<compile_context>
chip_gen: v5e
topology: v5e:2x2
jax: 0.10.0
libtpu: 0.0.40
codegen_flags: <defaults>
</compile_context>

<pallas_src>
import functools
import math

import jax
import jax.numpy as jnp
from jax import lax
from jax.experimental import pallas as pl
from jax.experimental.pallas import tpu as pltpu


def _round_up(n, m):
    return ((n + m - 1) // m) * m


def _pick_batch_tile(batch, batch_tile):
    """Largest batch tile <= batch_tile (multiple of 8) with <=10% pad waste."""
    batch_tile = max(8, _round_up(batch_tile, 8))
    if batch <= batch_tile:
        return _round_up(batch, 8)
    cands = sorted({c for c in ([batch_tile] + list(range(128, batch_tile + 1, 128))
                                + [64, 32, 16, 8]) if c <= batch_tile}, reverse=True)
    best, best_waste = cands[0], float("inf")
    for c in cands:
        waste = _round_up(batch, c) / batch
        if waste <= 1.10:
            return c
        if waste < best_waste:
            best, best_waste = c, waste
    return best


def _fourier_kan_kernel(x_ref, hseed_ref, hstep_ref, wc_ref, ws_ref, bias_ref,
                        o_ref, acc_ref, c_ref, s_ref, cj_ref, sj_ref, *,
                        n_blocks, block_k, outdim, compute_dtype):
    """One batch tile.

    x_ref:     (TB, I_pad)             f32  input rows
    hseed_ref: (I_pad, block_k)        f32  H[i, k*I_pad+i] = k+1  (k < J)
    hstep_ref: (I_pad, block_k)        f32  H[i, k*I_pad+i] = J
    wc_ref:    (n_blocks*block_k, Np)  compute_dtype  cos coeffs (harmonic-major)
    ws_ref:    (n_blocks*block_k, Np)  compute_dtype  sin coeffs (harmonic-major)
    bias_ref:  (1, outdim)             f32
    o_ref:     (TB, outdim)            f32
    acc/c/s/cj/sj: VMEM f32 scratch
    """
    xb = x_ref[...]                                          # (TB, I_pad) f32

    # Lane-dense phase matrices via tiny MXU matmuls (K = I_pad, no per-column
    # lane slicing / concat).  The phase stays in f32.
    arg1 = jnp.dot(xb, hseed_ref[...], preferred_element_type=jnp.float32)
    argj = jnp.dot(xb, hstep_ref[...], preferred_element_type=jnp.float32)

    # Direct transcendentals only for the seed block (harmonics 1..J) and the
    # block-step angle J*x; all higher harmonics come from the recurrence.
    c_ref[...] = jnp.cos(arg1)
    s_ref[...] = jnp.sin(arg1)
    cj_ref[...] = jnp.cos(argj)
    sj_ref[...] = jnp.sin(argj)

    acc_ref[...] = jnp.zeros_like(acc_ref)

    @pl.loop(0, n_blocks)
    def _(b):
        row0 = pl.multiple_of(b * block_k, block_k)
        cb = c_ref[...]
        sb = s_ref[...]
        acc_ref[...] += (
            jnp.dot(cb.astype(compute_dtype), wc_ref[pl.ds(row0, block_k), :],
                    preferred_element_type=jnp.float32)
            + jnp.dot(sb.astype(compute_dtype), ws_ref[pl.ds(row0, block_k), :],
                      preferred_element_type=jnp.float32))

        # Angle-addition recurrence: advance every column by J harmonics.
        # Pure full-width VPU FMAs (no EUP); skipped after the last block.
        @pl.when(b + 1 < n_blocks)
        def _():
            cj = cj_ref[...]
            sj = sj_ref[...]
            c_ref[...] = cb * cj - sb * sj
            s_ref[...] = sb * cj + cb * sj

    acc = acc_ref[...]
    o_ref[...] = (acc[:, :outdim] + bias_ref[...]).astype(o_ref.dtype)


def fourier_kan_forward(x, fouriercoeffs, bias=None, *,
                        batch_tile=256, compute_dtype=jnp.float32):
    """x: (..., inputdim) -> (..., outdim).  fouriercoeffs: (2, outdim, I, G)."""
    _, outdim, inputdim, gridsize = fouriercoeffs.shape
    lead_shape = x.shape[:-1]

    x2 = x.reshape(-1, inputdim).astype(jnp.float32)
    batch = x2.shape[0]

    # ---- static geometry --------------------------------------------------
    i_pad = _round_up(inputdim, 8)            # sublane-aligned input width
    j_harm = max(1, 128 // i_pad)             # harmonics per lane-dense block
    block_k = j_harm * i_pad                  # K per block matmul (multiple of 8)
    g_pad = _round_up(gridsize, j_harm)
    n_blocks = g_pad // j_harm
    k_total = n_blocks * block_k              # = g_pad * i_pad
    n_pad = _round_up(outdim, 128)            # lane-dense matmul N

    # ---- host-side operand prep --------------------------------------------
    # (x @ hseed)[:, k*I_pad+i] = (k+1)*x_i ; (x @ hstep)[:, k*I_pad+i] = J*x_i.
    p = jnp.arange(block_k)
    i_of_p = p % i_pad
    k_of_p = (p // i_pad).astype(jnp.float32)
    hseed = jnp.zeros((i_pad, block_k), jnp.float32).at[i_of_p, p].set(k_of_p + 1.0)
    hstep = jnp.zeros((i_pad, block_k), jnp.float32).at[i_of_p, p].set(float(j_harm))

    def prep(w):                              # (outdim, I, G) -> (k_total, n_pad)
        w = jnp.transpose(w.astype(jnp.float32), (2, 1, 0))        # (G, I, outdim)
        w = jnp.pad(w, ((0, g_pad - gridsize), (0, i_pad - inputdim),
                        (0, n_pad - outdim)))
        return w.reshape(k_total, n_pad).astype(compute_dtype)     # row = k*I_pad+i

    wc = prep(fouriercoeffs[0])
    ws = prep(fouriercoeffs[1])

    if bias is None:
        bias = jnp.zeros((1, outdim), jnp.float32)
    bias = bias.reshape(1, outdim).astype(jnp.float32)

    # ---- batch tiling -------------------------------------------------------
    tb = _pick_batch_tile(batch, batch_tile)
    batch_p = _round_up(batch, tb)
    x2 = jnp.pad(x2, ((0, batch_p - batch), (0, i_pad - inputdim)))
    grid = (batch_p // tb,)

    kernel = functools.partial(_fourier_kan_kernel, n_blocks=n_blocks,
                               block_k=block_k, outdim=outdim,
                               compute_dtype=compute_dtype)

    w_itemsize = jnp.dtype(compute_dtype).itemsize
    vmem_need = (2 * tb * i_pad * 4                  # x (double-buffered)
                 + 2 * i_pad * block_k * 4           # hseed + hstep (single)
                 + 2 * k_total * n_pad * w_itemsize  # wc + ws (single-buffered)
                 + n_pad * 4                         # bias
                 + 2 * tb * outdim * 4               # out (double-buffered)
                 + tb * n_pad * 4                    # acc scratch
                 + 4 * tb * block_k * 4)             # c, s, cj, sj scratch
    vmem_limit = int(min(64 * 2**20,
                         max(32 * 2**20, int(vmem_need * 1.5) + (4 << 20))))

    cost = pl.CostEstimate(
        flops=int(4 * batch_p * k_total * n_pad + 4 * batch_p * i_pad * block_k),
        transcendentals=int(4 * batch_p * block_k),
        bytes_accessed=int(batch_p * i_pad * 4 + 2 * i_pad * block_k * 4
                           + 2 * k_total * n_pad * w_itemsize
                           + outdim * 4 + batch_p * outdim * 4),
    )

    def const_spec(shape):
        # Grid-invariant operand: DMA'd once, single-buffered (saves VMEM).
        return pl.BlockSpec(shape, lambda i: (0,) * len(shape),
                            pipeline_mode=pl.Buffered(1))

    out = pl.pallas_call(
        kernel,
        out_shape=jax.ShapeDtypeStruct((batch_p, outdim), jnp.float32),
        grid_spec=pltpu.PrefetchScalarGridSpec(
            num_scalar_prefetch=0,
            grid=grid,
            in_specs=[
                pl.BlockSpec((tb, i_pad), lambda i: (i, 0)),   # x (batch-tiled)
                const_spec((i_pad, block_k)),                  # hseed
                const_spec((i_pad, block_k)),                  # hstep
                const_spec((k_total, n_pad)),                  # wc
                const_spec((k_total, n_pad)),                  # ws
                const_spec((1, outdim)),                       # bias
            ],
            out_specs=pl.BlockSpec((tb, outdim), lambda i: (i, 0)),
            scratch_shapes=[
                pltpu.VMEM((tb, n_pad), jnp.float32),    # acc
                pltpu.VMEM((tb, block_k), jnp.float32),  # cos block
                pltpu.VMEM((tb, block_k), jnp.float32),  # sin block
                pltpu.VMEM((tb, block_k), jnp.float32),  # cos(J*x)
                pltpu.VMEM((tb, block_k), jnp.float32),  # sin(J*x)
            ]),
        compiler_params=pltpu.CompilerParams(
            dimension_semantics=("parallel",),
            vmem_limit_bytes=vmem_limit),
        cost_estimate=cost,
    )(x2, hseed, hstep, wc, ws, bias)

    if batch_p != batch:
        out = out[:batch]
    return out.reshape(lead_shape + (outdim,))


def fourier_kan_reference(x, fouriercoeffs, bias):
    """Pure-JAX mirror of the PyTorch forward (for verification)."""
    _, outdim, inputdim, gridsize = fouriercoeffs.shape
    lead_shape = x.shape[:-1]
    x2 = x.reshape(-1, inputdim).astype(jnp.float32)
    k = jnp.arange(1, gridsize + 1, dtype=jnp.float32)[None, None, :]
    arg = x2[:, :, None] * k                               # (B, I, G)
    c, s = jnp.cos(arg), jnp.sin(arg)
    y = (jnp.einsum('bik,jik->bj', c, fouriercoeffs[0].astype(jnp.float32),
                    precision=lax.Precision.HIGHEST)
         + jnp.einsum('bik,jik->bj', s, fouriercoeffs[1].astype(jnp.float32),
                      precision=lax.Precision.HIGHEST))
    y = y + bias
    return y.reshape(lead_shape + (outdim,))


def _run_case(key, *, inputdim, outdim, gridsize, lead, batch_tile):
    k_coef, k_x = jax.random.split(key)
    # nn.Parameter(torch.randn(2, outdim, inputdim, gridsize) / (sqrt(I)*sqrt(G)))
    fouriercoeffs = (jax.random.normal(
        k_coef, (2, outdim, inputdim, gridsize), dtype=jnp.float32)
        / (math.sqrt(inputdim) * math.sqrt(gridsize)))
    bias = jnp.zeros((1, outdim), dtype=jnp.float32)
    x = jax.random.normal(k_x, lead + (inputdim,), dtype=jnp.float32)

    y = fourier_kan_forward(x, fouriercoeffs, bias, batch_tile=batch_tile)
    y = jax.block_until_ready(y)
    assert y.shape == lead + (outdim,)

    y_ref = fourier_kan_reference(x, fouriercoeffs, bias)
    err = float(jnp.max(jnp.abs(y - y_ref)))
    assert jnp.allclose(y, y_ref, atol=2e-3, rtol=2e-3), f"mismatch, max|err|={err}"


if __name__ == "__main__":
    key = jax.random.PRNGKey(0)
    k1, k2 = jax.random.split(key)

    # 512 flattened rows with a 128-row tile -> 4-step "parallel" grid
    # (pipelined; >=2 steps per TensorCore on v7x).  J=16 harmonics per
    # lane-dense block -> 3 recurrence blocks for gridsize=40.
    _run_case(k1, inputdim=8, outdim=16, gridsize=40, lead=(8, 64), batch_tile=128)

    # Exercises every padding path: inputdim 5 -> 8, gridsize 7 < J (zero-padded
    # harmonics, single block), outdim 130 (matmul N padded to 256, output
    # written at true width), ragged batch (111 rows -> one 112-row tile).
    _run_case(k2, inputdim=5, outdim=130, gridsize=7, lead=(3, 37), batch_tile=256)

    print("KERNEL_OK")
</pallas_src>

<mosaic_0001>
module attributes {stable_mosaic.version = 11 : i64} {
  func.func @_fourier_kan_kernel(%arg0: i32, %arg1: memref<128x8xf32, #tpu.memory_space<vmem>>, %arg2: memref<8x128xf32, #tpu.memory_space<vmem>>, %arg3: memref<8x128xf32, #tpu.memory_space<vmem>>, %arg4: memref<384x128xf32, #tpu.memory_space<vmem>>, %arg5: memref<384x128xf32, #tpu.memory_space<vmem>>, %arg6: memref<1x16xf32, #tpu.memory_space<vmem>>, %arg7: memref<128x16xf32, #tpu.memory_space<vmem>>, %arg8: memref<128x128xf32, #tpu.memory_space<vmem>>, %arg9: memref<128x128xf32, #tpu.memory_space<vmem>>, %arg10: memref<128x128xf32, #tpu.memory_space<vmem>>, %arg11: memref<128x128xf32, #tpu.memory_space<vmem>>, %arg12: memref<128x128xf32, #tpu.memory_space<vmem>>) attributes {dimension_semantics = [#tpu.dimension_semantics<parallel>], iteration_bounds = array<i64: 4>, scalar_prefetch = 0 : i64, scratch_operands = 5 : i64, tpu.core_type = #tpu.core_type<tc>, window_params = [{transform_indices = @transform_0, window_bounds = array<i64: 128, 8>}, {pipeline_mode = #tpu.pipeline_mode<synchronous>, transform_indices = @transform_1, window_bounds = array<i64: 8, 128>}, {pipeline_mode = #tpu.pipeline_mode<synchronous>, transform_indices = @transform_2, window_bounds = array<i64: 8, 128>}, {pipeline_mode = #tpu.pipeline_mode<synchronous>, transform_indices = @transform_3, window_bounds = array<i64: 384, 128>}, {pipeline_mode = #tpu.pipeline_mode<synchronous>, transform_indices = @transform_4, window_bounds = array<i64: 384, 128>}, {pipeline_mode = #tpu.pipeline_mode<synchronous>, transform_indices = @transform_5, window_bounds = array<i64: 1, 16>}, {transform_indices = @transform_6, window_bounds = array<i64: 128, 16>}]} {
    %c0 = arith.constant 0 : index
    %c0_0 = arith.constant 0 : index
    %0 = vector.load %arg1[%c0, %c0_0] : memref<128x8xf32, #tpu.memory_space<vmem>>, vector<128x8xf32>
    %c0_1 = arith.constant 0 : index
    %c0_2 = arith.constant 0 : index
    %1 = vector.load %arg2[%c0_1, %c0_2] : memref<8x128xf32, #tpu.memory_space<vmem>>, vector<8x128xf32>
    %cst = arith.constant dense<0.000000e+00> : vector<128x128xf32>
    %2 = tpu.matmul %0, %1, %cst {dimension_numbers = #tpu.dot_dimension_numbers<[1], [0], [0], [1], [0, 0, 1, 1], [], []>} : vector<128x8xf32>, vector<8x128xf32>, vector<128x128xf32> -> vector<128x128xf32>
    %c0_3 = arith.constant 0 : index
    %c0_4 = arith.constant 0 : index
    %3 = vector.load %arg3[%c0_3, %c0_4] : memref<8x128xf32, #tpu.memory_space<vmem>>, vector<8x128xf32>
    %cst_5 = arith.constant dense<0.000000e+00> : vector<128x128xf32>
    %4 = tpu.matmul %0, %3, %cst_5 {dimension_numbers = #tpu.dot_dimension_numbers<[1], [0], [0], [1], [0, 0, 1, 1], [], []>} : vector<128x8xf32>, vector<8x128xf32>, vector<128x128xf32> -> vector<128x128xf32>
    %5 = math.cos %2 : vector<128x128xf32>
    %c0_6 = arith.constant 0 : index
    %c0_7 = arith.constant 0 : index
    %6 = vector.load %arg9[%c0_6, %c0_7] : memref<128x128xf32, #tpu.memory_space<vmem>>, vector<128x128xf32>
    tpu.vector_store %arg9[%c0_6, %c0_7], %5 {strides = array<i32>} : memref<128x128xf32, #tpu.memory_space<vmem>>, vector<128x128xf32>,
    %7 = math.sin %2 : vector<128x128xf32>
    %c0_8 = arith.constant 0 : index
    %c0_9 = arith.constant 0 : index
    %8 = vector.load %arg10[%c0_8, %c0_9] : memref<128x128xf32, #tpu.memory_space<vmem>>, vector<128x128xf32>
    tpu.vector_store %arg10[%c0_8, %c0_9], %7 {strides = array<i32>} : memref<128x128xf32, #tpu.memory_space<vmem>>, vector<128x128xf32>,
    %9 = math.cos %4 : vector<128x128xf32>
    %c0_10 = arith.constant 0 : index
    %c0_11 = arith.constant 0 : index
    %10 = vector.load %arg11[%c0_10, %c0_11] : memref<128x128xf32, #tpu.memory_space<vmem>>, vector<128x128xf32>
    tpu.vector_store %arg11[%c0_10, %c0_11], %9 {strides = array<i32>} : memref<128x128xf32, #tpu.memory_space<vmem>>, vector<128x128xf32>,
    %11 = math.sin %4 : vector<128x128xf32>
    %c0_12 = arith.constant 0 : index
    %c0_13 = arith.constant 0 : index
    %12 = vector.load %arg12[%c0_12, %c0_13] : memref<128x128xf32, #tpu.memory_space<vmem>>, vector<128x128xf32>
    tpu.vector_store %arg12[%c0_12, %c0_13], %11 {strides = array<i32>} : memref<128x128xf32, #tpu.memory_space<vmem>>, vector<128x128xf32>,
    %cst_14 = arith.constant 0.000000e+00 : f32
    %13 = vector.broadcast %cst_14 : f32 to vector<128x128xf32>
    %c0_15 = arith.constant 0 : index
    %c0_16 = arith.constant 0 : index
    %14 = vector.load %arg8[%c0_15, %c0_16] : memref<128x128xf32, #tpu.memory_space<vmem>>, vector<128x128xf32>
    tpu.vector_store %arg8[%c0_15, %c0_16], %13 {strides = array<i32>} : memref<128x128xf32, #tpu.memory_space<vmem>>, vector<128x128xf32>,
    %c0_i32 = arith.constant 0 : i32
    %c3_i32 = arith.constant 3 : i32
    %15 = arith.addi %c0_i32, %c3_i32 : i32
    %c1_i32 = arith.constant 1 : i32
    scf.for %arg13 = %c0_i32 to %15 step %c1_i32  : i32 {
      %c1_i32_24 = arith.constant 1 : i32
      %22 = arith.muli %arg13, %c1_i32_24 : i32
      %c0_i32_25 = arith.constant 0 : i32
      %23 = arith.addi %c0_i32_25, %22 : i32
      %c128_i32 = arith.constant 128 : i32
      %24 = arith.muli %23, %c128_i32 : i32
      %25 = tpu.assume_multiple %24, 128 : i32
      %c0_26 = arith.constant 0 : index
      %c0_27 = arith.constant 0 : index
      %26 = vector.load %arg9[%c0_26, %c0_27] : memref<128x128xf32, #tpu.memory_space<vmem>>, vector<128x128xf32>
      %c0_28 = arith.constant 0 : index
      %c0_29 = arith.constant 0 : index
      %27 = vector.load %arg10[%c0_28, %c0_29] : memref<128x128xf32, #tpu.memory_space<vmem>>, vector<128x128xf32>
      %c0_30 = arith.constant 0 : index
      %c0_31 = arith.constant 0 : index
      %28 = vector.load %arg8[%c0_30, %c0_31] : memref<128x128xf32, #tpu.memory_space<vmem>>, vector<128x128xf32>
      %29 = arith.index_cast %25 : i32 to index
      %c0_32 = arith.constant 0 : index
      %30 = vector.load %arg4[%29, %c0_32] : memref<384x128xf32, #tpu.memory_space<vmem>>, vector<128x128xf32>
      %cst_33 = arith.constant dense<0.000000e+00> : vector<128x128xf32>
      %31 = tpu.matmul %26, %30, %cst_33 {dimension_numbers = #tpu.dot_dimension_numbers<[1], [0], [0], [1], [0, 0, 1, 1], [], []>} : vector<128x128xf32>, vector<128x128xf32>, vector<128x128xf32> -> vector<128x128xf32>
      %32 = arith.index_cast %25 : i32 to index
      %c0_34 = arith.constant 0 : index
      %33 = vector.load %arg5[%32, %c0_34] : memref<384x128xf32, #tpu.memory_space<vmem>>, vector<128x128xf32>
      %cst_35 = arith.constant dense<0.000000e+00> : vector<128x128xf32>
      %34 = tpu.matmul %27, %33, %cst_35 {dimension_numbers = #tpu.dot_dimension_numbers<[1], [0], [0], [1], [0, 0, 1, 1], [], []>} : vector<128x128xf32>, vector<128x128xf32>, vector<128x128xf32> -> vector<128x128xf32>
      %35 = arith.addf %31, %34 : vector<128x128xf32>
      %36 = arith.addf %28, %35 : vector<128x128xf32>
      %c0_36 = arith.constant 0 : index
      %c0_37 = arith.constant 0 : index
      %37 = vector.load %arg8[%c0_36, %c0_37] : memref<128x128xf32, #tpu.memory_space<vmem>>, vector<128x128xf32>
      tpu.vector_store %arg8[%c0_36, %c0_37], %36 {strides = array<i32>} : memref<128x128xf32, #tpu.memory_space<vmem>>, vector<128x128xf32>,
      %c1_i32_38 = arith.constant 1 : i32
      %38 = arith.addi %23, %c1_i32_38 : i32
      %c3_i32_39 = arith.constant 3 : i32
      %39 = arith.cmpi slt, %38, %c3_i32_39 : i32
      %40 = arith.extui %39 : i1 to i32
      %c0_i32_40 = arith.constant 0 : i32
      %41 = arith.cmpi ne, %40, %c0_i32_40 : i32
      scf.if %41 {
        %c0_41 = arith.constant 0 : index
        %c0_42 = arith.constant 0 : index
        %42 = vector.load %arg11[%c0_41, %c0_42] : memref<128x128xf32, #tpu.memory_space<vmem>>, vector<128x128xf32>
        %c0_43 = arith.constant 0 : index
        %c0_44 = arith.constant 0 : index
        %43 = vector.load %arg12[%c0_43, %c0_44] : memref<128x128xf32, #tpu.memory_space<vmem>>, vector<128x128xf32>
        %44 = arith.mulf %26, %42 : vector<128x128xf32>
        %45 = arith.mulf %27, %43 : vector<128x128xf32>
        %46 = arith.subf %44, %45 : vector<128x128xf32>
        %c0_45 = arith.constant 0 : index
        %c0_46 = arith.constant 0 : index
        %47 = vector.load %arg9[%c0_45, %c0_46] : memref<128x128xf32, #tpu.memory_space<vmem>>, vector<128x128xf32>
        tpu.vector_store %arg9[%c0_45, %c0_46], %46 {strides = array<i32>} : memref<128x128xf32, #tpu.memory_space<vmem>>, vector<128x128xf32>,
        %48 = arith.mulf %27, %42 : vector<128x128xf32>
        %49 = arith.mulf %26, %43 : vector<128x128xf32>
        %50 = arith.addf %48, %49 : vector<128x128xf32>
        %c0_47 = arith.constant 0 : index
        %c0_48 = arith.constant 0 : index
        %51 = vector.load %arg10[%c0_47, %c0_48] : memref<128x128xf32, #tpu.memory_space<vmem>>, vector<128x128xf32>
        tpu.vector_store %arg10[%c0_47, %c0_48], %50 {strides = array<i32>} : memref<128x128xf32, #tpu.memory_space<vmem>>, vector<128x128xf32>,
      } else {
      }
    }
    %c3_i32_17 = arith.constant 3 : i32
    %c0_18 = arith.constant 0 : index
    %c0_19 = arith.constant 0 : index
    %16 = vector.load %arg8[%c0_18, %c0_19] : memref<128x128xf32, #tpu.memory_space<vmem>>, vector<128x128xf32>
    %17 = vector.extract_strided_slice %16 {offsets = [0, 0], sizes = [128, 16], strides = [1, 1]} : vector<128x128xf32> to vector<128x16xf32>
    %c0_20 = arith.constant 0 : index
    %c0_21 = arith.constant 0 : index
    %18 = vector.load %arg6[%c0_20, %c0_21] : memref<1x16xf32, #tpu.memory_space<vmem>>, vector<1x16xf32>
    %19 = vector.broadcast %18 : vector<1x16xf32> to vector<128x16xf32>
    %20 = arith.addf %17, %19 : vector<128x16xf32>
    %c0_22 = arith.constant 0 : index
    %c0_23 = arith.constant 0 : index
    %21 = vector.load %arg7[%c0_22, %c0_23] : memref<128x16xf32, #tpu.memory_space<vmem>>, vector<128x16xf32>
    tpu.vector_store %arg7[%c0_22, %c0_23], %20 {strides = array<i32>} : memref<128x16xf32, #tpu.memory_space<vmem>>, vector<128x16xf32>,
    return
  }
  func.func @transform_0(%arg0: i32) -> (i32, i32) {
    %c0_i32 = arith.constant 0 : i32
    %c0_i32_0 = arith.constant 0 : i32
    return %arg0, %c0_i32 : i32, i32
  }
  func.func @transform_1(%arg0: i32) -> (i32, i32) {
    %c0_i32 = arith.constant 0 : i32
    %c0_i32_0 = arith.constant 0 : i32
    %c0_i32_1 = arith.constant 0 : i32
    return %c0_i32, %c0_i32_0 : i32, i32
  }
  func.func @transform_2(%arg0: i32) -> (i32, i32) {
    %c0_i32 = arith.constant 0 : i32
    %c0_i32_0 = arith.constant 0 : i32
    %c0_i32_1 = arith.constant 0 : i32
    return %c0_i32, %c0_i32_0 : i32, i32
  }
  func.func @transform_3(%arg0: i32) -> (i32, i32) {
    %c0_i32 = arith.constant 0 : i32
    %c0_i32_0 = arith.constant 0 : i32
    %c0_i32_1 = arith.constant 0 : i32
    return %c0_i32, %c0_i32_0 : i32, i32
  }
  func.func @transform_4(%arg0: i32) -> (i32, i32) {
    %c0_i32 = arith.constant 0 : i32
    %c0_i32_0 = arith.constant 0 : i32
    %c0_i32_1 = arith.constant 0 : i32
    return %c0_i32, %c0_i32_0 : i32, i32
  }
  func.func @transform_5(%arg0: i32) -> (i32, i32) {
    %c0_i32 = arith.constant 0 : i32
    %c0_i32_0 = arith.constant 0 : i32
    %c0_i32_1 = arith.constant 0 : i32
    return %c0_i32, %c0_i32_0 : i32, i32
  }
  func.func @transform_6(%arg0: i32) -> (i32, i32) {
    %c0_i32 = arith.constant 0 : i32
    %c0_i32_0 = arith.constant 0 : i32
    return %arg0, %c0_i32 : i32, i32
  }
}

</mosaic_0001>

<llo_original>
// kernel: tpu_custom_call.1
$region0: #{tpu_custom_call.1}
  #allocation0 [shape = 'u32[]', space=smem, size = 0x4, offset = 0x4, fixed_abs, tag = 'smem constant byte address 0x4 - core index']
  #allocation1 [shape = 'u32[72,128]{1,0:T(1,128)}', space=vmem, size = 0x9000, scoped, tag = 'internal scratch']
  #allocation2 [shape = 'f32[128,128]{1,0:T(8,128)}', space=vmem, size = 0x10000, scoped, tag = 'scratch operand']
  #allocation3 [shape = 'f32[128,128]{1,0:T(8,128)}', space=vmem, size = 0x10000, scoped, tag = 'scratch operand']
  #allocation4 [shape = 'f32[128,128]{1,0:T(8,128)}', space=vmem, size = 0x10000, scoped, tag = 'scratch operand']
  #allocation5 [shape = 'f32[128,128]{1,0:T(8,128)}', space=vmem, size = 0x10000, scoped, tag = 'scratch operand']
  #allocation6 [shape = 'f32[128,128]{1,0:T(8,128)}', space=vmem, size = 0x10000, scoped, tag = 'scratch operand']
  %s0 = inlined_call_operand.vmem [shape: f32[512,8], index: 0, kind: input, shape index: {}]
  %s1 = inlined_call_operand.vmem [shape: f32[8,128], index: 1, kind: input, shape index: {}]
  %s2 = inlined_call_operand.vmem [shape: f32[8,128], index: 2, kind: input, shape index: {}]
  %s3 = inlined_call_operand.vmem [shape: f32[384,128], index: 3, kind: input, shape index: {}]
  %s4 = inlined_call_operand.hbm [shape: f32[384,128], index: 4, kind: input, shape index: {}]
  %s5 = inlined_call_operand.vmem [shape: f32[1,16], index: 5, kind: input, shape index: {}]
  %s6 = inlined_call_operand.vmem [shape: f32[512,16], index: 6, kind: output, shape index: {}]
  %s7 = sld [smem:[#allocation0]]
  $region72: #{tpu_custom_call.1} parent=0
    _
  %s9 = ssub.s32 1, %s7
  %s10 = scalar_select 0, %s9, %s7
  $region1: #{tpu_custom_call.1} parent=0
    #allocation7 [shape = 'u8[196608]{0}', space=vmem, size = 0x30000, scoped, tag = 'input window, operand 4, single buffered']
    #allocation8 [shape = 's32[2]{0}', space=sflag, size = 0x8, scoped, tag = 'scoped memory for tpu_custom_call.1']
    %11 = vsyncpa [#allocation8], 0
    loop: start=0, step=1, limit=6
    $region2: #{tpu_custom_call.1} parent=1 // loop_pre_header
      _
    $region3: #{tpu_custom_call.1} parent=1 // loop_header
      %s13 = sphi 0, %s17
      %p14 = scmp.ge.s32.totalorder %s13, 6
      %s23 = sphi 0, %s25
      %s26 = sphi 0, %s23
      %s27 = sphi 0, %s26
      %s43 = sphi 0, %s27
      %s47 = sphi 0, %s47
      %s49 = sphi 0, %s47
      %s50 = sphi 0, %s49
      %s64 = sphi 0, %s50
      %s68 = sphi 0, %s68
      %s70 = sphi 0, %s68
      %s71 = sphi 0, %s70
      %s85 = sphi 0, %s71
      %s89 = sphi 0, %s89
      %s91 = sphi 0, %s89
      %s92 = sphi 0, %s91
      %s106 = sphi 0, %s92
      %s110 = sphi 0, %s110
      %s112 = sphi 0, %s110
      %s113 = sphi 0, %s112
      %s127 = sphi 0, %s113
      %s131 = sphi 0, %s131
      %s133 = sphi 0, %s131
      %s134 = sphi 0, %s133
      %s148 = sphi 0, %s134
      %s154 = sphi 0, %s156
      %s157 = sphi 0, %s154
      %s158 = sphi 0, %s157
      %s174 = sphi 0, %s158
    $region4: #{tpu_custom_call.1} parent=1 // loop_header_branch
      %16 = sbr.rel (%p14) target = $region8
    $region5: #{tpu_custom_call.1} parent=1 // loop_body
      %s18 = ssub.s32 %s13, 1
      %s19 = ssub.s32 %s13, 2
      %s20 = sadd.s32 %s13, 1
      %s21 = ssub.s32 %s13, %s20
      %p22 = scmp.eq.s32.totalorder %s21, 0
      %s24 = sadd.s32 %s23, 1
      %s25 = scalar_select %p22, %s23, %s24
      %p28 = pneg %p22
      %p29 = scmp.eq.s32.totalorder %s13, 3
      %p30 = por %p28, %p29
      %p31 = scmp.ne.s32.totalorder %s23, %s26
      %p32 = scmp.eq.s32.totalorder %s13, 0
      %p33 = por %p31, %p32
      %p34 = scmp.ne.s32.totalorder %s23, %s26
      %p35 = scmp.eq.s32.totalorder %s18, 3
      %p36 = por %p34, %p35
      %p37 = scmp.ne.s32.totalorder %s26, %s27
      %p38 = scmp.eq.s32.totalorder %s18, 0
      %p39 = por %p37, %p38
      %p40 = scmp.ne.s32.totalorder %s26, %s27
      %p41 = scmp.eq.s32.totalorder %s19, 3
      %p42 = por %p40, %p41
      %p44 = scmp.ne.s32.totalorder %s27, %s43
      %p45 = scmp.eq.s32.totalorder %s19, 0
      %p46 = por %p44, %p45
      %s48 = sadd.s32 %s47, 1
      %p51 = scmp.eq.s32.totalorder %s13, 3
      %p52 = scmp.ne.s32.totalorder %s47, %s49
      %p53 = scmp.eq.s32.totalorder %s13, 0
      %p54 = por %p52, %p53
      %p55 = scmp.ne.s32.totalorder %s47, %s49
      %p56 = scmp.eq.s32.totalorder %s18, 3
      %p57 = por %p55, %p56
      %p58 = scmp.ne.s32.totalorder %s49, %s50
      %p59 = scmp.eq.s32.totalorder %s18, 0
      %p60 = por %p58, %p59
      %p61 = scmp.ne.s32.totalorder %s49, %s50
      %p62 = scmp.eq.s32.totalorder %s19, 3
      %p63 = por %p61, %p62
      %p65 = scmp.ne.s32.totalorder %s50, %s64
      %p66 = scmp.eq.s32.totalorder %s19, 0
      %p67 = por %p65, %p66
      %s69 = sadd.s32 %s68, 1
      %p72 = scmp.eq.s32.totalorder %s13, 3
      %p73 = scmp.ne.s32.totalorder %s68, %s70
      %p74 = scmp.eq.s32.totalorder %s13, 0
      %p75 = por %p73, %p74
      %p76 = scmp.ne.s32.totalorder %s68, %s70
      %p77 = scmp.eq.s32.totalorder %s18, 3
      %p78 = por %p76, %p77
      %p79 = scmp.ne.s32.totalorder %s70, %s71
      %p80 = scmp.eq.s32.totalorder %s18, 0
      %p81 = por %p79, %p80
      %p82 = scmp.ne.s32.totalorder %s70, %s71
      %p83 = scmp.eq.s32.totalorder %s19, 3
      %p84 = por %p82, %p83
      %p86 = scmp.ne.s32.totalorder %s71, %s85
      %p87 = scmp.eq.s32.totalorder %s19, 0
      %p88 = por %p86, %p87
      %s90 = sadd.s32 %s89, 1
      %p93 = scmp.eq.s32.totalorder %s13, 3
      %p94 = scmp.ne.s32.totalorder %s89, %s91
      %p95 = scmp.eq.s32.totalorder %s13, 0
      %p96 = por %p94, %p95
      %p97 = scmp.ne.s32.totalorder %s89, %s91
      %p98 = scmp.eq.s32.totalorder %s18, 3
      %p99 = por %p97, %p98
      %p100 = scmp.ne.s32.totalorder %s91, %s92
      %p101 = scmp.eq.s32.totalorder %s18, 0
      %p102 = por %p100, %p101
      %p103 = scmp.ne.s32.totalorder %s91, %s92
      %p104 = scmp.eq.s32.totalorder %s19, 3
      %p105 = por %p103, %p104
      %p107 = scmp.ne.s32.totalorder %s92, %s106
      %p108 = scmp.eq.s32.totalorder %s19, 0
      %p109 = por %p107, %p108
      %s111 = sadd.s32 %s110, 1
      %p114 = scmp.eq.s32.totalorder %s13, 3
      %p115 = scmp.ne.s32.totalorder %s110, %s112
      %p116 = scmp.eq.s32.totalorder %s13, 0
      %p117 = por %p115, %p116
      %p118 = scmp.ne.s32.totalorder %s110, %s112
      %p119 = scmp.eq.s32.totalorder %s18, 3
      %p120 = por %p118, %p119
      %p121 = scmp.ne.s32.totalorder %s112, %s113
      %p122 = scmp.eq.s32.totalorder %s18, 0
      %p123 = por %p121, %p122
      %p124 = scmp.ne.s32.totalorder %s112, %s113
      %p125 = scmp.eq.s32.totalorder %s19, 3
      %p126 = por %p124, %p125
      %p128 = scmp.ne.s32.totalorder %s113, %s127
      %p129 = scmp.eq.s32.totalorder %s19, 0
      %p130 = por %p128, %p129
      %s132 = sadd.s32 %s131, 1
      %p135 = scmp.eq.s32.totalorder %s13, 3
      %p136 = scmp.ne.s32.totalorder %s131, %s133
      %p137 = scmp.eq.s32.totalorder %s13, 0
      %p138 = por %p136, %p137
      %p139 = scmp.ne.s32.totalorder %s131, %s133
      %p140 = scmp.eq.s32.totalorder %s18, 3
      %p141 = por %p139, %p140
      %p142 = scmp.ne.s32.totalorder %s133, %s134
      %p143 = scmp.eq.s32.totalorder %s18, 0
      %p144 = por %p142, %p143
      %p145 = scmp.ne.s32.totalorder %s133, %s134
      %p146 = scmp.eq.s32.totalorder %s19, 3
      %p147 = por %p145, %p146
      %p149 = scmp.ne.s32.totalorder %s134, %s148
      %p150 = scmp.eq.s32.totalorder %s19, 0
      %p151 = por %p149, %p150
      %s152 = ssub.s32 %s13, %s20
      %p153 = scmp.eq.s32.totalorder %s152, 0
      %s155 = sadd.s32 %s154, 1
      %s156 = scalar_select %p153, %s154, %s155
      %p159 = pneg %p153
      %p160 = scmp.eq.s32.totalorder %s13, 3
      %p161 = por %p159, %p160
      %p162 = scmp.ne.s32.totalorder %s154, %s157
      %p163 = scmp.eq.s32.totalorder %s13, 0
      %p164 = por %p162, %p163
      %p165 = scmp.ne.s32.totalorder %s154, %s157
      %p166 = scmp.eq.s32.totalorder %s18, 3
      %p167 = por %p165, %p166
      %p168 = scmp.ne.s32.totalorder %s157, %s158
      %p169 = scmp.eq.s32.totalorder %s18, 0
      %p170 = por %p168, %p169
      %p171 = scmp.ne.s32.totalorder %s157, %s158
      %p172 = scmp.eq.s32.totalorder %s19, 3
      %p173 = por %p171, %p172
      %p175 = scmp.ne.s32.totalorder %s158, %s174
      %p176 = scmp.eq.s32.totalorder %s19, 0
      %p177 = por %p175, %p176
      %p178 = scmp.le.s32.totalorder 1, %s13
      %p179 = scmp.lt.s32.totalorder %s13, 5
      %p180 = pnand %p178, %p179
      %p181 = pneg %p180
      // Predicated region
      $region9: #{tpu_custom_call.1} parent=5 // pred_check
        _
      $region10: #{tpu_custom_call.1} parent=5 // pred_check_branch
        %183 = sbr.rel (%p180) target = $region12
      $region11: #{tpu_custom_call.1} parent=5 // pred_region
        %s184 = ssub.s32 %s13, 1
        // Predicated region
        $region13: #{tpu_custom_call.1} parent=11 // pred_check
          %p185 = pneg %p60
        $region14: #{tpu_custom_call.1} parent=11 // pred_check_branch
          %187 = sbr.rel (%p185) target = $region16
        $region15: #{tpu_custom_call.1} parent=11 // pred_region
          _
        $region16: #{tpu_custom_call.1} parent=11 // pred_fallthru
          _
        // Predicated region
        $region17: #{tpu_custom_call.1} parent=11 // pred_check
          %p188 = pneg %p81
        $region18: #{tpu_custom_call.1} parent=11 // pred_check_branch
          %190 = sbr.rel (%p188) target = $region20
        $region19: #{tpu_custom_call.1} parent=11 // pred_region
          _
        $region20: #{tpu_custom_call.1} parent=11 // pred_fallthru
          _
        // Predicated region
        $region21: #{tpu_custom_call.1} parent=11 // pred_check
          %p191 = pneg %p102
        $region22: #{tpu_custom_call.1} parent=11 // pred_check_branch
          %193 = sbr.rel (%p191) target = $region24
        $region23: #{tpu_custom_call.1} parent=11 // pred_region
          _
        $region24: #{tpu_custom_call.1} parent=11 // pred_fallthru
          _
        // Predicated region
        $region25: #{tpu_custom_call.1} parent=11 // pred_check
          %p194 = pneg %p123
        $region26: #{tpu_custom_call.1} parent=11 // pred_check_branch
          %196 = sbr.rel (%p194) target = $region28
        $region27: #{tpu_custom_call.1} parent=11 // pred_region
          %198 = vsyncadd [#allocation8], 0
          %s199 = sshll.u32 %s4, 4
          %s200 = int_to_ptr.hbm [resolvable:$true] %s199
          %s201 = sshll.u32 [#allocation7], 4
          %s202 = int_to_ptr.vmem [resolvable:$true] %s201
          %207 = dma.hbm_to_vmem [thread:$0]  %s200, 6144, %s202, [#allocation8], 128, 128, 8
        $region28: #{tpu_custom_call.1} parent=11 // pred_fallthru
          _
        // Predicated region
        $region29: #{tpu_custom_call.1} parent=11 // pred_check
          %p208 = pneg %p144
        $region30: #{tpu_custom_call.1} parent=11 // pred_check_branch
          %210 = sbr.rel (%p208) target = $region32
        $region31: #{tpu_custom_call.1} parent=11 // pred_region
          _
        $region32: #{tpu_custom_call.1} parent=11 // pred_fallthru
          _
      $region12: #{tpu_custom_call.1} parent=5 // pred_fallthru
        _
      %p211 = scmp.lt.s32.totalorder %s13, 4
      // Predicated region
      $region33: #{tpu_custom_call.1} parent=5 // pred_check
        %p212 = pneg %p211
      $region34: #{tpu_custom_call.1} parent=5 // pred_check_branch
        %214 = sbr.rel (%p212) target = $region36
      $region35: #{tpu_custom_call.1} parent=5 // pred_region
        // Predicated region
        $region37: #{tpu_custom_call.1} parent=35 // pred_check
          %p215 = pneg %p33
        $region38: #{tpu_custom_call.1} parent=35 // pred_check_branch
          %217 = sbr.rel (%p215) target = $region40
        $region39: #{tpu_custom_call.1} parent=35 // pred_region
          %s218 = smul.u32 16, %s13
          %p219 = scmp.lt.s32.totalorder %s218, 63
          %s220 = scalar_select %p219, %s218, 63
          %s221 = smul.addr %s220, 8
          %s222 = scalar_lea.vmem %s0, %s221
          %s223 = smul.u32 16, %s13
        $region40: #{tpu_custom_call.1} parent=35 // pred_fallthru
          _
      $region36: #{tpu_custom_call.1} parent=5 // pred_fallthru
        _
      %p224 = scmp.le.s32.totalorder 1, %s13
      %p225 = scmp.lt.s32.totalorder %s13, 5
      %p226 = pnand %p224, %p225
      %p227 = pneg %p226
      // Predicated region
      $region41: #{tpu_custom_call.1} parent=5 // pred_check
        _
      $region42: #{tpu_custom_call.1} parent=5 // pred_check_branch
        %229 = sbr.rel (%p226) target = $region44
      $region43: #{tpu_custom_call.1} parent=5 // pred_region
        %s230 = ssub.s32 %s13, 1
        // Predicated region
        $region45: #{tpu_custom_call.1} parent=43 // pred_check
          %p231 = pneg %p123
        $region46: #{tpu_custom_call.1} parent=43 // pred_check_branch
          %233 = sbr.rel (%p231) target = $region48
        $region47: #{tpu_custom_call.1} parent=43 // pred_region
          %235 = dma.done [#allocation8], 6144
        $region48: #{tpu_custom_call.1} parent=43 // pred_fallthru
          _
        %s236 = smul.u32 16, %s18
        %p237 = scmp.lt.s32.totalorder %s236, 63
        %s238 = scalar_select %p237, %s236, 63
        %s239 = smul.addr %s238, 8
        %s240 = scalar_lea.vmem %s0, %s239
        %p241 = pneg %p39
        %p242 = pneg %p36
        %p243 = pneg %p60
        %p244 = pneg %p57
        %p245 = pneg %p81
        %p246 = pneg %p78
        %p247 = pneg %p102
        %p248 = pneg %p99
        %p249 = pneg %p123
        %p250 = pneg %p120
        %p251 = pneg %p144
        %p252 = pneg %p141
        %p253 = pneg %p170
        %p254 = pneg %p167
        %s255 = smul.u32 16, %s18
        %p256 = scmp.lt.s32.totalorder %s255, 63
        %s257 = scalar_select %p256, %s255, 63
        %s258 = smul.addr %s257, 8
        %s259 = scalar_lea.vmem %s6, %s258
        %s260 = smul.u32 16, %s18
        %p261 = scmp.lt.s32.totalorder %s260, 63
        %s262 = scalar_select %p261, %s260, 63
        %s263 = smul.addr %s262, 8
        %s264 = scalar_lea.vmem %s0, %s263
        %s265 = smul.u32 16, %s18
        %s266 = smul.u32 16, %s18
        %p267 = scmp.lt.s32.totalorder %s266, 63
        %s268 = scalar_select %p267, %s266, 63
        %s269 = smul.addr %s268, 8
        %s270 = scalar_lea.vmem %s6, %s269
        %s271 = smul.u32 16, %s18
        %v272 = vld [vmem:[%s264] sm:$0xff]
        %v273 = vld [vmem:[%s264 + $0x8] sm:$0xff]
        %v274 = vld [vmem:[%s264 + $0x10] sm:$0xff]
        %v275 = vld [vmem:[%s264 + $0x18] sm:$0xff]
        %v276 = vld [vmem:[%s264 + $0x20] sm:$0xff]
        %v277 = vld [vmem:[%s264 + $0x28] sm:$0xff]
        %v278 = vld [vmem:[%s264 + $0x30] sm:$0xff]
        %v279 = vld [vmem:[%s264 + $0x38] sm:$0xff]
        %v280 = vld [vmem:[%s264 + $0x40] sm:$0xff]
        %v281 = vld [vmem:[%s264 + $0x48] sm:$0xff]
        %v282 = vld [vmem:[%s264 + $0x50] sm:$0xff]
        %v283 = vld [vmem:[%s264 + $0x58] sm:$0xff]
        %v284 = vld [vmem:[%s264 + $0x60] sm:$0xff]
        %v285 = vld [vmem:[%s264 + $0x68] sm:$0xff]
        %v286 = vld [vmem:[%s264 + $0x70] sm:$0xff]
        %v287 = vld [vmem:[%s264 + $0x78] sm:$0xff]
        %v288 = vld [vmem:[%s1] sm:$0xff]
        %vm289 = vcmask 64512
        %v291 = vsel %vm289, %v272, 0
        %v294 = vsel %vm289, %v273, 0
        %v297 = vsel %vm289, %v274, 0
        %v300 = vsel %vm289, %v275, 0
        %v303 = vsel %vm289, %v276, 0
        %v306 = vsel %vm289, %v277, 0
        %v309 = vsel %vm289, %v278, 0
        %v312 = vsel %vm289, %v279, 0
        %v315 = vsel %vm289, %v280, 0
        %v318 = vsel %vm289, %v281, 0
        %v321 = vsel %vm289, %v282, 0
        %v324 = vsel %vm289, %v283, 0
        %v327 = vsel %vm289, %v284, 0
        %v330 = vsel %vm289, %v285, 0
        %v333 = vsel %vm289, %v286, 0
        %v336 = vsel %vm289, %v287, 0
        %338 = vmatpush.msra.mxu0 0.0
        %339 = vmatpush.msra.mxu0 0.0
        %340 = vmatpush.msra.mxu0 0.0
        %341 = vmatpush.msra.mxu0 0.0
        %342 = vmatpush.msra.mxu0 0.0
        %343 = vmatpush.msra.mxu0 0.0
        %344 = vmatpush.msra.mxu0 0.0
        %345 = vmatpush.msra.mxu0 0.0
        %346 = vmatpush.msra.mxu0 0.0
        %347 = vmatpush.msra.mxu0 0.0
        %348 = vmatpush.msra.mxu0 0.0
        %349 = vmatpush.msra.mxu0 0.0
        %350 = vmatpush.msra.mxu0 0.0
        %351 = vmatpush.msra.mxu0 0.0
        %352 = vmatpush.msra.mxu0 0.0
        %353 = vmatpush.msra.mxu0 %v288
        %354 = vmatmul.f32.gmra.mxu0 %v291
        %v355 = vpop.f32.mrf.mxu0
        %v356 = vadd.f32 0.0, %v355
        %357 = vmatmul.f32.gmra.mxu0 %v294
        %v358 = vpop.f32.mrf.mxu0
        %v359 = vadd.f32 0.0, %v358
        %360 = vmatmul.f32.gmra.mxu0 %v297
        %v361 = vpop.f32.mrf.mxu0
        %v362 = vadd.f32 0.0, %v361
        %363 = vmatmul.f32.gmra.mxu0 %v300
        %v364 = vpop.f32.mrf.mxu0
        %v365 = vadd.f32 0.0, %v364
        %366 = vmatmul.f32.gmra.mxu0 %v303
        %v367 = vpop.f32.mrf.mxu0
        %v368 = vadd.f32 0.0, %v367
        %369 = vmatmul.f32.gmra.mxu0 %v306
        %v370 = vpop.f32.mrf.mxu0
        %v371 = vadd.f32 0.0, %v370
        %372 = vmatmul.f32.gmra.mxu0 %v309
        %v373 = vpop.f32.mrf.mxu0
        %v374 = vadd.f32 0.0, %v373
        %375 = vmatmul.f32.gmra.mxu0 %v312
        %v376 = vpop.f32.mrf.mxu0
        %v377 = vadd.f32 0.0, %v376
        %378 = vmatmul.f32.gmra.mxu0 %v315
        %v379 = vpop.f32.mrf.mxu0
        %v380 = vadd.f32 0.0, %v379
        %381 = vmatmul.f32.gmra.mxu0 %v318
        %v382 = vpop.f32.mrf.mxu0
        %v383 = vadd.f32 0.0, %v382
        %384 = vmatmul.f32.gmra.mxu0 %v321
        %v385 = vpop.f32.mrf.mxu0
        %v386 = vadd.f32 0.0, %v385
        %387 = vmatmul.f32.gmra.mxu0 %v324
        %v388 = vpop.f32.mrf.mxu0
        %v389 = vadd.f32 0.0, %v388
        %390 = vmatmul.f32.gmra.mxu0 %v327
        %v391 = vpop.f32.mrf.mxu0
        %v392 = vadd.f32 0.0, %v391
        %393 = vmatmul.f32.gmra.mxu0 %v330
        %v394 = vpop.f32.mrf.mxu0
        %v395 = vadd.f32 0.0, %v394
        %396 = vmatmul.f32.gmra.mxu0 %v333
        %v397 = vpop.f32.mrf.mxu0
        %v398 = vadd.f32 0.0, %v397
        %399 = vmatmul.f32.gmra.mxu0 %v336
        %v400 = vpop.f32.mrf.mxu0
        %v401 = vadd.f32 0.0, %v400
        %402 = vdwg.mxu0
        %v403 = vld [vmem:[%s2] sm:$0xff]
        %404 = vmatpush.msra.mxu0 0.0
        %405 = vmatpush.msra.mxu0 0.0
        %406 = vmatpush.msra.mxu0 0.0
        %407 = vmatpush.msra.mxu0 0.0
        %408 = vmatpush.msra.mxu0 0.0
        %409 = vmatpush.msra.mxu0 0.0
        %410 = vmatpush.msra.mxu0 0.0
        %411 = vmatpush.msra.mxu0 0.0
        %412 = vmatpush.msra.mxu0 0.0
        %413 = vmatpush.msra.mxu0 0.0
        %414 = vmatpush.msra.mxu0 0.0
        %415 = vmatpush.msra.mxu0 0.0
        %416 = vmatpush.msra.mxu0 0.0
        %417 = vmatpush.msra.mxu0 0.0
        %418 = vmatpush.msra.mxu0 0.0
        %419 = vmatpush.msra.mxu0 %v403
        %420 = vmatmul.f32.gmra.mxu0 %v291
        %v421 = vpop.f32.mrf.mxu0
        %v422 = vadd.f32 0.0, %v421
        %423 = vmatmul.f32.gmra.mxu0 %v294
        %v424 = vpop.f32.mrf.mxu0
        %v425 = vadd.f32 0.0, %v424
        %426 = vmatmul.f32.gmra.mxu0 %v297
        %v427 = vpop.f32.mrf.mxu0
        %v428 = vadd.f32 0.0, %v427
        %429 = vmatmul.f32.gmra.mxu0 %v300
        %v430 = vpop.f32.mrf.mxu0
        %v431 = vadd.f32 0.0, %v430
        %432 = vmatmul.f32.gmra.mxu0 %v303
        %v433 = vpop.f32.mrf.mxu0
        %v434 = vadd.f32 0.0, %v433
        %435 = vmatmul.f32.gmra.mxu0 %v306
        %v436 = vpop.f32.mrf.mxu0
        %v437 = vadd.f32 0.0, %v436
        %438 = vmatmul.f32.gmra.mxu0 %v309
        %v439 = vpop.f32.mrf.mxu0
        %v440 = vadd.f32 0.0, %v439
        %441 = vmatmul.f32.gmra.mxu0 %v312
        %v442 = vpop.f32.mrf.mxu0
        %v443 = vadd.f32 0.0, %v442
        %444 = vmatmul.f32.gmra.mxu0 %v315
        %v445 = vpop.f32.mrf.mxu0
        %v446 = vadd.f32 0.0, %v445
        %447 = vmatmul.f32.gmra.mxu0 %v318
        %v448 = vpop.f32.mrf.mxu0
        %v449 = vadd.f32 0.0, %v448
        %450 = vmatmul.f32.gmra.mxu0 %v321
        %v451 = vpop.f32.mrf.mxu0
        %v452 = vadd.f32 0.0, %v451
        %453 = vmatmul.f32.gmra.mxu0 %v324
        %v454 = vpop.f32.mrf.mxu0
        %v455 = vadd.f32 0.0, %v454
        %456 = vmatmul.f32.gmra.mxu0 %v327
        %v457 = vpop.f32.mrf.mxu0
        %v458 = vadd.f32 0.0, %v457
        %459 = vmatmul.f32.gmra.mxu0 %v330
        %v460 = vpop.f32.mrf.mxu0
        %v461 = vadd.f32 0.0, %v460
        %462 = vmatmul.f32.gmra.mxu0 %v333
        %v463 = vpop.f32.mrf.mxu0
        %v464 = vadd.f32 0.0, %v463
        %465 = vmatmul.f32.gmra.mxu0 %v336
        %v466 = vpop.f32.mrf.mxu0
        %v467 = vadd.f32 0.0, %v466
        %468 = vdwg.mxu0
        %v469 = vand.u32 2147483647, %v356
        %vm470 = vcmp.le.f32.partialorder %v469, 0.7853982
        %vm471 = vcmp.lt.s32.totalorder %v356, 0
        %v472 = vand.u32 %v356, 2139095040
        %v473 = vshrl.u32 %v472, 23
        %v474 = vsub.s32 %v473, 127
        %v475 = vand.u32 2147483647, %v356
        %v476 = vand.u32 %v475, 8388607
        %v477 = vor.u32 %v476, 8388608
        %v478 = vsub.s32 0, %v477
        %v479 = vadd.s32 %v474, 1
        %vm480 = vcmp.gt.s32.totalorder %v479, 0
        %v481 = vsel %vm480, %v479, 0
        %v482 = vshrl.u32 %v481, 5
        %v483 = vand.u32 %v481, 31
        %v484 = vsub.s32 32, %v483
        %v485 = vshrl.u32 683565275, %v484
        %v486 = vshll.u32 683565275, %v483
        %v487 = vshrl.u32 2475754826, %v484
        %v488 = vor.u32 %v486, %v487
        %v489 = vshll.u32 2475754826, %v483
        %v490 = vshrl.u32 2131351028, %v484
        %v491 = vor.u32 %v489, %v490
        %v492 = vshll.u32 2131351028, %v483
        %v493 = vshrl.u32 2102212464, %v484
        %v494 = vor.u32 %v492, %v493
        %v495 = vshll.u32 2102212464, %v483
        %v496 = vshrl.u32 920167782, %v484
        %v497 = vor.u32 %v495, %v496
        %v498 = vshll.u32 920167782, %v483
        %v499 = vshrl.u32 1326507024, %v484
        %v500 = vor.u32 %v498, %v499
        %vm501 = vcmp.lt.s32.totalorder %v482, 1
        %vm502 = vcmp.lt.s32.totalorder %v482, 2
        %vm503 = vcmp.lt.s32.totalorder %v482, 3
        %vm504 = vcmp.lt.s32.totalorder %v482, 4
        %v505 = vsel %vm501, %v485, %v488
        %v506 = vsel %vm504, %v494, 2102212464
        %v507 = vsel %vm503, %v491, %v506
        %v508 = vsel %vm502, %v505, %v507
        %v509 = vsel %vm501, %v488, %v491
        %v510 = vsel %vm504, %v497, 920167782
        %v511 = vsel %vm503, %v494, %v510
        %v512 = vsel %vm502, %v509, %v511
        %v513 = vsel %vm501, %v491, %v494
        %v514 = vsel %vm504, %v500, 1326507024
        %v515 = vsel %vm503, %v497, %v514
        %v516 = vsel %vm502, %v513, %v515
        %v517 = vshll.u32 %v477, 8
        %v518 = vand.u32 %v517, 65535
        %v519 = vshrl.u32 %v517, 16
        %v520 = vand.u32 %v516, 65535
        %v521 = vshrl.u32 %v516, 16
        %v522 = vmul.u32 %v518, %v520
        %v523 = vmul.u32 %v518, %v521
        %v524 = vmul.u32 %v519, %v520
        %v525 = vmul.u32 %v519, %v521
        %v526 = vshll.u32 %v523, 16
        %v527 = vshrl.u32 %v523, 16
        %v528 = vshll.u32 %v524, 16
        %v529 = vshrl.u32 %v524, 16
        %vm530 = vc.u32 %v522, %v526
        %v531 = vsel %vm530, 1, 0
        %v532 = vadd.s32 %v522, %v526
        %v533 = vadd.s32 %v525, %v531
        %vm534 = vc.u32 %v532, %v528
        %v535 = vsel %vm534, 1, 0
        %v536 = vadd.s32 %v532, %v528
        %v537 = vadd.s32 %v533, %v535
        %v538 = vadd.s32 %v537, %v527
        %v539 = vadd.s32 %v538, %v529
        %v540 = vand.u32 %v517, 65535
        %v541 = vshrl.u32 %v517, 16
        %v542 = vand.u32 %v512, 65535
        %v543 = vshrl.u32 %v512, 16
        %v544 = vmul.u32 %v540, %v542
        %v545 = vmul.u32 %v540, %v543
        %v546 = vmul.u32 %v541, %v542
        %v547 = vmul.u32 %v541, %v543
        %v548 = vshll.u32 %v545, 16
        %v549 = vshrl.u32 %v545, 16
        %v550 = vshll.u32 %v546, 16
        %v551 = vshrl.u32 %v546, 16
        %vm552 = vc.u32 %v544, %v548
        %v553 = vsel %vm552, 1, 0
        %v554 = vadd.s32 %v544, %v548
        %v555 = vadd.s32 %v547, %v553
        %vm556 = vc.u32 %v554, %v550
        %v557 = vsel %vm556, 1, 0
        %v558 = vadd.s32 %v554, %v550
        %v559 = vadd.s32 %v555, %v557
        %v560 = vadd.s32 %v559, %v549
        %v561 = vadd.s32 %v560, %v551
        %v562 = vmul.u32 %v517, %v508
        %v563 = vadd.s32 %v539, %v558
        %vm564 = vc.u32 %v539, %v558
        %v565 = vadd.s32 %v561, 1
        %v566 = vsel %vm564, %v565, %v561
        %v567 = vadd.s32 %v562, %v566
        %v568 = vadd.s32 %v567, 536870912
        %v569 = vshrl.u32 %v568, 30
        %v570 = vshll.u32 %v569, 30
        %v571 = vsub.s32 %v567, %v570
        %vm572 = vcmp.lt.s32.totalorder %v571, 0
        %v573 = vsub.s32 0, %v571
        %v574 = vsel %vm572, %v573, %v571
        %v575 = vclz %v574
        %v576 = vsub.s32 %v575, 2
        %vm577 = vcmp.gt.s32.totalorder 0, %v576
        %v578 = vsel %vm577, 0, %v576
        %v579 = vsub.s32 32, %v578
        %v580 = vshll.u32 %v571, %v578
        %v581 = vshrl.u32 %v563, %v579
        %v582 = vor.u32 %v580, %v581
        %v583 = vsub.s32 4294967266, %v578
        %v584 = vadd.s32 %v583, 127
        %v585 = vshll.u32 %v584, 23
        %v586 = vor.u32 4788187, %v585
        %v587 = vand.u32 2147483647, %v586
        %v589 = vcvt.s32.f32 %v582
        %v590 = vmul.f32 %v589, %v587
        %v591 = vxor.u32 %v590, 2147483648
        %v592 = vsel %vm471, %v591, %v590
        %v593 = vsub.s32 4, %v569
        %v594 = vsel %vm471, %v593, %v569
        %v595 = vsel %vm470, %v356, %v592
        %v596 = vsel %vm470, 0, %v594
        %v597 = vmul.f32 %v595, %v595
        %v598 = vmul.f32 %v597, -0.001358992
        %v599 = vadd.f32 %v598, 0.041655596
        %v600 = vmul.f32 %v597, %v599
        %v601 = vadd.f32 %v600, -0.4999988
        %v602 = vmul.f32 %v597, %v601
        %v603 = vadd.f32 1.0, %v602
        %v604 = vmul.f32 %v595, %v595
        %v605 = vmul.f32 %v604, -0.00019511016
        %v606 = vadd.f32 %v605, 0.008332121
        %v607 = vmul.f32 %v604, %v606
        %v608 = vadd.f32 %v607, -0.16666654
        %v609 = vmul.f32 %v604, %v608
        %v610 = vadd.f32 %v609, 1.0
        %v611 = vmul.f32 %v610, %v595
        %vm612 = vweird.f32 %v356
        %v613 = vand.u32 %v596, 3
        %vm614 = vcmp.lt.s32.totalorder %v613, 2
        %vm615 = vcmp.eq.s32.totalorder %v613, 0
        %v616 = vxor.u32 %v611, 2147483648
        %v617 = vsel %vm615, %v603, %v616
        %vm618 = vcmp.eq.s32.totalorder %v613, 2
        %v619 = vxor.u32 %v603, 2147483648
        %v620 = vsel %vm618, %v619, %v611
        %v621 = vsel %vm614, %v617, %v620
        %v622 = vsel %vm612, nan, %v621
        %v623 = vand.u32 2147483647, %v359
        %vm624 = vcmp.le.f32.partialorder %v623, 0.7853982
        %vm625 = vcmp.lt.s32.totalorder %v359, 0
        %v626 = vand.u32 %v359, 2139095040
        %v627 = vshrl.u32 %v626, 23
        %v628 = vsub.s32 %v627, 127
        %v629 = vand.u32 2147483647, %v359
        %v630 = vand.u32 %v629, 8388607
        %v631 = vor.u32 %v630, 8388608
        %v632 = vsub.s32 0, %v631
        %v633 = vadd.s32 %v628, 1
        %vm634 = vcmp.gt.s32.totalorder %v633, 0
        %v635 = vsel %vm634, %v633, 0
        %v636 = vshrl.u32 %v635, 5
        %v637 = vand.u32 %v635, 31
        %v638 = vsub.s32 32, %v637
        %v639 = vshrl.u32 683565275, %v638
        %v640 = vshll.u32 683565275, %v637
        %v641 = vshrl.u32 2475754826, %v638
        %v642 = vor.u32 %v640, %v641
        %v643 = vshll.u32 2475754826, %v637
        %v644 = vshrl.u32 2131351028, %v638
        %v645 = vor.u32 %v643, %v644
        %v646 = vshll.u32 2131351028, %v637
        %v647 = vshrl.u32 2102212464, %v638
        %v648 = vor.u32 %v646, %v647
        %v649 = vshll.u32 2102212464, %v637
        %v650 = vshrl.u32 920167782, %v638
        %v651 = vor.u32 %v649, %v650
        %v652 = vshll.u32 920167782, %v637
        %v653 = vshrl.u32 1326507024, %v638
        %v654 = vor.u32 %v652, %v653
        %vm655 = vcmp.lt.s32.totalorder %v636, 1
        %vm656 = vcmp.lt.s32.totalorder %v636, 2
        %vm657 = vcmp.lt.s32.totalorder %v636, 3
        %vm658 = vcmp.lt.s32.totalorder %v636, 4
        %v659 = vsel %vm655, %v639, %v642
        %v660 = vsel %vm658, %v648, 2102212464
        %v661 = vsel %vm657, %v645, %v660
        %v662 = vsel %vm656, %v659, %v661
        %v663 = vsel %vm655, %v642, %v645
        %v664 = vsel %vm658, %v651, 920167782
        %v665 = vsel %vm657, %v648, %v664
        %v666 = vsel %vm656, %v663, %v665
        %v667 = vsel %vm655, %v645, %v648
        %v668 = vsel %vm658, %v654, 1326507024
        %v669 = vsel %vm657, %v651, %v668
        %v670 = vsel %vm656, %v667, %v669
        %v671 = vshll.u32 %v631, 8
        %v672 = vand.u32 %v671, 65535
        %v673 = vshrl.u32 %v671, 16
        %v674 = vand.u32 %v670, 65535
        %v675 = vshrl.u32 %v670, 16
        %v676 = vmul.u32 %v672, %v674
        %v677 = vmul.u32 %v672, %v675
        %v678 = vmul.u32 %v673, %v674
        %v679 = vmul.u32 %v673, %v675
        %v680 = vshll.u32 %v677, 16
        %v681 = vshrl.u32 %v677, 16
        %v682 = vshll.u32 %v678, 16
        %v683 = vshrl.u32 %v678, 16
        %vm684 = vc.u32 %v676, %v680
        %v685 = vsel %vm684, 1, 0
        %v686 = vadd.s32 %v676, %v680
        %v687 = vadd.s32 %v679, %v685
        %vm688 = vc.u32 %v686, %v682
        %v689 = vsel %vm688, 1, 0
        %v690 = vadd.s32 %v686, %v682
        %v691 = vadd.s32 %v687, %v689
        %v692 = vadd.s32 %v691, %v681
        %v693 = vadd.s32 %v692, %v683
        %v694 = vand.u32 %v671, 65535
        %v695 = vshrl.u32 %v671, 16
        %v696 = vand.u32 %v666, 65535
        %v697 = vshrl.u32 %v666, 16
        %v698 = vmul.u32 %v694, %v696
        %v699 = vmul.u32 %v694, %v697
        %v700 = vmul.u32 %v695, %v696
        %v701 = vmul.u32 %v695, %v697
        %v702 = vshll.u32 %v699, 16
        %v703 = vshrl.u32 %v699, 16
        %v704 = vshll.u32 %v700, 16
        %v705 = vshrl.u32 %v700, 16
        %vm706 = vc.u32 %v698, %v702
        %v707 = vsel %vm706, 1, 0
        %v708 = vadd.s32 %v698, %v702
        %v709 = vadd.s32 %v701, %v707
        %vm710 = vc.u32 %v708, %v704
        %v711 = vsel %vm710, 1, 0
        %v712 = vadd.s32 %v708, %v704
        %v713 = vadd.s32 %v709, %v711
        %v714 = vadd.s32 %v713, %v703
        %v715 = vadd.s32 %v714, %v705
        %v716 = vmul.u32 %v671, %v662
        %v717 = vadd.s32 %v693, %v712
        %vm718 = vc.u32 %v693, %v712
        %v719 = vadd.s32 %v715, 1
        %v720 = vsel %vm718, %v719, %v715
        %v721 = vadd.s32 %v716, %v720
        %v722 = vadd.s32 %v721, 536870912
        %v723 = vshrl.u32 %v722, 30
        %v724 = vshll.u32 %v723, 30
        %v725 = vsub.s32 %v721, %v724
        %vm726 = vcmp.lt.s32.totalorder %v725, 0
        %v727 = vsub.s32 0, %v725
        %v728 = vsel %vm726, %v727, %v725
        %v729 = vclz %v728
        %v730 = vsub.s32 %v729, 2
        %vm731 = vcmp.gt.s32.totalorder 0, %v730
        %v732 = vsel %vm731, 0, %v730
        %v733 = vsub.s32 32, %v732
        %v734 = vshll.u32 %v725, %v732
        %v735 = vshrl.u32 %v717, %v733
        %v736 = vor.u32 %v734, %v735
        %v737 = vsub.s32 4294967266, %v732
        %v738 = vadd.s32 %v737, 127
        %v739 = vshll.u32 %v738, 23
        %v740 = vor.u32 4788187, %v739
        %v741 = vand.u32 2147483647, %v740
        %v743 = vcvt.s32.f32 %v736
        %v744 = vmul.f32 %v743, %v741
        %v745 = vxor.u32 %v744, 2147483648
        %v746 = vsel %vm625, %v745, %v744
        %v747 = vsub.s32 4, %v723
        %v748 = vsel %vm625, %v747, %v723
        %v749 = vsel %vm624, %v359, %v746
        %v750 = vsel %vm624, 0, %v748
        %v751 = vmul.f32 %v749, %v749
        %v752 = vmul.f32 %v751, -0.001358992
        %v753 = vadd.f32 %v752, 0.041655596
        %v754 = vmul.f32 %v751, %v753
        %v755 = vadd.f32 %v754, -0.4999988
        %v756 = vmul.f32 %v751, %v755
        %v757 = vadd.f32 1.0, %v756
        %v758 = vmul.f32 %v749, %v749
        %v759 = vmul.f32 %v758, -0.00019511016
        %v760 = vadd.f32 %v759, 0.008332121
        %v761 = vmul.f32 %v758, %v760
        %v762 = vadd.f32 %v761, -0.16666654
        %v763 = vmul.f32 %v758, %v762
        %v764 = vadd.f32 %v763, 1.0
        %v765 = vmul.f32 %v764, %v749
        %vm766 = vweird.f32 %v359
        %v767 = vand.u32 %v750, 3
        %vm768 = vcmp.lt.s32.totalorder %v767, 2
        %vm769 = vcmp.eq.s32.totalorder %v767, 0
        %v770 = vxor.u32 %v765, 2147483648
        %v771 = vsel %vm769, %v757, %v770
        %vm772 = vcmp.eq.s32.totalorder %v767, 2
        %v773 = vxor.u32 %v757, 2147483648
        %v774 = vsel %vm772, %v773, %v765
        %v775 = vsel %vm768, %v771, %v774
        %v776 = vsel %vm766, nan, %v775
        %v777 = vand.u32 2147483647, %v362
        %vm778 = vcmp.le.f32.partialorder %v777, 0.7853982
        %vm779 = vcmp.lt.s32.totalorder %v362, 0
        %v780 = vand.u32 %v362, 2139095040
        %v781 = vshrl.u32 %v780, 23
        %v782 = vsub.s32 %v781, 127
        %v783 = vand.u32 2147483647, %v362
        %v784 = vand.u32 %v783, 8388607
        %v785 = vor.u32 %v784, 8388608
        %v786 = vsub.s32 0, %v785
        %v787 = vadd.s32 %v782, 1
        %vm788 = vcmp.gt.s32.totalorder %v787, 0
        %v789 = vsel %vm788, %v787, 0
        %v790 = vshrl.u32 %v789, 5
        %v791 = vand.u32 %v789, 31
        %v792 = vsub.s32 32, %v791
        %v793 = vshrl.u32 683565275, %v792
        %v794 = vshll.u32 683565275, %v791
        %v795 = vshrl.u32 2475754826, %v792
        %v796 = vor.u32 %v794, %v795
        %v797 = vshll.u32 2475754826, %v791
        %v798 = vshrl.u32 2131351028, %v792
        %v799 = vor.u32 %v797, %v798
        %v800 = vshll.u32 2131351028, %v791
        %v801 = vshrl.u32 2102212464, %v792
        %v802 = vor.u32 %v800, %v801
        %v803 = vshll.u32 2102212464, %v791
        %v804 = vshrl.u32 920167782, %v792
        %v805 = vor.u32 %v803, %v804
        %v806 = vshll.u32 920167782, %v791
        %v807 = vshrl.u32 1326507024, %v792
        %v808 = vor.u32 %v806, %v807
        %vm809 = vcmp.lt.s32.totalorder %v790, 1
        %vm810 = vcmp.lt.s32.totalorder %v790, 2
        %vm811 = vcmp.lt.s32.totalorder %v790, 3
        %vm812 = vcmp.lt.s32.totalorder %v790, 4
        %v813 = vsel %vm809, %v793, %v796
        %v814 = vsel %vm812, %v802, 2102212464
        %v815 = vsel %vm811, %v799, %v814
        %v816 = vsel %vm810, %v813, %v815
        %v817 = vsel %vm809, %v796, %v799
        %v818 = vsel %vm812, %v805, 920167782
        %v819 = vsel %vm811, %v802, %v818
        %v820 = vsel %vm810, %v817, %v819
        %v821 = vsel %vm809, %v799, %v802
        %v822 = vsel %vm812, %v808, 1326507024
        %v823 = vsel %vm811, %v805, %v822
        %v824 = vsel %vm810, %v821, %v823
        %v825 = vshll.u32 %v785, 8
        %v826 = vand.u32 %v825, 65535
        %v827 = vshrl.u32 %v825, 16
        %v828 = vand.u32 %v824, 65535
        %v829 = vshrl.u32 %v824, 16
        %v830 = vmul.u32 %v826, %v828
        %v831 = vmul.u32 %v826, %v829
        %v832 = vmul.u32 %v827, %v828
        %v833 = vmul.u32 %v827, %v829
        %v834 = vshll.u32 %v831, 16
        %v835 = vshrl.u32 %v831, 16
        %v836 = vshll.u32 %v832, 16
        %v837 = vshrl.u32 %v832, 16
        %vm838 = vc.u32 %v830, %v834
        %v839 = vsel %vm838, 1, 0
        %v840 = vadd.s32 %v830, %v834
        %v841 = vadd.s32 %v833, %v839
        %vm842 = vc.u32 %v840, %v836
        %v843 = vsel %vm842, 1, 0
        %v844 = vadd.s32 %v840, %v836
        %v845 = vadd.s32 %v841, %v843
        %v846 = vadd.s32 %v845, %v835
        %v847 = vadd.s32 %v846, %v837
        %v848 = vand.u32 %v825, 65535
        %v849 = vshrl.u32 %v825, 16
        %v850 = vand.u32 %v820, 65535
        %v851 = vshrl.u32 %v820, 16
        %v852 = vmul.u32 %v848, %v850
        %v853 = vmul.u32 %v848, %v851
        %v854 = vmul.u32 %v849, %v850
        %v855 = vmul.u32 %v849, %v851
        %v856 = vshll.u32 %v853, 16
        %v857 = vshrl.u32 %v853, 16
        %v858 = vshll.u32 %v854, 16
        %v859 = vshrl.u32 %v854, 16
        %vm860 = vc.u32 %v852, %v856
        %v861 = vsel %vm860, 1, 0
        %v862 = vadd.s32 %v852, %v856
        %v863 = vadd.s32 %v855, %v861
        %vm864 = vc.u32 %v862, %v858
        %v865 = vsel %vm864, 1, 0
        %v866 = vadd.s32 %v862, %v858
        %v867 = vadd.s32 %v863, %v865
        %v868 = vadd.s32 %v867, %v857
        %v869 = vadd.s32 %v868, %v859
        %v870 = vmul.u32 %v825, %v816
        %v871 = vadd.s32 %v847, %v866
        %vm872 = vc.u32 %v847, %v866
        %v873 = vadd.s32 %v869, 1
        %v874 = vsel %vm872, %v873, %v869
        %v875 = vadd.s32 %v870, %v874
        %v876 = vadd.s32 %v875, 536870912
        %v877 = vshrl.u32 %v876, 30
        %v878 = vshll.u32 %v877, 30
        %v879 = vsub.s32 %v875, %v878
        %vm880 = vcmp.lt.s32.totalorder %v879, 0
        %v881 = vsub.s32 0, %v879
        %v882 = vsel %vm880, %v881, %v879
        %v883 = vclz %v882
        %v884 = vsub.s32 %v883, 2
        %vm885 = vcmp.gt.s32.totalorder 0, %v884
        %v886 = vsel %vm885, 0, %v884
        %v887 = vsub.s32 32, %v886
        %v888 = vshll.u32 %v879, %v886
        %v889 = vshrl.u32 %v871, %v887
        %v890 = vor.u32 %v888, %v889
        %v891 = vsub.s32 4294967266, %v886
        %v892 = vadd.s32 %v891, 127
        %v893 = vshll.u32 %v892, 23
        %v894 = vor.u32 4788187, %v893
        %v895 = vand.u32 2147483647, %v894
        %v897 = vcvt.s32.f32 %v890
        %v898 = vmul.f32 %v897, %v895
        %v899 = vxor.u32 %v898, 2147483648
        %v900 = vsel %vm779, %v899, %v898
        %v901 = vsub.s32 4, %v877
        %v902 = vsel %vm779, %v901, %v877
        %v903 = vsel %vm778, %v362, %v900
        %v904 = vsel %vm778, 0, %v902
        %v905 = vmul.f32 %v903, %v903
        %v906 = vmul.f32 %v905, -0.001358992
        %v907 = vadd.f32 %v906, 0.041655596
        %v908 = vmul.f32 %v905, %v907
        %v909 = vadd.f32 %v908, -0.4999988
        %v910 = vmul.f32 %v905, %v909
        %v911 = vadd.f32 1.0, %v910
        %v912 = vmul.f32 %v903, %v903
        %v913 = vmul.f32 %v912, -0.00019511016
        %v914 = vadd.f32 %v913, 0.008332121
        %v915 = vmul.f32 %v912, %v914
        %v916 = vadd.f32 %v915, -0.16666654
        %v917 = vmul.f32 %v912, %v916
        %v918 = vadd.f32 %v917, 1.0
        %v919 = vmul.f32 %v918, %v903
        %vm920 = vweird.f32 %v362
        %v921 = vand.u32 %v904, 3
        %vm922 = vcmp.lt.s32.totalorder %v921, 2
        %vm923 = vcmp.eq.s32.totalorder %v921, 0
        %v924 = vxor.u32 %v919, 2147483648
        %v925 = vsel %vm923, %v911, %v924
        %vm926 = vcmp.eq.s32.totalorder %v921, 2
        %v927 = vxor.u32 %v911, 2147483648
        %v928 = vsel %vm926, %v927, %v919
        %v929 = vsel %vm922, %v925, %v928
        %v930 = vsel %vm920, nan, %v929
        %v931 = vand.u32 2147483647, %v365
        %vm932 = vcmp.le.f32.partialorder %v931, 0.7853982
        %vm933 = vcmp.lt.s32.totalorder %v365, 0
        %v934 = vand.u32 %v365, 2139095040
        %v935 = vshrl.u32 %v934, 23
        %v936 = vsub.s32 %v935, 127
        %v937 = vand.u32 2147483647, %v365
        %v938 = vand.u32 %v937, 8388607
        %v939 = vor.u32 %v938, 8388608
        %v940 = vsub.s32 0, %v939
        %v941 = vadd.s32 %v936, 1
        %vm942 = vcmp.gt.s32.totalorder %v941, 0
        %v943 = vsel %vm942, %v941, 0
        %v944 = vshrl.u32 %v943, 5
        %v945 = vand.u32 %v943, 31
        %v946 = vsub.s32 32, %v945
        %v947 = vshrl.u32 683565275, %v946
        %v948 = vshll.u32 683565275, %v945
        %v949 = vshrl.u32 2475754826, %v946
        %v950 = vor.u32 %v948, %v949
        %v951 = vshll.u32 2475754826, %v945
        %v952 = vshrl.u32 2131351028, %v946
        %v953 = vor.u32 %v951, %v952
        %v954 = vshll.u32 2131351028, %v945
        %v955 = vshrl.u32 2102212464, %v946
        %v956 = vor.u32 %v954, %v955
        %v957 = vshll.u32 2102212464, %v945
        %v958 = vshrl.u32 920167782, %v946
        %v959 = vor.u32 %v957, %v958
        %v960 = vshll.u32 920167782, %v945
        %v961 = vshrl.u32 1326507024, %v946
        %v962 = vor.u32 %v960, %v961
        %vm963 = vcmp.lt.s32.totalorder %v944, 1
        %vm964 = vcmp.lt.s32.totalorder %v944, 2
        %vm965 = vcmp.lt.s32.totalorder %v944, 3
        %vm966 = vcmp.lt.s32.totalorder %v944, 4
        %v967 = vsel %vm963, %v947, %v950
        %v968 = vsel %vm966, %v956, 2102212464
        %v969 = vsel %vm965, %v953, %v968
        %v970 = vsel %vm964, %v967, %v969
        %v971 = vsel %vm963, %v950, %v953
        %v972 = vsel %vm966, %v959, 920167782
        %v973 = vsel %vm965, %v956, %v972
        %v974 = vsel %vm964, %v971, %v973
        %v975 = vsel %vm963, %v953, %v956
        %v976 = vsel %vm966, %v962, 1326507024
        %v977 = vsel %vm965, %v959, %v976
        %v978 = vsel %vm964, %v975, %v977
        %v979 = vshll.u32 %v939, 8
        %v980 = vand.u32 %v979, 65535
        %v981 = vshrl.u32 %v979, 16
        %v982 = vand.u32 %v978, 65535
        %v983 = vshrl.u32 %v978, 16
        %v984 = vmul.u32 %v980, %v982
        %v985 = vmul.u32 %v980, %v983
        %v986 = vmul.u32 %v981, %v982
        %v987 = vmul.u32 %v981, %v983
        %v988 = vshll.u32 %v985, 16
        %v989 = vshrl.u32 %v985, 16
        %v990 = vshll.u32 %v986, 16
        %v991 = vshrl.u32 %v986, 16
        %vm992 = vc.u32 %v984, %v988
        %v993 = vsel %vm992, 1, 0
        %v994 = vadd.s32 %v984, %v988
        %v995 = vadd.s32 %v987, %v993
        %vm996 = vc.u32 %v994, %v990
        %v997 = vsel %vm996, 1, 0
        %v998 = vadd.s32 %v994, %v990
        %v999 = vadd.s32 %v995, %v997
        %v1000 = vadd.s32 %v999, %v989
        %v1001 = vadd.s32 %v1000, %v991
        %v1002 = vand.u32 %v979, 65535
        %v1003 = vshrl.u32 %v979, 16
        %v1004 = vand.u32 %v974, 65535
        %v1005 = vshrl.u32 %v974, 16
        %v1006 = vmul.u32 %v1002, %v1004
        %v1007 = vmul.u32 %v1002, %v1005
        %v1008 = vmul.u32 %v1003, %v1004
        %v1009 = vmul.u32 %v1003, %v1005
        %v1010 = vshll.u32 %v1007, 16
        %v1011 = vshrl.u32 %v1007, 16
        %v1012 = vshll.u32 %v1008, 16
        %v1013 = vshrl.u32 %v1008, 16
        %vm1014 = vc.u32 %v1006, %v1010
        %v1015 = vsel %vm1014, 1, 0
        %v1016 = vadd.s32 %v1006, %v1010
        %v1017 = vadd.s32 %v1009, %v1015
        %vm1018 = vc.u32 %v1016, %v1012
        %v1019 = vsel %vm1018, 1, 0
        %v1020 = vadd.s32 %v1016, %v1012
        %v1021 = vadd.s32 %v1017, %v1019
        %v1022 = vadd.s32 %v1021, %v1011
        %v1023 = vadd.s32 %v1022, %v1013
        %v1024 = vmul.u32 %v979, %v970
        %v1025 = vadd.s32 %v1001, %v1020
        %vm1026 = vc.u32 %v1001, %v1020
        %v1027 = vadd.s32 %v1023, 1
        %v1028 = vsel %vm1026, %v1027, %v1023
        %v1029 = vadd.s32 %v1024, %v1028
        %v1030 = vadd.s32 %v1029, 536870912
        %v1031 = vshrl.u32 %v1030, 30
        %v1032 = vshll.u32 %v1031, 30
        %v1033 = vsub.s32 %v1029, %v1032
        %vm1034 = vcmp.lt.s32.totalorder %v1033, 0
        %v1035 = vsub.s32 0, %v1033
        %v1036 = vsel %vm1034, %v1035, %v1033
        %v1037 = vclz %v1036
        %v1038 = vsub.s32 %v1037, 2
        %vm1039 = vcmp.gt.s32.totalorder 0, %v1038
        %v1040 = vsel %vm1039, 0, %v1038
        %v1041 = vsub.s32 32, %v1040
        %v1042 = vshll.u32 %v1033, %v1040
        %v1043 = vshrl.u32 %v1025, %v1041
        %v1044 = vor.u32 %v1042, %v1043
        %v1045 = vsub.s32 4294967266, %v1040
        %v1046 = vadd.s32 %v1045, 127
        %v1047 = vshll.u32 %v1046, 23
        %v1048 = vor.u32 4788187, %v1047
        %v1049 = vand.u32 2147483647, %v1048
        %v1051 = vcvt.s32.f32 %v1044
        %v1052 = vmul.f32 %v1051, %v1049
        %v1053 = vxor.u32 %v1052, 2147483648
        %v1054 = vsel %vm933, %v1053, %v1052
        %v1055 = vsub.s32 4, %v1031
        %v1056 = vsel %vm933, %v1055, %v1031
        %v1057 = vsel %vm932, %v365, %v1054
        %v1058 = vsel %vm932, 0, %v1056
        %v1059 = vmul.f32 %v1057, %v1057
        %v1060 = vmul.f32 %v1059, -0.001358992
        %v1061 = vadd.f32 %v1060, 0.041655596
        %v1062 = vmul.f32 %v1059, %v1061
        %v1063 = vadd.f32 %v1062, -0.4999988
        %v1064 = vmul.f32 %v1059, %v1063
        %v1065 = vadd.f32 1.0, %v1064
        %v1066 = vmul.f32 %v1057, %v1057
        %v1067 = vmul.f32 %v1066, -0.00019511016
        %v1068 = vadd.f32 %v1067, 0.008332121
        %v1069 = vmul.f32 %v1066, %v1068
        %v1070 = vadd.f32 %v1069, -0.16666654
        %v1071 = vmul.f32 %v1066, %v1070
        %v1072 = vadd.f32 %v1071, 1.0
        %v1073 = vmul.f32 %v1072, %v1057
        %vm1074 = vweird.f32 %v365
        %v1075 = vand.u32 %v1058, 3
        %vm1076 = vcmp.lt.s32.totalorder %v1075, 2
        %vm1077 = vcmp.eq.s32.totalorder %v1075, 0
        %v1078 = vxor.u32 %v1073, 2147483648
        %v1079 = vsel %vm1077, %v1065, %v1078
        %vm1080 = vcmp.eq.s32.totalorder %v1075, 2
        %v1081 = vxor.u32 %v1065, 2147483648
        %v1082 = vsel %vm1080, %v1081, %v1073
        %v1083 = vsel %vm1076, %v1079, %v1082
        %v1084 = vsel %vm1074, nan, %v1083
        %v1085 = vand.u32 2147483647, %v368
        %vm1086 = vcmp.le.f32.partialorder %v1085, 0.7853982
        %vm1087 = vcmp.lt.s32.totalorder %v368, 0
        %v1088 = vand.u32 %v368, 2139095040
        %v1089 = vshrl.u32 %v1088, 23
        %v1090 = vsub.s32 %v1089, 127
        %v1091 = vand.u32 2147483647, %v368
        %v1092 = vand.u32 %v1091, 8388607
        %v1093 = vor.u32 %v1092, 8388608
        %v1094 = vsub.s32 0, %v1093
        %v1095 = vadd.s32 %v1090, 1
        %vm1096 = vcmp.gt.s32.totalorder %v1095, 0
        %v1097 = vsel %vm1096, %v1095, 0
        %v1098 = vshrl.u32 %v1097, 5
        %v1099 = vand.u32 %v1097, 31
        %v1100 = vsub.s32 32, %v1099
        %v1101 = vshrl.u32 683565275, %v1100
        %v1102 = vshll.u32 683565275, %v1099
        %v1103 = vshrl.u32 2475754826, %v1100
        %v1104 = vor.u32 %v1102, %v1103
        %v1105 = vshll.u32 2475754826, %v1099
        %v1106 = vshrl.u32 2131351028, %v1100
        %v1107 = vor.u32 %v1105, %v1106
        %v1108 = vshll.u32 2131351028, %v1099
        %v1109 = vshrl.u32 2102212464, %v1100
        %v1110 = vor.u32 %v1108, %v1109
        %v1111 = vshll.u32 2102212464, %v1099
        %v1112 = vshrl.u32 920167782, %v1100
        %v1113 = vor.u32 %v1111, %v1112
        %v1114 = vshll.u32 920167782, %v1099
        %v1115 = vshrl.u32 1326507024, %v1100
        %v1116 = vor.u32 %v1114, %v1115
        %vm1117 = vcmp.lt.s32.totalorder %v1098, 1
        %vm1118 = vcmp.lt.s32.totalorder %v1098, 2
        %vm1119 = vcmp.lt.s32.totalorder %v1098, 3
        %vm1120 = vcmp.lt.s32.totalorder %v1098, 4
        %v1121 = vsel %vm1117, %v1101, %v1104
        %v1122 = vsel %vm1120, %v1110, 2102212464
        %v1123 = vsel %vm1119, %v1107, %v1122
        %v1124 = vsel %vm1118, %v1121, %v1123
        %v1125 = vsel %vm1117, %v1104, %v1107
        %v1126 = vsel %vm1120, %v1113, 920167782
        %v1127 = vsel %vm1119, %v1110, %v1126
        %v1128 = vsel %vm1118, %v1125, %v1127
        %v1129 = vsel %vm1117, %v1107, %v1110
        %v1130 = vsel %vm1120, %v1116, 1326507024
        %v1131 = vsel %vm1119, %v1113, %v1130
        %v1132 = vsel %vm1118, %v1129, %v1131
        %v1133 = vshll.u32 %v1093, 8
        %v1134 = vand.u32 %v1133, 65535
        %v1135 = vshrl.u32 %v1133, 16
        %v1136 = vand.u32 %v1132, 65535
        %v1137 = vshrl.u32 %v1132, 16
        %v1138 = vmul.u32 %v1134, %v1136
        %v1139 = vmul.u32 %v1134, %v1137
        %v1140 = vmul.u32 %v1135, %v1136
        %v1141 = vmul.u32 %v1135, %v1137
        %v1142 = vshll.u32 %v1139, 16
        %v1143 = vshrl.u32 %v1139, 16
        %v1144 = vshll.u32 %v1140, 16
        %v1145 = vshrl.u32 %v1140, 16
        %vm1146 = vc.u32 %v1138, %v1142
        %v1147 = vsel %vm1146, 1, 0
        %v1148 = vadd.s32 %v1138, %v1142
        %v1149 = vadd.s32 %v1141, %v1147
        %vm1150 = vc.u32 %v1148, %v1144
        %v1151 = vsel %vm1150, 1, 0
        %v1152 = vadd.s32 %v1148, %v1144
        %v1153 = vadd.s32 %v1149, %v1151
        %v1154 = vadd.s32 %v1153, %v1143
        %v1155 = vadd.s32 %v1154, %v1145
        %v1156 = vand.u32 %v1133, 65535
        %v1157 = vshrl.u32 %v1133, 16
        %v1158 = vand.u32 %v1128, 65535
        %v1159 = vshrl.u32 %v1128, 16
        %v1160 = vmul.u32 %v1156, %v1158
        %v1161 = vmul.u32 %v1156, %v1159
        %v1162 = vmul.u32 %v1157, %v1158
        %v1163 = vmul.u32 %v1157, %v1159
        %v1164 = vshll.u32 %v1161, 16
        %v1165 = vshrl.u32 %v1161, 16
        %v1166 = vshll.u32 %v1162, 16
        %v1167 = vshrl.u32 %v1162, 16
        %vm1168 = vc.u32 %v1160, %v1164
        %v1169 = vsel %vm1168, 1, 0
        %v1170 = vadd.s32 %v1160, %v1164
        %v1171 = vadd.s32 %v1163, %v1169
        %vm1172 = vc.u32 %v1170, %v1166
        %v1173 = vsel %vm1172, 1, 0
        %v1174 = vadd.s32 %v1170, %v1166
        %v1175 = vadd.s32 %v1171, %v1173
        %v1176 = vadd.s32 %v1175, %v1165
        %v1177 = vadd.s32 %v1176, %v1167
        %v1178 = vmul.u32 %v1133, %v1124
        %v1179 = vadd.s32 %v1155, %v1174
        %vm1180 = vc.u32 %v1155, %v1174
        %v1181 = vadd.s32 %v1177, 1
        %v1182 = vsel %vm1180, %v1181, %v1177
        %v1183 = vadd.s32 %v1178, %v1182
        %v1184 = vadd.s32 %v1183, 536870912
        %v1185 = vshrl.u32 %v1184, 30
        %v1186 = vshll.u32 %v1185, 30
        %v1187 = vsub.s32 %v1183, %v1186
        %vm1188 = vcmp.lt.s32.totalorder %v1187, 0
        %v1189 = vsub.s32 0, %v1187
        %v1190 = vsel %vm1188, %v1189, %v1187
        %v1191 = vclz %v1190
        %v1192 = vsub.s32 %v1191, 2
        %vm1193 = vcmp.gt.s32.totalorder 0, %v1192
        %v1194 = vsel %vm1193, 0, %v1192
        %v1195 = vsub.s32 32, %v1194
        %v1196 = vshll.u32 %v1187, %v1194
        %v1197 = vshrl.u32 %v1179, %v1195
        %v1198 = vor.u32 %v1196, %v1197
        %v1199 = vsub.s32 4294967266, %v1194
        %v1200 = vadd.s32 %v1199, 127
        %v1201 = vshll.u32 %v1200, 23
        %v1202 = vor.u32 4788187, %v1201
        %v1203 = vand.u32 2147483647, %v1202
        %v1205 = vcvt.s32.f32 %v1198
        %v1206 = vmul.f32 %v1205, %v1203
        %v1207 = vxor.u32 %v1206, 2147483648
        %v1208 = vsel %vm1087, %v1207, %v1206
        %v1209 = vsub.s32 4, %v1185
        %v1210 = vsel %vm1087, %v1209, %v1185
        %v1211 = vsel %vm1086, %v368, %v1208
        %v1212 = vsel %vm1086, 0, %v1210
        %v1213 = vmul.f32 %v1211, %v1211
        %v1214 = vmul.f32 %v1213, -0.001358992
        %v1215 = vadd.f32 %v1214, 0.041655596
        %v1216 = vmul.f32 %v1213, %v1215
        %v1217 = vadd.f32 %v1216, -0.4999988
        %v1218 = vmul.f32 %v1213, %v1217
        %v1219 = vadd.f32 1.0, %v1218
        %v1220 = vmul.f32 %v1211, %v1211
        %v1221 = vmul.f32 %v1220, -0.00019511016
        %v1222 = vadd.f32 %v1221, 0.008332121
        %v1223 = vmul.f32 %v1220, %v1222
        %v1224 = vadd.f32 %v1223, -0.16666654
        %v1225 = vmul.f32 %v1220, %v1224
        %v1226 = vadd.f32 %v1225, 1.0
        %v1227 = vmul.f32 %v1226, %v1211
        %vm1228 = vweird.f32 %v368
        %v1229 = vand.u32 %v1212, 3
        %vm1230 = vcmp.lt.s32.totalorder %v1229, 2
        %vm1231 = vcmp.eq.s32.totalorder %v1229, 0
        %v1232 = vxor.u32 %v1227, 2147483648
        %v1233 = vsel %vm1231, %v1219, %v1232
        %vm1234 = vcmp.eq.s32.totalorder %v1229, 2
        %v1235 = vxor.u32 %v1219, 2147483648
        %v1236 = vsel %vm1234, %v1235, %v1227
        %v1237 = vsel %vm1230, %v1233, %v1236
        %v1238 = vsel %vm1228, nan, %v1237
        %v1239 = vand.u32 2147483647, %v371
        %vm1240 = vcmp.le.f32.partialorder %v1239, 0.7853982
        %vm1241 = vcmp.lt.s32.totalorder %v371, 0
        %v1242 = vand.u32 %v371, 2139095040
        %v1243 = vshrl.u32 %v1242, 23
        %v1244 = vsub.s32 %v1243, 127
        %v1245 = vand.u32 2147483647, %v371
        %v1246 = vand.u32 %v1245, 8388607
        %v1247 = vor.u32 %v1246, 8388608
        %v1248 = vsub.s32 0, %v1247
        %v1249 = vadd.s32 %v1244, 1
        %vm1250 = vcmp.gt.s32.totalorder %v1249, 0
        %v1251 = vsel %vm1250, %v1249, 0
        %v1252 = vshrl.u32 %v1251, 5
        %v1253 = vand.u32 %v1251, 31
        %v1254 = vsub.s32 32, %v1253
        %v1255 = vshrl.u32 683565275, %v1254
        %v1256 = vshll.u32 683565275, %v1253
        %v1257 = vshrl.u32 2475754826, %v1254
        %v1258 = vor.u32 %v1256, %v1257
        %v1259 = vshll.u32 2475754826, %v1253
        %v1260 = vshrl.u32 2131351028, %v1254
        %v1261 = vor.u32 %v1259, %v1260
        %v1262 = vshll.u32 2131351028, %v1253
        %v1263 = vshrl.u32 2102212464, %v1254
        %v1264 = vor.u32 %v1262, %v1263
        %v1265 = vshll.u32 2102212464, %v1253
        %v1266 = vshrl.u32 920167782, %v1254
        %v1267 = vor.u32 %v1265, %v1266
        %v1268 = vshll.u32 920167782, %v1253
        %v1269 = vshrl.u32 1326507024, %v1254
        %v1270 = vor.u32 %v1268, %v1269
        %vm1271 = vcmp.lt.s32.totalorder %v1252, 1
        %vm1272 = vcmp.lt.s32.totalorder %v1252, 2
        %vm1273 = vcmp.lt.s32.totalorder %v1252, 3
        %vm1274 = vcmp.lt.s32.totalorder %v1252, 4
        %v1275 = vsel %vm1271, %v1255, %v1258
        %v1276 = vsel %vm1274, %v1264, 2102212464
        %v1277 = vsel %vm1273, %v1261, %v1276
        %v1278 = vsel %vm1272, %v1275, %v1277
        %v1279 = vsel %vm1271, %v1258, %v1261
        %v1280 = vsel %vm1274, %v1267, 920167782
        %v1281 = vsel %vm1273, %v1264, %v1280
        %v1282 = vsel %vm1272, %v1279, %v1281
        %v1283 = vsel %vm1271, %v1261, %v1264
        %v1284 = vsel %vm1274, %v1270, 1326507024
        %v1285 = vsel %vm1273, %v1267, %v1284
        %v1286 = vsel %vm1272, %v1283, %v1285
        %v1287 = vshll.u32 %v1247, 8
        %v1288 = vand.u32 %v1287, 65535
        %v1289 = vshrl.u32 %v1287, 16
        %v1290 = vand.u32 %v1286, 65535
        %v1291 = vshrl.u32 %v1286, 16
        %v1292 = vmul.u32 %v1288, %v1290
        %v1293 = vmul.u32 %v1288, %v1291
        %v1294 = vmul.u32 %v1289, %v1290
        %v1295 = vmul.u32 %v1289, %v1291
        %v1296 = vshll.u32 %v1293, 16
        %v1297 = vshrl.u32 %v1293, 16
        %v1298 = vshll.u32 %v1294, 16
        %v1299 = vshrl.u32 %v1294, 16
        %vm1300 = vc.u32 %v1292, %v1296
        %v1301 = vsel %vm1300, 1, 0
        %v1302 = vadd.s32 %v1292, %v1296
        %v1303 = vadd.s32 %v1295, %v1301
        %vm1304 = vc.u32 %v1302, %v1298
        %v1305 = vsel %vm1304, 1, 0
        %v1306 = vadd.s32 %v1302, %v1298
        %v1307 = vadd.s32 %v1303, %v1305
        %v1308 = vadd.s32 %v1307, %v1297
        %v1309 = vadd.s32 %v1308, %v1299
        %v1310 = vand.u32 %v1287, 65535
        %v1311 = vshrl.u32 %v1287, 16
        %v1312 = vand.u32 %v1282, 65535
        %v1313 = vshrl.u32 %v1282, 16
        %v1314 = vmul.u32 %v1310, %v1312
        %v1315 = vmul.u32 %v1310, %v1313
        %v1316 = vmul.u32 %v1311, %v1312
        %v1317 = vmul.u32 %v1311, %v1313
        %v1318 = vshll.u32 %v1315, 16
        %v1319 = vshrl.u32 %v1315, 16
        %v1320 = vshll.u32 %v1316, 16
        %v1321 = vshrl.u32 %v1316, 16
        %vm1322 = vc.u32 %v1314, %v1318
        %v1323 = vsel %vm1322, 1, 0
        %v1324 = vadd.s32 %v1314, %v1318
        %v1325 = vadd.s32 %v1317, %v1323
        %vm1326 = vc.u32 %v1324, %v1320
        %v1327 = vsel %vm1326, 1, 0
        %v1328 = vadd.s32 %v1324, %v1320
        %v1329 = vadd.s32 %v1325, %v1327
        %v1330 = vadd.s32 %v1329, %v1319
        %v1331 = vadd.s32 %v1330, %v1321
        %v1332 = vmul.u32 %v1287, %v1278
        %v1333 = vadd.s32 %v1309, %v1328
        %vm1334 = vc.u32 %v1309, %v1328
        %v1335 = vadd.s32 %v1331, 1
        %v1336 = vsel %vm1334, %v1335, %v1331
        %v1337 = vadd.s32 %v1332, %v1336
        %v1338 = vadd.s32 %v1337, 536870912
        %v1339 = vshrl.u32 %v1338, 30
        %v1340 = vshll.u32 %v1339, 30
        %v1341 = vsub.s32 %v1337, %v1340
        %vm1342 = vcmp.lt.s32.totalorder %v1341, 0
        %v1343 = vsub.s32 0, %v1341
        %v1344 = vsel %vm1342, %v1343, %v1341
        %v1345 = vclz %v1344
        %v1346 = vsub.s32 %v1345, 2
        %vm1347 = vcmp.gt.s32.totalorder 0, %v1346
        %v1348 = vsel %vm1347, 0, %v1346
        %v1349 = vsub.s32 32, %v1348
        %v1350 = vshll.u32 %v1341, %v1348
        %v1351 = vshrl.u32 %v1333, %v1349
        %v1352 = vor.u32 %v1350, %v1351
        %v1353 = vsub.s32 4294967266, %v1348
        %v1354 = vadd.s32 %v1353, 127
        %v1355 = vshll.u32 %v1354, 23
        %v1356 = vor.u32 4788187, %v1355
        %v1357 = vand.u32 2147483647, %v1356
        %v1359 = vcvt.s32.f32 %v1352
        %v1360 = vmul.f32 %v1359, %v1357
        %v1361 = vxor.u32 %v1360, 2147483648
        %v1362 = vsel %vm1241, %v1361, %v1360
        %v1363 = vsub.s32 4, %v1339
        %v1364 = vsel %vm1241, %v1363, %v1339
        %v1365 = vsel %vm1240, %v371, %v1362
        %v1366 = vsel %vm1240, 0, %v1364
        %v1367 = vmul.f32 %v1365, %v1365
        %v1368 = vmul.f32 %v1367, -0.001358992
        %v1369 = vadd.f32 %v1368, 0.041655596
        %v1370 = vmul.f32 %v1367, %v1369
        %v1371 = vadd.f32 %v1370, -0.4999988
        %v1372 = vmul.f32 %v1367, %v1371
        %v1373 = vadd.f32 1.0, %v1372
        %v1374 = vmul.f32 %v1365, %v1365
        %v1375 = vmul.f32 %v1374, -0.00019511016
        %v1376 = vadd.f32 %v1375, 0.008332121
        %v1377 = vmul.f32 %v1374, %v1376
        %v1378 = vadd.f32 %v1377, -0.16666654
        %v1379 = vmul.f32 %v1374, %v1378
        %v1380 = vadd.f32 %v1379, 1.0
        %v1381 = vmul.f32 %v1380, %v1365
        %vm1382 = vweird.f32 %v371
        %v1383 = vand.u32 %v1366, 3
        %vm1384 = vcmp.lt.s32.totalorder %v1383, 2
        %vm1385 = vcmp.eq.s32.totalorder %v1383, 0
        %v1386 = vxor.u32 %v1381, 2147483648
        %v1387 = vsel %vm1385, %v1373, %v1386
        %vm1388 = vcmp.eq.s32.totalorder %v1383, 2
        %v1389 = vxor.u32 %v1373, 2147483648
        %v1390 = vsel %vm1388, %v1389, %v1381
        %v1391 = vsel %vm1384, %v1387, %v1390
        %v1392 = vsel %vm1382, nan, %v1391
        %v1393 = vand.u32 2147483647, %v374
        %vm1394 = vcmp.le.f32.partialorder %v1393, 0.7853982
        %vm1395 = vcmp.lt.s32.totalorder %v374, 0
        %v1396 = vand.u32 %v374, 2139095040
        %v1397 = vshrl.u32 %v1396, 23
        %v1398 = vsub.s32 %v1397, 127
        %v1399 = vand.u32 2147483647, %v374
        %v1400 = vand.u32 %v1399, 8388607
        %v1401 = vor.u32 %v1400, 8388608
        %v1402 = vsub.s32 0, %v1401
        %v1403 = vadd.s32 %v1398, 1
        %vm1404 = vcmp.gt.s32.totalorder %v1403, 0
        %v1405 = vsel %vm1404, %v1403, 0
        %v1406 = vshrl.u32 %v1405, 5
        %v1407 = vand.u32 %v1405, 31
        %v1408 = vsub.s32 32, %v1407
        %v1409 = vshrl.u32 683565275, %v1408
        %v1410 = vshll.u32 683565275, %v1407
        %v1411 = vshrl.u32 2475754826, %v1408
        %v1412 = vor.u32 %v1410, %v1411
        %v1413 = vshll.u32 2475754826, %v1407
        %v1414 = vshrl.u32 2131351028, %v1408
        %v1415 = vor.u32 %v1413, %v1414
        %v1416 = vshll.u32 2131351028, %v1407
        %v1417 = vshrl.u32 2102212464, %v1408
        %v1418 = vor.u32 %v1416, %v1417
        %v1419 = vshll.u32 2102212464, %v1407
        %v1420 = vshrl.u32 920167782, %v1408
        %v1421 = vor.u32 %v1419, %v1420
        %v1422 = vshll.u32 920167782, %v1407
        %v1423 = vshrl.u32 1326507024, %v1408
        %v1424 = vor.u32 %v1422, %v1423
        %vm1425 = vcmp.lt.s32.totalorder %v1406, 1
        %vm1426 = vcmp.lt.s32.totalorder %v1406, 2
        %vm1427 = vcmp.lt.s32.totalorder %v1406, 3
        %vm1428 = vcmp.lt.s32.totalorder %v1406, 4
        %v1429 = vsel %vm1425, %v1409, %v1412
        %v1430 = vsel %vm1428, %v1418, 2102212464
        %v1431 = vsel %vm1427, %v1415, %v1430
        %v1432 = vsel %vm1426, %v1429, %v1431
        %v1433 = vsel %vm1425, %v1412, %v1415
        %v1434 = vsel %vm1428, %v1421, 920167782
        %v1435 = vsel %vm1427, %v1418, %v1434
        %v1436 = vsel %vm1426, %v1433, %v1435
        %v1437 = vsel %vm1425, %v1415, %v1418
        %v1438 = vsel %vm1428, %v1424, 1326507024
        %v1439 = vsel %vm1427, %v1421, %v1438
        %v1440 = vsel %vm1426, %v1437, %v1439
        %v1441 = vshll.u32 %v1401, 8
        %v1442 = vand.u32 %v1441, 65535
        %v1443 = vshrl.u32 %v1441, 16
        %v1444 = vand.u32 %v1440, 65535
        %v1445 = vshrl.u32 %v1440, 16
        %v1446 = vmul.u32 %v1442, %v1444
        %v1447 = vmul.u32 %v1442, %v1445
        %v1448 = vmul.u32 %v1443, %v1444
        %v1449 = vmul.u32 %v1443, %v1445
        %v1450 = vshll.u32 %v1447, 16
        %v1451 = vshrl.u32 %v1447, 16
        %v1452 = vshll.u32 %v1448, 16
        %v1453 = vshrl.u32 %v1448, 16
        %vm1454 = vc.u32 %v1446, %v1450
        %v1455 = vsel %vm1454, 1, 0
        %v1456 = vadd.s32 %v1446, %v1450
        %v1457 = vadd.s32 %v1449, %v1455
        %vm1458 = vc.u32 %v1456, %v1452
        %v1459 = vsel %vm1458, 1, 0
        %v1460 = vadd.s32 %v1456, %v1452
        %v1461 = vadd.s32 %v1457, %v1459
        %v1462 = vadd.s32 %v1461, %v1451
        %v1463 = vadd.s32 %v1462, %v1453
        %v1464 = vand.u32 %v1441, 65535
        %v1465 = vshrl.u32 %v1441, 16
        %v1466 = vand.u32 %v1436, 65535
        %v1467 = vshrl.u32 %v1436, 16
        %v1468 = vmul.u32 %v1464, %v1466
        %v1469 = vmul.u32 %v1464, %v1467
        %v1470 = vmul.u32 %v1465, %v1466
        %v1471 = vmul.u32 %v1465, %v1467
        %v1472 = vshll.u32 %v1469, 16
        %v1473 = vshrl.u32 %v1469, 16
        %v1474 = vshll.u32 %v1470, 16
        %v1475 = vshrl.u32 %v1470, 16
        %vm1476 = vc.u32 %v1468, %v1472
        %v1477 = vsel %vm1476, 1, 0
        %v1478 = vadd.s32 %v1468, %v1472
        %v1479 = vadd.s32 %v1471, %v1477
        %vm1480 = vc.u32 %v1478, %v1474
        %v1481 = vsel %vm1480, 1, 0
        %v1482 = vadd.s32 %v1478, %v1474
        %v1483 = vadd.s32 %v1479, %v1481
        %v1484 = vadd.s32 %v1483, %v1473
        %v1485 = vadd.s32 %v1484, %v1475
        %v1486 = vmul.u32 %v1441, %v1432
        %v1487 = vadd.s32 %v1463, %v1482
        %vm1488 = vc.u32 %v1463, %v1482
        %v1489 = vadd.s32 %v1485, 1
        %v1490 = vsel %vm1488, %v1489, %v1485
        %v1491 = vadd.s32 %v1486, %v1490
        %v1492 = vadd.s32 %v1491, 536870912
        %v1493 = vshrl.u32 %v1492, 30
        %v1494 = vshll.u32 %v1493, 30
        %v1495 = vsub.s32 %v1491, %v1494
        %vm1496 = vcmp.lt.s32.totalorder %v1495, 0
        %v1497 = vsub.s32 0, %v1495
        %v1498 = vsel %vm1496, %v1497, %v1495
        %v1499 = vclz %v1498
        %v1500 = vsub.s32 %v1499, 2
        %vm1501 = vcmp.gt.s32.totalorder 0, %v1500
        %v1502 = vsel %vm1501, 0, %v1500
        %v1503 = vsub.s32 32, %v1502
        %v1504 = vshll.u32 %v1495, %v1502
        %v1505 = vshrl.u32 %v1487, %v1503
        %v1506 = vor.u32 %v1504, %v1505
        %v1507 = vsub.s32 4294967266, %v1502
        %v1508 = vadd.s32 %v1507, 127
        %v1509 = vshll.u32 %v1508, 23
        %v1510 = vor.u32 4788187, %v1509
        %v1511 = vand.u32 2147483647, %v1510
        %v1513 = vcvt.s32.f32 %v1506
        %v1514 = vmul.f32 %v1513, %v1511
        %v1515 = vxor.u32 %v1514, 2147483648
        %v1516 = vsel %vm1395, %v1515, %v1514
        %v1517 = vsub.s32 4, %v1493
        %v1518 = vsel %vm1395, %v1517, %v1493
        %v1519 = vsel %vm1394, %v374, %v1516
        %v1520 = vsel %vm1394, 0, %v1518
        %v1521 = vmul.f32 %v1519, %v1519
        %v1522 = vmul.f32 %v1521, -0.001358992
        %v1523 = vadd.f32 %v1522, 0.041655596
        %v1524 = vmul.f32 %v1521, %v1523
        %v1525 = vadd.f32 %v1524, -0.4999988
        %v1526 = vmul.f32 %v1521, %v1525
        %v1527 = vadd.f32 1.0, %v1526
        %v1528 = vmul.f32 %v1519, %v1519
        %v1529 = vmul.f32 %v1528, -0.00019511016
        %v1530 = vadd.f32 %v1529, 0.008332121
        %v1531 = vmul.f32 %v1528, %v1530
        %v1532 = vadd.f32 %v1531, -0.16666654
        %v1533 = vmul.f32 %v1528, %v1532
        %v1534 = vadd.f32 %v1533, 1.0
        %v1535 = vmul.f32 %v1534, %v1519
        %vm1536 = vweird.f32 %v374
        %v1537 = vand.u32 %v1520, 3
        %vm1538 = vcmp.lt.s32.totalorder %v1537, 2
        %vm1539 = vcmp.eq.s32.totalorder %v1537, 0
        %v1540 = vxor.u32 %v1535, 2147483648
        %v1541 = vsel %vm1539, %v1527, %v1540
        %vm1542 = vcmp.eq.s32.totalorder %v1537, 2
        %v1543 = vxor.u32 %v1527, 2147483648
        %v1544 = vsel %vm1542, %v1543, %v1535
        %v1545 = vsel %vm1538, %v1541, %v1544
        %v1546 = vsel %vm1536, nan, %v1545
        %v1547 = vand.u32 2147483647, %v377
        %vm1548 = vcmp.le.f32.partialorder %v1547, 0.7853982
        %vm1549 = vcmp.lt.s32.totalorder %v377, 0
        %v1550 = vand.u32 %v377, 2139095040
        %v1551 = vshrl.u32 %v1550, 23
        %v1552 = vsub.s32 %v1551, 127
        %v1553 = vand.u32 2147483647, %v377
        %v1554 = vand.u32 %v1553, 8388607
        %v1555 = vor.u32 %v1554, 8388608
        %v1556 = vsub.s32 0, %v1555
        %v1557 = vadd.s32 %v1552, 1
        %vm1558 = vcmp.gt.s32.totalorder %v1557, 0
        %v1559 = vsel %vm1558, %v1557, 0
        %v1560 = vshrl.u32 %v1559, 5
        %v1561 = vand.u32 %v1559, 31
        %v1562 = vsub.s32 32, %v1561
        %v1563 = vshrl.u32 683565275, %v1562
        %v1564 = vshll.u32 683565275, %v1561
        %v1565 = vshrl.u32 2475754826, %v1562
        %v1566 = vor.u32 %v1564, %v1565
        %v1567 = vshll.u32 2475754826, %v1561
        %v1568 = vshrl.u32 2131351028, %v1562
        %v1569 = vor.u32 %v1567, %v1568
        %v1570 = vshll.u32 2131351028, %v1561
        %v1571 = vshrl.u32 2102212464, %v1562
        %v1572 = vor.u32 %v1570, %v1571
        %v1573 = vshll.u32 2102212464, %v1561
        %v1574 = vshrl.u32 920167782, %v1562
        %v1575 = vor.u32 %v1573, %v1574
        %v1576 = vshll.u32 920167782, %v1561
        %v1577 = vshrl.u32 1326507024, %v1562
        %v1578 = vor.u32 %v1576, %v1577
        %vm1579 = vcmp.lt.s32.totalorder %v1560, 1
        %vm1580 = vcmp.lt.s32.totalorder %v1560, 2
        %vm1581 = vcmp.lt.s32.totalorder %v1560, 3
        %vm1582 = vcmp.lt.s32.totalorder %v1560, 4
        %v1583 = vsel %vm1579, %v1563, %v1566
        %v1584 = vsel %vm1582, %v1572, 2102212464
        %v1585 = vsel %vm1581, %v1569, %v1584
        %v1586 = vsel %vm1580, %v1583, %v1585
        %v1587 = vsel %vm1579, %v1566, %v1569
        %v1588 = vsel %vm1582, %v1575, 920167782
        %v1589 = vsel %vm1581, %v1572, %v1588
        %v1590 = vsel %vm1580, %v1587, %v1589
        %v1591 = vsel %vm1579, %v1569, %v1572
        %v1592 = vsel %vm1582, %v1578, 1326507024
        %v1593 = vsel %vm1581, %v1575, %v1592
        %v1594 = vsel %vm1580, %v1591, %v1593
        %v1595 = vshll.u32 %v1555, 8
        %v1596 = vand.u32 %v1595, 65535
        %v1597 = vshrl.u32 %v1595, 16
        %v1598 = vand.u32 %v1594, 65535
        %v1599 = vshrl.u32 %v1594, 16
        %v1600 = vmul.u32 %v1596, %v1598
        %v1601 = vmul.u32 %v1596, %v1599
        %v1602 = vmul.u32 %v1597, %v1598
        %v1603 = vmul.u32 %v1597, %v1599
        %v1604 = vshll.u32 %v1601, 16
        %v1605 = vshrl.u32 %v1601, 16
        %v1606 = vshll.u32 %v1602, 16
        %v1607 = vshrl.u32 %v1602, 16
        %vm1608 = vc.u32 %v1600, %v1604
        %v1609 = vsel %vm1608, 1, 0
        %v1610 = vadd.s32 %v1600, %v1604
        %v1611 = vadd.s32 %v1603, %v1609
        %vm1612 = vc.u32 %v1610, %v1606
        %v1613 = vsel %vm1612, 1, 0
        %v1614 = vadd.s32 %v1610, %v1606
        %v1615 = vadd.s32 %v1611, %v1613
        %v1616 = vadd.s32 %v1615, %v1605
        %v1617 = vadd.s32 %v1616, %v1607
        %v1618 = vand.u32 %v1595, 65535
        %v1619 = vshrl.u32 %v1595, 16
        %v1620 = vand.u32 %v1590, 65535
        %v1621 = vshrl.u32 %v1590, 16
        %v1622 = vmul.u32 %v1618, %v1620
        %v1623 = vmul.u32 %v1618, %v1621
        %v1624 = vmul.u32 %v1619, %v1620
        %v1625 = vmul.u32 %v1619, %v1621
        %v1626 = vshll.u32 %v1623, 16
        %v1627 = vshrl.u32 %v1623, 16
        %v1628 = vshll.u32 %v1624, 16
        %v1629 = vshrl.u32 %v1624, 16
        %vm1630 = vc.u32 %v1622, %v1626
        %v1631 = vsel %vm1630, 1, 0
        %v1632 = vadd.s32 %v1622, %v1626
        %v1633 = vadd.s32 %v1625, %v1631
        %vm1634 = vc.u32 %v1632, %v1628
        %v1635 = vsel %vm1634, 1, 0
        %v1636 = vadd.s32 %v1632, %v1628
        %v1637 = vadd.s32 %v1633, %v1635
        %v1638 = vadd.s32 %v1637, %v1627
        %v1639 = vadd.s32 %v1638, %v1629
        %v1640 = vmul.u32 %v1595, %v1586
        %v1641 = vadd.s32 %v1617, %v1636
        %vm1642 = vc.u32 %v1617, %v1636
        %v1643 = vadd.s32 %v1639, 1
        %v1644 = vsel %vm1642, %v1643, %v1639
        %v1645 = vadd.s32 %v1640, %v1644
        %v1646 = vadd.s32 %v1645, 536870912
        %v1647 = vshrl.u32 %v1646, 30
        %v1648 = vshll.u32 %v1647, 30
        %v1649 = vsub.s32 %v1645, %v1648
        %vm1650 = vcmp.lt.s32.totalorder %v1649, 0
        %v1651 = vsub.s32 0, %v1649
        %v1652 = vsel %vm1650, %v1651, %v1649
        %v1653 = vclz %v1652
        %v1654 = vsub.s32 %v1653, 2
        %vm1655 = vcmp.gt.s32.totalorder 0, %v1654
        %v1656 = vsel %vm1655, 0, %v1654
        %v1657 = vsub.s32 32, %v1656
        %v1658 = vshll.u32 %v1649, %v1656
        %v1659 = vshrl.u32 %v1641, %v1657
        %v1660 = vor.u32 %v1658, %v1659
        %v1661 = vsub.s32 4294967266, %v1656
        %v1662 = vadd.s32 %v1661, 127
        %v1663 = vshll.u32 %v1662, 23
        %v1664 = vor.u32 4788187, %v1663
        %v1665 = vand.u32 2147483647, %v1664
        %v1667 = vcvt.s32.f32 %v1660
        %v1668 = vmul.f32 %v1667, %v1665
        %v1669 = vxor.u32 %v1668, 2147483648
        %v1670 = vsel %vm1549, %v1669, %v1668
        %v1671 = vsub.s32 4, %v1647
        %v1672 = vsel %vm1549, %v1671, %v1647
        %v1673 = vsel %vm1548, %v377, %v1670
        %v1674 = vsel %vm1548, 0, %v1672
        %v1675 = vmul.f32 %v1673, %v1673
        %v1676 = vmul.f32 %v1675, -0.001358992
        %v1677 = vadd.f32 %v1676, 0.041655596
        %v1678 = vmul.f32 %v1675, %v1677
        %v1679 = vadd.f32 %v1678, -0.4999988
        %v1680 = vmul.f32 %v1675, %v1679
        %v1681 = vadd.f32 1.0, %v1680
        %v1682 = vmul.f32 %v1673, %v1673
        %v1683 = vmul.f32 %v1682, -0.00019511016
        %v1684 = vadd.f32 %v1683, 0.008332121
        %v1685 = vmul.f32 %v1682, %v1684
        %v1686 = vadd.f32 %v1685, -0.16666654
        %v1687 = vmul.f32 %v1682, %v1686
        %v1688 = vadd.f32 %v1687, 1.0
        %v1689 = vmul.f32 %v1688, %v1673
        %vm1690 = vweird.f32 %v377
        %v1691 = vand.u32 %v1674, 3
        %vm1692 = vcmp.lt.s32.totalorder %v1691, 2
        %vm1693 = vcmp.eq.s32.totalorder %v1691, 0
        %v1694 = vxor.u32 %v1689, 2147483648
        %v1695 = vsel %vm1693, %v1681, %v1694
        %vm1696 = vcmp.eq.s32.totalorder %v1691, 2
        %v1697 = vxor.u32 %v1681, 2147483648
        %v1698 = vsel %vm1696, %v1697, %v1689
        %v1699 = vsel %vm1692, %v1695, %v1698
        %v1700 = vsel %vm1690, nan, %v1699
        %v1701 = vand.u32 2147483647, %v380
        %vm1702 = vcmp.le.f32.partialorder %v1701, 0.7853982
        %vm1703 = vcmp.lt.s32.totalorder %v380, 0
        %v1704 = vand.u32 %v380, 2139095040
        %v1705 = vshrl.u32 %v1704, 23
        %v1706 = vsub.s32 %v1705, 127
        %v1707 = vand.u32 2147483647, %v380
        %v1708 = vand.u32 %v1707, 8388607
        %v1709 = vor.u32 %v1708, 8388608
        %v1710 = vsub.s32 0, %v1709
        %v1711 = vadd.s32 %v1706, 1
        %vm1712 = vcmp.gt.s32.totalorder %v1711, 0
        %v1713 = vsel %vm1712, %v1711, 0
        %v1714 = vshrl.u32 %v1713, 5
        %v1715 = vand.u32 %v1713, 31
        %v1716 = vsub.s32 32, %v1715
        %v1717 = vshrl.u32 683565275, %v1716
        %v1718 = vshll.u32 683565275, %v1715
        %v1719 = vshrl.u32 2475754826, %v1716
        %v1720 = vor.u32 %v1718, %v1719
        %v1721 = vshll.u32 2475754826, %v1715
        %v1722 = vshrl.u32 2131351028, %v1716
        %v1723 = vor.u32 %v1721, %v1722
        %v1724 = vshll.u32 2131351028, %v1715
        %v1725 = vshrl.u32 2102212464, %v1716
        %v1726 = vor.u32 %v1724, %v1725
        %v1727 = vshll.u32 2102212464, %v1715
        %v1728 = vshrl.u32 920167782, %v1716
        %v1729 = vor.u32 %v1727, %v1728
        %v1730 = vshll.u32 920167782, %v1715
        %v1731 = vshrl.u32 1326507024, %v1716
        %v1732 = vor.u32 %v1730, %v1731
        %vm1733 = vcmp.lt.s32.totalorder %v1714, 1
        %vm1734 = vcmp.lt.s32.totalorder %v1714, 2
        %vm1735 = vcmp.lt.s32.totalorder %v1714, 3
        %vm1736 = vcmp.lt.s32.totalorder %v1714, 4
        %v1737 = vsel %vm1733, %v1717, %v1720
        %v1738 = vsel %vm1736, %v1726, 2102212464
        %v1739 = vsel %vm1735, %v1723, %v1738
        %v1740 = vsel %vm1734, %v1737, %v1739
        %v1741 = vsel %vm1733, %v1720, %v1723
        %v1742 = vsel %vm1736, %v1729, 920167782
        %v1743 = vsel %vm1735, %v1726, %v1742
        %v1744 = vsel %vm1734, %v1741, %v1743
        %v1745 = vsel %vm1733, %v1723, %v1726
        %v1746 = vsel %vm1736, %v1732, 1326507024
        %v1747 = vsel %vm1735, %v1729, %v1746
        %v1748 = vsel %vm1734, %v1745, %v1747
        %v1749 = vshll.u32 %v1709, 8
        %v1750 = vand.u32 %v1749, 65535
        %v1751 = vshrl.u32 %v1749, 16
        %v1752 = vand.u32 %v1748, 65535
        %v1753 = vshrl.u32 %v1748, 16
        %v1754 = vmul.u32 %v1750, %v1752
        %v1755 = vmul.u32 %v1750, %v1753
        %v1756 = vmul.u32 %v1751, %v1752
        %v1757 = vmul.u32 %v1751, %v1753
        %v1758 = vshll.u32 %v1755, 16
        %v1759 = vshrl.u32 %v1755, 16
        %v1760 = vshll.u32 %v1756, 16
        %v1761 = vshrl.u32 %v1756, 16
        %vm1762 = vc.u32 %v1754, %v1758
        %v1763 = vsel %vm1762, 1, 0
        %v1764 = vadd.s32 %v1754, %v1758
        %v1765 = vadd.s32 %v1757, %v1763
        %vm1766 = vc.u32 %v1764, %v1760
        %v1767 = vsel %vm1766, 1, 0
        %v1768 = vadd.s32 %v1764, %v1760
        %v1769 = vadd.s32 %v1765, %v1767
        %v1770 = vadd.s32 %v1769, %v1759
        %v1771 = vadd.s32 %v1770, %v1761
        %v1772 = vand.u32 %v1749, 65535
        %v1773 = vshrl.u32 %v1749, 16
        %v1774 = vand.u32 %v1744, 65535
        %v1775 = vshrl.u32 %v1744, 16
        %v1776 = vmul.u32 %v1772, %v1774
        %v1777 = vmul.u32 %v1772, %v1775
        %v1778 = vmul.u32 %v1773, %v1774
        %v1779 = vmul.u32 %v1773, %v1775
        %v1780 = vshll.u32 %v1777, 16
        %v1781 = vshrl.u32 %v1777, 16
        %v1782 = vshll.u32 %v1778, 16
        %v1783 = vshrl.u32 %v1778, 16
        %vm1784 = vc.u32 %v1776, %v1780
        %v1785 = vsel %vm1784, 1, 0
        %v1786 = vadd.s32 %v1776, %v1780
        %v1787 = vadd.s32 %v1779, %v1785
        %vm1788 = vc.u32 %v1786, %v1782
        %v1789 = vsel %vm1788, 1, 0
        %v1790 = vadd.s32 %v1786, %v1782
        %v1791 = vadd.s32 %v1787, %v1789
        %v1792 = vadd.s32 %v1791, %v1781
        %v1793 = vadd.s32 %v1792, %v1783
        %v1794 = vmul.u32 %v1749, %v1740
        %v1795 = vadd.s32 %v1771, %v1790
        %vm1796 = vc.u32 %v1771, %v1790
        %v1797 = vadd.s32 %v1793, 1
        %v1798 = vsel %vm1796, %v1797, %v1793
        %v1799 = vadd.s32 %v1794, %v1798
        %v1800 = vadd.s32 %v1799, 536870912
        %v1801 = vshrl.u32 %v1800, 30
        %v1802 = vshll.u32 %v1801, 30
        %v1803 = vsub.s32 %v1799, %v1802
        %vm1804 = vcmp.lt.s32.totalorder %v1803, 0
        %v1805 = vsub.s32 0, %v1803
        %v1806 = vsel %vm1804, %v1805, %v1803
        %v1807 = vclz %v1806
        %v1808 = vsub.s32 %v1807, 2
        %vm1809 = vcmp.gt.s32.totalorder 0, %v1808
        %v1810 = vsel %vm1809, 0, %v1808
        %v1811 = vsub.s32 32, %v1810
        %v1812 = vshll.u32 %v1803, %v1810
        %v1813 = vshrl.u32 %v1795, %v1811
        %v1814 = vor.u32 %v1812, %v1813
        %v1815 = vsub.s32 4294967266, %v1810
        %v1816 = vadd.s32 %v1815, 127
        %v1817 = vshll.u32 %v1816, 23
        %v1818 = vor.u32 4788187, %v1817
        %v1819 = vand.u32 2147483647, %v1818
        %v1821 = vcvt.s32.f32 %v1814
        %v1822 = vmul.f32 %v1821, %v1819
        %v1823 = vxor.u32 %v1822, 2147483648
        %v1824 = vsel %vm1703, %v1823, %v1822
        %v1825 = vsub.s32 4, %v1801
        %v1826 = vsel %vm1703, %v1825, %v1801
        %v1827 = vsel %vm1702, %v380, %v1824
        %v1828 = vsel %vm1702, 0, %v1826
        %v1829 = vmul.f32 %v1827, %v1827
        %v1830 = vmul.f32 %v1829, -0.001358992
        %v1831 = vadd.f32 %v1830, 0.041655596
        %v1832 = vmul.f32 %v1829, %v1831
        %v1833 = vadd.f32 %v1832, -0.4999988
        %v1834 = vmul.f32 %v1829, %v1833
        %v1835 = vadd.f32 1.0, %v1834
        %v1836 = vmul.f32 %v1827, %v1827
        %v1837 = vmul.f32 %v1836, -0.00019511016
        %v1838 = vadd.f32 %v1837, 0.008332121
        %v1839 = vmul.f32 %v1836, %v1838
        %v1840 = vadd.f32 %v1839, -0.16666654
        %v1841 = vmul.f32 %v1836, %v1840
        %v1842 = vadd.f32 %v1841, 1.0
        %v1843 = vmul.f32 %v1842, %v1827
        %vm1844 = vweird.f32 %v380
        %v1845 = vand.u32 %v1828, 3
        %vm1846 = vcmp.lt.s32.totalorder %v1845, 2
        %vm1847 = vcmp.eq.s32.totalorder %v1845, 0
        %v1848 = vxor.u32 %v1843, 2147483648
        %v1849 = vsel %vm1847, %v1835, %v1848
        %vm1850 = vcmp.eq.s32.totalorder %v1845, 2
        %v1851 = vxor.u32 %v1835, 2147483648
        %v1852 = vsel %vm1850, %v1851, %v1843
        %v1853 = vsel %vm1846, %v1849, %v1852
        %v1854 = vsel %vm1844, nan, %v1853
        %v1855 = vand.u32 2147483647, %v383
        %vm1856 = vcmp.le.f32.partialorder %v1855, 0.7853982
        %vm1857 = vcmp.lt.s32.totalorder %v383, 0
        %v1858 = vand.u32 %v383, 2139095040
        %v1859 = vshrl.u32 %v1858, 23
        %v1860 = vsub.s32 %v1859, 127
        %v1861 = vand.u32 2147483647, %v383
        %v1862 = vand.u32 %v1861, 8388607
        %v1863 = vor.u32 %v1862, 8388608
        %v1864 = vsub.s32 0, %v1863
        %v1865 = vadd.s32 %v1860, 1
        %vm1866 = vcmp.gt.s32.totalorder %v1865, 0
        %v1867 = vsel %vm1866, %v1865, 0
        %v1868 = vshrl.u32 %v1867, 5
        %v1869 = vand.u32 %v1867, 31
        %v1870 = vsub.s32 32, %v1869
        %v1871 = vshrl.u32 683565275, %v1870
        %v1872 = vshll.u32 683565275, %v1869
        %v1873 = vshrl.u32 2475754826, %v1870
        %v1874 = vor.u32 %v1872, %v1873
        %v1875 = vshll.u32 2475754826, %v1869
        %v1876 = vshrl.u32 2131351028, %v1870
        %v1877 = vor.u32 %v1875, %v1876
        %v1878 = vshll.u32 2131351028, %v1869
        %v1879 = vshrl.u32 2102212464, %v1870
        %v1880 = vor.u32 %v1878, %v1879
        %v1881 = vshll.u32 2102212464, %v1869
        %v1882 = vshrl.u32 920167782, %v1870
        %v1883 = vor.u32 %v1881, %v1882
        %v1884 = vshll.u32 920167782, %v1869
        %v1885 = vshrl.u32 1326507024, %v1870
        %v1886 = vor.u32 %v1884, %v1885
        %vm1887 = vcmp.lt.s32.totalorder %v1868, 1
        %vm1888 = vcmp.lt.s32.totalorder %v1868, 2
        %vm1889 = vcmp.lt.s32.totalorder %v1868, 3
        %vm1890 = vcmp.lt.s32.totalorder %v1868, 4
        %v1891 = vsel %vm1887, %v1871, %v1874
        %v1892 = vsel %vm1890, %v1880, 2102212464
        %v1893 = vsel %vm1889, %v1877, %v1892
        %v1894 = vsel %vm1888, %v1891, %v1893
        %v1895 = vsel %vm1887, %v1874, %v1877
        %v1896 = vsel %vm1890, %v1883, 920167782
        %v1897 = vsel %vm1889, %v1880, %v1896
        %v1898 = vsel %vm1888, %v1895, %v1897
        %v1899 = vsel %vm1887, %v1877, %v1880
        %v1900 = vsel %vm1890, %v1886, 1326507024
        %v1901 = vsel %vm1889, %v1883, %v1900
        %v1902 = vsel %vm1888, %v1899, %v1901
        %v1903 = vshll.u32 %v1863, 8
        %v1904 = vand.u32 %v1903, 65535
        %v1905 = vshrl.u32 %v1903, 16
        %v1906 = vand.u32 %v1902, 65535
        %v1907 = vshrl.u32 %v1902, 16
        %v1908 = vmul.u32 %v1904, %v1906
        %v1909 = vmul.u32 %v1904, %v1907
        %v1910 = vmul.u32 %v1905, %v1906
        %v1911 = vmul.u32 %v1905, %v1907
        %v1912 = vshll.u32 %v1909, 16
        %v1913 = vshrl.u32 %v1909, 16
        %v1914 = vshll.u32 %v1910, 16
        %v1915 = vshrl.u32 %v1910, 16
        %vm1916 = vc.u32 %v1908, %v1912
        %v1917 = vsel %vm1916, 1, 0
        %v1918 = vadd.s32 %v1908, %v1912
        %v1919 = vadd.s32 %v1911, %v1917
        %vm1920 = vc.u32 %v1918, %v1914
        %v1921 = vsel %vm1920, 1, 0
        %v1922 = vadd.s32 %v1918, %v1914
        %v1923 = vadd.s32 %v1919, %v1921
        %v1924 = vadd.s32 %v1923, %v1913
        %v1925 = vadd.s32 %v1924, %v1915
        %v1926 = vand.u32 %v1903, 65535
        %v1927 = vshrl.u32 %v1903, 16
        %v1928 = vand.u32 %v1898, 65535
        %v1929 = vshrl.u32 %v1898, 16
        %v1930 = vmul.u32 %v1926, %v1928
        %v1931 = vmul.u32 %v1926, %v1929
        %v1932 = vmul.u32 %v1927, %v1928
        %v1933 = vmul.u32 %v1927, %v1929
        %v1934 = vshll.u32 %v1931, 16
        %v1935 = vshrl.u32 %v1931, 16
        %v1936 = vshll.u32 %v1932, 16
        %v1937 = vshrl.u32 %v1932, 16
        %vm1938 = vc.u32 %v1930, %v1934
        %v1939 = vsel %vm1938, 1, 0
        %v1940 = vadd.s32 %v1930, %v1934
        %v1941 = vadd.s32 %v1933, %v1939
        %vm1942 = vc.u32 %v1940, %v1936
        %v1943 = vsel %vm1942, 1, 0
        %v1944 = vadd.s32 %v1940, %v1936
        %v1945 = vadd.s32 %v1941, %v1943
        %v1946 = vadd.s32 %v1945, %v1935
        %v1947 = vadd.s32 %v1946, %v1937
        %v1948 = vmul.u32 %v1903, %v1894
        %v1949 = vadd.s32 %v1925, %v1944
        %vm1950 = vc.u32 %v1925, %v1944
        %v1951 = vadd.s32 %v1947, 1
        %v1952 = vsel %vm1950, %v1951, %v1947
        %v1953 = vadd.s32 %v1948, %v1952
        %v1954 = vadd.s32 %v1953, 536870912
        %v1955 = vshrl.u32 %v1954, 30
        %v1956 = vshll.u32 %v1955, 30
        %v1957 = vsub.s32 %v1953, %v1956
        %vm1958 = vcmp.lt.s32.totalorder %v1957, 0
        %v1959 = vsub.s32 0, %v1957
        %v1960 = vsel %vm1958, %v1959, %v1957
        %v1961 = vclz %v1960
        %v1962 = vsub.s32 %v1961, 2
        %vm1963 = vcmp.gt.s32.totalorder 0, %v1962
        %v1964 = vsel %vm1963, 0, %v1962
        %v1965 = vsub.s32 32, %v1964
        %v1966 = vshll.u32 %v1957, %v1964
        %v1967 = vshrl.u32 %v1949, %v1965
        %v1968 = vor.u32 %v1966, %v1967
        %v1969 = vsub.s32 4294967266, %v1964
        %v1970 = vadd.s32 %v1969, 127
        %v1971 = vshll.u32 %v1970, 23
        %v1972 = vor.u32 4788187, %v1971
        %v1973 = vand.u32 2147483647, %v1972
        %v1975 = vcvt.s32.f32 %v1968
        %v1976 = vmul.f32 %v1975, %v1973
        %v1977 = vxor.u32 %v1976, 2147483648
        %v1978 = vsel %vm1857, %v1977, %v1976
        %v1979 = vsub.s32 4, %v1955
        %v1980 = vsel %vm1857, %v1979, %v1955
        %v1981 = vsel %vm1856, %v383, %v1978
        %v1982 = vsel %vm1856, 0, %v1980
        %v1983 = vmul.f32 %v1981, %v1981
        %v1984 = vmul.f32 %v1983, -0.001358992
        %v1985 = vadd.f32 %v1984, 0.041655596
        %v1986 = vmul.f32 %v1983, %v1985
        %v1987 = vadd.f32 %v1986, -0.4999988
        %v1988 = vmul.f32 %v1983, %v1987
        %v1989 = vadd.f32 1.0, %v1988
        %v1990 = vmul.f32 %v1981, %v1981
        %v1991 = vmul.f32 %v1990, -0.00019511016
        %v1992 = vadd.f32 %v1991, 0.008332121
        %v1993 = vmul.f32 %v1990, %v1992
        %v1994 = vadd.f32 %v1993, -0.16666654
        %v1995 = vmul.f32 %v1990, %v1994
        %v1996 = vadd.f32 %v1995, 1.0
        %v1997 = vmul.f32 %v1996, %v1981
        %vm1998 = vweird.f32 %v383
        %v1999 = vand.u32 %v1982, 3
        %vm2000 = vcmp.lt.s32.totalorder %v1999, 2
        %vm2001 = vcmp.eq.s32.totalorder %v1999, 0
        %v2002 = vxor.u32 %v1997, 2147483648
        %v2003 = vsel %vm2001, %v1989, %v2002
        %vm2004 = vcmp.eq.s32.totalorder %v1999, 2
        %v2005 = vxor.u32 %v1989, 2147483648
        %v2006 = vsel %vm2004, %v2005, %v1997
        %v2007 = vsel %vm2000, %v2003, %v2006
        %v2008 = vsel %vm1998, nan, %v2007
        %v2009 = vand.u32 2147483647, %v386
        %vm2010 = vcmp.le.f32.partialorder %v2009, 0.7853982
        %vm2011 = vcmp.lt.s32.totalorder %v386, 0
        %v2012 = vand.u32 %v386, 2139095040
        %v2013 = vshrl.u32 %v2012, 23
        %v2014 = vsub.s32 %v2013, 127
        %v2015 = vand.u32 2147483647, %v386
        %v2016 = vand.u32 %v2015, 8388607
        %v2017 = vor.u32 %v2016, 8388608
        %v2018 = vsub.s32 0, %v2017
        %v2019 = vadd.s32 %v2014, 1
        %vm2020 = vcmp.gt.s32.totalorder %v2019, 0
        %v2021 = vsel %vm2020, %v2019, 0
        %v2022 = vshrl.u32 %v2021, 5
        %v2023 = vand.u32 %v2021, 31
        %v2024 = vsub.s32 32, %v2023
        %v2025 = vshrl.u32 683565275, %v2024
        %v2026 = vshll.u32 683565275, %v2023
        %v2027 = vshrl.u32 2475754826, %v2024
        %v2028 = vor.u32 %v2026, %v2027
        %v2029 = vshll.u32 2475754826, %v2023
        %v2030 = vshrl.u32 2131351028, %v2024
        %v2031 = vor.u32 %v2029, %v2030
        %v2032 = vshll.u32 2131351028, %v2023
        %v2033 = vshrl.u32 2102212464, %v2024
        %v2034 = vor.u32 %v2032, %v2033
        %v2035 = vshll.u32 2102212464, %v2023
        %v2036 = vshrl.u32 920167782, %v2024
        %v2037 = vor.u32 %v2035, %v2036
        %v2038 = vshll.u32 920167782, %v2023
        %v2039 = vshrl.u32 1326507024, %v2024
        %v2040 = vor.u32 %v2038, %v2039
        %vm2041 = vcmp.lt.s32.totalorder %v2022, 1
        %vm2042 = vcmp.lt.s32.totalorder %v2022, 2
        %vm2043 = vcmp.lt.s32.totalorder %v2022, 3
        %vm2044 = vcmp.lt.s32.totalorder %v2022, 4
        %v2045 = vsel %vm2041, %v2025, %v2028
        %v2046 = vsel %vm2044, %v2034, 2102212464
        %v2047 = vsel %vm2043, %v2031, %v2046
        %v2048 = vsel %vm2042, %v2045, %v2047
        %v2049 = vsel %vm2041, %v2028, %v2031
        %v2050 = vsel %vm2044, %v2037, 920167782
        %v2051 = vsel %vm2043, %v2034, %v2050
        %v2052 = vsel %vm2042, %v2049, %v2051
        %v2053 = vsel %vm2041, %v2031, %v2034
        %v2054 = vsel %vm2044, %v2040, 1326507024
        %v2055 = vsel %vm2043, %v2037, %v2054
        %v2056 = vsel %vm2042, %v2053, %v2055
        %v2057 = vshll.u32 %v2017, 8
        %v2058 = vand.u32 %v2057, 65535
        %v2059 = vshrl.u32 %v2057, 16
        %v2060 = vand.u32 %v2056, 65535
        %v2061 = vshrl.u32 %v2056, 16
        %v2062 = vmul.u32 %v2058, %v2060
        %v2063 = vmul.u32 %v2058, %v2061
        %v2064 = vmul.u32 %v2059, %v2060
        %v2065 = vmul.u32 %v2059, %v2061
        %v2066 = vshll.u32 %v2063, 16
        %v2067 = vshrl.u32 %v2063, 16
        %v2068 = vshll.u32 %v2064, 16
        %v2069 = vshrl.u32 %v2064, 16
        %vm2070 = vc.u32 %v2062, %v2066
        %v2071 = vsel %vm2070, 1, 0
        %v2072 = vadd.s32 %v2062, %v2066
        %v2073 = vadd.s32 %v2065, %v2071
        %vm2074 = vc.u32 %v2072, %v2068
        %v2075 = vsel %vm2074, 1, 0
        %v2076 = vadd.s32 %v2072, %v2068
        %v2077 = vadd.s32 %v2073, %v2075
        %v2078 = vadd.s32 %v2077, %v2067
        %v2079 = vadd.s32 %v2078, %v2069
        %v2080 = vand.u32 %v2057, 65535
        %v2081 = vshrl.u32 %v2057, 16
        %v2082 = vand.u32 %v2052, 65535
        %v2083 = vshrl.u32 %v2052, 16
        %v2084 = vmul.u32 %v2080, %v2082
        %v2085 = vmul.u32 %v2080, %v2083
        %v2086 = vmul.u32 %v2081, %v2082
        %v2087 = vmul.u32 %v2081, %v2083
        %v2088 = vshll.u32 %v2085, 16
        %v2089 = vshrl.u32 %v2085, 16
        %v2090 = vshll.u32 %v2086, 16
        %v2091 = vshrl.u32 %v2086, 16
        %vm2092 = vc.u32 %v2084, %v2088
        %v2093 = vsel %vm2092, 1, 0
        %v2094 = vadd.s32 %v2084, %v2088
        %v2095 = vadd.s32 %v2087, %v2093
        %vm2096 = vc.u32 %v2094, %v2090
        %v2097 = vsel %vm2096, 1, 0
        %v2098 = vadd.s32 %v2094, %v2090
        %v2099 = vadd.s32 %v2095, %v2097
        %v2100 = vadd.s32 %v2099, %v2089
        %v2101 = vadd.s32 %v2100, %v2091
        %v2102 = vmul.u32 %v2057, %v2048
        %v2103 = vadd.s32 %v2079, %v2098
        %vm2104 = vc.u32 %v2079, %v2098
        %v2105 = vadd.s32 %v2101, 1
        %v2106 = vsel %vm2104, %v2105, %v2101
        %v2107 = vadd.s32 %v2102, %v2106
        %v2108 = vadd.s32 %v2107, 536870912
        %v2109 = vshrl.u32 %v2108, 30
        %v2110 = vshll.u32 %v2109, 30
        %v2111 = vsub.s32 %v2107, %v2110
        %vm2112 = vcmp.lt.s32.totalorder %v2111, 0
        %v2113 = vsub.s32 0, %v2111
        %v2114 = vsel %vm2112, %v2113, %v2111
        %v2115 = vclz %v2114
        %v2116 = vsub.s32 %v2115, 2
        %vm2117 = vcmp.gt.s32.totalorder 0, %v2116
        %v2118 = vsel %vm2117, 0, %v2116
        %v2119 = vsub.s32 32, %v2118
        %v2120 = vshll.u32 %v2111, %v2118
        %v2121 = vshrl.u32 %v2103, %v2119
        %v2122 = vor.u32 %v2120, %v2121
        %v2123 = vsub.s32 4294967266, %v2118
        %v2124 = vadd.s32 %v2123, 127
        %v2125 = vshll.u32 %v2124, 23
        %v2126 = vor.u32 4788187, %v2125
        %v2127 = vand.u32 2147483647, %v2126
        %v2129 = vcvt.s32.f32 %v2122
        %v2130 = vmul.f32 %v2129, %v2127
        %v2131 = vxor.u32 %v2130, 2147483648
        %v2132 = vsel %vm2011, %v2131, %v2130
        %v2133 = vsub.s32 4, %v2109
        %v2134 = vsel %vm2011, %v2133, %v2109
        %v2135 = vsel %vm2010, %v386, %v2132
        %v2136 = vsel %vm2010, 0, %v2134
        %v2137 = vmul.f32 %v2135, %v2135
        %v2138 = vmul.f32 %v2137, -0.001358992
        %v2139 = vadd.f32 %v2138, 0.041655596
        %v2140 = vmul.f32 %v2137, %v2139
        %v2141 = vadd.f32 %v2140, -0.4999988
        %v2142 = vmul.f32 %v2137, %v2141
        %v2143 = vadd.f32 1.0, %v2142
        %v2144 = vmul.f32 %v2135, %v2135
        %v2145 = vmul.f32 %v2144, -0.00019511016
        %v2146 = vadd.f32 %v2145, 0.008332121
        %v2147 = vmul.f32 %v2144, %v2146
        %v2148 = vadd.f32 %v2147, -0.16666654
        %v2149 = vmul.f32 %v2144, %v2148
        %v2150 = vadd.f32 %v2149, 1.0
        %v2151 = vmul.f32 %v2150, %v2135
        %vm2152 = vweird.f32 %v386
        %v2153 = vand.u32 %v2136, 3
        %vm2154 = vcmp.lt.s32.totalorder %v2153, 2
        %vm2155 = vcmp.eq.s32.totalorder %v2153, 0
        %v2156 = vxor.u32 %v2151, 2147483648
        %v2157 = vsel %vm2155, %v2143, %v2156
        %vm2158 = vcmp.eq.s32.totalorder %v2153, 2
        %v2159 = vxor.u32 %v2143, 2147483648
        %v2160 = vsel %vm2158, %v2159, %v2151
        %v2161 = vsel %vm2154, %v2157, %v2160
        %v2162 = vsel %vm2152, nan, %v2161
        %v2163 = vand.u32 2147483647, %v389
        %vm2164 = vcmp.le.f32.partialorder %v2163, 0.7853982
        %vm2165 = vcmp.lt.s32.totalorder %v389, 0
        %v2166 = vand.u32 %v389, 2139095040
        %v2167 = vshrl.u32 %v2166, 23
        %v2168 = vsub.s32 %v2167, 127
        %v2169 = vand.u32 2147483647, %v389
        %v2170 = vand.u32 %v2169, 8388607
        %v2171 = vor.u32 %v2170, 8388608
        %v2172 = vsub.s32 0, %v2171
        %v2173 = vadd.s32 %v2168, 1
        %vm2174 = vcmp.gt.s32.totalorder %v2173, 0
        %v2175 = vsel %vm2174, %v2173, 0
        %v2176 = vshrl.u32 %v2175, 5
        %v2177 = vand.u32 %v2175, 31
        %v2178 = vsub.s32 32, %v2177
        %v2179 = vshrl.u32 683565275, %v2178
        %v2180 = vshll.u32 683565275, %v2177
        %v2181 = vshrl.u32 2475754826, %v2178
        %v2182 = vor.u32 %v2180, %v2181
        %v2183 = vshll.u32 2475754826, %v2177
        %v2184 = vshrl.u32 2131351028, %v2178
        %v2185 = vor.u32 %v2183, %v2184
        %v2186 = vshll.u32 2131351028, %v2177
        %v2187 = vshrl.u32 2102212464, %v2178
        %v2188 = vor.u32 %v2186, %v2187
        %v2189 = vshll.u32 2102212464, %v2177
        %v2190 = vshrl.u32 920167782, %v2178
        %v2191 = vor.u32 %v2189, %v2190
        %v2192 = vshll.u32 920167782, %v2177
        %v2193 = vshrl.u32 1326507024, %v2178
        %v2194 = vor.u32 %v2192, %v2193
        %vm2195 = vcmp.lt.s32.totalorder %v2176, 1
        %vm2196 = vcmp.lt.s32.totalorder %v2176, 2
        %vm2197 = vcmp.lt.s32.totalorder %v2176, 3
        %vm2198 = vcmp.lt.s32.totalorder %v2176, 4
        %v2199 = vsel %vm2195, %v2179, %v2182
        %v2200 = vsel %vm2198, %v2188, 2102212464
        %v2201 = vsel %vm2197, %v2185, %v2200
        %v2202 = vsel %vm2196, %v2199, %v2201
        %v2203 = vsel %vm2195, %v2182, %v2185
        %v2204 = vsel %vm2198, %v2191, 920167782
        %v2205 = vsel %vm2197, %v2188, %v2204
        %v2206 = vsel %vm2196, %v2203, %v2205
        %v2207 = vsel %vm2195, %v2185, %v2188
        %v2208 = vsel %vm2198, %v2194, 1326507024
        %v2209 = vsel %vm2197, %v2191, %v2208
        %v2210 = vsel %vm2196, %v2207, %v2209
        %v2211 = vshll.u32 %v2171, 8
        %v2212 = vand.u32 %v2211, 65535
        %v2213 = vshrl.u32 %v2211, 16
        %v2214 = vand.u32 %v2210, 65535
        %v2215 = vshrl.u32 %v2210, 16
        %v2216 = vmul.u32 %v2212, %v2214
        %v2217 = vmul.u32 %v2212, %v2215
        %v2218 = vmul.u32 %v2213, %v2214
        %v2219 = vmul.u32 %v2213, %v2215
        %v2220 = vshll.u32 %v2217, 16
        %v2221 = vshrl.u32 %v2217, 16
        %v2222 = vshll.u32 %v2218, 16
        %v2223 = vshrl.u32 %v2218, 16
        %vm2224 = vc.u32 %v2216, %v2220
        %v2225 = vsel %vm2224, 1, 0
        %v2226 = vadd.s32 %v2216, %v2220
        %v2227 = vadd.s32 %v2219, %v2225
        %vm2228 = vc.u32 %v2226, %v2222
        %v2229 = vsel %vm2228, 1, 0
        %v2230 = vadd.s32 %v2226, %v2222
        %v2231 = vadd.s32 %v2227, %v2229
        %v2232 = vadd.s32 %v2231, %v2221
        %v2233 = vadd.s32 %v2232, %v2223
        %v2234 = vand.u32 %v2211, 65535
        %v2235 = vshrl.u32 %v2211, 16
        %v2236 = vand.u32 %v2206, 65535
        %v2237 = vshrl.u32 %v2206, 16
        %v2238 = vmul.u32 %v2234, %v2236
        %v2239 = vmul.u32 %v2234, %v2237
        %v2240 = vmul.u32 %v2235, %v2236
        %v2241 = vmul.u32 %v2235, %v2237
        %v2242 = vshll.u32 %v2239, 16
        %v2243 = vshrl.u32 %v2239, 16
        %v2244 = vshll.u32 %v2240, 16
        %v2245 = vshrl.u32 %v2240, 16
        %vm2246 = vc.u32 %v2238, %v2242
        %v2247 = vsel %vm2246, 1, 0
        %v2248 = vadd.s32 %v2238, %v2242
        %v2249 = vadd.s32 %v2241, %v2247
        %vm2250 = vc.u32 %v2248, %v2244
        %v2251 = vsel %vm2250, 1, 0
        %v2252 = vadd.s32 %v2248, %v2244
        %v2253 = vadd.s32 %v2249, %v2251
        %v2254 = vadd.s32 %v2253, %v2243
        %v2255 = vadd.s32 %v2254, %v2245
        %v2256 = vmul.u32 %v2211, %v2202
        %v2257 = vadd.s32 %v2233, %v2252
        %vm2258 = vc.u32 %v2233, %v2252
        %v2259 = vadd.s32 %v2255, 1
        %v2260 = vsel %vm2258, %v2259, %v2255
        %v2261 = vadd.s32 %v2256, %v2260
        %v2262 = vadd.s32 %v2261, 536870912
        %v2263 = vshrl.u32 %v2262, 30
        %v2264 = vshll.u32 %v2263, 30
        %v2265 = vsub.s32 %v2261, %v2264
        %vm2266 = vcmp.lt.s32.totalorder %v2265, 0
        %v2267 = vsub.s32 0, %v2265
        %v2268 = vsel %vm2266, %v2267, %v2265
        %v2269 = vclz %v2268
        %v2270 = vsub.s32 %v2269, 2
        %vm2271 = vcmp.gt.s32.totalorder 0, %v2270
        %v2272 = vsel %vm2271, 0, %v2270
        %v2273 = vsub.s32 32, %v2272
        %v2274 = vshll.u32 %v2265, %v2272
        %v2275 = vshrl.u32 %v2257, %v2273
        %v2276 = vor.u32 %v2274, %v2275
        %v2277 = vsub.s32 4294967266, %v2272
        %v2278 = vadd.s32 %v2277, 127
        %v2279 = vshll.u32 %v2278, 23
        %v2280 = vor.u32 4788187, %v2279
        %v2281 = vand.u32 2147483647, %v2280
        %v2283 = vcvt.s32.f32 %v2276
        %v2284 = vmul.f32 %v2283, %v2281
        %v2285 = vxor.u32 %v2284, 2147483648
        %v2286 = vsel %vm2165, %v2285, %v2284
        %v2287 = vsub.s32 4, %v2263
        %v2288 = vsel %vm2165, %v2287, %v2263
        %v2289 = vsel %vm2164, %v389, %v2286
        %v2290 = vsel %vm2164, 0, %v2288
        %v2291 = vmul.f32 %v2289, %v2289
        %v2292 = vmul.f32 %v2291, -0.001358992
        %v2293 = vadd.f32 %v2292, 0.041655596
        %v2294 = vmul.f32 %v2291, %v2293
        %v2295 = vadd.f32 %v2294, -0.4999988
        %v2296 = vmul.f32 %v2291, %v2295
        %v2297 = vadd.f32 1.0, %v2296
        %v2298 = vmul.f32 %v2289, %v2289
        %v2299 = vmul.f32 %v2298, -0.00019511016
        %v2300 = vadd.f32 %v2299, 0.008332121
        %v2301 = vmul.f32 %v2298, %v2300
        %v2302 = vadd.f32 %v2301, -0.16666654
        %v2303 = vmul.f32 %v2298, %v2302
        %v2304 = vadd.f32 %v2303, 1.0
        %v2305 = vmul.f32 %v2304, %v2289
        %vm2306 = vweird.f32 %v389
        %v2307 = vand.u32 %v2290, 3
        %vm2308 = vcmp.lt.s32.totalorder %v2307, 2
        %vm2309 = vcmp.eq.s32.totalorder %v2307, 0
        %v2310 = vxor.u32 %v2305, 2147483648
        %v2311 = vsel %vm2309, %v2297, %v2310
        %vm2312 = vcmp.eq.s32.totalorder %v2307, 2
        %v2313 = vxor.u32 %v2297, 2147483648
        %v2314 = vsel %vm2312, %v2313, %v2305
        %v2315 = vsel %vm2308, %v2311, %v2314
        %v2316 = vsel %vm2306, nan, %v2315
        %v2317 = vand.u32 2147483647, %v392
        %vm2318 = vcmp.le.f32.partialorder %v2317, 0.7853982
        %vm2319 = vcmp.lt.s32.totalorder %v392, 0
        %v2320 = vand.u32 %v392, 2139095040
        %v2321 = vshrl.u32 %v2320, 23
        %v2322 = vsub.s32 %v2321, 127
        %v2323 = vand.u32 2147483647, %v392
        %v2324 = vand.u32 %v2323, 8388607
        %v2325 = vor.u32 %v2324, 8388608
        %v2326 = vsub.s32 0, %v2325
        %v2327 = vadd.s32 %v2322, 1
        %vm2328 = vcmp.gt.s32.totalorder %v2327, 0
        %v2329 = vsel %vm2328, %v2327, 0
        %v2330 = vshrl.u32 %v2329, 5
        %v2331 = vand.u32 %v2329, 31
        %v2332 = vsub.s32 32, %v2331
        %v2333 = vshrl.u32 683565275, %v2332
        %v2334 = vshll.u32 683565275, %v2331
        %v2335 = vshrl.u32 2475754826, %v2332
        %v2336 = vor.u32 %v2334, %v2335
        %v2337 = vshll.u32 2475754826, %v2331
        %v2338 = vshrl.u32 2131351028, %v2332
        %v2339 = vor.u32 %v2337, %v2338
        %v2340 = vshll.u32 2131351028, %v2331
        %v2341 = vshrl.u32 2102212464, %v2332
        %v2342 = vor.u32 %v2340, %v2341
        %v2343 = vshll.u32 2102212464, %v2331
        %v2344 = vshrl.u32 920167782, %v2332
        %v2345 = vor.u32 %v2343, %v2344
        %v2346 = vshll.u32 920167782, %v2331
        %v2347 = vshrl.u32 1326507024, %v2332
        %v2348 = vor.u32 %v2346, %v2347
        %vm2349 = vcmp.lt.s32.totalorder %v2330, 1
        %vm2350 = vcmp.lt.s32.totalorder %v2330, 2
        %vm2351 = vcmp.lt.s32.totalorder %v2330, 3
        %vm2352 = vcmp.lt.s32.totalorder %v2330, 4
        %v2353 = vsel %vm2349, %v2333, %v2336
        %v2354 = vsel %vm2352, %v2342, 2102212464
        %v2355 = vsel %vm2351, %v2339, %v2354
        %v2356 = vsel %vm2350, %v2353, %v2355
        %v2357 = vsel %vm2349, %v2336, %v2339
        %v2358 = vsel %vm2352, %v2345, 920167782
        %v2359 = vsel %vm2351, %v2342, %v2358
        %v2360 = vsel %vm2350, %v2357, %v2359
        %v2361 = vsel %vm2349, %v2339, %v2342
        %v2362 = vsel %vm2352, %v2348, 1326507024
        %v2363 = vsel %vm2351, %v2345, %v2362
        %v2364 = vsel %vm2350, %v2361, %v2363
        %v2365 = vshll.u32 %v2325, 8
        %v2366 = vand.u32 %v2365, 65535
        %v2367 = vshrl.u32 %v2365, 16
        %v2368 = vand.u32 %v2364, 65535
        %v2369 = vshrl.u32 %v2364, 16
        %v2370 = vmul.u32 %v2366, %v2368
        %v2371 = vmul.u32 %v2366, %v2369
        %v2372 = vmul.u32 %v2367, %v2368
        %v2373 = vmul.u32 %v2367, %v2369
        %v2374 = vshll.u32 %v2371, 16
        %v2375 = vshrl.u32 %v2371, 16
        %v2376 = vshll.u32 %v2372, 16
        %v2377 = vshrl.u32 %v2372, 16
        %vm2378 = vc.u32 %v2370, %v2374
        %v2379 = vsel %vm2378, 1, 0
        %v2380 = vadd.s32 %v2370, %v2374
        %v2381 = vadd.s32 %v2373, %v2379
        %vm2382 = vc.u32 %v2380, %v2376
        %v2383 = vsel %vm2382, 1, 0
        %v2384 = vadd.s32 %v2380, %v2376
        %v2385 = vadd.s32 %v2381, %v2383
        %v2386 = vadd.s32 %v2385, %v2375
        %v2387 = vadd.s32 %v2386, %v2377
        %v2388 = vand.u32 %v2365, 65535
        %v2389 = vshrl.u32 %v2365, 16
        %v2390 = vand.u32 %v2360, 65535
        %v2391 = vshrl.u32 %v2360, 16
        %v2392 = vmul.u32 %v2388, %v2390
        %v2393 = vmul.u32 %v2388, %v2391
        %v2394 = vmul.u32 %v2389, %v2390
        %v2395 = vmul.u32 %v2389, %v2391
        %v2396 = vshll.u32 %v2393, 16
        %v2397 = vshrl.u32 %v2393, 16
        %v2398 = vshll.u32 %v2394, 16
        %v2399 = vshrl.u32 %v2394, 16
        %vm2400 = vc.u32 %v2392, %v2396
        %v2401 = vsel %vm2400, 1, 0
        %v2402 = vadd.s32 %v2392, %v2396
        %v2403 = vadd.s32 %v2395, %v2401
        %vm2404 = vc.u32 %v2402, %v2398
        %v2405 = vsel %vm2404, 1, 0
        %v2406 = vadd.s32 %v2402, %v2398
        %v2407 = vadd.s32 %v2403, %v2405
        %v2408 = vadd.s32 %v2407, %v2397
        %v2409 = vadd.s32 %v2408, %v2399
        %v2410 = vmul.u32 %v2365, %v2356
        %v2411 = vadd.s32 %v2387, %v2406
        %vm2412 = vc.u32 %v2387, %v2406
        %v2413 = vadd.s32 %v2409, 1
        %v2414 = vsel %vm2412, %v2413, %v2409
        %v2415 = vadd.s32 %v2410, %v2414
        %v2416 = vadd.s32 %v2415, 536870912
        %v2417 = vshrl.u32 %v2416, 30
        %v2418 = vshll.u32 %v2417, 30
        %v2419 = vsub.s32 %v2415, %v2418
        %vm2420 = vcmp.lt.s32.totalorder %v2419, 0
        %v2421 = vsub.s32 0, %v2419
        %v2422 = vsel %vm2420, %v2421, %v2419
        %v2423 = vclz %v2422
        %v2424 = vsub.s32 %v2423, 2
        %vm2425 = vcmp.gt.s32.totalorder 0, %v2424
        %v2426 = vsel %vm2425, 0, %v2424
        %v2427 = vsub.s32 32, %v2426
        %v2428 = vshll.u32 %v2419, %v2426
        %v2429 = vshrl.u32 %v2411, %v2427
        %v2430 = vor.u32 %v2428, %v2429
        %v2431 = vsub.s32 4294967266, %v2426
        %v2432 = vadd.s32 %v2431, 127
        %v2433 = vshll.u32 %v2432, 23
        %v2434 = vor.u32 4788187, %v2433
        %v2435 = vand.u32 2147483647, %v2434
        %v2437 = vcvt.s32.f32 %v2430
        %v2438 = vmul.f32 %v2437, %v2435
        %v2439 = vxor.u32 %v2438, 2147483648
        %v2440 = vsel %vm2319, %v2439, %v2438
        %v2441 = vsub.s32 4, %v2417
        %v2442 = vsel %vm2319, %v2441, %v2417
        %v2443 = vsel %vm2318, %v392, %v2440
        %v2444 = vsel %vm2318, 0, %v2442
        %v2445 = vmul.f32 %v2443, %v2443
        %v2446 = vmul.f32 %v2445, -0.001358992
        %v2447 = vadd.f32 %v2446, 0.041655596
        %v2448 = vmul.f32 %v2445, %v2447
        %v2449 = vadd.f32 %v2448, -0.4999988
        %v2450 = vmul.f32 %v2445, %v2449
        %v2451 = vadd.f32 1.0, %v2450
        %v2452 = vmul.f32 %v2443, %v2443
        %v2453 = vmul.f32 %v2452, -0.00019511016
        %v2454 = vadd.f32 %v2453, 0.008332121
        %v2455 = vmul.f32 %v2452, %v2454
        %v2456 = vadd.f32 %v2455, -0.16666654
        %v2457 = vmul.f32 %v2452, %v2456
        %v2458 = vadd.f32 %v2457, 1.0
        %v2459 = vmul.f32 %v2458, %v2443
        %vm2460 = vweird.f32 %v392
        %v2461 = vand.u32 %v2444, 3
        %vm2462 = vcmp.lt.s32.totalorder %v2461, 2
        %vm2463 = vcmp.eq.s32.totalorder %v2461, 0
        %v2464 = vxor.u32 %v2459, 2147483648
        %v2465 = vsel %vm2463, %v2451, %v2464
        %vm2466 = vcmp.eq.s32.totalorder %v2461, 2
        %v2467 = vxor.u32 %v2451, 2147483648
        %v2468 = vsel %vm2466, %v2467, %v2459
        %v2469 = vsel %vm2462, %v2465, %v2468
        %v2470 = vsel %vm2460, nan, %v2469
        %v2471 = vand.u32 2147483647, %v395
        %vm2472 = vcmp.le.f32.partialorder %v2471, 0.7853982
        %vm2473 = vcmp.lt.s32.totalorder %v395, 0
        %v2474 = vand.u32 %v395, 2139095040
        %v2475 = vshrl.u32 %v2474, 23
        %v2476 = vsub.s32 %v2475, 127
        %v2477 = vand.u32 2147483647, %v395
        %v2478 = vand.u32 %v2477, 8388607
        %v2479 = vor.u32 %v2478, 8388608
        %v2480 = vsub.s32 0, %v2479
        %v2481 = vadd.s32 %v2476, 1
        %vm2482 = vcmp.gt.s32.totalorder %v2481, 0
        %v2483 = vsel %vm2482, %v2481, 0
        %v2484 = vshrl.u32 %v2483, 5
        %v2485 = vand.u32 %v2483, 31
        %v2486 = vsub.s32 32, %v2485
        %v2487 = vshrl.u32 683565275, %v2486
        %v2488 = vshll.u32 683565275, %v2485
        %v2489 = vshrl.u32 2475754826, %v2486
        %v2490 = vor.u32 %v2488, %v2489
        %v2491 = vshll.u32 2475754826, %v2485
        %v2492 = vshrl.u32 2131351028, %v2486
        %v2493 = vor.u32 %v2491, %v2492
        %v2494 = vshll.u32 2131351028, %v2485
        %v2495 = vshrl.u32 2102212464, %v2486
        %v2496 = vor.u32 %v2494, %v2495
        %v2497 = vshll.u32 2102212464, %v2485
        %v2498 = vshrl.u32 920167782, %v2486
        %v2499 = vor.u32 %v2497, %v2498
        %v2500 = vshll.u32 920167782, %v2485
        %v2501 = vshrl.u32 1326507024, %v2486
        %v2502 = vor.u32 %v2500, %v2501
        %vm2503 = vcmp.lt.s32.totalorder %v2484, 1
        %vm2504 = vcmp.lt.s32.totalorder %v2484, 2
        %vm2505 = vcmp.lt.s32.totalorder %v2484, 3
        %vm2506 = vcmp.lt.s32.totalorder %v2484, 4
        %v2507 = vsel %vm2503, %v2487, %v2490
        %v2508 = vsel %vm2506, %v2496, 2102212464
        %v2509 = vsel %vm2505, %v2493, %v2508
        %v2510 = vsel %vm2504, %v2507, %v2509
        %v2511 = vsel %vm2503, %v2490, %v2493
        %v2512 = vsel %vm2506, %v2499, 920167782
        %v2513 = vsel %vm2505, %v2496, %v2512
        %v2514 = vsel %vm2504, %v2511, %v2513
        %v2515 = vsel %vm2503, %v2493, %v2496
        %v2516 = vsel %vm2506, %v2502, 1326507024
        %v2517 = vsel %vm2505, %v2499, %v2516
        %v2518 = vsel %vm2504, %v2515, %v2517
        %v2519 = vshll.u32 %v2479, 8
        %v2520 = vand.u32 %v2519, 65535
        %v2521 = vshrl.u32 %v2519, 16
        %v2522 = vand.u32 %v2518, 65535
        %v2523 = vshrl.u32 %v2518, 16
        %v2524 = vmul.u32 %v2520, %v2522
        %v2525 = vmul.u32 %v2520, %v2523
        %v2526 = vmul.u32 %v2521, %v2522
        %v2527 = vmul.u32 %v2521, %v2523
        %v2528 = vshll.u32 %v2525, 16
        %v2529 = vshrl.u32 %v2525, 16
        %v2530 = vshll.u32 %v2526, 16
        %v2531 = vshrl.u32 %v2526, 16
        %vm2532 = vc.u32 %v2524, %v2528
        %v2533 = vsel %vm2532, 1, 0
        %v2534 = vadd.s32 %v2524, %v2528
        %v2535 = vadd.s32 %v2527, %v2533
        %vm2536 = vc.u32 %v2534, %v2530
        %v2537 = vsel %vm2536, 1, 0
        %v2538 = vadd.s32 %v2534, %v2530
        %v2539 = vadd.s32 %v2535, %v2537
        %v2540 = vadd.s32 %v2539, %v2529
        %v2541 = vadd.s32 %v2540, %v2531
        %v2542 = vand.u32 %v2519, 65535
        %v2543 = vshrl.u32 %v2519, 16
        %v2544 = vand.u32 %v2514, 65535
        %v2545 = vshrl.u32 %v2514, 16
        %v2546 = vmul.u32 %v2542, %v2544
        %v2547 = vmul.u32 %v2542, %v2545
        %v2548 = vmul.u32 %v2543, %v2544
        %v2549 = vmul.u32 %v2543, %v2545
        %v2550 = vshll.u32 %v2547, 16
        %v2551 = vshrl.u32 %v2547, 16
        %v2552 = vshll.u32 %v2548, 16
        %v2553 = vshrl.u32 %v2548, 16
        %vm2554 = vc.u32 %v2546, %v2550
        %v2555 = vsel %vm2554, 1, 0
        %v2556 = vadd.s32 %v2546, %v2550
        %v2557 = vadd.s32 %v2549, %v2555
        %vm2558 = vc.u32 %v2556, %v2552
        %v2559 = vsel %vm2558, 1, 0
        %v2560 = vadd.s32 %v2556, %v2552
        %v2561 = vadd.s32 %v2557, %v2559
        %v2562 = vadd.s32 %v2561, %v2551
        %v2563 = vadd.s32 %v2562, %v2553
        %v2564 = vmul.u32 %v2519, %v2510
        %v2565 = vadd.s32 %v2541, %v2560
        %vm2566 = vc.u32 %v2541, %v2560
        %v2567 = vadd.s32 %v2563, 1
        %v2568 = vsel %vm2566, %v2567, %v2563
        %v2569 = vadd.s32 %v2564, %v2568
        %v2570 = vadd.s32 %v2569, 536870912
        %v2571 = vshrl.u32 %v2570, 30
        %v2572 = vshll.u32 %v2571, 30
        %v2573 = vsub.s32 %v2569, %v2572
        %vm2574 = vcmp.lt.s32.totalorder %v2573, 0
        %v2575 = vsub.s32 0, %v2573
        %v2576 = vsel %vm2574, %v2575, %v2573
        %v2577 = vclz %v2576
        %v2578 = vsub.s32 %v2577, 2
        %vm2579 = vcmp.gt.s32.totalorder 0, %v2578
        %v2580 = vsel %vm2579, 0, %v2578
        %v2581 = vsub.s32 32, %v2580
        %v2582 = vshll.u32 %v2573, %v2580
        %v2583 = vshrl.u32 %v2565, %v2581
        %v2584 = vor.u32 %v2582, %v2583
        %v2585 = vsub.s32 4294967266, %v2580
        %v2586 = vadd.s32 %v2585, 127
        %v2587 = vshll.u32 %v2586, 23
        %v2588 = vor.u32 4788187, %v2587
        %v2589 = vand.u32 2147483647, %v2588
        %v2591 = vcvt.s32.f32 %v2584
        %v2592 = vmul.f32 %v2591, %v2589
        %v2593 = vxor.u32 %v2592, 2147483648
        %v2594 = vsel %vm2473, %v2593, %v2592
        %v2595 = vsub.s32 4, %v2571
        %v2596 = vsel %vm2473, %v2595, %v2571
        %v2597 = vsel %vm2472, %v395, %v2594
        %v2598 = vsel %vm2472, 0, %v2596
        %v2599 = vmul.f32 %v2597, %v2597
        %v2600 = vmul.f32 %v2599, -0.001358992
        %v2601 = vadd.f32 %v2600, 0.041655596
        %v2602 = vmul.f32 %v2599, %v2601
        %v2603 = vadd.f32 %v2602, -0.4999988
        %v2604 = vmul.f32 %v2599, %v2603
        %v2605 = vadd.f32 1.0, %v2604
        %v2606 = vmul.f32 %v2597, %v2597
        %v2607 = vmul.f32 %v2606, -0.00019511016
        %v2608 = vadd.f32 %v2607, 0.008332121
        %v2609 = vmul.f32 %v2606, %v2608
        %v2610 = vadd.f32 %v2609, -0.16666654
        %v2611 = vmul.f32 %v2606, %v2610
        %v2612 = vadd.f32 %v2611, 1.0
        %v2613 = vmul.f32 %v2612, %v2597
        %vm2614 = vweird.f32 %v395
        %v2615 = vand.u32 %v2598, 3
        %vm2616 = vcmp.lt.s32.totalorder %v2615, 2
        %vm2617 = vcmp.eq.s32.totalorder %v2615, 0
        %v2618 = vxor.u32 %v2613, 2147483648
        %v2619 = vsel %vm2617, %v2605, %v2618
        %vm2620 = vcmp.eq.s32.totalorder %v2615, 2
        %v2621 = vxor.u32 %v2605, 2147483648
        %v2622 = vsel %vm2620, %v2621, %v2613
        %v2623 = vsel %vm2616, %v2619, %v2622
        %v2624 = vsel %vm2614, nan, %v2623
        %v2625 = vand.u32 2147483647, %v398
        %vm2626 = vcmp.le.f32.partialorder %v2625, 0.7853982
        %vm2627 = vcmp.lt.s32.totalorder %v398, 0
        %v2628 = vand.u32 %v398, 2139095040
        %v2629 = vshrl.u32 %v2628, 23
        %v2630 = vsub.s32 %v2629, 127
        %v2631 = vand.u32 2147483647, %v398
        %v2632 = vand.u32 %v2631, 8388607
        %v2633 = vor.u32 %v2632, 8388608
        %v2634 = vsub.s32 0, %v2633
        %v2635 = vadd.s32 %v2630, 1
        %vm2636 = vcmp.gt.s32.totalorder %v2635, 0
        %v2637 = vsel %vm2636, %v2635, 0
        %v2638 = vshrl.u32 %v2637, 5
        %v2639 = vand.u32 %v2637, 31
        %v2640 = vsub.s32 32, %v2639
        %v2641 = vshrl.u32 683565275, %v2640
        %v2642 = vshll.u32 683565275, %v2639
        %v2643 = vshrl.u32 2475754826, %v2640
        %v2644 = vor.u32 %v2642, %v2643
        %v2645 = vshll.u32 2475754826, %v2639
        %v2646 = vshrl.u32 2131351028, %v2640
        %v2647 = vor.u32 %v2645, %v2646
        %v2648 = vshll.u32 2131351028, %v2639
        %v2649 = vshrl.u32 2102212464, %v2640
        %v2650 = vor.u32 %v2648, %v2649
        %v2651 = vshll.u32 2102212464, %v2639
        %v2652 = vshrl.u32 920167782, %v2640
        %v2653 = vor.u32 %v2651, %v2652
        %v2654 = vshll.u32 920167782, %v2639
        %v2655 = vshrl.u32 1326507024, %v2640
        %v2656 = vor.u32 %v2654, %v2655
        %vm2657 = vcmp.lt.s32.totalorder %v2638, 1
        %vm2658 = vcmp.lt.s32.totalorder %v2638, 2
        %vm2659 = vcmp.lt.s32.totalorder %v2638, 3
        %vm2660 = vcmp.lt.s32.totalorder %v2638, 4
        %v2661 = vsel %vm2657, %v2641, %v2644
        %v2662 = vsel %vm2660, %v2650, 2102212464
        %v2663 = vsel %vm2659, %v2647, %v2662
        %v2664 = vsel %vm2658, %v2661, %v2663
        %v2665 = vsel %vm2657, %v2644, %v2647
        %v2666 = vsel %vm2660, %v2653, 920167782
        %v2667 = vsel %vm2659, %v2650, %v2666
        %v2668 = vsel %vm2658, %v2665, %v2667
        %v2669 = vsel %vm2657, %v2647, %v2650
        %v2670 = vsel %vm2660, %v2656, 1326507024
        %v2671 = vsel %vm2659, %v2653, %v2670
        %v2672 = vsel %vm2658, %v2669, %v2671
        %v2673 = vshll.u32 %v2633, 8
        %v2674 = vand.u32 %v2673, 65535
        %v2675 = vshrl.u32 %v2673, 16
        %v2676 = vand.u32 %v2672, 65535
        %v2677 = vshrl.u32 %v2672, 16
        %v2678 = vmul.u32 %v2674, %v2676
        %v2679 = vmul.u32 %v2674, %v2677
        %v2680 = vmul.u32 %v2675, %v2676
        %v2681 = vmul.u32 %v2675, %v2677
        %v2682 = vshll.u32 %v2679, 16
        %v2683 = vshrl.u32 %v2679, 16
        %v2684 = vshll.u32 %v2680, 16
        %v2685 = vshrl.u32 %v2680, 16
        %vm2686 = vc.u32 %v2678, %v2682
        %v2687 = vsel %vm2686, 1, 0
        %v2688 = vadd.s32 %v2678, %v2682
        %v2689 = vadd.s32 %v2681, %v2687
        %vm2690 = vc.u32 %v2688, %v2684
        %v2691 = vsel %vm2690, 1, 0
        %v2692 = vadd.s32 %v2688, %v2684
        %v2693 = vadd.s32 %v2689, %v2691
        %v2694 = vadd.s32 %v2693, %v2683
        %v2695 = vadd.s32 %v2694, %v2685
        %v2696 = vand.u32 %v2673, 65535
        %v2697 = vshrl.u32 %v2673, 16
        %v2698 = vand.u32 %v2668, 65535
        %v2699 = vshrl.u32 %v2668, 16
        %v2700 = vmul.u32 %v2696, %v2698
        %v2701 = vmul.u32 %v2696, %v2699
        %v2702 = vmul.u32 %v2697, %v2698
        %v2703 = vmul.u32 %v2697, %v2699
        %v2704 = vshll.u32 %v2701, 16
        %v2705 = vshrl.u32 %v2701, 16
        %v2706 = vshll.u32 %v2702, 16
        %v2707 = vshrl.u32 %v2702, 16
        %vm2708 = vc.u32 %v2700, %v2704
        %v2709 = vsel %vm2708, 1, 0
        %v2710 = vadd.s32 %v2700, %v2704
        %v2711 = vadd.s32 %v2703, %v2709
        %vm2712 = vc.u32 %v2710, %v2706
        %v2713 = vsel %vm2712, 1, 0
        %v2714 = vadd.s32 %v2710, %v2706
        %v2715 = vadd.s32 %v2711, %v2713
        %v2716 = vadd.s32 %v2715, %v2705
        %v2717 = vadd.s32 %v2716, %v2707
        %v2718 = vmul.u32 %v2673, %v2664
        %v2719 = vadd.s32 %v2695, %v2714
        %vm2720 = vc.u32 %v2695, %v2714
        %v2721 = vadd.s32 %v2717, 1
        %v2722 = vsel %vm2720, %v2721, %v2717
        %v2723 = vadd.s32 %v2718, %v2722
        %v2724 = vadd.s32 %v2723, 536870912
        %v2725 = vshrl.u32 %v2724, 30
        %v2726 = vshll.u32 %v2725, 30
        %v2727 = vsub.s32 %v2723, %v2726
        %vm2728 = vcmp.lt.s32.totalorder %v2727, 0
        %v2729 = vsub.s32 0, %v2727
        %v2730 = vsel %vm2728, %v2729, %v2727
        %v2731 = vclz %v2730
        %v2732 = vsub.s32 %v2731, 2
        %vm2733 = vcmp.gt.s32.totalorder 0, %v2732
        %v2734 = vsel %vm2733, 0, %v2732
        %v2735 = vsub.s32 32, %v2734
        %v2736 = vshll.u32 %v2727, %v2734
        %v2737 = vshrl.u32 %v2719, %v2735
        %v2738 = vor.u32 %v2736, %v2737
        %v2739 = vsub.s32 4294967266, %v2734
        %v2740 = vadd.s32 %v2739, 127
        %v2741 = vshll.u32 %v2740, 23
        %v2742 = vor.u32 4788187, %v2741
        %v2743 = vand.u32 2147483647, %v2742
        %v2745 = vcvt.s32.f32 %v2738
        %v2746 = vmul.f32 %v2745, %v2743
        %v2747 = vxor.u32 %v2746, 2147483648
        %v2748 = vsel %vm2627, %v2747, %v2746
        %v2749 = vsub.s32 4, %v2725
        %v2750 = vsel %vm2627, %v2749, %v2725
        %v2751 = vsel %vm2626, %v398, %v2748
        %v2752 = vsel %vm2626, 0, %v2750
        %v2753 = vmul.f32 %v2751, %v2751
        %v2754 = vmul.f32 %v2753, -0.001358992
        %v2755 = vadd.f32 %v2754, 0.041655596
        %v2756 = vmul.f32 %v2753, %v2755
        %v2757 = vadd.f32 %v2756, -0.4999988
        %v2758 = vmul.f32 %v2753, %v2757
        %v2759 = vadd.f32 1.0, %v2758
        %v2760 = vmul.f32 %v2751, %v2751
        %v2761 = vmul.f32 %v2760, -0.00019511016
        %v2762 = vadd.f32 %v2761, 0.008332121
        %v2763 = vmul.f32 %v2760, %v2762
        %v2764 = vadd.f32 %v2763, -0.16666654
        %v2765 = vmul.f32 %v2760, %v2764
        %v2766 = vadd.f32 %v2765, 1.0
        %v2767 = vmul.f32 %v2766, %v2751
        %vm2768 = vweird.f32 %v398
        %v2769 = vand.u32 %v2752, 3
        %vm2770 = vcmp.lt.s32.totalorder %v2769, 2
        %vm2771 = vcmp.eq.s32.totalorder %v2769, 0
        %v2772 = vxor.u32 %v2767, 2147483648
        %v2773 = vsel %vm2771, %v2759, %v2772
        %vm2774 = vcmp.eq.s32.totalorder %v2769, 2
        %v2775 = vxor.u32 %v2759, 2147483648
        %v2776 = vsel %vm2774, %v2775, %v2767
        %v2777 = vsel %vm2770, %v2773, %v2776
        %v2778 = vsel %vm2768, nan, %v2777
        %v2779 = vand.u32 2147483647, %v401
        %vm2780 = vcmp.le.f32.partialorder %v2779, 0.7853982
        %vm2781 = vcmp.lt.s32.totalorder %v401, 0
        %v2782 = vand.u32 %v401, 2139095040
        %v2783 = vshrl.u32 %v2782, 23
        %v2784 = vsub.s32 %v2783, 127
        %v2785 = vand.u32 2147483647, %v401
        %v2786 = vand.u32 %v2785, 8388607
        %v2787 = vor.u32 %v2786, 8388608
        %v2788 = vsub.s32 0, %v2787
        %v2789 = vadd.s32 %v2784, 1
        %vm2790 = vcmp.gt.s32.totalorder %v2789, 0
        %v2791 = vsel %vm2790, %v2789, 0
        %v2792 = vshrl.u32 %v2791, 5
        %v2793 = vand.u32 %v2791, 31
        %v2794 = vsub.s32 32, %v2793
        %v2795 = vshrl.u32 683565275, %v2794
        %v2796 = vshll.u32 683565275, %v2793
        %v2797 = vshrl.u32 2475754826, %v2794
        %v2798 = vor.u32 %v2796, %v2797
        %v2799 = vshll.u32 2475754826, %v2793
        %v2800 = vshrl.u32 2131351028, %v2794
        %v2801 = vor.u32 %v2799, %v2800
        %v2802 = vshll.u32 2131351028, %v2793
        %v2803 = vshrl.u32 2102212464, %v2794
        %v2804 = vor.u32 %v2802, %v2803
        %v2805 = vshll.u32 2102212464, %v2793
        %v2806 = vshrl.u32 920167782, %v2794
        %v2807 = vor.u32 %v2805, %v2806
        %v2808 = vshll.u32 920167782, %v2793
        %v2809 = vshrl.u32 1326507024, %v2794
        %v2810 = vor.u32 %v2808, %v2809
        %vm2811 = vcmp.lt.s32.totalorder %v2792, 1
        %vm2812 = vcmp.lt.s32.totalorder %v2792, 2
        %vm2813 = vcmp.lt.s32.totalorder %v2792, 3
        %vm2814 = vcmp.lt.s32.totalorder %v2792, 4
        %v2815 = vsel %vm2811, %v2795, %v2798
        %v2816 = vsel %vm2814, %v2804, 2102212464
        %v2817 = vsel %vm2813, %v2801, %v2816
        %v2818 = vsel %vm2812, %v2815, %v2817
        %v2819 = vsel %vm2811, %v2798, %v2801
        %v2820 = vsel %vm2814, %v2807, 920167782
        %v2821 = vsel %vm2813, %v2804, %v2820
        %v2822 = vsel %vm2812, %v2819, %v2821
        %v2823 = vsel %vm2811, %v2801, %v2804
        %v2824 = vsel %vm2814, %v2810, 1326507024
        %v2825 = vsel %vm2813, %v2807, %v2824
        %v2826 = vsel %vm2812, %v2823, %v2825
        %v2827 = vshll.u32 %v2787, 8
        %v2828 = vand.u32 %v2827, 65535
        %v2829 = vshrl.u32 %v2827, 16
        %v2830 = vand.u32 %v2826, 65535
        %v2831 = vshrl.u32 %v2826, 16
        %v2832 = vmul.u32 %v2828, %v2830
        %v2833 = vmul.u32 %v2828, %v2831
        %v2834 = vmul.u32 %v2829, %v2830
        %v2835 = vmul.u32 %v2829, %v2831
        %v2836 = vshll.u32 %v2833, 16
        %v2837 = vshrl.u32 %v2833, 16
        %v2838 = vshll.u32 %v2834, 16
        %v2839 = vshrl.u32 %v2834, 16
        %vm2840 = vc.u32 %v2832, %v2836
        %v2841 = vsel %vm2840, 1, 0
        %v2842 = vadd.s32 %v2832, %v2836
        %v2843 = vadd.s32 %v2835, %v2841
        %vm2844 = vc.u32 %v2842, %v2838
        %v2845 = vsel %vm2844, 1, 0
        %v2846 = vadd.s32 %v2842, %v2838
        %v2847 = vadd.s32 %v2843, %v2845
        %v2848 = vadd.s32 %v2847, %v2837
        %v2849 = vadd.s32 %v2848, %v2839
        %v2850 = vand.u32 %v2827, 65535
        %v2851 = vshrl.u32 %v2827, 16
        %v2852 = vand.u32 %v2822, 65535
        %v2853 = vshrl.u32 %v2822, 16
        %v2854 = vmul.u32 %v2850, %v2852
        %v2855 = vmul.u32 %v2850, %v2853
        %v2856 = vmul.u32 %v2851, %v2852
        %v2857 = vmul.u32 %v2851, %v2853
        %v2858 = vshll.u32 %v2855, 16
        %v2859 = vshrl.u32 %v2855, 16
        %v2860 = vshll.u32 %v2856, 16
        %v2861 = vshrl.u32 %v2856, 16
        %vm2862 = vc.u32 %v2854, %v2858
        %v2863 = vsel %vm2862, 1, 0
        %v2864 = vadd.s32 %v2854, %v2858
        %v2865 = vadd.s32 %v2857, %v2863
        %vm2866 = vc.u32 %v2864, %v2860
        %v2867 = vsel %vm2866, 1, 0
        %v2868 = vadd.s32 %v2864, %v2860
        %v2869 = vadd.s32 %v2865, %v2867
        %v2870 = vadd.s32 %v2869, %v2859
        %v2871 = vadd.s32 %v2870, %v2861
        %v2872 = vmul.u32 %v2827, %v2818
        %v2873 = vadd.s32 %v2849, %v2868
        %vm2874 = vc.u32 %v2849, %v2868
        %v2875 = vadd.s32 %v2871, 1
        %v2876 = vsel %vm2874, %v2875, %v2871
        %v2877 = vadd.s32 %v2872, %v2876
        %v2878 = vadd.s32 %v2877, 536870912
        %v2879 = vshrl.u32 %v2878, 30
        %v2880 = vshll.u32 %v2879, 30
        %v2881 = vsub.s32 %v2877, %v2880
        %vm2882 = vcmp.lt.s32.totalorder %v2881, 0
        %v2883 = vsub.s32 0, %v2881
        %v2884 = vsel %vm2882, %v2883, %v2881
        %v2885 = vclz %v2884
        %v2886 = vsub.s32 %v2885, 2
        %vm2887 = vcmp.gt.s32.totalorder 0, %v2886
        %v2888 = vsel %vm2887, 0, %v2886
        %v2889 = vsub.s32 32, %v2888
        %v2890 = vshll.u32 %v2881, %v2888
        %v2891 = vshrl.u32 %v2873, %v2889
        %v2892 = vor.u32 %v2890, %v2891
        %v2893 = vsub.s32 4294967266, %v2888
        %v2894 = vadd.s32 %v2893, 127
        %v2895 = vshll.u32 %v2894, 23
        %v2896 = vor.u32 4788187, %v2895
        %v2897 = vand.u32 2147483647, %v2896
        %v2899 = vcvt.s32.f32 %v2892
        %v2900 = vmul.f32 %v2899, %v2897
        %v2901 = vxor.u32 %v2900, 2147483648
        %v2902 = vsel %vm2781, %v2901, %v2900
        %v2903 = vsub.s32 4, %v2879
        %v2904 = vsel %vm2781, %v2903, %v2879
        %v2905 = vsel %vm2780, %v401, %v2902
        %v2906 = vsel %vm2780, 0, %v2904
        %v2907 = vmul.f32 %v2905, %v2905
        %v2908 = vmul.f32 %v2907, -0.001358992
        %v2909 = vadd.f32 %v2908, 0.041655596
        %v2910 = vmul.f32 %v2907, %v2909
        %v2911 = vadd.f32 %v2910, -0.4999988
        %v2912 = vmul.f32 %v2907, %v2911
        %v2913 = vadd.f32 1.0, %v2912
        %v2914 = vmul.f32 %v2905, %v2905
        %v2915 = vmul.f32 %v2914, -0.00019511016
        %v2916 = vadd.f32 %v2915, 0.008332121
        %v2917 = vmul.f32 %v2914, %v2916
        %v2918 = vadd.f32 %v2917, -0.16666654
        %v2919 = vmul.f32 %v2914, %v2918
        %v2920 = vadd.f32 %v2919, 1.0
        %v2921 = vmul.f32 %v2920, %v2905
        %vm2922 = vweird.f32 %v401
        %v2923 = vand.u32 %v2906, 3
        %vm2924 = vcmp.lt.s32.totalorder %v2923, 2
        %vm2925 = vcmp.eq.s32.totalorder %v2923, 0
        %v2926 = vxor.u32 %v2921, 2147483648
        %v2927 = vsel %vm2925, %v2913, %v2926
        %vm2928 = vcmp.eq.s32.totalorder %v2923, 2
        %v2929 = vxor.u32 %v2913, 2147483648
        %v2930 = vsel %vm2928, %v2929, %v2921
        %v2931 = vsel %vm2924, %v2927, %v2930
        %v2932 = vsel %vm2922, nan, %v2931
        %2933 = vst [vmem:[#allocation3] sm:$0xff] %v622
        %2934 = vst [vmem:[#allocation3 + $0x8] sm:$0xff] %v776
        %2935 = vst [vmem:[#allocation3 + $0x10] sm:$0xff] %v930
        %2936 = vst [vmem:[#allocation3 + $0x18] sm:$0xff] %v1084
        %2937 = vst [vmem:[#allocation3 + $0x20] sm:$0xff] %v1238
        %2938 = vst [vmem:[#allocation3 + $0x28] sm:$0xff] %v1392
        %2939 = vst [vmem:[#allocation3 + $0x30] sm:$0xff] %v1546
        %2940 = vst [vmem:[#allocation3 + $0x38] sm:$0xff] %v1700
        %2941 = vst [vmem:[#allocation3 + $0x40] sm:$0xff] %v1854
        %2942 = vst [vmem:[#allocation3 + $0x48] sm:$0xff] %v2008
        %2943 = vst [vmem:[#allocation3 + $0x50] sm:$0xff] %v2162
        %2944 = vst [vmem:[#allocation3 + $0x58] sm:$0xff] %v2316
        %2945 = vst [vmem:[#allocation3 + $0x60] sm:$0xff] %v2470
        %2946 = vst [vmem:[#allocation3 + $0x68] sm:$0xff] %v2624
        %2947 = vst [vmem:[#allocation3 + $0x70] sm:$0xff] %v2778
        %2948 = vst [vmem:[#allocation3 + $0x78] sm:$0xff] %v2932
        %v2949 = vand.u32 2147483647, %v356
        %vm2950 = vcmp.le.f32.partialorder %v2949, 0.7853982
        %vm2951 = vcmp.lt.s32.totalorder %v356, 0
        %v2952 = vand.u32 %v356, 2139095040
        %v2953 = vshrl.u32 %v2952, 23
        %v2954 = vsub.s32 %v2953, 127
        %v2955 = vand.u32 2147483647, %v356
        %v2956 = vand.u32 %v2955, 8388607
        %v2957 = vor.u32 %v2956, 8388608
        %v2958 = vsub.s32 0, %v2957
        %v2959 = vadd.s32 %v2954, 1
        %vm2960 = vcmp.gt.s32.totalorder %v2959, 0
        %v2961 = vsel %vm2960, %v2959, 0
        %v2962 = vshrl.u32 %v2961, 5
        %v2963 = vand.u32 %v2961, 31
        %v2964 = vsub.s32 32, %v2963
        %v2965 = vshrl.u32 683565275, %v2964
        %v2966 = vshll.u32 683565275, %v2963
        %v2967 = vshrl.u32 2475754826, %v2964
        %v2968 = vor.u32 %v2966, %v2967
        %v2969 = vshll.u32 2475754826, %v2963
        %v2970 = vshrl.u32 2131351028, %v2964
        %v2971 = vor.u32 %v2969, %v2970
        %v2972 = vshll.u32 2131351028, %v2963
        %v2973 = vshrl.u32 2102212464, %v2964
        %v2974 = vor.u32 %v2972, %v2973
        %v2975 = vshll.u32 2102212464, %v2963
        %v2976 = vshrl.u32 920167782, %v2964
        %v2977 = vor.u32 %v2975, %v2976
        %v2978 = vshll.u32 920167782, %v2963
        %v2979 = vshrl.u32 1326507024, %v2964
        %v2980 = vor.u32 %v2978, %v2979
        %vm2981 = vcmp.lt.s32.totalorder %v2962, 1
        %vm2982 = vcmp.lt.s32.totalorder %v2962, 2
        %vm2983 = vcmp.lt.s32.totalorder %v2962, 3
        %vm2984 = vcmp.lt.s32.totalorder %v2962, 4
        %v2985 = vsel %vm2981, %v2965, %v2968
        %v2986 = vsel %vm2984, %v2974, 2102212464
        %v2987 = vsel %vm2983, %v2971, %v2986
        %v2988 = vsel %vm2982, %v2985, %v2987
        %v2989 = vsel %vm2981, %v2968, %v2971
        %v2990 = vsel %vm2984, %v2977, 920167782
        %v2991 = vsel %vm2983, %v2974, %v2990
        %v2992 = vsel %vm2982, %v2989, %v2991
        %v2993 = vsel %vm2981, %v2971, %v2974
        %v2994 = vsel %vm2984, %v2980, 1326507024
        %v2995 = vsel %vm2983, %v2977, %v2994
        %v2996 = vsel %vm2982, %v2993, %v2995
        %v2997 = vshll.u32 %v2957, 8
        %v2998 = vand.u32 %v2997, 65535
        %v2999 = vshrl.u32 %v2997, 16
        %v3000 = vand.u32 %v2996, 65535
        %v3001 = vshrl.u32 %v2996, 16
        %v3002 = vmul.u32 %v2998, %v3000
        %v3003 = vmul.u32 %v2998, %v3001
        %v3004 = vmul.u32 %v2999, %v3000
        %v3005 = vmul.u32 %v2999, %v3001
        %v3006 = vshll.u32 %v3003, 16
        %v3007 = vshrl.u32 %v3003, 16
        %v3008 = vshll.u32 %v3004, 16
        %v3009 = vshrl.u32 %v3004, 16
        %vm3010 = vc.u32 %v3002, %v3006
        %v3011 = vsel %vm3010, 1, 0
        %v3012 = vadd.s32 %v3002, %v3006
        %v3013 = vadd.s32 %v3005, %v3011
        %vm3014 = vc.u32 %v3012, %v3008
        %v3015 = vsel %vm3014, 1, 0
        %v3016 = vadd.s32 %v3012, %v3008
        %v3017 = vadd.s32 %v3013, %v3015
        %v3018 = vadd.s32 %v3017, %v3007
        %v3019 = vadd.s32 %v3018, %v3009
        %v3020 = vand.u32 %v2997, 65535
        %v3021 = vshrl.u32 %v2997, 16
        %v3022 = vand.u32 %v2992, 65535
        %v3023 = vshrl.u32 %v2992, 16
        %v3024 = vmul.u32 %v3020, %v3022
        %v3025 = vmul.u32 %v3020, %v3023
        %v3026 = vmul.u32 %v3021, %v3022
        %v3027 = vmul.u32 %v3021, %v3023
        %v3028 = vshll.u32 %v3025, 16
        %v3029 = vshrl.u32 %v3025, 16
        %v3030 = vshll.u32 %v3026, 16
        %v3031 = vshrl.u32 %v3026, 16
        %vm3032 = vc.u32 %v3024, %v3028
        %v3033 = vsel %vm3032, 1, 0
        %v3034 = vadd.s32 %v3024, %v3028
        %v3035 = vadd.s32 %v3027, %v3033
        %vm3036 = vc.u32 %v3034, %v3030
        %v3037 = vsel %vm3036, 1, 0
        %v3038 = vadd.s32 %v3034, %v3030
        %v3039 = vadd.s32 %v3035, %v3037
        %v3040 = vadd.s32 %v3039, %v3029
        %v3041 = vadd.s32 %v3040, %v3031
        %v3042 = vmul.u32 %v2997, %v2988
        %v3043 = vadd.s32 %v3019, %v3038
        %vm3044 = vc.u32 %v3019, %v3038
        %v3045 = vadd.s32 %v3041, 1
        %v3046 = vsel %vm3044, %v3045, %v3041
        %v3047 = vadd.s32 %v3042, %v3046
        %v3048 = vadd.s32 %v3047, 536870912
        %v3049 = vshrl.u32 %v3048, 30
        %v3050 = vshll.u32 %v3049, 30
        %v3051 = vsub.s32 %v3047, %v3050
        %vm3052 = vcmp.lt.s32.totalorder %v3051, 0
        %v3053 = vsub.s32 0, %v3051
        %v3054 = vsel %vm3052, %v3053, %v3051
        %v3055 = vclz %v3054
        %v3056 = vsub.s32 %v3055, 2
        %vm3057 = vcmp.gt.s32.totalorder 0, %v3056
        %v3058 = vsel %vm3057, 0, %v3056
        %v3059 = vsub.s32 32, %v3058
        %v3060 = vshll.u32 %v3051, %v3058
        %v3061 = vshrl.u32 %v3043, %v3059
        %v3062 = vor.u32 %v3060, %v3061
        %v3063 = vsub.s32 4294967266, %v3058
        %v3064 = vadd.s32 %v3063, 127
        %v3065 = vshll.u32 %v3064, 23
        %v3066 = vor.u32 4788187, %v3065
        %v3067 = vand.u32 2147483647, %v3066
        %v3069 = vcvt.s32.f32 %v3062
        %v3070 = vmul.f32 %v3069, %v3067
        %v3071 = vxor.u32 %v3070, 2147483648
        %v3072 = vsel %vm2951, %v3071, %v3070
        %v3073 = vsub.s32 4, %v3049
        %v3074 = vsel %vm2951, %v3073, %v3049
        %v3075 = vsel %vm2950, %v356, %v3072
        %v3076 = vsel %vm2950, 0, %v3074
        %v3077 = vmul.f32 %v3075, %v3075
        %v3078 = vmul.f32 %v3077, -0.001358992
        %v3079 = vadd.f32 %v3078, 0.041655596
        %v3080 = vmul.f32 %v3077, %v3079
        %v3081 = vadd.f32 %v3080, -0.4999988
        %v3082 = vmul.f32 %v3077, %v3081
        %v3083 = vadd.f32 1.0, %v3082
        %v3084 = vmul.f32 %v3075, %v3075
        %v3085 = vmul.f32 %v3084, -0.00019511016
        %v3086 = vadd.f32 %v3085, 0.008332121
        %v3087 = vmul.f32 %v3084, %v3086
        %v3088 = vadd.f32 %v3087, -0.16666654
        %v3089 = vmul.f32 %v3084, %v3088
        %v3090 = vadd.f32 %v3089, 1.0
        %v3091 = vmul.f32 %v3090, %v3075
        %vm3092 = vweird.f32 %v356
        %v3093 = vadd.s32 %v3076, 3
        %v3094 = vand.u32 %v3093, 3
        %vm3095 = vcmp.lt.s32.totalorder %v3094, 2
        %vm3096 = vcmp.eq.s32.totalorder %v3094, 0
        %v3097 = vxor.u32 %v3091, 2147483648
        %v3098 = vsel %vm3096, %v3083, %v3097
        %vm3099 = vcmp.eq.s32.totalorder %v3094, 2
        %v3100 = vxor.u32 %v3083, 2147483648
        %v3101 = vsel %vm3099, %v3100, %v3091
        %v3102 = vsel %vm3095, %v3098, %v3101
        %v3103 = vsel %vm3092, nan, %v3102
        %v3104 = vand.u32 2147483647, %v359
        %vm3105 = vcmp.le.f32.partialorder %v3104, 0.7853982
        %vm3106 = vcmp.lt.s32.totalorder %v359, 0
        %v3107 = vand.u32 %v359, 2139095040
        %v3108 = vshrl.u32 %v3107, 23
        %v3109 = vsub.s32 %v3108, 127
        %v3110 = vand.u32 2147483647, %v359
        %v3111 = vand.u32 %v3110, 8388607
        %v3112 = vor.u32 %v3111, 8388608
        %v3113 = vsub.s32 0, %v3112
        %v3114 = vadd.s32 %v3109, 1
        %vm3115 = vcmp.gt.s32.totalorder %v3114, 0
        %v3116 = vsel %vm3115, %v3114, 0
        %v3117 = vshrl.u32 %v3116, 5
        %v3118 = vand.u32 %v3116, 31
        %v3119 = vsub.s32 32, %v3118
        %v3120 = vshrl.u32 683565275, %v3119
        %v3121 = vshll.u32 683565275, %v3118
        %v3122 = vshrl.u32 2475754826, %v3119
        %v3123 = vor.u32 %v3121, %v3122
        %v3124 = vshll.u32 2475754826, %v3118
        %v3125 = vshrl.u32 2131351028, %v3119
        %v3126 = vor.u32 %v3124, %v3125
        %v3127 = vshll.u32 2131351028, %v3118
        %v3128 = vshrl.u32 2102212464, %v3119
        %v3129 = vor.u32 %v3127, %v3128
        %v3130 = vshll.u32 2102212464, %v3118
        %v3131 = vshrl.u32 920167782, %v3119
        %v3132 = vor.u32 %v3130, %v3131
        %v3133 = vshll.u32 920167782, %v3118
        %v3134 = vshrl.u32 1326507024, %v3119
        %v3135 = vor.u32 %v3133, %v3134
        %vm3136 = vcmp.lt.s32.totalorder %v3117, 1
        %vm3137 = vcmp.lt.s32.totalorder %v3117, 2
        %vm3138 = vcmp.lt.s32.totalorder %v3117, 3
        %vm3139 = vcmp.lt.s32.totalorder %v3117, 4
        %v3140 = vsel %vm3136, %v3120, %v3123
        %v3141 = vsel %vm3139, %v3129, 2102212464
        %v3142 = vsel %vm3138, %v3126, %v3141
        %v3143 = vsel %vm3137, %v3140, %v3142
        %v3144 = vsel %vm3136, %v3123, %v3126
        %v3145 = vsel %vm3139, %v3132, 920167782
        %v3146 = vsel %vm3138, %v3129, %v3145
        %v3147 = vsel %vm3137, %v3144, %v3146
        %v3148 = vsel %vm3136, %v3126, %v3129
        %v3149 = vsel %vm3139, %v3135, 1326507024
        %v3150 = vsel %vm3138, %v3132, %v3149
        %v3151 = vsel %vm3137, %v3148, %v3150
        %v3152 = vshll.u32 %v3112, 8
        %v3153 = vand.u32 %v3152, 65535
        %v3154 = vshrl.u32 %v3152, 16
        %v3155 = vand.u32 %v3151, 65535
        %v3156 = vshrl.u32 %v3151, 16
        %v3157 = vmul.u32 %v3153, %v3155
        %v3158 = vmul.u32 %v3153, %v3156
        %v3159 = vmul.u32 %v3154, %v3155
        %v3160 = vmul.u32 %v3154, %v3156
        %v3161 = vshll.u32 %v3158, 16
        %v3162 = vshrl.u32 %v3158, 16
        %v3163 = vshll.u32 %v3159, 16
        %v3164 = vshrl.u32 %v3159, 16
        %vm3165 = vc.u32 %v3157, %v3161
        %v3166 = vsel %vm3165, 1, 0
        %v3167 = vadd.s32 %v3157, %v3161
        %v3168 = vadd.s32 %v3160, %v3166
        %vm3169 = vc.u32 %v3167, %v3163
        %v3170 = vsel %vm3169, 1, 0
        %v3171 = vadd.s32 %v3167, %v3163
        %v3172 = vadd.s32 %v3168, %v3170
        %v3173 = vadd.s32 %v3172, %v3162
        %v3174 = vadd.s32 %v3173, %v3164
        %v3175 = vand.u32 %v3152, 65535
        %v3176 = vshrl.u32 %v3152, 16
        %v3177 = vand.u32 %v3147, 65535
        %v3178 = vshrl.u32 %v3147, 16
        %v3179 = vmul.u32 %v3175, %v3177
        %v3180 = vmul.u32 %v3175, %v3178
        %v3181 = vmul.u32 %v3176, %v3177
        %v3182 = vmul.u32 %v3176, %v3178
        %v3183 = vshll.u32 %v3180, 16
        %v3184 = vshrl.u32 %v3180, 16
        %v3185 = vshll.u32 %v3181, 16
        %v3186 = vshrl.u32 %v3181, 16
        %vm3187 = vc.u32 %v3179, %v3183
        %v3188 = vsel %vm3187, 1, 0
        %v3189 = vadd.s32 %v3179, %v3183
        %v3190 = vadd.s32 %v3182, %v3188
        %vm3191 = vc.u32 %v3189, %v3185
        %v3192 = vsel %vm3191, 1, 0
        %v3193 = vadd.s32 %v3189, %v3185
        %v3194 = vadd.s32 %v3190, %v3192
        %v3195 = vadd.s32 %v3194, %v3184
        %v3196 = vadd.s32 %v3195, %v3186
        %v3197 = vmul.u32 %v3152, %v3143
        %v3198 = vadd.s32 %v3174, %v3193
        %vm3199 = vc.u32 %v3174, %v3193
        %v3200 = vadd.s32 %v3196, 1
        %v3201 = vsel %vm3199, %v3200, %v3196
        %v3202 = vadd.s32 %v3197, %v3201
        %v3203 = vadd.s32 %v3202, 536870912
        %v3204 = vshrl.u32 %v3203, 30
        %v3205 = vshll.u32 %v3204, 30
        %v3206 = vsub.s32 %v3202, %v3205
        %vm3207 = vcmp.lt.s32.totalorder %v3206, 0
        %v3208 = vsub.s32 0, %v3206
        %v3209 = vsel %vm3207, %v3208, %v3206
        %v3210 = vclz %v3209
        %v3211 = vsub.s32 %v3210, 2
        %vm3212 = vcmp.gt.s32.totalorder 0, %v3211
        %v3213 = vsel %vm3212, 0, %v3211
        %v3214 = vsub.s32 32, %v3213
        %v3215 = vshll.u32 %v3206, %v3213
        %v3216 = vshrl.u32 %v3198, %v3214
        %v3217 = vor.u32 %v3215, %v3216
        %v3218 = vsub.s32 4294967266, %v3213
        %v3219 = vadd.s32 %v3218, 127
        %v3220 = vshll.u32 %v3219, 23
        %v3221 = vor.u32 4788187, %v3220
        %v3222 = vand.u32 2147483647, %v3221
        %v3224 = vcvt.s32.f32 %v3217
        %v3225 = vmul.f32 %v3224, %v3222
        %v3226 = vxor.u32 %v3225, 2147483648
        %v3227 = vsel %vm3106, %v3226, %v3225
        %v3228 = vsub.s32 4, %v3204
        %v3229 = vsel %vm3106, %v3228, %v3204
        %v3230 = vsel %vm3105, %v359, %v3227
        %v3231 = vsel %vm3105, 0, %v3229
        %v3232 = vmul.f32 %v3230, %v3230
        %v3233 = vmul.f32 %v3232, -0.001358992
        %v3234 = vadd.f32 %v3233, 0.041655596
        %v3235 = vmul.f32 %v3232, %v3234
        %v3236 = vadd.f32 %v3235, -0.4999988
        %v3237 = vmul.f32 %v3232, %v3236
        %v3238 = vadd.f32 1.0, %v3237
        %v3239 = vmul.f32 %v3230, %v3230
        %v3240 = vmul.f32 %v3239, -0.00019511016
        %v3241 = vadd.f32 %v3240, 0.008332121
        %v3242 = vmul.f32 %v3239, %v3241
        %v3243 = vadd.f32 %v3242, -0.16666654
        %v3244 = vmul.f32 %v3239, %v3243
        %v3245 = vadd.f32 %v3244, 1.0
        %v3246 = vmul.f32 %v3245, %v3230
        %vm3247 = vweird.f32 %v359
        %v3248 = vadd.s32 %v3231, 3
        %v3249 = vand.u32 %v3248, 3
        %vm3250 = vcmp.lt.s32.totalorder %v3249, 2
        %vm3251 = vcmp.eq.s32.totalorder %v3249, 0
        %v3252 = vxor.u32 %v3246, 2147483648
        %v3253 = vsel %vm3251, %v3238, %v3252
        %vm3254 = vcmp.eq.s32.totalorder %v3249, 2
        %v3255 = vxor.u32 %v3238, 2147483648
        %v3256 = vsel %vm3254, %v3255, %v3246
        %v3257 = vsel %vm3250, %v3253, %v3256
        %v3258 = vsel %vm3247, nan, %v3257
        %v3259 = vand.u32 2147483647, %v362
        %vm3260 = vcmp.le.f32.partialorder %v3259, 0.7853982
        %vm3261 = vcmp.lt.s32.totalorder %v362, 0
        %v3262 = vand.u32 %v362, 2139095040
        %v3263 = vshrl.u32 %v3262, 23
        %v3264 = vsub.s32 %v3263, 127
        %v3265 = vand.u32 2147483647, %v362
        %v3266 = vand.u32 %v3265, 8388607
        %v3267 = vor.u32 %v3266, 8388608
        %v3268 = vsub.s32 0, %v3267
        %v3269 = vadd.s32 %v3264, 1
        %vm3270 = vcmp.gt.s32.totalorder %v3269, 0
        %v3271 = vsel %vm3270, %v3269, 0
        %v3272 = vshrl.u32 %v3271, 5
        %v3273 = vand.u32 %v3271, 31
        %v3274 = vsub.s32 32, %v3273
        %v3275 = vshrl.u32 683565275, %v3274
        %v3276 = vshll.u32 683565275, %v3273
        %v3277 = vshrl.u32 2475754826, %v3274
        %v3278 = vor.u32 %v3276, %v3277
        %v3279 = vshll.u32 2475754826, %v3273
        %v3280 = vshrl.u32 2131351028, %v3274
        %v3281 = vor.u32 %v3279, %v3280
        %v3282 = vshll.u32 2131351028, %v3273
        %v3283 = vshrl.u32 2102212464, %v3274
        %v3284 = vor.u32 %v3282, %v3283
        %v3285 = vshll.u32 2102212464, %v3273
        %v3286 = vshrl.u32 920167782, %v3274
        %v3287 = vor.u32 %v3285, %v3286
        %v3288 = vshll.u32 920167782, %v3273
        %v3289 = vshrl.u32 1326507024, %v3274
        %v3290 = vor.u32 %v3288, %v3289
        %vm3291 = vcmp.lt.s32.totalorder %v3272, 1
        %vm3292 = vcmp.lt.s32.totalorder %v3272, 2
        %vm3293 = vcmp.lt.s32.totalorder %v3272, 3
        %vm3294 = vcmp.lt.s32.totalorder %v3272, 4
        %v3295 = vsel %vm3291, %v3275, %v3278
        %v3296 = vsel %vm3294, %v3284, 2102212464
        %v3297 = vsel %vm3293, %v3281, %v3296
        %v3298 = vsel %vm3292, %v3295, %v3297
        %v3299 = vsel %vm3291, %v3278, %v3281
        %v3300 = vsel %vm3294, %v3287, 920167782
        %v3301 = vsel %vm3293, %v3284, %v3300
        %v3302 = vsel %vm3292, %v3299, %v3301
        %v3303 = vsel %vm3291, %v3281, %v3284
        %v3304 = vsel %vm3294, %v3290, 1326507024
        %v3305 = vsel %vm3293, %v3287, %v3304
        %v3306 = vsel %vm3292, %v3303, %v3305
        %v3307 = vshll.u32 %v3267, 8
        %v3308 = vand.u32 %v3307, 65535
        %v3309 = vshrl.u32 %v3307, 16
        %v3310 = vand.u32 %v3306, 65535
        %v3311 = vshrl.u32 %v3306, 16
        %v3312 = vmul.u32 %v3308, %v3310
        %v3313 = vmul.u32 %v3308, %v3311
        %v3314 = vmul.u32 %v3309, %v3310
        %v3315 = vmul.u32 %v3309, %v3311
        %v3316 = vshll.u32 %v3313, 16
        %v3317 = vshrl.u32 %v3313, 16
        %v3318 = vshll.u32 %v3314, 16
        %v3319 = vshrl.u32 %v3314, 16
        %vm3320 = vc.u32 %v3312, %v3316
        %v3321 = vsel %vm3320, 1, 0
        %v3322 = vadd.s32 %v3312, %v3316
        %v3323 = vadd.s32 %v3315, %v3321
        %vm3324 = vc.u32 %v3322, %v3318
        %v3325 = vsel %vm3324, 1, 0
        %v3326 = vadd.s32 %v3322, %v3318
        %v3327 = vadd.s32 %v3323, %v3325
        %v3328 = vadd.s32 %v3327, %v3317
        %v3329 = vadd.s32 %v3328, %v3319
        %v3330 = vand.u32 %v3307, 65535
        %v3331 = vshrl.u32 %v3307, 16
        %v3332 = vand.u32 %v3302, 65535
        %v3333 = vshrl.u32 %v3302, 16
        %v3334 = vmul.u32 %v3330, %v3332
        %v3335 = vmul.u32 %v3330, %v3333
        %v3336 = vmul.u32 %v3331, %v3332
        %v3337 = vmul.u32 %v3331, %v3333
        %v3338 = vshll.u32 %v3335, 16
        %v3339 = vshrl.u32 %v3335, 16
        %v3340 = vshll.u32 %v3336, 16
        %v3341 = vshrl.u32 %v3336, 16
        %vm3342 = vc.u32 %v3334, %v3338
        %v3343 = vsel %vm3342, 1, 0
        %v3344 = vadd.s32 %v3334, %v3338
        %v3345 = vadd.s32 %v3337, %v3343
        %vm3346 = vc.u32 %v3344, %v3340
        %v3347 = vsel %vm3346, 1, 0
        %v3348 = vadd.s32 %v3344, %v3340
        %v3349 = vadd.s32 %v3345, %v3347
        %v3350 = vadd.s32 %v3349, %v3339
        %v3351 = vadd.s32 %v3350, %v3341
        %v3352 = vmul.u32 %v3307, %v3298
        %v3353 = vadd.s32 %v3329, %v3348
        %vm3354 = vc.u32 %v3329, %v3348
        %v3355 = vadd.s32 %v3351, 1
        %v3356 = vsel %vm3354, %v3355, %v3351
        %v3357 = vadd.s32 %v3352, %v3356
        %v3358 = vadd.s32 %v3357, 536870912
        %v3359 = vshrl.u32 %v3358, 30
        %v3360 = vshll.u32 %v3359, 30
        %v3361 = vsub.s32 %v3357, %v3360
        %vm3362 = vcmp.lt.s32.totalorder %v3361, 0
        %v3363 = vsub.s32 0, %v3361
        %v3364 = vsel %vm3362, %v3363, %v3361
        %v3365 = vclz %v3364
        %v3366 = vsub.s32 %v3365, 2
        %vm3367 = vcmp.gt.s32.totalorder 0, %v3366
        %v3368 = vsel %vm3367, 0, %v3366
        %v3369 = vsub.s32 32, %v3368
        %v3370 = vshll.u32 %v3361, %v3368
        %v3371 = vshrl.u32 %v3353, %v3369
        %v3372 = vor.u32 %v3370, %v3371
        %v3373 = vsub.s32 4294967266, %v3368
        %v3374 = vadd.s32 %v3373, 127
        %v3375 = vshll.u32 %v3374, 23
        %v3376 = vor.u32 4788187, %v3375
        %v3377 = vand.u32 2147483647, %v3376
        %v3379 = vcvt.s32.f32 %v3372
        %v3380 = vmul.f32 %v3379, %v3377
        %v3381 = vxor.u32 %v3380, 2147483648
        %v3382 = vsel %vm3261, %v3381, %v3380
        %v3383 = vsub.s32 4, %v3359
        %v3384 = vsel %vm3261, %v3383, %v3359
        %v3385 = vsel %vm3260, %v362, %v3382
        %v3386 = vsel %vm3260, 0, %v3384
        %v3387 = vmul.f32 %v3385, %v3385
        %v3388 = vmul.f32 %v3387, -0.001358992
        %v3389 = vadd.f32 %v3388, 0.041655596
        %v3390 = vmul.f32 %v3387, %v3389
        %v3391 = vadd.f32 %v3390, -0.4999988
        %v3392 = vmul.f32 %v3387, %v3391
        %v3393 = vadd.f32 1.0, %v3392
        %v3394 = vmul.f32 %v3385, %v3385
        %v3395 = vmul.f32 %v3394, -0.00019511016
        %v3396 = vadd.f32 %v3395, 0.008332121
        %v3397 = vmul.f32 %v3394, %v3396
        %v3398 = vadd.f32 %v3397, -0.16666654
        %v3399 = vmul.f32 %v3394, %v3398
        %v3400 = vadd.f32 %v3399, 1.0
        %v3401 = vmul.f32 %v3400, %v3385
        %vm3402 = vweird.f32 %v362
        %v3403 = vadd.s32 %v3386, 3
        %v3404 = vand.u32 %v3403, 3
        %vm3405 = vcmp.lt.s32.totalorder %v3404, 2
        %vm3406 = vcmp.eq.s32.totalorder %v3404, 0
        %v3407 = vxor.u32 %v3401, 2147483648
        %v3408 = vsel %vm3406, %v3393, %v3407
        %vm3409 = vcmp.eq.s32.totalorder %v3404, 2
        %v3410 = vxor.u32 %v3393, 2147483648
        %v3411 = vsel %vm3409, %v3410, %v3401
        %v3412 = vsel %vm3405, %v3408, %v3411
        %v3413 = vsel %vm3402, nan, %v3412
        %v3414 = vand.u32 2147483647, %v365
        %vm3415 = vcmp.le.f32.partialorder %v3414, 0.7853982
        %vm3416 = vcmp.lt.s32.totalorder %v365, 0
        %v3417 = vand.u32 %v365, 2139095040
        %v3418 = vshrl.u32 %v3417, 23
        %v3419 = vsub.s32 %v3418, 127
        %v3420 = vand.u32 2147483647, %v365
        %v3421 = vand.u32 %v3420, 8388607
        %v3422 = vor.u32 %v3421, 8388608
        %v3423 = vsub.s32 0, %v3422
        %v3424 = vadd.s32 %v3419, 1
        %vm3425 = vcmp.gt.s32.totalorder %v3424, 0
        %v3426 = vsel %vm3425, %v3424, 0
        %v3427 = vshrl.u32 %v3426, 5
        %v3428 = vand.u32 %v3426, 31
        %v3429 = vsub.s32 32, %v3428
        %v3430 = vshrl.u32 683565275, %v3429
        %v3431 = vshll.u32 683565275, %v3428
        %v3432 = vshrl.u32 2475754826, %v3429
        %v3433 = vor.u32 %v3431, %v3432
        %v3434 = vshll.u32 2475754826, %v3428
        %v3435 = vshrl.u32 2131351028, %v3429
        %v3436 = vor.u32 %v3434, %v3435
        %v3437 = vshll.u32 2131351028, %v3428
        %v3438 = vshrl.u32 2102212464, %v3429
        %v3439 = vor.u32 %v3437, %v3438
        %v3440 = vshll.u32 2102212464, %v3428
        %v3441 = vshrl.u32 920167782, %v3429
        %v3442 = vor.u32 %v3440, %v3441
        %v3443 = vshll.u32 920167782, %v3428
        %v3444 = vshrl.u32 1326507024, %v3429
        %v3445 = vor.u32 %v3443, %v3444
        %vm3446 = vcmp.lt.s32.totalorder %v3427, 1
        %vm3447 = vcmp.lt.s32.totalorder %v3427, 2
        %vm3448 = vcmp.lt.s32.totalorder %v3427, 3
        %vm3449 = vcmp.lt.s32.totalorder %v3427, 4
        %v3450 = vsel %vm3446, %v3430, %v3433
        %v3451 = vsel %vm3449, %v3439, 2102212464
        %v3452 = vsel %vm3448, %v3436, %v3451
        %v3453 = vsel %vm3447, %v3450, %v3452
        %v3454 = vsel %vm3446, %v3433, %v3436
        %v3455 = vsel %vm3449, %v3442, 920167782
        %v3456 = vsel %vm3448, %v3439, %v3455
        %v3457 = vsel %vm3447, %v3454, %v3456
        %v3458 = vsel %vm3446, %v3436, %v3439
        %v3459 = vsel %vm3449, %v3445, 1326507024
        %v3460 = vsel %vm3448, %v3442, %v3459
        %v3461 = vsel %vm3447, %v3458, %v3460
        %v3462 = vshll.u32 %v3422, 8
        %v3463 = vand.u32 %v3462, 65535
        %v3464 = vshrl.u32 %v3462, 16
        %v3465 = vand.u32 %v3461, 65535
        %v3466 = vshrl.u32 %v3461, 16
        %v3467 = vmul.u32 %v3463, %v3465
        %v3468 = vmul.u32 %v3463, %v3466
        %v3469 = vmul.u32 %v3464, %v3465
        %v3470 = vmul.u32 %v3464, %v3466
        %v3471 = vshll.u32 %v3468, 16
        %v3472 = vshrl.u32 %v3468, 16
        %v3473 = vshll.u32 %v3469, 16
        %v3474 = vshrl.u32 %v3469, 16
        %vm3475 = vc.u32 %v3467, %v3471
        %v3476 = vsel %vm3475, 1, 0
        %v3477 = vadd.s32 %v3467, %v3471
        %v3478 = vadd.s32 %v3470, %v3476
        %vm3479 = vc.u32 %v3477, %v3473
        %v3480 = vsel %vm3479, 1, 0
        %v3481 = vadd.s32 %v3477, %v3473
        %v3482 = vadd.s32 %v3478, %v3480
        %v3483 = vadd.s32 %v3482, %v3472
        %v3484 = vadd.s32 %v3483, %v3474
        %v3485 = vand.u32 %v3462, 65535
        %v3486 = vshrl.u32 %v3462, 16
        %v3487 = vand.u32 %v3457, 65535
        %v3488 = vshrl.u32 %v3457, 16
        %v3489 = vmul.u32 %v3485, %v3487
        %v3490 = vmul.u32 %v3485, %v3488
        %v3491 = vmul.u32 %v3486, %v3487
        %v3492 = vmul.u32 %v3486, %v3488
        %v3493 = vshll.u32 %v3490, 16
        %v3494 = vshrl.u32 %v3490, 16
        %v3495 = vshll.u32 %v3491, 16
        %v3496 = vshrl.u32 %v3491, 16
        %vm3497 = vc.u32 %v3489, %v3493
        %v3498 = vsel %vm3497, 1, 0
        %v3499 = vadd.s32 %v3489, %v3493
        %v3500 = vadd.s32 %v3492, %v3498
        %vm3501 = vc.u32 %v3499, %v3495
        %v3502 = vsel %vm3501, 1, 0
        %v3503 = vadd.s32 %v3499, %v3495
        %v3504 = vadd.s32 %v3500, %v3502
        %v3505 = vadd.s32 %v3504, %v3494
        %v3506 = vadd.s32 %v3505, %v3496
        %v3507 = vmul.u32 %v3462, %v3453
        %v3508 = vadd.s32 %v3484, %v3503
        %vm3509 = vc.u32 %v3484, %v3503
        %v3510 = vadd.s32 %v3506, 1
        %v3511 = vsel %vm3509, %v3510, %v3506
        %v3512 = vadd.s32 %v3507, %v3511
        %v3513 = vadd.s32 %v3512, 536870912
        %v3514 = vshrl.u32 %v3513, 30
        %v3515 = vshll.u32 %v3514, 30
        %v3516 = vsub.s32 %v3512, %v3515
        %vm3517 = vcmp.lt.s32.totalorder %v3516, 0
        %v3518 = vsub.s32 0, %v3516
        %v3519 = vsel %vm3517, %v3518, %v3516
        %v3520 = vclz %v3519
        %v3521 = vsub.s32 %v3520, 2
        %vm3522 = vcmp.gt.s32.totalorder 0, %v3521
        %v3523 = vsel %vm3522, 0, %v3521
        %v3524 = vsub.s32 32, %v3523
        %v3525 = vshll.u32 %v3516, %v3523
        %v3526 = vshrl.u32 %v3508, %v3524
        %v3527 = vor.u32 %v3525, %v3526
        %v3528 = vsub.s32 4294967266, %v3523
        %v3529 = vadd.s32 %v3528, 127
        %v3530 = vshll.u32 %v3529, 23
        %v3531 = vor.u32 4788187, %v3530
        %v3532 = vand.u32 2147483647, %v3531
        %v3534 = vcvt.s32.f32 %v3527
        %v3535 = vmul.f32 %v3534, %v3532
        %v3536 = vxor.u32 %v3535, 2147483648
        %v3537 = vsel %vm3416, %v3536, %v3535
        %v3538 = vsub.s32 4, %v3514
        %v3539 = vsel %vm3416, %v3538, %v3514
        %v3540 = vsel %vm3415, %v365, %v3537
        %v3541 = vsel %vm3415, 0, %v3539
        %v3542 = vmul.f32 %v3540, %v3540
        %v3543 = vmul.f32 %v3542, -0.001358992
        %v3544 = vadd.f32 %v3543, 0.041655596
        %v3545 = vmul.f32 %v3542, %v3544
        %v3546 = vadd.f32 %v3545, -0.4999988
        %v3547 = vmul.f32 %v3542, %v3546
        %v3548 = vadd.f32 1.0, %v3547
        %v3549 = vmul.f32 %v3540, %v3540
        %v3550 = vmul.f32 %v3549, -0.00019511016
        %v3551 = vadd.f32 %v3550, 0.008332121
        %v3552 = vmul.f32 %v3549, %v3551
        %v3553 = vadd.f32 %v3552, -0.16666654
        %v3554 = vmul.f32 %v3549, %v3553
        %v3555 = vadd.f32 %v3554, 1.0
        %v3556 = vmul.f32 %v3555, %v3540
        %vm3557 = vweird.f32 %v365
        %v3558 = vadd.s32 %v3541, 3
        %v3559 = vand.u32 %v3558, 3
        %vm3560 = vcmp.lt.s32.totalorder %v3559, 2
        %vm3561 = vcmp.eq.s32.totalorder %v3559, 0
        %v3562 = vxor.u32 %v3556, 2147483648
        %v3563 = vsel %vm3561, %v3548, %v3562
        %vm3564 = vcmp.eq.s32.totalorder %v3559, 2
        %v3565 = vxor.u32 %v3548, 2147483648
        %v3566 = vsel %vm3564, %v3565, %v3556
        %v3567 = vsel %vm3560, %v3563, %v3566
        %v3568 = vsel %vm3557, nan, %v3567
        %v3569 = vand.u32 2147483647, %v368
        %vm3570 = vcmp.le.f32.partialorder %v3569, 0.7853982
        %vm3571 = vcmp.lt.s32.totalorder %v368, 0
        %v3572 = vand.u32 %v368, 2139095040
        %v3573 = vshrl.u32 %v3572, 23
        %v3574 = vsub.s32 %v3573, 127
        %v3575 = vand.u32 2147483647, %v368
        %v3576 = vand.u32 %v3575, 8388607
        %v3577 = vor.u32 %v3576, 8388608
        %v3578 = vsub.s32 0, %v3577
        %v3579 = vadd.s32 %v3574, 1
        %vm3580 = vcmp.gt.s32.totalorder %v3579, 0
        %v3581 = vsel %vm3580, %v3579, 0
        %v3582 = vshrl.u32 %v3581, 5
        %v3583 = vand.u32 %v3581, 31
        %v3584 = vsub.s32 32, %v3583
        %v3585 = vshrl.u32 683565275, %v3584
        %v3586 = vshll.u32 683565275, %v3583
        %v3587 = vshrl.u32 2475754826, %v3584
        %v3588 = vor.u32 %v3586, %v3587
        %v3589 = vshll.u32 2475754826, %v3583
        %v3590 = vshrl.u32 2131351028, %v3584
        %v3591 = vor.u32 %v3589, %v3590
        %v3592 = vshll.u32 2131351028, %v3583
        %v3593 = vshrl.u32 2102212464, %v3584
        %v3594 = vor.u32 %v3592, %v3593
        %v3595 = vshll.u32 2102212464, %v3583
        %v3596 = vshrl.u32 920167782, %v3584
        %v3597 = vor.u32 %v3595, %v3596
        %v3598 = vshll.u32 920167782, %v3583
        %v3599 = vshrl.u32 1326507024, %v3584
        %v3600 = vor.u32 %v3598, %v3599
        %vm3601 = vcmp.lt.s32.totalorder %v3582, 1
        %vm3602 = vcmp.lt.s32.totalorder %v3582, 2
        %vm3603 = vcmp.lt.s32.totalorder %v3582, 3
        %vm3604 = vcmp.lt.s32.totalorder %v3582, 4
        %v3605 = vsel %vm3601, %v3585, %v3588
        %v3606 = vsel %vm3604, %v3594, 2102212464
        %v3607 = vsel %vm3603, %v3591, %v3606
        %v3608 = vsel %vm3602, %v3605, %v3607
        %v3609 = vsel %vm3601, %v3588, %v3591
        %v3610 = vsel %vm3604, %v3597, 920167782
        %v3611 = vsel %vm3603, %v3594, %v3610
        %v3612 = vsel %vm3602, %v3609, %v3611
        %v3613 = vsel %vm3601, %v3591, %v3594
        %v3614 = vsel %vm3604, %v3600, 1326507024
        %v3615 = vsel %vm3603, %v3597, %v3614
        %v3616 = vsel %vm3602, %v3613, %v3615
        %v3617 = vshll.u32 %v3577, 8
        %v3618 = vand.u32 %v3617, 65535
        %v3619 = vshrl.u32 %v3617, 16
        %v3620 = vand.u32 %v3616, 65535
        %v3621 = vshrl.u32 %v3616, 16
        %v3622 = vmul.u32 %v3618, %v3620
        %v3623 = vmul.u32 %v3618, %v3621
        %v3624 = vmul.u32 %v3619, %v3620
        %v3625 = vmul.u32 %v3619, %v3621
        %v3626 = vshll.u32 %v3623, 16
        %v3627 = vshrl.u32 %v3623, 16
        %v3628 = vshll.u32 %v3624, 16
        %v3629 = vshrl.u32 %v3624, 16
        %vm3630 = vc.u32 %v3622, %v3626
        %v3631 = vsel %vm3630, 1, 0
        %v3632 = vadd.s32 %v3622, %v3626
        %v3633 = vadd.s32 %v3625, %v3631
        %vm3634 = vc.u32 %v3632, %v3628
        %v3635 = vsel %vm3634, 1, 0
        %v3636 = vadd.s32 %v3632, %v3628
        %v3637 = vadd.s32 %v3633, %v3635
        %v3638 = vadd.s32 %v3637, %v3627
        %v3639 = vadd.s32 %v3638, %v3629
        %v3640 = vand.u32 %v3617, 65535
        %v3641 = vshrl.u32 %v3617, 16
        %v3642 = vand.u32 %v3612, 65535
        %v3643 = vshrl.u32 %v3612, 16
        %v3644 = vmul.u32 %v3640, %v3642
        %v3645 = vmul.u32 %v3640, %v3643
        %v3646 = vmul.u32 %v3641, %v3642
        %v3647 = vmul.u32 %v3641, %v3643
        %v3648 = vshll.u32 %v3645, 16
        %v3649 = vshrl.u32 %v3645, 16
        %v3650 = vshll.u32 %v3646, 16
        %v3651 = vshrl.u32 %v3646, 16
        %vm3652 = vc.u32 %v3644, %v3648
        %v3653 = vsel %vm3652, 1, 0
        %v3654 = vadd.s32 %v3644, %v3648
        %v3655 = vadd.s32 %v3647, %v3653
        %vm3656 = vc.u32 %v3654, %v3650
        %v3657 = vsel %vm3656, 1, 0
        %v3658 = vadd.s32 %v3654, %v3650
        %v3659 = vadd.s32 %v3655, %v3657
        %v3660 = vadd.s32 %v3659, %v3649
        %v3661 = vadd.s32 %v3660, %v3651
        %v3662 = vmul.u32 %v3617, %v3608
        %v3663 = vadd.s32 %v3639, %v3658
        %vm3664 = vc.u32 %v3639, %v3658
        %v3665 = vadd.s32 %v3661, 1
        %v3666 = vsel %vm3664, %v3665, %v3661
        %v3667 = vadd.s32 %v3662, %v3666
        %v3668 = vadd.s32 %v3667, 536870912
        %v3669 = vshrl.u32 %v3668, 30
        %v3670 = vshll.u32 %v3669, 30
        %v3671 = vsub.s32 %v3667, %v3670
        %vm3672 = vcmp.lt.s32.totalorder %v3671, 0
        %v3673 = vsub.s32 0, %v3671
        %v3674 = vsel %vm3672, %v3673, %v3671
        %v3675 = vclz %v3674
        %v3676 = vsub.s32 %v3675, 2
        %vm3677 = vcmp.gt.s32.totalorder 0, %v3676
        %v3678 = vsel %vm3677, 0, %v3676
        %v3679 = vsub.s32 32, %v3678
        %v3680 = vshll.u32 %v3671, %v3678
        %v3681 = vshrl.u32 %v3663, %v3679
        %v3682 = vor.u32 %v3680, %v3681
        %v3683 = vsub.s32 4294967266, %v3678
        %v3684 = vadd.s32 %v3683, 127
        %v3685 = vshll.u32 %v3684, 23
        %v3686 = vor.u32 4788187, %v3685
        %v3687 = vand.u32 2147483647, %v3686
        %v3689 = vcvt.s32.f32 %v3682
        %v3690 = vmul.f32 %v3689, %v3687
        %v3691 = vxor.u32 %v3690, 2147483648
        %v3692 = vsel %vm3571, %v3691, %v3690
        %v3693 = vsub.s32 4, %v3669
        %v3694 = vsel %vm3571, %v3693, %v3669
        %v3695 = vsel %vm3570, %v368, %v3692
        %v3696 = vsel %vm3570, 0, %v3694
        %v3697 = vmul.f32 %v3695, %v3695
        %v3698 = vmul.f32 %v3697, -0.001358992
        %v3699 = vadd.f32 %v3698, 0.041655596
        %v3700 = vmul.f32 %v3697, %v3699
        %v3701 = vadd.f32 %v3700, -0.4999988
        %v3702 = vmul.f32 %v3697, %v3701
        %v3703 = vadd.f32 1.0, %v3702
        %v3704 = vmul.f32 %v3695, %v3695
        %v3705 = vmul.f32 %v3704, -0.00019511016
        %v3706 = vadd.f32 %v3705, 0.008332121
        %v3707 = vmul.f32 %v3704, %v3706
        %v3708 = vadd.f32 %v3707, -0.16666654
        %v3709 = vmul.f32 %v3704, %v3708
        %v3710 = vadd.f32 %v3709, 1.0
        %v3711 = vmul.f32 %v3710, %v3695
        %vm3712 = vweird.f32 %v368
        %v3713 = vadd.s32 %v3696, 3
        %v3714 = vand.u32 %v3713, 3
        %vm3715 = vcmp.lt.s32.totalorder %v3714, 2
        %vm3716 = vcmp.eq.s32.totalorder %v3714, 0
        %v3717 = vxor.u32 %v3711, 2147483648
        %v3718 = vsel %vm3716, %v3703, %v3717
        %vm3719 = vcmp.eq.s32.totalorder %v3714, 2
        %v3720 = vxor.u32 %v3703, 2147483648
        %v3721 = vsel %vm3719, %v3720, %v3711
        %v3722 = vsel %vm3715, %v3718, %v3721
        %v3723 = vsel %vm3712, nan, %v3722
        %v3724 = vand.u32 2147483647, %v371
        %vm3725 = vcmp.le.f32.partialorder %v3724, 0.7853982
        %vm3726 = vcmp.lt.s32.totalorder %v371, 0
        %v3727 = vand.u32 %v371, 2139095040
        %v3728 = vshrl.u32 %v3727, 23
        %v3729 = vsub.s32 %v3728, 127
        %v3730 = vand.u32 2147483647, %v371
        %v3731 = vand.u32 %v3730, 8388607
        %v3732 = vor.u32 %v3731, 8388608
        %v3733 = vsub.s32 0, %v3732
        %v3734 = vadd.s32 %v3729, 1
        %vm3735 = vcmp.gt.s32.totalorder %v3734, 0
        %v3736 = vsel %vm3735, %v3734, 0
        %v3737 = vshrl.u32 %v3736, 5
        %v3738 = vand.u32 %v3736, 31
        %v3739 = vsub.s32 32, %v3738
        %v3740 = vshrl.u32 683565275, %v3739
        %v3741 = vshll.u32 683565275, %v3738
        %v3742 = vshrl.u32 2475754826, %v3739
        %v3743 = vor.u32 %v3741, %v3742
        %v3744 = vshll.u32 2475754826, %v3738
        %v3745 = vshrl.u32 2131351028, %v3739
        %v3746 = vor.u32 %v3744, %v3745
        %v3747 = vshll.u32 2131351028, %v3738
        %v3748 = vshrl.u32 2102212464, %v3739
        %v3749 = vor.u32 %v3747, %v3748
        %v3750 = vshll.u32 2102212464, %v3738
        %v3751 = vshrl.u32 920167782, %v3739
        %v3752 = vor.u32 %v3750, %v3751
        %v3753 = vshll.u32 920167782, %v3738
        %v3754 = vshrl.u32 1326507024, %v3739
        %v3755 = vor.u32 %v3753, %v3754
        %vm3756 = vcmp.lt.s32.totalorder %v3737, 1
        %vm3757 = vcmp.lt.s32.totalorder %v3737, 2
        %vm3758 = vcmp.lt.s32.totalorder %v3737, 3
        %vm3759 = vcmp.lt.s32.totalorder %v3737, 4
        %v3760 = vsel %vm3756, %v3740, %v3743
        %v3761 = vsel %vm3759, %v3749, 2102212464
        %v3762 = vsel %vm3758, %v3746, %v3761
        %v3763 = vsel %vm3757, %v3760, %v3762
        %v3764 = vsel %vm3756, %v3743, %v3746
        %v3765 = vsel %vm3759, %v3752, 920167782
        %v3766 = vsel %vm3758, %v3749, %v3765
        %v3767 = vsel %vm3757, %v3764, %v3766
        %v3768 = vsel %vm3756, %v3746, %v3749
        %v3769 = vsel %vm3759, %v3755, 1326507024
        %v3770 = vsel %vm3758, %v3752, %v3769
        %v3771 = vsel %vm3757, %v3768, %v3770
        %v3772 = vshll.u32 %v3732, 8
        %v3773 = vand.u32 %v3772, 65535
        %v3774 = vshrl.u32 %v3772, 16
        %v3775 = vand.u32 %v3771, 65535
        %v3776 = vshrl.u32 %v3771, 16
        %v3777 = vmul.u32 %v3773, %v3775
        %v3778 = vmul.u32 %v3773, %v3776
        %v3779 = vmul.u32 %v3774, %v3775
        %v3780 = vmul.u32 %v3774, %v3776
        %v3781 = vshll.u32 %v3778, 16
        %v3782 = vshrl.u32 %v3778, 16
        %v3783 = vshll.u32 %v3779, 16
        %v3784 = vshrl.u32 %v3779, 16
        %vm3785 = vc.u32 %v3777, %v3781
        %v3786 = vsel %vm3785, 1, 0
        %v3787 = vadd.s32 %v3777, %v3781
        %v3788 = vadd.s32 %v3780, %v3786
        %vm3789 = vc.u32 %v3787, %v3783
        %v3790 = vsel %vm3789, 1, 0
        %v3791 = vadd.s32 %v3787, %v3783
        %v3792 = vadd.s32 %v3788, %v3790
        %v3793 = vadd.s32 %v3792, %v3782
        %v3794 = vadd.s32 %v3793, %v3784
        %v3795 = vand.u32 %v3772, 65535
        %v3796 = vshrl.u32 %v3772, 16
        %v3797 = vand.u32 %v3767, 65535
        %v3798 = vshrl.u32 %v3767, 16
        %v3799 = vmul.u32 %v3795, %v3797
        %v3800 = vmul.u32 %v3795, %v3798
        %v3801 = vmul.u32 %v3796, %v3797
        %v3802 = vmul.u32 %v3796, %v3798
        %v3803 = vshll.u32 %v3800, 16
        %v3804 = vshrl.u32 %v3800, 16
        %v3805 = vshll.u32 %v3801, 16
        %v3806 = vshrl.u32 %v3801, 16
        %vm3807 = vc.u32 %v3799, %v3803
        %v3808 = vsel %vm3807, 1, 0
        %v3809 = vadd.s32 %v3799, %v3803
        %v3810 = vadd.s32 %v3802, %v3808
        %vm3811 = vc.u32 %v3809, %v3805
        %v3812 = vsel %vm3811, 1, 0
        %v3813 = vadd.s32 %v3809, %v3805
        %v3814 = vadd.s32 %v3810, %v3812
        %v3815 = vadd.s32 %v3814, %v3804
        %v3816 = vadd.s32 %v3815, %v3806
        %v3817 = vmul.u32 %v3772, %v3763
        %v3818 = vadd.s32 %v3794, %v3813
        %vm3819 = vc.u32 %v3794, %v3813
        %v3820 = vadd.s32 %v3816, 1
        %v3821 = vsel %vm3819, %v3820, %v3816
        %v3822 = vadd.s32 %v3817, %v3821
        %v3823 = vadd.s32 %v3822, 536870912
        %v3824 = vshrl.u32 %v3823, 30
        %v3825 = vshll.u32 %v3824, 30
        %v3826 = vsub.s32 %v3822, %v3825
        %vm3827 = vcmp.lt.s32.totalorder %v3826, 0
        %v3828 = vsub.s32 0, %v3826
        %v3829 = vsel %vm3827, %v3828, %v3826
        %v3830 = vclz %v3829
        %v3831 = vsub.s32 %v3830, 2
        %vm3832 = vcmp.gt.s32.totalorder 0, %v3831
        %v3833 = vsel %vm3832, 0, %v3831
        %v3834 = vsub.s32 32, %v3833
        %v3835 = vshll.u32 %v3826, %v3833
        %v3836 = vshrl.u32 %v3818, %v3834
        %v3837 = vor.u32 %v3835, %v3836
        %v3838 = vsub.s32 4294967266, %v3833
        %v3839 = vadd.s32 %v3838, 127
        %v3840 = vshll.u32 %v3839, 23
        %v3841 = vor.u32 4788187, %v3840
        %v3842 = vand.u32 2147483647, %v3841
        %v3844 = vcvt.s32.f32 %v3837
        %v3845 = vmul.f32 %v3844, %v3842
        %v3846 = vxor.u32 %v3845, 2147483648
        %v3847 = vsel %vm3726, %v3846, %v3845
        %v3848 = vsub.s32 4, %v3824
        %v3849 = vsel %vm3726, %v3848, %v3824
        %v3850 = vsel %vm3725, %v371, %v3847
        %v3851 = vsel %vm3725, 0, %v3849
        %v3852 = vmul.f32 %v3850, %v3850
        %v3853 = vmul.f32 %v3852, -0.001358992
        %v3854 = vadd.f32 %v3853, 0.041655596
        %v3855 = vmul.f32 %v3852, %v3854
        %v3856 = vadd.f32 %v3855, -0.4999988
        %v3857 = vmul.f32 %v3852, %v3856
        %v3858 = vadd.f32 1.0, %v3857
        %v3859 = vmul.f32 %v3850, %v3850
        %v3860 = vmul.f32 %v3859, -0.00019511016
        %v3861 = vadd.f32 %v3860, 0.008332121
        %v3862 = vmul.f32 %v3859, %v3861
        %v3863 = vadd.f32 %v3862, -0.16666654
        %v3864 = vmul.f32 %v3859, %v3863
        %v3865 = vadd.f32 %v3864, 1.0
        %v3866 = vmul.f32 %v3865, %v3850
        %vm3867 = vweird.f32 %v371
        %v3868 = vadd.s32 %v3851, 3
        %v3869 = vand.u32 %v3868, 3
        %vm3870 = vcmp.lt.s32.totalorder %v3869, 2
        %vm3871 = vcmp.eq.s32.totalorder %v3869, 0
        %v3872 = vxor.u32 %v3866, 2147483648
        %v3873 = vsel %vm3871, %v3858, %v3872
        %vm3874 = vcmp.eq.s32.totalorder %v3869, 2
        %v3875 = vxor.u32 %v3858, 2147483648
        %v3876 = vsel %vm3874, %v3875, %v3866
        %v3877 = vsel %vm3870, %v3873, %v3876
        %v3878 = vsel %vm3867, nan, %v3877
        %v3879 = vand.u32 2147483647, %v374
        %vm3880 = vcmp.le.f32.partialorder %v3879, 0.7853982
        %vm3881 = vcmp.lt.s32.totalorder %v374, 0
        %v3882 = vand.u32 %v374, 2139095040
        %v3883 = vshrl.u32 %v3882, 23
        %v3884 = vsub.s32 %v3883, 127
        %v3885 = vand.u32 2147483647, %v374
        %v3886 = vand.u32 %v3885, 8388607
        %v3887 = vor.u32 %v3886, 8388608
        %v3888 = vsub.s32 0, %v3887
        %v3889 = vadd.s32 %v3884, 1
        %vm3890 = vcmp.gt.s32.totalorder %v3889, 0
        %v3891 = vsel %vm3890, %v3889, 0
        %v3892 = vshrl.u32 %v3891, 5
        %v3893 = vand.u32 %v3891, 31
        %v3894 = vsub.s32 32, %v3893
        %v3895 = vshrl.u32 683565275, %v3894
        %v3896 = vshll.u32 683565275, %v3893
        %v3897 = vshrl.u32 2475754826, %v3894
        %v3898 = vor.u32 %v3896, %v3897
        %v3899 = vshll.u32 2475754826, %v3893
        %v3900 = vshrl.u32 2131351028, %v3894
        %v3901 = vor.u32 %v3899, %v3900
        %v3902 = vshll.u32 2131351028, %v3893
        %v3903 = vshrl.u32 2102212464, %v3894
        %v3904 = vor.u32 %v3902, %v3903
        %v3905 = vshll.u32 2102212464, %v3893
        %v3906 = vshrl.u32 920167782, %v3894
        %v3907 = vor.u32 %v3905, %v3906
        %v3908 = vshll.u32 920167782, %v3893
        %v3909 = vshrl.u32 1326507024, %v3894
        %v3910 = vor.u32 %v3908, %v3909
        %vm3911 = vcmp.lt.s32.totalorder %v3892, 1
        %vm3912 = vcmp.lt.s32.totalorder %v3892, 2
        %vm3913 = vcmp.lt.s32.totalorder %v3892, 3
        %vm3914 = vcmp.lt.s32.totalorder %v3892, 4
        %v3915 = vsel %vm3911, %v3895, %v3898
        %v3916 = vsel %vm3914, %v3904, 2102212464
        %v3917 = vsel %vm3913, %v3901, %v3916
        %v3918 = vsel %vm3912, %v3915, %v3917
        %v3919 = vsel %vm3911, %v3898, %v3901
        %v3920 = vsel %vm3914, %v3907, 920167782
        %v3921 = vsel %vm3913, %v3904, %v3920
        %v3922 = vsel %vm3912, %v3919, %v3921
        %v3923 = vsel %vm3911, %v3901, %v3904
        %v3924 = vsel %vm3914, %v3910, 1326507024
        %v3925 = vsel %vm3913, %v3907, %v3924
        %v3926 = vsel %vm3912, %v3923, %v3925
        %v3927 = vshll.u32 %v3887, 8
        %v3928 = vand.u32 %v3927, 65535
        %v3929 = vshrl.u32 %v3927, 16
        %v3930 = vand.u32 %v3926, 65535
        %v3931 = vshrl.u32 %v3926, 16
        %v3932 = vmul.u32 %v3928, %v3930
        %v3933 = vmul.u32 %v3928, %v3931
        %v3934 = vmul.u32 %v3929, %v3930
        %v3935 = vmul.u32 %v3929, %v3931
        %v3936 = vshll.u32 %v3933, 16
        %v3937 = vshrl.u32 %v3933, 16
        %v3938 = vshll.u32 %v3934, 16
        %v3939 = vshrl.u32 %v3934, 16
        %vm3940 = vc.u32 %v3932, %v3936
        %v3941 = vsel %vm3940, 1, 0
        %v3942 = vadd.s32 %v3932, %v3936
        %v3943 = vadd.s32 %v3935, %v3941
        %vm3944 = vc.u32 %v3942, %v3938
        %v3945 = vsel %vm3944, 1, 0
        %v3946 = vadd.s32 %v3942, %v3938
        %v3947 = vadd.s32 %v3943, %v3945
        %v3948 = vadd.s32 %v3947, %v3937
        %v3949 = vadd.s32 %v3948, %v3939
        %v3950 = vand.u32 %v3927, 65535
        %v3951 = vshrl.u32 %v3927, 16
        %v3952 = vand.u32 %v3922, 65535
        %v3953 = vshrl.u32 %v3922, 16
        %v3954 = vmul.u32 %v3950, %v3952
        %v3955 = vmul.u32 %v3950, %v3953
        %v3956 = vmul.u32 %v3951, %v3952
        %v3957 = vmul.u32 %v3951, %v3953
        %v3958 = vshll.u32 %v3955, 16
        %v3959 = vshrl.u32 %v3955, 16
        %v3960 = vshll.u32 %v3956, 16
        %v3961 = vshrl.u32 %v3956, 16
        %vm3962 = vc.u32 %v3954, %v3958
        %v3963 = vsel %vm3962, 1, 0
        %v3964 = vadd.s32 %v3954, %v3958
        %v3965 = vadd.s32 %v3957, %v3963
        %vm3966 = vc.u32 %v3964, %v3960
        %v3967 = vsel %vm3966, 1, 0
        %v3968 = vadd.s32 %v3964, %v3960
        %v3969 = vadd.s32 %v3965, %v3967
        %v3970 = vadd.s32 %v3969, %v3959
        %v3971 = vadd.s32 %v3970, %v3961
        %v3972 = vmul.u32 %v3927, %v3918
        %v3973 = vadd.s32 %v3949, %v3968
        %vm3974 = vc.u32 %v3949, %v3968
        %v3975 = vadd.s32 %v3971, 1
        %v3976 = vsel %vm3974, %v3975, %v3971
        %v3977 = vadd.s32 %v3972, %v3976
        %v3978 = vadd.s32 %v3977, 536870912
        %v3979 = vshrl.u32 %v3978, 30
        %v3980 = vshll.u32 %v3979, 30
        %v3981 = vsub.s32 %v3977, %v3980
        %vm3982 = vcmp.lt.s32.totalorder %v3981, 0
        %v3983 = vsub.s32 0, %v3981
        %v3984 = vsel %vm3982, %v3983, %v3981
        %v3985 = vclz %v3984
        %v3986 = vsub.s32 %v3985, 2
        %vm3987 = vcmp.gt.s32.totalorder 0, %v3986
        %v3988 = vsel %vm3987, 0, %v3986
        %v3989 = vsub.s32 32, %v3988
        %v3990 = vshll.u32 %v3981, %v3988
        %v3991 = vshrl.u32 %v3973, %v3989
        %v3992 = vor.u32 %v3990, %v3991
        %v3993 = vsub.s32 4294967266, %v3988
        %v3994 = vadd.s32 %v3993, 127
        %v3995 = vshll.u32 %v3994, 23
        %v3996 = vor.u32 4788187, %v3995
        %v3997 = vand.u32 2147483647, %v3996
        %v3999 = vcvt.s32.f32 %v3992
        %v4000 = vmul.f32 %v3999, %v3997
        %v4001 = vxor.u32 %v4000, 2147483648
        %v4002 = vsel %vm3881, %v4001, %v4000
        %v4003 = vsub.s32 4, %v3979
        %v4004 = vsel %vm3881, %v4003, %v3979
        %v4005 = vsel %vm3880, %v374, %v4002
        %v4006 = vsel %vm3880, 0, %v4004
        %v4007 = vmul.f32 %v4005, %v4005
        %v4008 = vmul.f32 %v4007, -0.001358992
        %v4009 = vadd.f32 %v4008, 0.041655596
        %v4010 = vmul.f32 %v4007, %v4009
        %v4011 = vadd.f32 %v4010, -0.4999988
        %v4012 = vmul.f32 %v4007, %v4011
        %v4013 = vadd.f32 1.0, %v4012
        %v4014 = vmul.f32 %v4005, %v4005
        %v4015 = vmul.f32 %v4014, -0.00019511016
        %v4016 = vadd.f32 %v4015, 0.008332121
        %v4017 = vmul.f32 %v4014, %v4016
        %v4018 = vadd.f32 %v4017, -0.16666654
        %v4019 = vmul.f32 %v4014, %v4018
        %v4020 = vadd.f32 %v4019, 1.0
        %v4021 = vmul.f32 %v4020, %v4005
        %vm4022 = vweird.f32 %v374
        %v4023 = vadd.s32 %v4006, 3
        %v4024 = vand.u32 %v4023, 3
        %vm4025 = vcmp.lt.s32.totalorder %v4024, 2
        %vm4026 = vcmp.eq.s32.totalorder %v4024, 0
        %v4027 = vxor.u32 %v4021, 2147483648
        %v4028 = vsel %vm4026, %v4013, %v4027
        %vm4029 = vcmp.eq.s32.totalorder %v4024, 2
        %v4030 = vxor.u32 %v4013, 2147483648
        %v4031 = vsel %vm4029, %v4030, %v4021
        %v4032 = vsel %vm4025, %v4028, %v4031
        %v4033 = vsel %vm4022, nan, %v4032
        %v4034 = vand.u32 2147483647, %v377
        %vm4035 = vcmp.le.f32.partialorder %v4034, 0.7853982
        %vm4036 = vcmp.lt.s32.totalorder %v377, 0
        %v4037 = vand.u32 %v377, 2139095040
        %v4038 = vshrl.u32 %v4037, 23
        %v4039 = vsub.s32 %v4038, 127
        %v4040 = vand.u32 2147483647, %v377
        %v4041 = vand.u32 %v4040, 8388607
        %v4042 = vor.u32 %v4041, 8388608
        %v4043 = vsub.s32 0, %v4042
        %v4044 = vadd.s32 %v4039, 1
        %vm4045 = vcmp.gt.s32.totalorder %v4044, 0
        %v4046 = vsel %vm4045, %v4044, 0
        %v4047 = vshrl.u32 %v4046, 5
        %v4048 = vand.u32 %v4046, 31
        %v4049 = vsub.s32 32, %v4048
        %v4050 = vshrl.u32 683565275, %v4049
        %v4051 = vshll.u32 683565275, %v4048
        %v4052 = vshrl.u32 2475754826, %v4049
        %v4053 = vor.u32 %v4051, %v4052
        %v4054 = vshll.u32 2475754826, %v4048
        %v4055 = vshrl.u32 2131351028, %v4049
        %v4056 = vor.u32 %v4054, %v4055
        %v4057 = vshll.u32 2131351028, %v4048
        %v4058 = vshrl.u32 2102212464, %v4049
        %v4059 = vor.u32 %v4057, %v4058
        %v4060 = vshll.u32 2102212464, %v4048
        %v4061 = vshrl.u32 920167782, %v4049
        %v4062 = vor.u32 %v4060, %v4061
        %v4063 = vshll.u32 920167782, %v4048
        %v4064 = vshrl.u32 1326507024, %v4049
        %v4065 = vor.u32 %v4063, %v4064
        %vm4066 = vcmp.lt.s32.totalorder %v4047, 1
        %vm4067 = vcmp.lt.s32.totalorder %v4047, 2
        %vm4068 = vcmp.lt.s32.totalorder %v4047, 3
        %vm4069 = vcmp.lt.s32.totalorder %v4047, 4
        %v4070 = vsel %vm4066, %v4050, %v4053
        %v4071 = vsel %vm4069, %v4059, 2102212464
        %v4072 = vsel %vm4068, %v4056, %v4071
        %v4073 = vsel %vm4067, %v4070, %v4072
        %v4074 = vsel %vm4066, %v4053, %v4056
        %v4075 = vsel %vm4069, %v4062, 920167782
        %v4076 = vsel %vm4068, %v4059, %v4075
        %v4077 = vsel %vm4067, %v4074, %v4076
        %v4078 = vsel %vm4066, %v4056, %v4059
        %v4079 = vsel %vm4069, %v4065, 1326507024
        %v4080 = vsel %vm4068, %v4062, %v4079
        %v4081 = vsel %vm4067, %v4078, %v4080
        %v4082 = vshll.u32 %v4042, 8
        %v4083 = vand.u32 %v4082, 65535
        %v4084 = vshrl.u32 %v4082, 16
        %v4085 = vand.u32 %v4081, 65535
        %v4086 = vshrl.u32 %v4081, 16
        %v4087 = vmul.u32 %v4083, %v4085
        %v4088 = vmul.u32 %v4083, %v4086
        %v4089 = vmul.u32 %v4084, %v4085
        %v4090 = vmul.u32 %v4084, %v4086
        %v4091 = vshll.u32 %v4088, 16
        %v4092 = vshrl.u32 %v4088, 16
        %v4093 = vshll.u32 %v4089, 16
        %v4094 = vshrl.u32 %v4089, 16
        %vm4095 = vc.u32 %v4087, %v4091
        %v4096 = vsel %vm4095, 1, 0
        %v4097 = vadd.s32 %v4087, %v4091
        %v4098 = vadd.s32 %v4090, %v4096
        %vm4099 = vc.u32 %v4097, %v4093
        %v4100 = vsel %vm4099, 1, 0
        %v4101 = vadd.s32 %v4097, %v4093
        %v4102 = vadd.s32 %v4098, %v4100
        %v4103 = vadd.s32 %v4102, %v4092
        %v4104 = vadd.s32 %v4103, %v4094
        %v4105 = vand.u32 %v4082, 65535
        %v4106 = vshrl.u32 %v4082, 16
        %v4107 = vand.u32 %v4077, 65535
        %v4108 = vshrl.u32 %v4077, 16
        %v4109 = vmul.u32 %v4105, %v4107
        %v4110 = vmul.u32 %v4105, %v4108
        %v4111 = vmul.u32 %v4106, %v4107
        %v4112 = vmul.u32 %v4106, %v4108
        %v4113 = vshll.u32 %v4110, 16
        %v4114 = vshrl.u32 %v4110, 16
        %v4115 = vshll.u32 %v4111, 16
        %v4116 = vshrl.u32 %v4111, 16
        %vm4117 = vc.u32 %v4109, %v4113
        %v4118 = vsel %vm4117, 1, 0
        %v4119 = vadd.s32 %v4109, %v4113
        %v4120 = vadd.s32 %v4112, %v4118
        %vm4121 = vc.u32 %v4119, %v4115
        %v4122 = vsel %vm4121, 1, 0
        %v4123 = vadd.s32 %v4119, %v4115
        %v4124 = vadd.s32 %v4120, %v4122
        %v4125 = vadd.s32 %v4124, %v4114
        %v4126 = vadd.s32 %v4125, %v4116
        %v4127 = vmul.u32 %v4082, %v4073
        %v4128 = vadd.s32 %v4104, %v4123
        %vm4129 = vc.u32 %v4104, %v4123
        %v4130 = vadd.s32 %v4126, 1
        %v4131 = vsel %vm4129, %v4130, %v4126
        %v4132 = vadd.s32 %v4127, %v4131
        %v4133 = vadd.s32 %v4132, 536870912
        %v4134 = vshrl.u32 %v4133, 30
        %v4135 = vshll.u32 %v4134, 30
        %v4136 = vsub.s32 %v4132, %v4135
        %vm4137 = vcmp.lt.s32.totalorder %v4136, 0
        %v4138 = vsub.s32 0, %v4136
        %v4139 = vsel %vm4137, %v4138, %v4136
        %v4140 = vclz %v4139
        %v4141 = vsub.s32 %v4140, 2
        %vm4142 = vcmp.gt.s32.totalorder 0, %v4141
        %v4143 = vsel %vm4142, 0, %v4141
        %v4144 = vsub.s32 32, %v4143
        %v4145 = vshll.u32 %v4136, %v4143
        %v4146 = vshrl.u32 %v4128, %v4144
        %v4147 = vor.u32 %v4145, %v4146
        %v4148 = vsub.s32 4294967266, %v4143
        %v4149 = vadd.s32 %v4148, 127
        %v4150 = vshll.u32 %v4149, 23
        %v4151 = vor.u32 4788187, %v4150
        %v4152 = vand.u32 2147483647, %v4151
        %v4154 = vcvt.s32.f32 %v4147
        %v4155 = vmul.f32 %v4154, %v4152
        %v4156 = vxor.u32 %v4155, 2147483648
        %v4157 = vsel %vm4036, %v4156, %v4155
        %v4158 = vsub.s32 4, %v4134
        %v4159 = vsel %vm4036, %v4158, %v4134
        %v4160 = vsel %vm4035, %v377, %v4157
        %v4161 = vsel %vm4035, 0, %v4159
        %v4162 = vmul.f32 %v4160, %v4160
        %v4163 = vmul.f32 %v4162, -0.001358992
        %v4164 = vadd.f32 %v4163, 0.041655596
        %v4165 = vmul.f32 %v4162, %v4164
        %v4166 = vadd.f32 %v4165, -0.4999988
        %v4167 = vmul.f32 %v4162, %v4166
        %v4168 = vadd.f32 1.0, %v4167
        %v4169 = vmul.f32 %v4160, %v4160
        %v4170 = vmul.f32 %v4169, -0.00019511016
        %v4171 = vadd.f32 %v4170, 0.008332121
        %v4172 = vmul.f32 %v4169, %v4171
        %v4173 = vadd.f32 %v4172, -0.16666654
        %v4174 = vmul.f32 %v4169, %v4173
        %v4175 = vadd.f32 %v4174, 1.0
        %v4176 = vmul.f32 %v4175, %v4160
        %vm4177 = vweird.f32 %v377
        %v4178 = vadd.s32 %v4161, 3
        %v4179 = vand.u32 %v4178, 3
        %vm4180 = vcmp.lt.s32.totalorder %v4179, 2
        %vm4181 = vcmp.eq.s32.totalorder %v4179, 0
        %v4182 = vxor.u32 %v4176, 2147483648
        %v4183 = vsel %vm4181, %v4168, %v4182
        %vm4184 = vcmp.eq.s32.totalorder %v4179, 2
        %v4185 = vxor.u32 %v4168, 2147483648
        %v4186 = vsel %vm4184, %v4185, %v4176
        %v4187 = vsel %vm4180, %v4183, %v4186
        %v4188 = vsel %vm4177, nan, %v4187
        %v4189 = vand.u32 2147483647, %v380
        %vm4190 = vcmp.le.f32.partialorder %v4189, 0.7853982
        %vm4191 = vcmp.lt.s32.totalorder %v380, 0
        %v4192 = vand.u32 %v380, 2139095040
        %v4193 = vshrl.u32 %v4192, 23
        %v4194 = vsub.s32 %v4193, 127
        %v4195 = vand.u32 2147483647, %v380
        %v4196 = vand.u32 %v4195, 8388607
        %v4197 = vor.u32 %v4196, 8388608
        %v4198 = vsub.s32 0, %v4197
        %v4199 = vadd.s32 %v4194, 1
        %vm4200 = vcmp.gt.s32.totalorder %v4199, 0
        %v4201 = vsel %vm4200, %v4199, 0
        %v4202 = vshrl.u32 %v4201, 5
        %v4203 = vand.u32 %v4201, 31
        %v4204 = vsub.s32 32, %v4203
        %v4205 = vshrl.u32 683565275, %v4204
        %v4206 = vshll.u32 683565275, %v4203
        %v4207 = vshrl.u32 2475754826, %v4204
        %v4208 = vor.u32 %v4206, %v4207
        %v4209 = vshll.u32 2475754826, %v4203
        %v4210 = vshrl.u32 2131351028, %v4204
        %v4211 = vor.u32 %v4209, %v4210
        %v4212 = vshll.u32 2131351028, %v4203
        %v4213 = vshrl.u32 2102212464, %v4204
        %v4214 = vor.u32 %v4212, %v4213
        %v4215 = vshll.u32 2102212464, %v4203
        %v4216 = vshrl.u32 920167782, %v4204
        %v4217 = vor.u32 %v4215, %v4216
        %v4218 = vshll.u32 920167782, %v4203
        %v4219 = vshrl.u32 1326507024, %v4204
        %v4220 = vor.u32 %v4218, %v4219
        %vm4221 = vcmp.lt.s32.totalorder %v4202, 1
        %vm4222 = vcmp.lt.s32.totalorder %v4202, 2
        %vm4223 = vcmp.lt.s32.totalorder %v4202, 3
        %vm4224 = vcmp.lt.s32.totalorder %v4202, 4
        %v4225 = vsel %vm4221, %v4205, %v4208
        %v4226 = vsel %vm4224, %v4214, 2102212464
        %v4227 = vsel %vm4223, %v4211, %v4226
        %v4228 = vsel %vm4222, %v4225, %v4227
        %v4229 = vsel %vm4221, %v4208, %v4211
        %v4230 = vsel %vm4224, %v4217, 920167782
        %v4231 = vsel %vm4223, %v4214, %v4230
        %v4232 = vsel %vm4222, %v4229, %v4231
        %v4233 = vsel %vm4221, %v4211, %v4214
        %v4234 = vsel %vm4224, %v4220, 1326507024
        %v4235 = vsel %vm4223, %v4217, %v4234
        %v4236 = vsel %vm4222, %v4233, %v4235
        %v4237 = vshll.u32 %v4197, 8
        %v4238 = vand.u32 %v4237, 65535
        %v4239 = vshrl.u32 %v4237, 16
        %v4240 = vand.u32 %v4236, 65535
        %v4241 = vshrl.u32 %v4236, 16
        %v4242 = vmul.u32 %v4238, %v4240
        %v4243 = vmul.u32 %v4238, %v4241
        %v4244 = vmul.u32 %v4239, %v4240
        %v4245 = vmul.u32 %v4239, %v4241
        %v4246 = vshll.u32 %v4243, 16
        %v4247 = vshrl.u32 %v4243, 16
        %v4248 = vshll.u32 %v4244, 16
        %v4249 = vshrl.u32 %v4244, 16
        %vm4250 = vc.u32 %v4242, %v4246
        %v4251 = vsel %vm4250, 1, 0
        %v4252 = vadd.s32 %v4242, %v4246
        %v4253 = vadd.s32 %v4245, %v4251
        %vm4254 = vc.u32 %v4252, %v4248
        %v4255 = vsel %vm4254, 1, 0
        %v4256 = vadd.s32 %v4252, %v4248
        %v4257 = vadd.s32 %v4253, %v4255
        %v4258 = vadd.s32 %v4257, %v4247
        %v4259 = vadd.s32 %v4258, %v4249
        %v4260 = vand.u32 %v4237, 65535
        %v4261 = vshrl.u32 %v4237, 16
        %v4262 = vand.u32 %v4232, 65535
        %v4263 = vshrl.u32 %v4232, 16
        %v4264 = vmul.u32 %v4260, %v4262
        %v4265 = vmul.u32 %v4260, %v4263
        %v4266 = vmul.u32 %v4261, %v4262
        %v4267 = vmul.u32 %v4261, %v4263
        %v4268 = vshll.u32 %v4265, 16
        %v4269 = vshrl.u32 %v4265, 16
        %v4270 = vshll.u32 %v4266, 16
        %v4271 = vshrl.u32 %v4266, 16
        %vm4272 = vc.u32 %v4264, %v4268
        %v4273 = vsel %vm4272, 1, 0
        %v4274 = vadd.s32 %v4264, %v4268
        %v4275 = vadd.s32 %v4267, %v4273
        %vm4276 = vc.u32 %v4274, %v4270
        %v4277 = vsel %vm4276, 1, 0
        %v4278 = vadd.s32 %v4274, %v4270
        %v4279 = vadd.s32 %v4275, %v4277
        %v4280 = vadd.s32 %v4279, %v4269
        %v4281 = vadd.s32 %v4280, %v4271
        %v4282 = vmul.u32 %v4237, %v4228
        %v4283 = vadd.s32 %v4259, %v4278
        %vm4284 = vc.u32 %v4259, %v4278
        %v4285 = vadd.s32 %v4281, 1
        %v4286 = vsel %vm4284, %v4285, %v4281
        %v4287 = vadd.s32 %v4282, %v4286
        %v4288 = vadd.s32 %v4287, 536870912
        %v4289 = vshrl.u32 %v4288, 30
        %v4290 = vshll.u32 %v4289, 30
        %v4291 = vsub.s32 %v4287, %v4290
        %vm4292 = vcmp.lt.s32.totalorder %v4291, 0
        %v4293 = vsub.s32 0, %v4291
        %v4294 = vsel %vm4292, %v4293, %v4291
        %v4295 = vclz %v4294
        %v4296 = vsub.s32 %v4295, 2
        %vm4297 = vcmp.gt.s32.totalorder 0, %v4296
        %v4298 = vsel %vm4297, 0, %v4296
        %v4299 = vsub.s32 32, %v4298
        %v4300 = vshll.u32 %v4291, %v4298
        %v4301 = vshrl.u32 %v4283, %v4299
        %v4302 = vor.u32 %v4300, %v4301
        %v4303 = vsub.s32 4294967266, %v4298
        %v4304 = vadd.s32 %v4303, 127
        %v4305 = vshll.u32 %v4304, 23
        %v4306 = vor.u32 4788187, %v4305
        %v4307 = vand.u32 2147483647, %v4306
        %v4309 = vcvt.s32.f32 %v4302
        %v4310 = vmul.f32 %v4309, %v4307
        %v4311 = vxor.u32 %v4310, 2147483648
        %v4312 = vsel %vm4191, %v4311, %v4310
        %v4313 = vsub.s32 4, %v4289
        %v4314 = vsel %vm4191, %v4313, %v4289
        %v4315 = vsel %vm4190, %v380, %v4312
        %v4316 = vsel %vm4190, 0, %v4314
        %v4317 = vmul.f32 %v4315, %v4315
        %v4318 = vmul.f32 %v4317, -0.001358992
        %v4319 = vadd.f32 %v4318, 0.041655596
        %v4320 = vmul.f32 %v4317, %v4319
        %v4321 = vadd.f32 %v4320, -0.4999988
        %v4322 = vmul.f32 %v4317, %v4321
        %v4323 = vadd.f32 1.0, %v4322
        %v4324 = vmul.f32 %v4315, %v4315
        %v4325 = vmul.f32 %v4324, -0.00019511016
        %v4326 = vadd.f32 %v4325, 0.008332121
        %v4327 = vmul.f32 %v4324, %v4326
        %v4328 = vadd.f32 %v4327, -0.16666654
        %v4329 = vmul.f32 %v4324, %v4328
        %v4330 = vadd.f32 %v4329, 1.0
        %v4331 = vmul.f32 %v4330, %v4315
        %vm4332 = vweird.f32 %v380
        %v4333 = vadd.s32 %v4316, 3
        %v4334 = vand.u32 %v4333, 3
        %vm4335 = vcmp.lt.s32.totalorder %v4334, 2
        %vm4336 = vcmp.eq.s32.totalorder %v4334, 0
        %v4337 = vxor.u32 %v4331, 2147483648
        %v4338 = vsel %vm4336, %v4323, %v4337
        %vm4339 = vcmp.eq.s32.totalorder %v4334, 2
        %v4340 = vxor.u32 %v4323, 2147483648
        %v4341 = vsel %vm4339, %v4340, %v4331
        %v4342 = vsel %vm4335, %v4338, %v4341
        %v4343 = vsel %vm4332, nan, %v4342
        %v4344 = vand.u32 2147483647, %v383
        %vm4345 = vcmp.le.f32.partialorder %v4344, 0.7853982
        %vm4346 = vcmp.lt.s32.totalorder %v383, 0
        %v4347 = vand.u32 %v383, 2139095040
        %v4348 = vshrl.u32 %v4347, 23
        %v4349 = vsub.s32 %v4348, 127
        %v4350 = vand.u32 2147483647, %v383
        %v4351 = vand.u32 %v4350, 8388607
        %v4352 = vor.u32 %v4351, 8388608
        %v4353 = vsub.s32 0, %v4352
        %v4354 = vadd.s32 %v4349, 1
        %vm4355 = vcmp.gt.s32.totalorder %v4354, 0
        %v4356 = vsel %vm4355, %v4354, 0
        %v4357 = vshrl.u32 %v4356, 5
        %v4358 = vand.u32 %v4356, 31
        %v4359 = vsub.s32 32, %v4358
        %v4360 = vshrl.u32 683565275, %v4359
        %v4361 = vshll.u32 683565275, %v4358
        %v4362 = vshrl.u32 2475754826, %v4359
        %v4363 = vor.u32 %v4361, %v4362
        %v4364 = vshll.u32 2475754826, %v4358
        %v4365 = vshrl.u32 2131351028, %v4359
        %v4366 = vor.u32 %v4364, %v4365
        %v4367 = vshll.u32 2131351028, %v4358
        %v4368 = vshrl.u32 2102212464, %v4359
        %v4369 = vor.u32 %v4367, %v4368
        %v4370 = vshll.u32 2102212464, %v4358
        %v4371 = vshrl.u32 920167782, %v4359
        %v4372 = vor.u32 %v4370, %v4371
        %v4373 = vshll.u32 920167782, %v4358
        %v4374 = vshrl.u32 1326507024, %v4359
        %v4375 = vor.u32 %v4373, %v4374
        %vm4376 = vcmp.lt.s32.totalorder %v4357, 1
        %vm4377 = vcmp.lt.s32.totalorder %v4357, 2
        %vm4378 = vcmp.lt.s32.totalorder %v4357, 3
        %vm4379 = vcmp.lt.s32.totalorder %v4357, 4
        %v4380 = vsel %vm4376, %v4360, %v4363
        %v4381 = vsel %vm4379, %v4369, 2102212464
        %v4382 = vsel %vm4378, %v4366, %v4381
        %v4383 = vsel %vm4377, %v4380, %v4382
        %v4384 = vsel %vm4376, %v4363, %v4366
        %v4385 = vsel %vm4379, %v4372, 920167782
        %v4386 = vsel %vm4378, %v4369, %v4385
        %v4387 = vsel %vm4377, %v4384, %v4386
        %v4388 = vsel %vm4376, %v4366, %v4369
        %v4389 = vsel %vm4379, %v4375, 1326507024
        %v4390 = vsel %vm4378, %v4372, %v4389
        %v4391 = vsel %vm4377, %v4388, %v4390
        %v4392 = vshll.u32 %v4352, 8
        %v4393 = vand.u32 %v4392, 65535
        %v4394 = vshrl.u32 %v4392, 16
        %v4395 = vand.u32 %v4391, 65535
        %v4396 = vshrl.u32 %v4391, 16
        %v4397 = vmul.u32 %v4393, %v4395
        %v4398 = vmul.u32 %v4393, %v4396
        %v4399 = vmul.u32 %v4394, %v4395
        %v4400 = vmul.u32 %v4394, %v4396
        %v4401 = vshll.u32 %v4398, 16
        %v4402 = vshrl.u32 %v4398, 16
        %v4403 = vshll.u32 %v4399, 16
        %v4404 = vshrl.u32 %v4399, 16
        %vm4405 = vc.u32 %v4397, %v4401
        %v4406 = vsel %vm4405, 1, 0
        %v4407 = vadd.s32 %v4397, %v4401
        %v4408 = vadd.s32 %v4400, %v4406
        %vm4409 = vc.u32 %v4407, %v4403
        %v4410 = vsel %vm4409, 1, 0
        %v4411 = vadd.s32 %v4407, %v4403
        %v4412 = vadd.s32 %v4408, %v4410
        %v4413 = vadd.s32 %v4412, %v4402
        %v4414 = vadd.s32 %v4413, %v4404
        %v4415 = vand.u32 %v4392, 65535
        %v4416 = vshrl.u32 %v4392, 16
        %v4417 = vand.u32 %v4387, 65535
        %v4418 = vshrl.u32 %v4387, 16
        %v4419 = vmul.u32 %v4415, %v4417
        %v4420 = vmul.u32 %v4415, %v4418
        %v4421 = vmul.u32 %v4416, %v4417
        %v4422 = vmul.u32 %v4416, %v4418
        %v4423 = vshll.u32 %v4420, 16
        %v4424 = vshrl.u32 %v4420, 16
        %v4425 = vshll.u32 %v4421, 16
        %v4426 = vshrl.u32 %v4421, 16
        %vm4427 = vc.u32 %v4419, %v4423
        %v4428 = vsel %vm4427, 1, 0
        %v4429 = vadd.s32 %v4419, %v4423
        %v4430 = vadd.s32 %v4422, %v4428
        %vm4431 = vc.u32 %v4429, %v4425
        %v4432 = vsel %vm4431, 1, 0
        %v4433 = vadd.s32 %v4429, %v4425
        %v4434 = vadd.s32 %v4430, %v4432
        %v4435 = vadd.s32 %v4434, %v4424
        %v4436 = vadd.s32 %v4435, %v4426
        %v4437 = vmul.u32 %v4392, %v4383
        %v4438 = vadd.s32 %v4414, %v4433
        %vm4439 = vc.u32 %v4414, %v4433
        %v4440 = vadd.s32 %v4436, 1
        %v4441 = vsel %vm4439, %v4440, %v4436
        %v4442 = vadd.s32 %v4437, %v4441
        %v4443 = vadd.s32 %v4442, 536870912
        %v4444 = vshrl.u32 %v4443, 30
        %v4445 = vshll.u32 %v4444, 30
        %v4446 = vsub.s32 %v4442, %v4445
        %vm4447 = vcmp.lt.s32.totalorder %v4446, 0
        %v4448 = vsub.s32 0, %v4446
        %v4449 = vsel %vm4447, %v4448, %v4446
        %v4450 = vclz %v4449
        %v4451 = vsub.s32 %v4450, 2
        %vm4452 = vcmp.gt.s32.totalorder 0, %v4451
        %v4453 = vsel %vm4452, 0, %v4451
        %v4454 = vsub.s32 32, %v4453
        %v4455 = vshll.u32 %v4446, %v4453
        %v4456 = vshrl.u32 %v4438, %v4454
        %v4457 = vor.u32 %v4455, %v4456
        %v4458 = vsub.s32 4294967266, %v4453
        %v4459 = vadd.s32 %v4458, 127
        %v4460 = vshll.u32 %v4459, 23
        %v4461 = vor.u32 4788187, %v4460
        %v4462 = vand.u32 2147483647, %v4461
        %v4464 = vcvt.s32.f32 %v4457
        %v4465 = vmul.f32 %v4464, %v4462
        %v4466 = vxor.u32 %v4465, 2147483648
        %v4467 = vsel %vm4346, %v4466, %v4465
        %v4468 = vsub.s32 4, %v4444
        %v4469 = vsel %vm4346, %v4468, %v4444
        %v4470 = vsel %vm4345, %v383, %v4467
        %v4471 = vsel %vm4345, 0, %v4469
        %v4472 = vmul.f32 %v4470, %v4470
        %v4473 = vmul.f32 %v4472, -0.001358992
        %v4474 = vadd.f32 %v4473, 0.041655596
        %v4475 = vmul.f32 %v4472, %v4474
        %v4476 = vadd.f32 %v4475, -0.4999988
        %v4477 = vmul.f32 %v4472, %v4476
        %v4478 = vadd.f32 1.0, %v4477
        %v4479 = vmul.f32 %v4470, %v4470
        %v4480 = vmul.f32 %v4479, -0.00019511016
        %v4481 = vadd.f32 %v4480, 0.008332121
        %v4482 = vmul.f32 %v4479, %v4481
        %v4483 = vadd.f32 %v4482, -0.16666654
        %v4484 = vmul.f32 %v4479, %v4483
        %v4485 = vadd.f32 %v4484, 1.0
        %v4486 = vmul.f32 %v4485, %v4470
        %vm4487 = vweird.f32 %v383
        %v4488 = vadd.s32 %v4471, 3
        %v4489 = vand.u32 %v4488, 3
        %vm4490 = vcmp.lt.s32.totalorder %v4489, 2
        %vm4491 = vcmp.eq.s32.totalorder %v4489, 0
        %v4492 = vxor.u32 %v4486, 2147483648
        %v4493 = vsel %vm4491, %v4478, %v4492
        %vm4494 = vcmp.eq.s32.totalorder %v4489, 2
        %v4495 = vxor.u32 %v4478, 2147483648
        %v4496 = vsel %vm4494, %v4495, %v4486
        %v4497 = vsel %vm4490, %v4493, %v4496
        %v4498 = vsel %vm4487, nan, %v4497
        %v4499 = vand.u32 2147483647, %v386
        %vm4500 = vcmp.le.f32.partialorder %v4499, 0.7853982
        %vm4501 = vcmp.lt.s32.totalorder %v386, 0
        %v4502 = vand.u32 %v386, 2139095040
        %v4503 = vshrl.u32 %v4502, 23
        %v4504 = vsub.s32 %v4503, 127
        %v4505 = vand.u32 2147483647, %v386
        %v4506 = vand.u32 %v4505, 8388607
        %v4507 = vor.u32 %v4506, 8388608
        %v4508 = vsub.s32 0, %v4507
        %v4509 = vadd.s32 %v4504, 1
        %vm4510 = vcmp.gt.s32.totalorder %v4509, 0
        %v4511 = vsel %vm4510, %v4509, 0
        %v4512 = vshrl.u32 %v4511, 5
        %v4513 = vand.u32 %v4511, 31
        %v4514 = vsub.s32 32, %v4513
        %v4515 = vshrl.u32 683565275, %v4514
        %v4516 = vshll.u32 683565275, %v4513
        %v4517 = vshrl.u32 2475754826, %v4514
        %v4518 = vor.u32 %v4516, %v4517
        %v4519 = vshll.u32 2475754826, %v4513
        %v4520 = vshrl.u32 2131351028, %v4514
        %v4521 = vor.u32 %v4519, %v4520
        %v4522 = vshll.u32 2131351028, %v4513
        %v4523 = vshrl.u32 2102212464, %v4514
        %v4524 = vor.u32 %v4522, %v4523
        %v4525 = vshll.u32 2102212464, %v4513
        %v4526 = vshrl.u32 920167782, %v4514
        %v4527 = vor.u32 %v4525, %v4526
        %v4528 = vshll.u32 920167782, %v4513
        %v4529 = vshrl.u32 1326507024, %v4514
        %v4530 = vor.u32 %v4528, %v4529
        %vm4531 = vcmp.lt.s32.totalorder %v4512, 1
        %vm4532 = vcmp.lt.s32.totalorder %v4512, 2
        %vm4533 = vcmp.lt.s32.totalorder %v4512, 3
        %vm4534 = vcmp.lt.s32.totalorder %v4512, 4
        %v4535 = vsel %vm4531, %v4515, %v4518
        %v4536 = vsel %vm4534, %v4524, 2102212464
        %v4537 = vsel %vm4533, %v4521, %v4536
        %v4538 = vsel %vm4532, %v4535, %v4537
        %v4539 = vsel %vm4531, %v4518, %v4521
        %v4540 = vsel %vm4534, %v4527, 920167782
        %v4541 = vsel %vm4533, %v4524, %v4540
        %v4542 = vsel %vm4532, %v4539, %v4541
        %v4543 = vsel %vm4531, %v4521, %v4524
        %v4544 = vsel %vm4534, %v4530, 1326507024
        %v4545 = vsel %vm4533, %v4527, %v4544
        %v4546 = vsel %vm4532, %v4543, %v4545
        %v4547 = vshll.u32 %v4507, 8
        %v4548 = vand.u32 %v4547, 65535
        %v4549 = vshrl.u32 %v4547, 16
        %v4550 = vand.u32 %v4546, 65535
        %v4551 = vshrl.u32 %v4546, 16
        %v4552 = vmul.u32 %v4548, %v4550
        %v4553 = vmul.u32 %v4548, %v4551
        %v4554 = vmul.u32 %v4549, %v4550
        %v4555 = vmul.u32 %v4549, %v4551
        %v4556 = vshll.u32 %v4553, 16
        %v4557 = vshrl.u32 %v4553, 16
        %v4558 = vshll.u32 %v4554, 16
        %v4559 = vshrl.u32 %v4554, 16
        %vm4560 = vc.u32 %v4552, %v4556
        %v4561 = vsel %vm4560, 1, 0
        %v4562 = vadd.s32 %v4552, %v4556
        %v4563 = vadd.s32 %v4555, %v4561
        %vm4564 = vc.u32 %v4562, %v4558
        %v4565 = vsel %vm4564, 1, 0
        %v4566 = vadd.s32 %v4562, %v4558
        %v4567 = vadd.s32 %v4563, %v4565
        %v4568 = vadd.s32 %v4567, %v4557
        %v4569 = vadd.s32 %v4568, %v4559
        %v4570 = vand.u32 %v4547, 65535
        %v4571 = vshrl.u32 %v4547, 16
        %v4572 = vand.u32 %v4542, 65535
        %v4573 = vshrl.u32 %v4542, 16
        %v4574 = vmul.u32 %v4570, %v4572
        %v4575 = vmul.u32 %v4570, %v4573
        %v4576 = vmul.u32 %v4571, %v4572
        %v4577 = vmul.u32 %v4571, %v4573
        %v4578 = vshll.u32 %v4575, 16
        %v4579 = vshrl.u32 %v4575, 16
        %v4580 = vshll.u32 %v4576, 16
        %v4581 = vshrl.u32 %v4576, 16
        %vm4582 = vc.u32 %v4574, %v4578
        %v4583 = vsel %vm4582, 1, 0
        %v4584 = vadd.s32 %v4574, %v4578
        %v4585 = vadd.s32 %v4577, %v4583
        %vm4586 = vc.u32 %v4584, %v4580
        %v4587 = vsel %vm4586, 1, 0
        %v4588 = vadd.s32 %v4584, %v4580
        %v4589 = vadd.s32 %v4585, %v4587
        %v4590 = vadd.s32 %v4589, %v4579
        %v4591 = vadd.s32 %v4590, %v4581
        %v4592 = vmul.u32 %v4547, %v4538
        %v4593 = vadd.s32 %v4569, %v4588
        %vm4594 = vc.u32 %v4569, %v4588
        %v4595 = vadd.s32 %v4591, 1
        %v4596 = vsel %vm4594, %v4595, %v4591
        %v4597 = vadd.s32 %v4592, %v4596
        %v4598 = vadd.s32 %v4597, 536870912
        %v4599 = vshrl.u32 %v4598, 30
        %v4600 = vshll.u32 %v4599, 30
        %v4601 = vsub.s32 %v4597, %v4600
        %vm4602 = vcmp.lt.s32.totalorder %v4601, 0
        %v4603 = vsub.s32 0, %v4601
        %v4604 = vsel %vm4602, %v4603, %v4601
        %v4605 = vclz %v4604
        %v4606 = vsub.s32 %v4605, 2
        %vm4607 = vcmp.gt.s32.totalorder 0, %v4606
        %v4608 = vsel %vm4607, 0, %v4606
        %v4609 = vsub.s32 32, %v4608
        %v4610 = vshll.u32 %v4601, %v4608
        %v4611 = vshrl.u32 %v4593, %v4609
        %v4612 = vor.u32 %v4610, %v4611
        %v4613 = vsub.s32 4294967266, %v4608
        %v4614 = vadd.s32 %v4613, 127
        %v4615 = vshll.u32 %v4614, 23
        %v4616 = vor.u32 4788187, %v4615
        %v4617 = vand.u32 2147483647, %v4616
        %v4619 = vcvt.s32.f32 %v4612
        %v4620 = vmul.f32 %v4619, %v4617
        %v4621 = vxor.u32 %v4620, 2147483648
        %v4622 = vsel %vm4501, %v4621, %v4620
        %v4623 = vsub.s32 4, %v4599
        %v4624 = vsel %vm4501, %v4623, %v4599
        %v4625 = vsel %vm4500, %v386, %v4622
        %v4626 = vsel %vm4500, 0, %v4624
        %v4627 = vmul.f32 %v4625, %v4625
        %v4628 = vmul.f32 %v4627, -0.001358992
        %v4629 = vadd.f32 %v4628, 0.041655596
        %v4630 = vmul.f32 %v4627, %v4629
        %v4631 = vadd.f32 %v4630, -0.4999988
        %v4632 = vmul.f32 %v4627, %v4631
        %v4633 = vadd.f32 1.0, %v4632
        %v4634 = vmul.f32 %v4625, %v4625
        %v4635 = vmul.f32 %v4634, -0.00019511016
        %v4636 = vadd.f32 %v4635, 0.008332121
        %v4637 = vmul.f32 %v4634, %v4636
        %v4638 = vadd.f32 %v4637, -0.16666654
        %v4639 = vmul.f32 %v4634, %v4638
        %v4640 = vadd.f32 %v4639, 1.0
        %v4641 = vmul.f32 %v4640, %v4625
        %vm4642 = vweird.f32 %v386
        %v4643 = vadd.s32 %v4626, 3
        %v4644 = vand.u32 %v4643, 3
        %vm4645 = vcmp.lt.s32.totalorder %v4644, 2
        %vm4646 = vcmp.eq.s32.totalorder %v4644, 0
        %v4647 = vxor.u32 %v4641, 2147483648
        %v4648 = vsel %vm4646, %v4633, %v4647
        %vm4649 = vcmp.eq.s32.totalorder %v4644, 2
        %v4650 = vxor.u32 %v4633, 2147483648
        %v4651 = vsel %vm4649, %v4650, %v4641
        %v4652 = vsel %vm4645, %v4648, %v4651
        %v4653 = vsel %vm4642, nan, %v4652
        %v4654 = vand.u32 2147483647, %v389
        %vm4655 = vcmp.le.f32.partialorder %v4654, 0.7853982
        %vm4656 = vcmp.lt.s32.totalorder %v389, 0
        %v4657 = vand.u32 %v389, 2139095040
        %v4658 = vshrl.u32 %v4657, 23
        %v4659 = vsub.s32 %v4658, 127
        %v4660 = vand.u32 2147483647, %v389
        %v4661 = vand.u32 %v4660, 8388607
        %v4662 = vor.u32 %v4661, 8388608
        %v4663 = vsub.s32 0, %v4662
        %v4664 = vadd.s32 %v4659, 1
        %vm4665 = vcmp.gt.s32.totalorder %v4664, 0
        %v4666 = vsel %vm4665, %v4664, 0
        %v4667 = vshrl.u32 %v4666, 5
        %v4668 = vand.u32 %v4666, 31
        %v4669 = vsub.s32 32, %v4668
        %v4670 = vshrl.u32 683565275, %v4669
        %v4671 = vshll.u32 683565275, %v4668
        %v4672 = vshrl.u32 2475754826, %v4669
        %v4673 = vor.u32 %v4671, %v4672
        %v4674 = vshll.u32 2475754826, %v4668
        %v4675 = vshrl.u32 2131351028, %v4669
        %v4676 = vor.u32 %v4674, %v4675
        %v4677 = vshll.u32 2131351028, %v4668
        %v4678 = vshrl.u32 2102212464, %v4669
        %v4679 = vor.u32 %v4677, %v4678
        %v4680 = vshll.u32 2102212464, %v4668
        %v4681 = vshrl.u32 920167782, %v4669
        %v4682 = vor.u32 %v4680, %v4681
        %v4683 = vshll.u32 920167782, %v4668
        %v4684 = vshrl.u32 1326507024, %v4669
        %v4685 = vor.u32 %v4683, %v4684
        %vm4686 = vcmp.lt.s32.totalorder %v4667, 1
        %vm4687 = vcmp.lt.s32.totalorder %v4667, 2
        %vm4688 = vcmp.lt.s32.totalorder %v4667, 3
        %vm4689 = vcmp.lt.s32.totalorder %v4667, 4
        %v4690 = vsel %vm4686, %v4670, %v4673
        %v4691 = vsel %vm4689, %v4679, 2102212464
        %v4692 = vsel %vm4688, %v4676, %v4691
        %v4693 = vsel %vm4687, %v4690, %v4692
        %v4694 = vsel %vm4686, %v4673, %v4676
        %v4695 = vsel %vm4689, %v4682, 920167782
        %v4696 = vsel %vm4688, %v4679, %v4695
        %v4697 = vsel %vm4687, %v4694, %v4696
        %v4698 = vsel %vm4686, %v4676, %v4679
        %v4699 = vsel %vm4689, %v4685, 1326507024
        %v4700 = vsel %vm4688, %v4682, %v4699
        %v4701 = vsel %vm4687, %v4698, %v4700
        %v4702 = vshll.u32 %v4662, 8
        %v4703 = vand.u32 %v4702, 65535
        %v4704 = vshrl.u32 %v4702, 16
        %v4705 = vand.u32 %v4701, 65535
        %v4706 = vshrl.u32 %v4701, 16
        %v4707 = vmul.u32 %v4703, %v4705
        %v4708 = vmul.u32 %v4703, %v4706
        %v4709 = vmul.u32 %v4704, %v4705
        %v4710 = vmul.u32 %v4704, %v4706
        %v4711 = vshll.u32 %v4708, 16
        %v4712 = vshrl.u32 %v4708, 16
        %v4713 = vshll.u32 %v4709, 16
        %v4714 = vshrl.u32 %v4709, 16
        %vm4715 = vc.u32 %v4707, %v4711
        %v4716 = vsel %vm4715, 1, 0
        %v4717 = vadd.s32 %v4707, %v4711
        %v4718 = vadd.s32 %v4710, %v4716
        %vm4719 = vc.u32 %v4717, %v4713
        %v4720 = vsel %vm4719, 1, 0
        %v4721 = vadd.s32 %v4717, %v4713
        %v4722 = vadd.s32 %v4718, %v4720
        %v4723 = vadd.s32 %v4722, %v4712
        %v4724 = vadd.s32 %v4723, %v4714
        %v4725 = vand.u32 %v4702, 65535
        %v4726 = vshrl.u32 %v4702, 16
        %v4727 = vand.u32 %v4697, 65535
        %v4728 = vshrl.u32 %v4697, 16
        %v4729 = vmul.u32 %v4725, %v4727
        %v4730 = vmul.u32 %v4725, %v4728
        %v4731 = vmul.u32 %v4726, %v4727
        %v4732 = vmul.u32 %v4726, %v4728
        %v4733 = vshll.u32 %v4730, 16
        %v4734 = vshrl.u32 %v4730, 16
        %v4735 = vshll.u32 %v4731, 16
        %v4736 = vshrl.u32 %v4731, 16
        %vm4737 = vc.u32 %v4729, %v4733
        %v4738 = vsel %vm4737, 1, 0
        %v4739 = vadd.s32 %v4729, %v4733
        %v4740 = vadd.s32 %v4732, %v4738
        %vm4741 = vc.u32 %v4739, %v4735
        %v4742 = vsel %vm4741, 1, 0
        %v4743 = vadd.s32 %v4739, %v4735
        %v4744 = vadd.s32 %v4740, %v4742
        %v4745 = vadd.s32 %v4744, %v4734
        %v4746 = vadd.s32 %v4745, %v4736
        %v4747 = vmul.u32 %v4702, %v4693
        %v4748 = vadd.s32 %v4724, %v4743
        %vm4749 = vc.u32 %v4724, %v4743
        %v4750 = vadd.s32 %v4746, 1
        %v4751 = vsel %vm4749, %v4750, %v4746
        %v4752 = vadd.s32 %v4747, %v4751
        %v4753 = vadd.s32 %v4752, 536870912
        %v4754 = vshrl.u32 %v4753, 30
        %v4755 = vshll.u32 %v4754, 30
        %v4756 = vsub.s32 %v4752, %v4755
        %vm4757 = vcmp.lt.s32.totalorder %v4756, 0
        %v4758 = vsub.s32 0, %v4756
        %v4759 = vsel %vm4757, %v4758, %v4756
        %v4760 = vclz %v4759
        %v4761 = vsub.s32 %v4760, 2
        %vm4762 = vcmp.gt.s32.totalorder 0, %v4761
        %v4763 = vsel %vm4762, 0, %v4761
        %v4764 = vsub.s32 32, %v4763
        %v4765 = vshll.u32 %v4756, %v4763
        %v4766 = vshrl.u32 %v4748, %v4764
        %v4767 = vor.u32 %v4765, %v4766
        %v4768 = vsub.s32 4294967266, %v4763
        %v4769 = vadd.s32 %v4768, 127
        %v4770 = vshll.u32 %v4769, 23
        %v4771 = vor.u32 4788187, %v4770
        %v4772 = vand.u32 2147483647, %v4771
        %v4774 = vcvt.s32.f32 %v4767
        %v4775 = vmul.f32 %v4774, %v4772
        %v4776 = vxor.u32 %v4775, 2147483648
        %v4777 = vsel %vm4656, %v4776, %v4775
        %v4778 = vsub.s32 4, %v4754
        %v4779 = vsel %vm4656, %v4778, %v4754
        %v4780 = vsel %vm4655, %v389, %v4777
        %v4781 = vsel %vm4655, 0, %v4779
        %v4782 = vmul.f32 %v4780, %v4780
        %v4783 = vmul.f32 %v4782, -0.001358992
        %v4784 = vadd.f32 %v4783, 0.041655596
        %v4785 = vmul.f32 %v4782, %v4784
        %v4786 = vadd.f32 %v4785, -0.4999988
        %v4787 = vmul.f32 %v4782, %v4786
        %v4788 = vadd.f32 1.0, %v4787
        %v4789 = vmul.f32 %v4780, %v4780
        %v4790 = vmul.f32 %v4789, -0.00019511016
        %v4791 = vadd.f32 %v4790, 0.008332121
        %v4792 = vmul.f32 %v4789, %v4791
        %v4793 = vadd.f32 %v4792, -0.16666654
        %v4794 = vmul.f32 %v4789, %v4793
        %v4795 = vadd.f32 %v4794, 1.0
        %v4796 = vmul.f32 %v4795, %v4780
        %vm4797 = vweird.f32 %v389
        %v4798 = vadd.s32 %v4781, 3
        %v4799 = vand.u32 %v4798, 3
        %vm4800 = vcmp.lt.s32.totalorder %v4799, 2
        %vm4801 = vcmp.eq.s32.totalorder %v4799, 0
        %v4802 = vxor.u32 %v4796, 2147483648
        %v4803 = vsel %vm4801, %v4788, %v4802
        %vm4804 = vcmp.eq.s32.totalorder %v4799, 2
        %v4805 = vxor.u32 %v4788, 2147483648
        %v4806 = vsel %vm4804, %v4805, %v4796
        %v4807 = vsel %vm4800, %v4803, %v4806
        %v4808 = vsel %vm4797, nan, %v4807
        %v4809 = vand.u32 2147483647, %v392
        %vm4810 = vcmp.le.f32.partialorder %v4809, 0.7853982
        %vm4811 = vcmp.lt.s32.totalorder %v392, 0
        %v4812 = vand.u32 %v392, 2139095040
        %v4813 = vshrl.u32 %v4812, 23
        %v4814 = vsub.s32 %v4813, 127
        %v4815 = vand.u32 2147483647, %v392
        %v4816 = vand.u32 %v4815, 8388607
        %v4817 = vor.u32 %v4816, 8388608
        %v4818 = vsub.s32 0, %v4817
        %v4819 = vadd.s32 %v4814, 1
        %vm4820 = vcmp.gt.s32.totalorder %v4819, 0
        %v4821 = vsel %vm4820, %v4819, 0
        %v4822 = vshrl.u32 %v4821, 5
        %v4823 = vand.u32 %v4821, 31
        %v4824 = vsub.s32 32, %v4823
        %v4825 = vshrl.u32 683565275, %v4824
        %v4826 = vshll.u32 683565275, %v4823
        %v4827 = vshrl.u32 2475754826, %v4824
        %v4828 = vor.u32 %v4826, %v4827
        %v4829 = vshll.u32 2475754826, %v4823
        %v4830 = vshrl.u32 2131351028, %v4824
        %v4831 = vor.u32 %v4829, %v4830
        %v4832 = vshll.u32 2131351028, %v4823
        %v4833 = vshrl.u32 2102212464, %v4824
        %v4834 = vor.u32 %v4832, %v4833
        %v4835 = vshll.u32 2102212464, %v4823
        %v4836 = vshrl.u32 920167782, %v4824
        %v4837 = vor.u32 %v4835, %v4836
        %v4838 = vshll.u32 920167782, %v4823
        %v4839 = vshrl.u32 1326507024, %v4824
        %v4840 = vor.u32 %v4838, %v4839
        %vm4841 = vcmp.lt.s32.totalorder %v4822, 1
        %vm4842 = vcmp.lt.s32.totalorder %v4822, 2
        %vm4843 = vcmp.lt.s32.totalorder %v4822, 3
        %vm4844 = vcmp.lt.s32.totalorder %v4822, 4
        %v4845 = vsel %vm4841, %v4825, %v4828
        %v4846 = vsel %vm4844, %v4834, 2102212464
        %v4847 = vsel %vm4843, %v4831, %v4846
        %v4848 = vsel %vm4842, %v4845, %v4847
        %v4849 = vsel %vm4841, %v4828, %v4831
        %v4850 = vsel %vm4844, %v4837, 920167782
        %v4851 = vsel %vm4843, %v4834, %v4850
        %v4852 = vsel %vm4842, %v4849, %v4851
        %v4853 = vsel %vm4841, %v4831, %v4834
        %v4854 = vsel %vm4844, %v4840, 1326507024
        %v4855 = vsel %vm4843, %v4837, %v4854
        %v4856 = vsel %vm4842, %v4853, %v4855
        %v4857 = vshll.u32 %v4817, 8
        %v4858 = vand.u32 %v4857, 65535
        %v4859 = vshrl.u32 %v4857, 16
        %v4860 = vand.u32 %v4856, 65535
        %v4861 = vshrl.u32 %v4856, 16
        %v4862 = vmul.u32 %v4858, %v4860
        %v4863 = vmul.u32 %v4858, %v4861
        %v4864 = vmul.u32 %v4859, %v4860
        %v4865 = vmul.u32 %v4859, %v4861
        %v4866 = vshll.u32 %v4863, 16
        %v4867 = vshrl.u32 %v4863, 16
        %v4868 = vshll.u32 %v4864, 16
        %v4869 = vshrl.u32 %v4864, 16
        %vm4870 = vc.u32 %v4862, %v4866
        %v4871 = vsel %vm4870, 1, 0
        %v4872 = vadd.s32 %v4862, %v4866
        %v4873 = vadd.s32 %v4865, %v4871
        %vm4874 = vc.u32 %v4872, %v4868
        %v4875 = vsel %vm4874, 1, 0
        %v4876 = vadd.s32 %v4872, %v4868
        %v4877 = vadd.s32 %v4873, %v4875
        %v4878 = vadd.s32 %v4877, %v4867
        %v4879 = vadd.s32 %v4878, %v4869
        %v4880 = vand.u32 %v4857, 65535
        %v4881 = vshrl.u32 %v4857, 16
        %v4882 = vand.u32 %v4852, 65535
        %v4883 = vshrl.u32 %v4852, 16
        %v4884 = vmul.u32 %v4880, %v4882
        %v4885 = vmul.u32 %v4880, %v4883
        %v4886 = vmul.u32 %v4881, %v4882
        %v4887 = vmul.u32 %v4881, %v4883
        %v4888 = vshll.u32 %v4885, 16
        %v4889 = vshrl.u32 %v4885, 16
        %v4890 = vshll.u32 %v4886, 16
        %v4891 = vshrl.u32 %v4886, 16
        %vm4892 = vc.u32 %v4884, %v4888
        %v4893 = vsel %vm4892, 1, 0
        %v4894 = vadd.s32 %v4884, %v4888
        %v4895 = vadd.s32 %v4887, %v4893
        %vm4896 = vc.u32 %v4894, %v4890
        %v4897 = vsel %vm4896, 1, 0
        %v4898 = vadd.s32 %v4894, %v4890
        %v4899 = vadd.s32 %v4895, %v4897
        %v4900 = vadd.s32 %v4899, %v4889
        %v4901 = vadd.s32 %v4900, %v4891
        %v4902 = vmul.u32 %v4857, %v4848
        %v4903 = vadd.s32 %v4879, %v4898
        %vm4904 = vc.u32 %v4879, %v4898
        %v4905 = vadd.s32 %v4901, 1
        %v4906 = vsel %vm4904, %v4905, %v4901
        %v4907 = vadd.s32 %v4902, %v4906
        %v4908 = vadd.s32 %v4907, 536870912
        %v4909 = vshrl.u32 %v4908, 30
        %v4910 = vshll.u32 %v4909, 30
        %v4911 = vsub.s32 %v4907, %v4910
        %vm4912 = vcmp.lt.s32.totalorder %v4911, 0
        %v4913 = vsub.s32 0, %v4911
        %v4914 = vsel %vm4912, %v4913, %v4911
        %v4915 = vclz %v4914
        %v4916 = vsub.s32 %v4915, 2
        %vm4917 = vcmp.gt.s32.totalorder 0, %v4916
        %v4918 = vsel %vm4917, 0, %v4916
        %v4919 = vsub.s32 32, %v4918
        %v4920 = vshll.u32 %v4911, %v4918
        %v4921 = vshrl.u32 %v4903, %v4919
        %v4922 = vor.u32 %v4920, %v4921
        %v4923 = vsub.s32 4294967266, %v4918
        %v4924 = vadd.s32 %v4923, 127
        %v4925 = vshll.u32 %v4924, 23
        %v4926 = vor.u32 4788187, %v4925
        %v4927 = vand.u32 2147483647, %v4926
        %v4929 = vcvt.s32.f32 %v4922
        %v4930 = vmul.f32 %v4929, %v4927
        %v4931 = vxor.u32 %v4930, 2147483648
        %v4932 = vsel %vm4811, %v4931, %v4930
        %v4933 = vsub.s32 4, %v4909
        %v4934 = vsel %vm4811, %v4933, %v4909
        %v4935 = vsel %vm4810, %v392, %v4932
        %v4936 = vsel %vm4810, 0, %v4934
        %v4937 = vmul.f32 %v4935, %v4935
        %v4938 = vmul.f32 %v4937, -0.001358992
        %v4939 = vadd.f32 %v4938, 0.041655596
        %v4940 = vmul.f32 %v4937, %v4939
        %v4941 = vadd.f32 %v4940, -0.4999988
        %v4942 = vmul.f32 %v4937, %v4941
        %v4943 = vadd.f32 1.0, %v4942
        %v4944 = vmul.f32 %v4935, %v4935
        %v4945 = vmul.f32 %v4944, -0.00019511016
        %v4946 = vadd.f32 %v4945, 0.008332121
        %v4947 = vmul.f32 %v4944, %v4946
        %v4948 = vadd.f32 %v4947, -0.16666654
        %v4949 = vmul.f32 %v4944, %v4948
        %v4950 = vadd.f32 %v4949, 1.0
        %v4951 = vmul.f32 %v4950, %v4935
        %vm4952 = vweird.f32 %v392
        %v4953 = vadd.s32 %v4936, 3
        %v4954 = vand.u32 %v4953, 3
        %vm4955 = vcmp.lt.s32.totalorder %v4954, 2
        %vm4956 = vcmp.eq.s32.totalorder %v4954, 0
        %v4957 = vxor.u32 %v4951, 2147483648
        %v4958 = vsel %vm4956, %v4943, %v4957
        %vm4959 = vcmp.eq.s32.totalorder %v4954, 2
        %v4960 = vxor.u32 %v4943, 2147483648
        %v4961 = vsel %vm4959, %v4960, %v4951
        %v4962 = vsel %vm4955, %v4958, %v4961
        %v4963 = vsel %vm4952, nan, %v4962
        %v4964 = vand.u32 2147483647, %v395
        %vm4965 = vcmp.le.f32.partialorder %v4964, 0.7853982
        %vm4966 = vcmp.lt.s32.totalorder %v395, 0
        %v4967 = vand.u32 %v395, 2139095040
        %v4968 = vshrl.u32 %v4967, 23
        %v4969 = vsub.s32 %v4968, 127
        %v4970 = vand.u32 2147483647, %v395
        %v4971 = vand.u32 %v4970, 8388607
        %v4972 = vor.u32 %v4971, 8388608
        %v4973 = vsub.s32 0, %v4972
        %v4974 = vadd.s32 %v4969, 1
        %vm4975 = vcmp.gt.s32.totalorder %v4974, 0
        %v4976 = vsel %vm4975, %v4974, 0
        %v4977 = vshrl.u32 %v4976, 5
        %v4978 = vand.u32 %v4976, 31
        %v4979 = vsub.s32 32, %v4978
        %v4980 = vshrl.u32 683565275, %v4979
        %v4981 = vshll.u32 683565275, %v4978
        %v4982 = vshrl.u32 2475754826, %v4979
        %v4983 = vor.u32 %v4981, %v4982
        %v4984 = vshll.u32 2475754826, %v4978
        %v4985 = vshrl.u32 2131351028, %v4979
        %v4986 = vor.u32 %v4984, %v4985
        %v4987 = vshll.u32 2131351028, %v4978
        %v4988 = vshrl.u32 2102212464, %v4979
        %v4989 = vor.u32 %v4987, %v4988
        %v4990 = vshll.u32 2102212464, %v4978
        %v4991 = vshrl.u32 920167782, %v4979
        %v4992 = vor.u32 %v4990, %v4991
        %v4993 = vshll.u32 920167782, %v4978
        %v4994 = vshrl.u32 1326507024, %v4979
        %v4995 = vor.u32 %v4993, %v4994
        %vm4996 = vcmp.lt.s32.totalorder %v4977, 1
        %vm4997 = vcmp.lt.s32.totalorder %v4977, 2
        %vm4998 = vcmp.lt.s32.totalorder %v4977, 3
        %vm4999 = vcmp.lt.s32.totalorder %v4977, 4
        %v5000 = vsel %vm4996, %v4980, %v4983
        %v5001 = vsel %vm4999, %v4989, 2102212464
        %v5002 = vsel %vm4998, %v4986, %v5001
        %v5003 = vsel %vm4997, %v5000, %v5002
        %v5004 = vsel %vm4996, %v4983, %v4986
        %v5005 = vsel %vm4999, %v4992, 920167782
        %v5006 = vsel %vm4998, %v4989, %v5005
        %v5007 = vsel %vm4997, %v5004, %v5006
        %v5008 = vsel %vm4996, %v4986, %v4989
        %v5009 = vsel %vm4999, %v4995, 1326507024
        %v5010 = vsel %vm4998, %v4992, %v5009
        %v5011 = vsel %vm4997, %v5008, %v5010
        %v5012 = vshll.u32 %v4972, 8
        %v5013 = vand.u32 %v5012, 65535
        %v5014 = vshrl.u32 %v5012, 16
        %v5015 = vand.u32 %v5011, 65535
        %v5016 = vshrl.u32 %v5011, 16
        %v5017 = vmul.u32 %v5013, %v5015
        %v5018 = vmul.u32 %v5013, %v5016
        %v5019 = vmul.u32 %v5014, %v5015
        %v5020 = vmul.u32 %v5014, %v5016
        %v5021 = vshll.u32 %v5018, 16
        %v5022 = vshrl.u32 %v5018, 16
        %v5023 = vshll.u32 %v5019, 16
        %v5024 = vshrl.u32 %v5019, 16
        %vm5025 = vc.u32 %v5017, %v5021
        %v5026 = vsel %vm5025, 1, 0
        %v5027 = vadd.s32 %v5017, %v5021
        %v5028 = vadd.s32 %v5020, %v5026
        %vm5029 = vc.u32 %v5027, %v5023
        %v5030 = vsel %vm5029, 1, 0
        %v5031 = vadd.s32 %v5027, %v5023
        %v5032 = vadd.s32 %v5028, %v5030
        %v5033 = vadd.s32 %v5032, %v5022
        %v5034 = vadd.s32 %v5033, %v5024
        %v5035 = vand.u32 %v5012, 65535
        %v5036 = vshrl.u32 %v5012, 16
        %v5037 = vand.u32 %v5007, 65535
        %v5038 = vshrl.u32 %v5007, 16
        %v5039 = vmul.u32 %v5035, %v5037
        %v5040 = vmul.u32 %v5035, %v5038
        %v5041 = vmul.u32 %v5036, %v5037
        %v5042 = vmul.u32 %v5036, %v5038
        %v5043 = vshll.u32 %v5040, 16
        %v5044 = vshrl.u32 %v5040, 16
        %v5045 = vshll.u32 %v5041, 16
        %v5046 = vshrl.u32 %v5041, 16
        %vm5047 = vc.u32 %v5039, %v5043
        %v5048 = vsel %vm5047, 1, 0
        %v5049 = vadd.s32 %v5039, %v5043
        %v5050 = vadd.s32 %v5042, %v5048
        %vm5051 = vc.u32 %v5049, %v5045
        %v5052 = vsel %vm5051, 1, 0
        %v5053 = vadd.s32 %v5049, %v5045
        %v5054 = vadd.s32 %v5050, %v5052
        %v5055 = vadd.s32 %v5054, %v5044
        %v5056 = vadd.s32 %v5055, %v5046
        %v5057 = vmul.u32 %v5012, %v5003
        %v5058 = vadd.s32 %v5034, %v5053
        %vm5059 = vc.u32 %v5034, %v5053
        %v5060 = vadd.s32 %v5056, 1
        %v5061 = vsel %vm5059, %v5060, %v5056
        %v5062 = vadd.s32 %v5057, %v5061
        %v5063 = vadd.s32 %v5062, 536870912
        %v5064 = vshrl.u32 %v5063, 30
        %v5065 = vshll.u32 %v5064, 30
        %v5066 = vsub.s32 %v5062, %v5065
        %vm5067 = vcmp.lt.s32.totalorder %v5066, 0
        %v5068 = vsub.s32 0, %v5066
        %v5069 = vsel %vm5067, %v5068, %v5066
        %v5070 = vclz %v5069
        %v5071 = vsub.s32 %v5070, 2
        %vm5072 = vcmp.gt.s32.totalorder 0, %v5071
        %v5073 = vsel %vm5072, 0, %v5071
        %v5074 = vsub.s32 32, %v5073
        %v5075 = vshll.u32 %v5066, %v5073
        %v5076 = vshrl.u32 %v5058, %v5074
        %v5077 = vor.u32 %v5075, %v5076
        %v5078 = vsub.s32 4294967266, %v5073
        %v5079 = vadd.s32 %v5078, 127
        %v5080 = vshll.u32 %v5079, 23
        %v5081 = vor.u32 4788187, %v5080
        %v5082 = vand.u32 2147483647, %v5081
        %v5084 = vcvt.s32.f32 %v5077
        %v5085 = vmul.f32 %v5084, %v5082
        %v5086 = vxor.u32 %v5085, 2147483648
        %v5087 = vsel %vm4966, %v5086, %v5085
        %v5088 = vsub.s32 4, %v5064
        %v5089 = vsel %vm4966, %v5088, %v5064
        %v5090 = vsel %vm4965, %v395, %v5087
        %v5091 = vsel %vm4965, 0, %v5089
        %v5092 = vmul.f32 %v5090, %v5090
        %v5093 = vmul.f32 %v5092, -0.001358992
        %v5094 = vadd.f32 %v5093, 0.041655596
        %v5095 = vmul.f32 %v5092, %v5094
        %v5096 = vadd.f32 %v5095, -0.4999988
        %v5097 = vmul.f32 %v5092, %v5096
        %v5098 = vadd.f32 1.0, %v5097
        %v5099 = vmul.f32 %v5090, %v5090
        %v5100 = vmul.f32 %v5099, -0.00019511016
        %v5101 = vadd.f32 %v5100, 0.008332121
        %v5102 = vmul.f32 %v5099, %v5101
        %v5103 = vadd.f32 %v5102, -0.16666654
        %v5104 = vmul.f32 %v5099, %v5103
        %v5105 = vadd.f32 %v5104, 1.0
        %v5106 = vmul.f32 %v5105, %v5090
        %vm5107 = vweird.f32 %v395
        %v5108 = vadd.s32 %v5091, 3
        %v5109 = vand.u32 %v5108, 3
        %vm5110 = vcmp.lt.s32.totalorder %v5109, 2
        %vm5111 = vcmp.eq.s32.totalorder %v5109, 0
        %v5112 = vxor.u32 %v5106, 2147483648
        %v5113 = vsel %vm5111, %v5098, %v5112
        %vm5114 = vcmp.eq.s32.totalorder %v5109, 2
        %v5115 = vxor.u32 %v5098, 2147483648
        %v5116 = vsel %vm5114, %v5115, %v5106
        %v5117 = vsel %vm5110, %v5113, %v5116
        %v5118 = vsel %vm5107, nan, %v5117
        %v5119 = vand.u32 2147483647, %v398
        %vm5120 = vcmp.le.f32.partialorder %v5119, 0.7853982
        %vm5121 = vcmp.lt.s32.totalorder %v398, 0
        %v5122 = vand.u32 %v398, 2139095040
        %v5123 = vshrl.u32 %v5122, 23
        %v5124 = vsub.s32 %v5123, 127
        %v5125 = vand.u32 2147483647, %v398
        %v5126 = vand.u32 %v5125, 8388607
        %v5127 = vor.u32 %v5126, 8388608
        %v5128 = vsub.s32 0, %v5127
        %v5129 = vadd.s32 %v5124, 1
        %vm5130 = vcmp.gt.s32.totalorder %v5129, 0
        %v5131 = vsel %vm5130, %v5129, 0
        %v5132 = vshrl.u32 %v5131, 5
        %v5133 = vand.u32 %v5131, 31
        %v5134 = vsub.s32 32, %v5133
        %v5135 = vshrl.u32 683565275, %v5134
        %v5136 = vshll.u32 683565275, %v5133
        %v5137 = vshrl.u32 2475754826, %v5134
        %v5138 = vor.u32 %v5136, %v5137
        %v5139 = vshll.u32 2475754826, %v5133
        %v5140 = vshrl.u32 2131351028, %v5134
        %v5141 = vor.u32 %v5139, %v5140
        %v5142 = vshll.u32 2131351028, %v5133
        %v5143 = vshrl.u32 2102212464, %v5134
        %v5144 = vor.u32 %v5142, %v5143
        %v5145 = vshll.u32 2102212464, %v5133
        %v5146 = vshrl.u32 920167782, %v5134
        %v5147 = vor.u32 %v5145, %v5146
        %v5148 = vshll.u32 920167782, %v5133
        %v5149 = vshrl.u32 1326507024, %v5134
        %v5150 = vor.u32 %v5148, %v5149
        %vm5151 = vcmp.lt.s32.totalorder %v5132, 1
        %vm5152 = vcmp.lt.s32.totalorder %v5132, 2
        %vm5153 = vcmp.lt.s32.totalorder %v5132, 3
        %vm5154 = vcmp.lt.s32.totalorder %v5132, 4
        %v5155 = vsel %vm5151, %v5135, %v5138
        %v5156 = vsel %vm5154, %v5144, 2102212464
        %v5157 = vsel %vm5153, %v5141, %v5156
        %v5158 = vsel %vm5152, %v5155, %v5157
        %v5159 = vsel %vm5151, %v5138, %v5141
        %v5160 = vsel %vm5154, %v5147, 920167782
        %v5161 = vsel %vm5153, %v5144, %v5160
        %v5162 = vsel %vm5152, %v5159, %v5161
        %v5163 = vsel %vm5151, %v5141, %v5144
        %v5164 = vsel %vm5154, %v5150, 1326507024
        %v5165 = vsel %vm5153, %v5147, %v5164
        %v5166 = vsel %vm5152, %v5163, %v5165
        %v5167 = vshll.u32 %v5127, 8
        %v5168 = vand.u32 %v5167, 65535
        %v5169 = vshrl.u32 %v5167, 16
        %v5170 = vand.u32 %v5166, 65535
        %v5171 = vshrl.u32 %v5166, 16
        %v5172 = vmul.u32 %v5168, %v5170
        %v5173 = vmul.u32 %v5168, %v5171
        %v5174 = vmul.u32 %v5169, %v5170
        %v5175 = vmul.u32 %v5169, %v5171
        %v5176 = vshll.u32 %v5173, 16
        %v5177 = vshrl.u32 %v5173, 16
        %v5178 = vshll.u32 %v5174, 16
        %v5179 = vshrl.u32 %v5174, 16
        %vm5180 = vc.u32 %v5172, %v5176
        %v5181 = vsel %vm5180, 1, 0
        %v5182 = vadd.s32 %v5172, %v5176
        %v5183 = vadd.s32 %v5175, %v5181
        %vm5184 = vc.u32 %v5182, %v5178
        %v5185 = vsel %vm5184, 1, 0
        %v5186 = vadd.s32 %v5182, %v5178
        %v5187 = vadd.s32 %v5183, %v5185
        %v5188 = vadd.s32 %v5187, %v5177
        %v5189 = vadd.s32 %v5188, %v5179
        %v5190 = vand.u32 %v5167, 65535
        %v5191 = vshrl.u32 %v5167, 16
        %v5192 = vand.u32 %v5162, 65535
        %v5193 = vshrl.u32 %v5162, 16
        %v5194 = vmul.u32 %v5190, %v5192
        %v5195 = vmul.u32 %v5190, %v5193
        %v5196 = vmul.u32 %v5191, %v5192
        %v5197 = vmul.u32 %v5191, %v5193
        %v5198 = vshll.u32 %v5195, 16
        %v5199 = vshrl.u32 %v5195, 16
        %v5200 = vshll.u32 %v5196, 16
        %v5201 = vshrl.u32 %v5196, 16
        %vm5202 = vc.u32 %v5194, %v5198
        %v5203 = vsel %vm5202, 1, 0
        %v5204 = vadd.s32 %v5194, %v5198
        %v5205 = vadd.s32 %v5197, %v5203
        %vm5206 = vc.u32 %v5204, %v5200
        %v5207 = vsel %vm5206, 1, 0
        %v5208 = vadd.s32 %v5204, %v5200
        %v5209 = vadd.s32 %v5205, %v5207
        %v5210 = vadd.s32 %v5209, %v5199
        %v5211 = vadd.s32 %v5210, %v5201
        %v5212 = vmul.u32 %v5167, %v5158
        %v5213 = vadd.s32 %v5189, %v5208
        %vm5214 = vc.u32 %v5189, %v5208
        %v5215 = vadd.s32 %v5211, 1
        %v5216 = vsel %vm5214, %v5215, %v5211
        %v5217 = vadd.s32 %v5212, %v5216
        %v5218 = vadd.s32 %v5217, 536870912
        %v5219 = vshrl.u32 %v5218, 30
        %v5220 = vshll.u32 %v5219, 30
        %v5221 = vsub.s32 %v5217, %v5220
        %vm5222 = vcmp.lt.s32.totalorder %v5221, 0
        %v5223 = vsub.s32 0, %v5221
        %v5224 = vsel %vm5222, %v5223, %v5221
        %v5225 = vclz %v5224
        %v5226 = vsub.s32 %v5225, 2
        %vm5227 = vcmp.gt.s32.totalorder 0, %v5226
        %v5228 = vsel %vm5227, 0, %v5226
        %v5229 = vsub.s32 32, %v5228
        %v5230 = vshll.u32 %v5221, %v5228
        %v5231 = vshrl.u32 %v5213, %v5229
        %v5232 = vor.u32 %v5230, %v5231
        %v5233 = vsub.s32 4294967266, %v5228
        %v5234 = vadd.s32 %v5233, 127
        %v5235 = vshll.u32 %v5234, 23
        %v5236 = vor.u32 4788187, %v5235
        %v5237 = vand.u32 2147483647, %v5236
        %v5239 = vcvt.s32.f32 %v5232
        %v5240 = vmul.f32 %v5239, %v5237
        %v5241 = vxor.u32 %v5240, 2147483648
        %v5242 = vsel %vm5121, %v5241, %v5240
        %v5243 = vsub.s32 4, %v5219
        %v5244 = vsel %vm5121, %v5243, %v5219
        %v5245 = vsel %vm5120, %v398, %v5242
        %v5246 = vsel %vm5120, 0, %v5244
        %v5247 = vmul.f32 %v5245, %v5245
        %v5248 = vmul.f32 %v5247, -0.001358992
        %v5249 = vadd.f32 %v5248, 0.041655596
        %v5250 = vmul.f32 %v5247, %v5249
        %v5251 = vadd.f32 %v5250, -0.4999988
        %v5252 = vmul.f32 %v5247, %v5251
        %v5253 = vadd.f32 1.0, %v5252
        %v5254 = vmul.f32 %v5245, %v5245
        %v5255 = vmul.f32 %v5254, -0.00019511016
        %v5256 = vadd.f32 %v5255, 0.008332121
        %v5257 = vmul.f32 %v5254, %v5256
        %v5258 = vadd.f32 %v5257, -0.16666654
        %v5259 = vmul.f32 %v5254, %v5258
        %v5260 = vadd.f32 %v5259, 1.0
        %v5261 = vmul.f32 %v5260, %v5245
        %vm5262 = vweird.f32 %v398
        %v5263 = vadd.s32 %v5246, 3
        %v5264 = vand.u32 %v5263, 3
        %vm5265 = vcmp.lt.s32.totalorder %v5264, 2
        %vm5266 = vcmp.eq.s32.totalorder %v5264, 0
        %v5267 = vxor.u32 %v5261, 2147483648
        %v5268 = vsel %vm5266, %v5253, %v5267
        %vm5269 = vcmp.eq.s32.totalorder %v5264, 2
        %v5270 = vxor.u32 %v5253, 2147483648
        %v5271 = vsel %vm5269, %v5270, %v5261
        %v5272 = vsel %vm5265, %v5268, %v5271
        %v5273 = vsel %vm5262, nan, %v5272
        %v5274 = vand.u32 2147483647, %v401
        %vm5275 = vcmp.le.f32.partialorder %v5274, 0.7853982
        %vm5276 = vcmp.lt.s32.totalorder %v401, 0
        %v5277 = vand.u32 %v401, 2139095040
        %v5278 = vshrl.u32 %v5277, 23
        %v5279 = vsub.s32 %v5278, 127
        %v5280 = vand.u32 2147483647, %v401
        %v5281 = vand.u32 %v5280, 8388607
        %v5282 = vor.u32 %v5281, 8388608
        %v5283 = vsub.s32 0, %v5282
        %v5284 = vadd.s32 %v5279, 1
        %vm5285 = vcmp.gt.s32.totalorder %v5284, 0
        %v5286 = vsel %vm5285, %v5284, 0
        %v5287 = vshrl.u32 %v5286, 5
        %v5288 = vand.u32 %v5286, 31
        %v5289 = vsub.s32 32, %v5288
        %v5290 = vshrl.u32 683565275, %v5289
        %v5291 = vshll.u32 683565275, %v5288
        %v5292 = vshrl.u32 2475754826, %v5289
        %v5293 = vor.u32 %v5291, %v5292
        %v5294 = vshll.u32 2475754826, %v5288
        %v5295 = vshrl.u32 2131351028, %v5289
        %v5296 = vor.u32 %v5294, %v5295
        %v5297 = vshll.u32 2131351028, %v5288
        %v5298 = vshrl.u32 2102212464, %v5289
        %v5299 = vor.u32 %v5297, %v5298
        %v5300 = vshll.u32 2102212464, %v5288
        %v5301 = vshrl.u32 920167782, %v5289
        %v5302 = vor.u32 %v5300, %v5301
        %v5303 = vshll.u32 920167782, %v5288
        %v5304 = vshrl.u32 1326507024, %v5289
        %v5305 = vor.u32 %v5303, %v5304
        %vm5306 = vcmp.lt.s32.totalorder %v5287, 1
        %vm5307 = vcmp.lt.s32.totalorder %v5287, 2
        %vm5308 = vcmp.lt.s32.totalorder %v5287, 3
        %vm5309 = vcmp.lt.s32.totalorder %v5287, 4
        %v5310 = vsel %vm5306, %v5290, %v5293
        %v5311 = vsel %vm5309, %v5299, 2102212464
        %v5312 = vsel %vm5308, %v5296, %v5311
        %v5313 = vsel %vm5307, %v5310, %v5312
        %v5314 = vsel %vm5306, %v5293, %v5296
        %v5315 = vsel %vm5309, %v5302, 920167782
        %v5316 = vsel %vm5308, %v5299, %v5315
        %v5317 = vsel %vm5307, %v5314, %v5316
        %v5318 = vsel %vm5306, %v5296, %v5299
        %v5319 = vsel %vm5309, %v5305, 1326507024
        %v5320 = vsel %vm5308, %v5302, %v5319
        %v5321 = vsel %vm5307, %v5318, %v5320
        %v5322 = vshll.u32 %v5282, 8
        %v5323 = vand.u32 %v5322, 65535
        %v5324 = vshrl.u32 %v5322, 16
        %v5325 = vand.u32 %v5321, 65535
        %v5326 = vshrl.u32 %v5321, 16
        %v5327 = vmul.u32 %v5323, %v5325
        %v5328 = vmul.u32 %v5323, %v5326
        %v5329 = vmul.u32 %v5324, %v5325
        %v5330 = vmul.u32 %v5324, %v5326
        %v5331 = vshll.u32 %v5328, 16
        %v5332 = vshrl.u32 %v5328, 16
        %v5333 = vshll.u32 %v5329, 16
        %v5334 = vshrl.u32 %v5329, 16
        %vm5335 = vc.u32 %v5327, %v5331
        %v5336 = vsel %vm5335, 1, 0
        %v5337 = vadd.s32 %v5327, %v5331
        %v5338 = vadd.s32 %v5330, %v5336
        %vm5339 = vc.u32 %v5337, %v5333
        %v5340 = vsel %vm5339, 1, 0
        %v5341 = vadd.s32 %v5337, %v5333
        %v5342 = vadd.s32 %v5338, %v5340
        %v5343 = vadd.s32 %v5342, %v5332
        %v5344 = vadd.s32 %v5343, %v5334
        %v5345 = vand.u32 %v5322, 65535
        %v5346 = vshrl.u32 %v5322, 16
        %v5347 = vand.u32 %v5317, 65535
        %v5348 = vshrl.u32 %v5317, 16
        %v5349 = vmul.u32 %v5345, %v5347
        %v5350 = vmul.u32 %v5345, %v5348
        %v5351 = vmul.u32 %v5346, %v5347
        %v5352 = vmul.u32 %v5346, %v5348
        %v5353 = vshll.u32 %v5350, 16
        %v5354 = vshrl.u32 %v5350, 16
        %v5355 = vshll.u32 %v5351, 16
        %v5356 = vshrl.u32 %v5351, 16
        %vm5357 = vc.u32 %v5349, %v5353
        %v5358 = vsel %vm5357, 1, 0
        %v5359 = vadd.s32 %v5349, %v5353
        %v5360 = vadd.s32 %v5352, %v5358
        %vm5361 = vc.u32 %v5359, %v5355
        %v5362 = vsel %vm5361, 1, 0
        %v5363 = vadd.s32 %v5359, %v5355
        %v5364 = vadd.s32 %v5360, %v5362
        %v5365 = vadd.s32 %v5364, %v5354
        %v5366 = vadd.s32 %v5365, %v5356
        %v5367 = vmul.u32 %v5322, %v5313
        %v5368 = vadd.s32 %v5344, %v5363
        %vm5369 = vc.u32 %v5344, %v5363
        %v5370 = vadd.s32 %v5366, 1
        %v5371 = vsel %vm5369, %v5370, %v5366
        %v5372 = vadd.s32 %v5367, %v5371
        %v5373 = vadd.s32 %v5372, 536870912
        %v5374 = vshrl.u32 %v5373, 30
        %v5375 = vshll.u32 %v5374, 30
        %v5376 = vsub.s32 %v5372, %v5375
        %vm5377 = vcmp.lt.s32.totalorder %v5376, 0
        %v5378 = vsub.s32 0, %v5376
        %v5379 = vsel %vm5377, %v5378, %v5376
        %v5380 = vclz %v5379
        %v5381 = vsub.s32 %v5380, 2
        %vm5382 = vcmp.gt.s32.totalorder 0, %v5381
        %v5383 = vsel %vm5382, 0, %v5381
        %v5384 = vsub.s32 32, %v5383
        %v5385 = vshll.u32 %v5376, %v5383
        %v5386 = vshrl.u32 %v5368, %v5384
        %v5387 = vor.u32 %v5385, %v5386
        %v5388 = vsub.s32 4294967266, %v5383
        %v5389 = vadd.s32 %v5388, 127
        %v5390 = vshll.u32 %v5389, 23
        %v5391 = vor.u32 4788187, %v5390
        %v5392 = vand.u32 2147483647, %v5391
        %v5394 = vcvt.s32.f32 %v5387
        %v5395 = vmul.f32 %v5394, %v5392
        %v5396 = vxor.u32 %v5395, 2147483648
        %v5397 = vsel %vm5276, %v5396, %v5395
        %v5398 = vsub.s32 4, %v5374
        %v5399 = vsel %vm5276, %v5398, %v5374
        %v5400 = vsel %vm5275, %v401, %v5397
        %v5401 = vsel %vm5275, 0, %v5399
        %v5402 = vmul.f32 %v5400, %v5400
        %v5403 = vmul.f32 %v5402, -0.001358992
        %v5404 = vadd.f32 %v5403, 0.041655596
        %v5405 = vmul.f32 %v5402, %v5404
        %v5406 = vadd.f32 %v5405, -0.4999988
        %v5407 = vmul.f32 %v5402, %v5406
        %v5408 = vadd.f32 1.0, %v5407
        %v5409 = vmul.f32 %v5400, %v5400
        %v5410 = vmul.f32 %v5409, -0.00019511016
        %v5411 = vadd.f32 %v5410, 0.008332121
        %v5412 = vmul.f32 %v5409, %v5411
        %v5413 = vadd.f32 %v5412, -0.16666654
        %v5414 = vmul.f32 %v5409, %v5413
        %v5415 = vadd.f32 %v5414, 1.0
        %v5416 = vmul.f32 %v5415, %v5400
        %vm5417 = vweird.f32 %v401
        %v5418 = vadd.s32 %v5401, 3
        %v5419 = vand.u32 %v5418, 3
        %vm5420 = vcmp.lt.s32.totalorder %v5419, 2
        %vm5421 = vcmp.eq.s32.totalorder %v5419, 0
        %v5422 = vxor.u32 %v5416, 2147483648
        %v5423 = vsel %vm5421, %v5408, %v5422
        %vm5424 = vcmp.eq.s32.totalorder %v5419, 2
        %v5425 = vxor.u32 %v5408, 2147483648
        %v5426 = vsel %vm5424, %v5425, %v5416
        %v5427 = vsel %vm5420, %v5423, %v5426
        %v5428 = vsel %vm5417, nan, %v5427
        %5429 = vst [vmem:[#allocation4] sm:$0xff] %v3103
        %5430 = vst [vmem:[#allocation4 + $0x8] sm:$0xff] %v3258
        %5431 = vst [vmem:[#allocation4 + $0x10] sm:$0xff] %v3413
        %5432 = vst [vmem:[#allocation4 + $0x18] sm:$0xff] %v3568
        %5433 = vst [vmem:[#allocation4 + $0x20] sm:$0xff] %v3723
        %5434 = vst [vmem:[#allocation4 + $0x28] sm:$0xff] %v3878
        %5435 = vst [vmem:[#allocation4 + $0x30] sm:$0xff] %v4033
        %5436 = vst [vmem:[#allocation4 + $0x38] sm:$0xff] %v4188
        %5437 = vst [vmem:[#allocation4 + $0x40] sm:$0xff] %v4343
        %5438 = vst [vmem:[#allocation4 + $0x48] sm:$0xff] %v4498
        %5439 = vst [vmem:[#allocation4 + $0x50] sm:$0xff] %v4653
        %5440 = vst [vmem:[#allocation4 + $0x58] sm:$0xff] %v4808
        %5441 = vst [vmem:[#allocation4 + $0x60] sm:$0xff] %v4963
        %5442 = vst [vmem:[#allocation4 + $0x68] sm:$0xff] %v5118
        %5443 = vst [vmem:[#allocation4 + $0x70] sm:$0xff] %v5273
        %5444 = vst [vmem:[#allocation4 + $0x78] sm:$0xff] %v5428
        %v5445 = vand.u32 2147483647, %v422
        %vm5446 = vcmp.le.f32.partialorder %v5445, 0.7853982
        %vm5447 = vcmp.lt.s32.totalorder %v422, 0
        %v5448 = vand.u32 %v422, 2139095040
        %v5449 = vshrl.u32 %v5448, 23
        %v5450 = vsub.s32 %v5449, 127
        %v5451 = vand.u32 2147483647, %v422
        %v5452 = vand.u32 %v5451, 8388607
        %v5453 = vor.u32 %v5452, 8388608
        %v5454 = vsub.s32 0, %v5453
        %v5455 = vadd.s32 %v5450, 1
        %vm5456 = vcmp.gt.s32.totalorder %v5455, 0
        %v5457 = vsel %vm5456, %v5455, 0
        %v5458 = vshrl.u32 %v5457, 5
        %v5459 = vand.u32 %v5457, 31
        %v5460 = vsub.s32 32, %v5459
        %v5461 = vshrl.u32 683565275, %v5460
        %v5462 = vshll.u32 683565275, %v5459
        %v5463 = vshrl.u32 2475754826, %v5460
        %v5464 = vor.u32 %v5462, %v5463
        %v5465 = vshll.u32 2475754826, %v5459
        %v5466 = vshrl.u32 2131351028, %v5460
        %v5467 = vor.u32 %v5465, %v5466
        %v5468 = vshll.u32 2131351028, %v5459
        %v5469 = vshrl.u32 2102212464, %v5460
        %v5470 = vor.u32 %v5468, %v5469
        %v5471 = vshll.u32 2102212464, %v5459
        %v5472 = vshrl.u32 920167782, %v5460
        %v5473 = vor.u32 %v5471, %v5472
        %v5474 = vshll.u32 920167782, %v5459
        %v5475 = vshrl.u32 1326507024, %v5460
        %v5476 = vor.u32 %v5474, %v5475
        %vm5477 = vcmp.lt.s32.totalorder %v5458, 1
        %vm5478 = vcmp.lt.s32.totalorder %v5458, 2
        %vm5479 = vcmp.lt.s32.totalorder %v5458, 3
        %vm5480 = vcmp.lt.s32.totalorder %v5458, 4
        %v5481 = vsel %vm5477, %v5461, %v5464
        %v5482 = vsel %vm5480, %v5470, 2102212464
        %v5483 = vsel %vm5479, %v5467, %v5482
        %v5484 = vsel %vm5478, %v5481, %v5483
        %v5485 = vsel %vm5477, %v5464, %v5467
        %v5486 = vsel %vm5480, %v5473, 920167782
        %v5487 = vsel %vm5479, %v5470, %v5486
        %v5488 = vsel %vm5478, %v5485, %v5487
        %v5489 = vsel %vm5477, %v5467, %v5470
        %v5490 = vsel %vm5480, %v5476, 1326507024
        %v5491 = vsel %vm5479, %v5473, %v5490
        %v5492 = vsel %vm5478, %v5489, %v5491
        %v5493 = vshll.u32 %v5453, 8
        %v5494 = vand.u32 %v5493, 65535
        %v5495 = vshrl.u32 %v5493, 16
        %v5496 = vand.u32 %v5492, 65535
        %v5497 = vshrl.u32 %v5492, 16
        %v5498 = vmul.u32 %v5494, %v5496
        %v5499 = vmul.u32 %v5494, %v5497
        %v5500 = vmul.u32 %v5495, %v5496
        %v5501 = vmul.u32 %v5495, %v5497
        %v5502 = vshll.u32 %v5499, 16
        %v5503 = vshrl.u32 %v5499, 16
        %v5504 = vshll.u32 %v5500, 16
        %v5505 = vshrl.u32 %v5500, 16
        %vm5506 = vc.u32 %v5498, %v5502
        %v5507 = vsel %vm5506, 1, 0
        %v5508 = vadd.s32 %v5498, %v5502
        %v5509 = vadd.s32 %v5501, %v5507
        %vm5510 = vc.u32 %v5508, %v5504
        %v5511 = vsel %vm5510, 1, 0
        %v5512 = vadd.s32 %v5508, %v5504
        %v5513 = vadd.s32 %v5509, %v5511
        %v5514 = vadd.s32 %v5513, %v5503
        %v5515 = vadd.s32 %v5514, %v5505
        %v5516 = vand.u32 %v5493, 65535
        %v5517 = vshrl.u32 %v5493, 16
        %v5518 = vand.u32 %v5488, 65535
        %v5519 = vshrl.u32 %v5488, 16
        %v5520 = vmul.u32 %v5516, %v5518
        %v5521 = vmul.u32 %v5516, %v5519
        %v5522 = vmul.u32 %v5517, %v5518
        %v5523 = vmul.u32 %v5517, %v5519
        %v5524 = vshll.u32 %v5521, 16
        %v5525 = vshrl.u32 %v5521, 16
        %v5526 = vshll.u32 %v5522, 16
        %v5527 = vshrl.u32 %v5522, 16
        %vm5528 = vc.u32 %v5520, %v5524
        %v5529 = vsel %vm5528, 1, 0
        %v5530 = vadd.s32 %v5520, %v5524
        %v5531 = vadd.s32 %v5523, %v5529
        %vm5532 = vc.u32 %v5530, %v5526
        %v5533 = vsel %vm5532, 1, 0
        %v5534 = vadd.s32 %v5530, %v5526
        %v5535 = vadd.s32 %v5531, %v5533
        %v5536 = vadd.s32 %v5535, %v5525
        %v5537 = vadd.s32 %v5536, %v5527
        %v5538 = vmul.u32 %v5493, %v5484
        %v5539 = vadd.s32 %v5515, %v5534
        %vm5540 = vc.u32 %v5515, %v5534
        %v5541 = vadd.s32 %v5537, 1
        %v5542 = vsel %vm5540, %v5541, %v5537
        %v5543 = vadd.s32 %v5538, %v5542
        %v5544 = vadd.s32 %v5543, 536870912
        %v5545 = vshrl.u32 %v5544, 30
        %v5546 = vshll.u32 %v5545, 30
        %v5547 = vsub.s32 %v5543, %v5546
        %vm5548 = vcmp.lt.s32.totalorder %v5547, 0
        %v5549 = vsub.s32 0, %v5547
        %v5550 = vsel %vm5548, %v5549, %v5547
        %v5551 = vclz %v5550
        %v5552 = vsub.s32 %v5551, 2
        %vm5553 = vcmp.gt.s32.totalorder 0, %v5552
        %v5554 = vsel %vm5553, 0, %v5552
        %v5555 = vsub.s32 32, %v5554
        %v5556 = vshll.u32 %v5547, %v5554
        %v5557 = vshrl.u32 %v5539, %v5555
        %v5558 = vor.u32 %v5556, %v5557
        %v5559 = vsub.s32 4294967266, %v5554
        %v5560 = vadd.s32 %v5559, 127
        %v5561 = vshll.u32 %v5560, 23
        %v5562 = vor.u32 4788187, %v5561
        %v5563 = vand.u32 2147483647, %v5562
        %v5565 = vcvt.s32.f32 %v5558
        %v5566 = vmul.f32 %v5565, %v5563
        %v5567 = vxor.u32 %v5566, 2147483648
        %v5568 = vsel %vm5447, %v5567, %v5566
        %v5569 = vsub.s32 4, %v5545
        %v5570 = vsel %vm5447, %v5569, %v5545
        %v5571 = vsel %vm5446, %v422, %v5568
        %v5572 = vsel %vm5446, 0, %v5570
        %v5573 = vmul.f32 %v5571, %v5571
        %v5574 = vmul.f32 %v5573, -0.001358992
        %v5575 = vadd.f32 %v5574, 0.041655596
        %v5576 = vmul.f32 %v5573, %v5575
        %v5577 = vadd.f32 %v5576, -0.4999988
        %v5578 = vmul.f32 %v5573, %v5577
        %v5579 = vadd.f32 1.0, %v5578
        %v5580 = vmul.f32 %v5571, %v5571
        %v5581 = vmul.f32 %v5580, -0.00019511016
        %v5582 = vadd.f32 %v5581, 0.008332121
        %v5583 = vmul.f32 %v5580, %v5582
        %v5584 = vadd.f32 %v5583, -0.16666654
        %v5585 = vmul.f32 %v5580, %v5584
        %v5586 = vadd.f32 %v5585, 1.0
        %v5587 = vmul.f32 %v5586, %v5571
        %vm5588 = vweird.f32 %v422
        %v5589 = vand.u32 %v5572, 3
        %vm5590 = vcmp.lt.s32.totalorder %v5589, 2
        %vm5591 = vcmp.eq.s32.totalorder %v5589, 0
        %v5592 = vxor.u32 %v5587, 2147483648
        %v5593 = vsel %vm5591, %v5579, %v5592
        %vm5594 = vcmp.eq.s32.totalorder %v5589, 2
        %v5595 = vxor.u32 %v5579, 2147483648
        %v5596 = vsel %vm5594, %v5595, %v5587
        %v5597 = vsel %vm5590, %v5593, %v5596
        %v5598 = vsel %vm5588, nan, %v5597
        %v5599 = vand.u32 2147483647, %v425
        %vm5600 = vcmp.le.f32.partialorder %v5599, 0.7853982
        %vm5601 = vcmp.lt.s32.totalorder %v425, 0
        %v5602 = vand.u32 %v425, 2139095040
        %v5603 = vshrl.u32 %v5602, 23
        %v5604 = vsub.s32 %v5603, 127
        %v5605 = vand.u32 2147483647, %v425
        %v5606 = vand.u32 %v5605, 8388607
        %v5607 = vor.u32 %v5606, 8388608
        %v5608 = vsub.s32 0, %v5607
        %v5609 = vadd.s32 %v5604, 1
        %vm5610 = vcmp.gt.s32.totalorder %v5609, 0
        %v5611 = vsel %vm5610, %v5609, 0
        %v5612 = vshrl.u32 %v5611, 5
        %v5613 = vand.u32 %v5611, 31
        %v5614 = vsub.s32 32, %v5613
        %v5615 = vshrl.u32 683565275, %v5614
        %v5616 = vshll.u32 683565275, %v5613
        %v5617 = vshrl.u32 2475754826, %v5614
        %v5618 = vor.u32 %v5616, %v5617
        %v5619 = vshll.u32 2475754826, %v5613
        %v5620 = vshrl.u32 2131351028, %v5614
        %v5621 = vor.u32 %v5619, %v5620
        %v5622 = vshll.u32 2131351028, %v5613
        %v5623 = vshrl.u32 2102212464, %v5614
        %v5624 = vor.u32 %v5622, %v5623
        %v5625 = vshll.u32 2102212464, %v5613
        %v5626 = vshrl.u32 920167782, %v5614
        %v5627 = vor.u32 %v5625, %v5626
        %v5628 = vshll.u32 920167782, %v5613
        %v5629 = vshrl.u32 1326507024, %v5614
        %v5630 = vor.u32 %v5628, %v5629
        %vm5631 = vcmp.lt.s32.totalorder %v5612, 1
        %vm5632 = vcmp.lt.s32.totalorder %v5612, 2
        %vm5633 = vcmp.lt.s32.totalorder %v5612, 3
        %vm5634 = vcmp.lt.s32.totalorder %v5612, 4
        %v5635 = vsel %vm5631, %v5615, %v5618
        %v5636 = vsel %vm5634, %v5624, 2102212464
        %v5637 = vsel %vm5633, %v5621, %v5636
        %v5638 = vsel %vm5632, %v5635, %v5637
        %v5639 = vsel %vm5631, %v5618, %v5621
        %v5640 = vsel %vm5634, %v5627, 920167782
        %v5641 = vsel %vm5633, %v5624, %v5640
        %v5642 = vsel %vm5632, %v5639, %v5641
        %v5643 = vsel %vm5631, %v5621, %v5624
        %v5644 = vsel %vm5634, %v5630, 1326507024
        %v5645 = vsel %vm5633, %v5627, %v5644
        %v5646 = vsel %vm5632, %v5643, %v5645
        %v5647 = vshll.u32 %v5607, 8
        %v5648 = vand.u32 %v5647, 65535
        %v5649 = vshrl.u32 %v5647, 16
        %v5650 = vand.u32 %v5646, 65535
        %v5651 = vshrl.u32 %v5646, 16
        %v5652 = vmul.u32 %v5648, %v5650
        %v5653 = vmul.u32 %v5648, %v5651
        %v5654 = vmul.u32 %v5649, %v5650
        %v5655 = vmul.u32 %v5649, %v5651
        %v5656 = vshll.u32 %v5653, 16
        %v5657 = vshrl.u32 %v5653, 16
        %v5658 = vshll.u32 %v5654, 16
        %v5659 = vshrl.u32 %v5654, 16
        %vm5660 = vc.u32 %v5652, %v5656
        %v5661 = vsel %vm5660, 1, 0
        %v5662 = vadd.s32 %v5652, %v5656
        %v5663 = vadd.s32 %v5655, %v5661
        %vm5664 = vc.u32 %v5662, %v5658
        %v5665 = vsel %vm5664, 1, 0
        %v5666 = vadd.s32 %v5662, %v5658
        %v5667 = vadd.s32 %v5663, %v5665
        %v5668 = vadd.s32 %v5667, %v5657
        %v5669 = vadd.s32 %v5668, %v5659
        %v5670 = vand.u32 %v5647, 65535
        %v5671 = vshrl.u32 %v5647, 16
        %v5672 = vand.u32 %v5642, 65535
        %v5673 = vshrl.u32 %v5642, 16
        %v5674 = vmul.u32 %v5670, %v5672
        %v5675 = vmul.u32 %v5670, %v5673
        %v5676 = vmul.u32 %v5671, %v5672
        %v5677 = vmul.u32 %v5671, %v5673
        %v5678 = vshll.u32 %v5675, 16
        %v5679 = vshrl.u32 %v5675, 16
        %v5680 = vshll.u32 %v5676, 16
        %v5681 = vshrl.u32 %v5676, 16
        %vm5682 = vc.u32 %v5674, %v5678
        %v5683 = vsel %vm5682, 1, 0
        %v5684 = vadd.s32 %v5674, %v5678
        %v5685 = vadd.s32 %v5677, %v5683
        %vm5686 = vc.u32 %v5684, %v5680
        %v5687 = vsel %vm5686, 1, 0
        %v5688 = vadd.s32 %v5684, %v5680
        %v5689 = vadd.s32 %v5685, %v5687
        %v5690 = vadd.s32 %v5689, %v5679
        %v5691 = vadd.s32 %v5690, %v5681
        %v5692 = vmul.u32 %v5647, %v5638
        %v5693 = vadd.s32 %v5669, %v5688
        %vm5694 = vc.u32 %v5669, %v5688
        %v5695 = vadd.s32 %v5691, 1
        %v5696 = vsel %vm5694, %v5695, %v5691
        %v5697 = vadd.s32 %v5692, %v5696
        %v5698 = vadd.s32 %v5697, 536870912
        %v5699 = vshrl.u32 %v5698, 30
        %v5700 = vshll.u32 %v5699, 30
        %v5701 = vsub.s32 %v5697, %v5700
        %vm5702 = vcmp.lt.s32.totalorder %v5701, 0
        %v5703 = vsub.s32 0, %v5701
        %v5704 = vsel %vm5702, %v5703, %v5701
        %v5705 = vclz %v5704
        %v5706 = vsub.s32 %v5705, 2
        %vm5707 = vcmp.gt.s32.totalorder 0, %v5706
        %v5708 = vsel %vm5707, 0, %v5706
        %v5709 = vsub.s32 32, %v5708
        %v5710 = vshll.u32 %v5701, %v5708
        %v5711 = vshrl.u32 %v5693, %v5709
        %v5712 = vor.u32 %v5710, %v5711
        %v5713 = vsub.s32 4294967266, %v5708
        %v5714 = vadd.s32 %v5713, 127
        %v5715 = vshll.u32 %v5714, 23
        %v5716 = vor.u32 4788187, %v5715
        %v5717 = vand.u32 2147483647, %v5716
        %v5719 = vcvt.s32.f32 %v5712
        %v5720 = vmul.f32 %v5719, %v5717
        %v5721 = vxor.u32 %v5720, 2147483648
        %v5722 = vsel %vm5601, %v5721, %v5720
        %v5723 = vsub.s32 4, %v5699
        %v5724 = vsel %vm5601, %v5723, %v5699
        %v5725 = vsel %vm5600, %v425, %v5722
        %v5726 = vsel %vm5600, 0, %v5724
        %v5727 = vmul.f32 %v5725, %v5725
        %v5728 = vmul.f32 %v5727, -0.001358992
        %v5729 = vadd.f32 %v5728, 0.041655596
        %v5730 = vmul.f32 %v5727, %v5729
        %v5731 = vadd.f32 %v5730, -0.4999988
        %v5732 = vmul.f32 %v5727, %v5731
        %v5733 = vadd.f32 1.0, %v5732
        %v5734 = vmul.f32 %v5725, %v5725
        %v5735 = vmul.f32 %v5734, -0.00019511016
        %v5736 = vadd.f32 %v5735, 0.008332121
        %v5737 = vmul.f32 %v5734, %v5736
        %v5738 = vadd.f32 %v5737, -0.16666654
        %v5739 = vmul.f32 %v5734, %v5738
        %v5740 = vadd.f32 %v5739, 1.0
        %v5741 = vmul.f32 %v5740, %v5725
        %vm5742 = vweird.f32 %v425
        %v5743 = vand.u32 %v5726, 3
        %vm5744 = vcmp.lt.s32.totalorder %v5743, 2
        %vm5745 = vcmp.eq.s32.totalorder %v5743, 0
        %v5746 = vxor.u32 %v5741, 2147483648
        %v5747 = vsel %vm5745, %v5733, %v5746
        %vm5748 = vcmp.eq.s32.totalorder %v5743, 2
        %v5749 = vxor.u32 %v5733, 2147483648
        %v5750 = vsel %vm5748, %v5749, %v5741
        %v5751 = vsel %vm5744, %v5747, %v5750
        %v5752 = vsel %vm5742, nan, %v5751
        %v5753 = vand.u32 2147483647, %v428
        %vm5754 = vcmp.le.f32.partialorder %v5753, 0.7853982
        %vm5755 = vcmp.lt.s32.totalorder %v428, 0
        %v5756 = vand.u32 %v428, 2139095040
        %v5757 = vshrl.u32 %v5756, 23
        %v5758 = vsub.s32 %v5757, 127
        %v5759 = vand.u32 2147483647, %v428
        %v5760 = vand.u32 %v5759, 8388607
        %v5761 = vor.u32 %v5760, 8388608
        %v5762 = vsub.s32 0, %v5761
        %v5763 = vadd.s32 %v5758, 1
        %vm5764 = vcmp.gt.s32.totalorder %v5763, 0
        %v5765 = vsel %vm5764, %v5763, 0
        %v5766 = vshrl.u32 %v5765, 5
        %v5767 = vand.u32 %v5765, 31
        %v5768 = vsub.s32 32, %v5767
        %v5769 = vshrl.u32 683565275, %v5768
        %v5770 = vshll.u32 683565275, %v5767
        %v5771 = vshrl.u32 2475754826, %v5768
        %v5772 = vor.u32 %v5770, %v5771
        %v5773 = vshll.u32 2475754826, %v5767
        %v5774 = vshrl.u32 2131351028, %v5768
        %v5775 = vor.u32 %v5773, %v5774
        %v5776 = vshll.u32 2131351028, %v5767
        %v5777 = vshrl.u32 2102212464, %v5768
        %v5778 = vor.u32 %v5776, %v5777
        %v5779 = vshll.u32 2102212464, %v5767
        %v5780 = vshrl.u32 920167782, %v5768
        %v5781 = vor.u32 %v5779, %v5780
        %v5782 = vshll.u32 920167782, %v5767
        %v5783 = vshrl.u32 1326507024, %v5768
        %v5784 = vor.u32 %v5782, %v5783
        %vm5785 = vcmp.lt.s32.totalorder %v5766, 1
        %vm5786 = vcmp.lt.s32.totalorder %v5766, 2
        %vm5787 = vcmp.lt.s32.totalorder %v5766, 3
        %vm5788 = vcmp.lt.s32.totalorder %v5766, 4
        %v5789 = vsel %vm5785, %v5769, %v5772
        %v5790 = vsel %vm5788, %v5778, 2102212464
        %v5791 = vsel %vm5787, %v5775, %v5790
        %v5792 = vsel %vm5786, %v5789, %v5791
        %v5793 = vsel %vm5785, %v5772, %v5775
        %v5794 = vsel %vm5788, %v5781, 920167782
        %v5795 = vsel %vm5787, %v5778, %v5794
        %v5796 = vsel %vm5786, %v5793, %v5795
        %v5797 = vsel %vm5785, %v5775, %v5778
        %v5798 = vsel %vm5788, %v5784, 1326507024
        %v5799 = vsel %vm5787, %v5781, %v5798
        %v5800 = vsel %vm5786, %v5797, %v5799
        %v5801 = vshll.u32 %v5761, 8
        %v5802 = vand.u32 %v5801, 65535
        %v5803 = vshrl.u32 %v5801, 16
        %v5804 = vand.u32 %v5800, 65535
        %v5805 = vshrl.u32 %v5800, 16
        %v5806 = vmul.u32 %v5802, %v5804
        %v5807 = vmul.u32 %v5802, %v5805
        %v5808 = vmul.u32 %v5803, %v5804
        %v5809 = vmul.u32 %v5803, %v5805
        %v5810 = vshll.u32 %v5807, 16
        %v5811 = vshrl.u32 %v5807, 16
        %v5812 = vshll.u32 %v5808, 16
        %v5813 = vshrl.u32 %v5808, 16
        %vm5814 = vc.u32 %v5806, %v5810
        %v5815 = vsel %vm5814, 1, 0
        %v5816 = vadd.s32 %v5806, %v5810
        %v5817 = vadd.s32 %v5809, %v5815
        %vm5818 = vc.u32 %v5816, %v5812
        %v5819 = vsel %vm5818, 1, 0
        %v5820 = vadd.s32 %v5816, %v5812
        %v5821 = vadd.s32 %v5817, %v5819
        %v5822 = vadd.s32 %v5821, %v5811
        %v5823 = vadd.s32 %v5822, %v5813
        %v5824 = vand.u32 %v5801, 65535
        %v5825 = vshrl.u32 %v5801, 16
        %v5826 = vand.u32 %v5796, 65535
        %v5827 = vshrl.u32 %v5796, 16
        %v5828 = vmul.u32 %v5824, %v5826
        %v5829 = vmul.u32 %v5824, %v5827
        %v5830 = vmul.u32 %v5825, %v5826
        %v5831 = vmul.u32 %v5825, %v5827
        %v5832 = vshll.u32 %v5829, 16
        %v5833 = vshrl.u32 %v5829, 16
        %v5834 = vshll.u32 %v5830, 16
        %v5835 = vshrl.u32 %v5830, 16
        %vm5836 = vc.u32 %v5828, %v5832
        %v5837 = vsel %vm5836, 1, 0
        %v5838 = vadd.s32 %v5828, %v5832
        %v5839 = vadd.s32 %v5831, %v5837
        %vm5840 = vc.u32 %v5838, %v5834
        %v5841 = vsel %vm5840, 1, 0
        %v5842 = vadd.s32 %v5838, %v5834
        %v5843 = vadd.s32 %v5839, %v5841
        %v5844 = vadd.s32 %v5843, %v5833
        %v5845 = vadd.s32 %v5844, %v5835
        %v5846 = vmul.u32 %v5801, %v5792
        %v5847 = vadd.s32 %v5823, %v5842
        %vm5848 = vc.u32 %v5823, %v5842
        %v5849 = vadd.s32 %v5845, 1
        %v5850 = vsel %vm5848, %v5849, %v5845
        %v5851 = vadd.s32 %v5846, %v5850
        %v5852 = vadd.s32 %v5851, 536870912
        %v5853 = vshrl.u32 %v5852, 30
        %v5854 = vshll.u32 %v5853, 30
        %v5855 = vsub.s32 %v5851, %v5854
        %vm5856 = vcmp.lt.s32.totalorder %v5855, 0
        %v5857 = vsub.s32 0, %v5855
        %v5858 = vsel %vm5856, %v5857, %v5855
        %v5859 = vclz %v5858
        %v5860 = vsub.s32 %v5859, 2
        %vm5861 = vcmp.gt.s32.totalorder 0, %v5860
        %v5862 = vsel %vm5861, 0, %v5860
        %v5863 = vsub.s32 32, %v5862
        %v5864 = vshll.u32 %v5855, %v5862
        %v5865 = vshrl.u32 %v5847, %v5863
        %v5866 = vor.u32 %v5864, %v5865
        %v5867 = vsub.s32 4294967266, %v5862
        %v5868 = vadd.s32 %v5867, 127
        %v5869 = vshll.u32 %v5868, 23
        %v5870 = vor.u32 4788187, %v5869
        %v5871 = vand.u32 2147483647, %v5870
        %v5873 = vcvt.s32.f32 %v5866
        %v5874 = vmul.f32 %v5873, %v5871
        %v5875 = vxor.u32 %v5874, 2147483648
        %v5876 = vsel %vm5755, %v5875, %v5874
        %v5877 = vsub.s32 4, %v5853
        %v5878 = vsel %vm5755, %v5877, %v5853
        %v5879 = vsel %vm5754, %v428, %v5876
        %v5880 = vsel %vm5754, 0, %v5878
        %v5881 = vmul.f32 %v5879, %v5879
        %v5882 = vmul.f32 %v5881, -0.001358992
        %v5883 = vadd.f32 %v5882, 0.041655596
        %v5884 = vmul.f32 %v5881, %v5883
        %v5885 = vadd.f32 %v5884, -0.4999988
        %v5886 = vmul.f32 %v5881, %v5885
        %v5887 = vadd.f32 1.0, %v5886
        %v5888 = vmul.f32 %v5879, %v5879
        %v5889 = vmul.f32 %v5888, -0.00019511016
        %v5890 = vadd.f32 %v5889, 0.008332121
        %v5891 = vmul.f32 %v5888, %v5890
        %v5892 = vadd.f32 %v5891, -0.16666654
        %v5893 = vmul.f32 %v5888, %v5892
        %v5894 = vadd.f32 %v5893, 1.0
        %v5895 = vmul.f32 %v5894, %v5879
        %vm5896 = vweird.f32 %v428
        %v5897 = vand.u32 %v5880, 3
        %vm5898 = vcmp.lt.s32.totalorder %v5897, 2
        %vm5899 = vcmp.eq.s32.totalorder %v5897, 0
        %v5900 = vxor.u32 %v5895, 2147483648
        %v5901 = vsel %vm5899, %v5887, %v5900
        %vm5902 = vcmp.eq.s32.totalorder %v5897, 2
        %v5903 = vxor.u32 %v5887, 2147483648
        %v5904 = vsel %vm5902, %v5903, %v5895
        %v5905 = vsel %vm5898, %v5901, %v5904
        %v5906 = vsel %vm5896, nan, %v5905
        %v5907 = vand.u32 2147483647, %v431
        %vm5908 = vcmp.le.f32.partialorder %v5907, 0.7853982
        %vm5909 = vcmp.lt.s32.totalorder %v431, 0
        %v5910 = vand.u32 %v431, 2139095040
        %v5911 = vshrl.u32 %v5910, 23
        %v5912 = vsub.s32 %v5911, 127
        %v5913 = vand.u32 2147483647, %v431
        %v5914 = vand.u32 %v5913, 8388607
        %v5915 = vor.u32 %v5914, 8388608
        %v5916 = vsub.s32 0, %v5915
        %v5917 = vadd.s32 %v5912, 1
        %vm5918 = vcmp.gt.s32.totalorder %v5917, 0
        %v5919 = vsel %vm5918, %v5917, 0
        %v5920 = vshrl.u32 %v5919, 5
        %v5921 = vand.u32 %v5919, 31
        %v5922 = vsub.s32 32, %v5921
        %v5923 = vshrl.u32 683565275, %v5922
        %v5924 = vshll.u32 683565275, %v5921
        %v5925 = vshrl.u32 2475754826, %v5922
        %v5926 = vor.u32 %v5924, %v5925
        %v5927 = vshll.u32 2475754826, %v5921
        %v5928 = vshrl.u32 2131351028, %v5922
        %v5929 = vor.u32 %v5927, %v5928
        %v5930 = vshll.u32 2131351028, %v5921
        %v5931 = vshrl.u32 2102212464, %v5922
        %v5932 = vor.u32 %v5930, %v5931
        %v5933 = vshll.u32 2102212464, %v5921
        %v5934 = vshrl.u32 920167782, %v5922
        %v5935 = vor.u32 %v5933, %v5934
        %v5936 = vshll.u32 920167782, %v5921
        %v5937 = vshrl.u32 1326507024, %v5922
        %v5938 = vor.u32 %v5936, %v5937
        %vm5939 = vcmp.lt.s32.totalorder %v5920, 1
        %vm5940 = vcmp.lt.s32.totalorder %v5920, 2
        %vm5941 = vcmp.lt.s32.totalorder %v5920, 3
        %vm5942 = vcmp.lt.s32.totalorder %v5920, 4
        %v5943 = vsel %vm5939, %v5923, %v5926
        %v5944 = vsel %vm5942, %v5932, 2102212464
        %v5945 = vsel %vm5941, %v5929, %v5944
        %v5946 = vsel %vm5940, %v5943, %v5945
        %v5947 = vsel %vm5939, %v5926, %v5929
        %v5948 = vsel %vm5942, %v5935, 920167782
        %v5949 = vsel %vm5941, %v5932, %v5948
        %v5950 = vsel %vm5940, %v5947, %v5949
        %v5951 = vsel %vm5939, %v5929, %v5932
        %v5952 = vsel %vm5942, %v5938, 1326507024
        %v5953 = vsel %vm5941, %v5935, %v5952
        %v5954 = vsel %vm5940, %v5951, %v5953
        %v5955 = vshll.u32 %v5915, 8
        %v5956 = vand.u32 %v5955, 65535
        %v5957 = vshrl.u32 %v5955, 16
        %v5958 = vand.u32 %v5954, 65535
        %v5959 = vshrl.u32 %v5954, 16
        %v5960 = vmul.u32 %v5956, %v5958
        %v5961 = vmul.u32 %v5956, %v5959
        %v5962 = vmul.u32 %v5957, %v5958
        %v5963 = vmul.u32 %v5957, %v5959
        %v5964 = vshll.u32 %v5961, 16
        %v5965 = vshrl.u32 %v5961, 16
        %v5966 = vshll.u32 %v5962, 16
        %v5967 = vshrl.u32 %v5962, 16
        %vm5968 = vc.u32 %v5960, %v5964
        %v5969 = vsel %vm5968, 1, 0
        %v5970 = vadd.s32 %v5960, %v5964
        %v5971 = vadd.s32 %v5963, %v5969
        %vm5972 = vc.u32 %v5970, %v5966
        %v5973 = vsel %vm5972, 1, 0
        %v5974 = vadd.s32 %v5970, %v5966
        %v5975 = vadd.s32 %v5971, %v5973
        %v5976 = vadd.s32 %v5975, %v5965
        %v5977 = vadd.s32 %v5976, %v5967
        %v5978 = vand.u32 %v5955, 65535
        %v5979 = vshrl.u32 %v5955, 16
        %v5980 = vand.u32 %v5950, 65535
        %v5981 = vshrl.u32 %v5950, 16
        %v5982 = vmul.u32 %v5978, %v5980
        %v5983 = vmul.u32 %v5978, %v5981
        %v5984 = vmul.u32 %v5979, %v5980
        %v5985 = vmul.u32 %v5979, %v5981
        %v5986 = vshll.u32 %v5983, 16
        %v5987 = vshrl.u32 %v5983, 16
        %v5988 = vshll.u32 %v5984, 16
        %v5989 = vshrl.u32 %v5984, 16
        %vm5990 = vc.u32 %v5982, %v5986
        %v5991 = vsel %vm5990, 1, 0
        %v5992 = vadd.s32 %v5982, %v5986
        %v5993 = vadd.s32 %v5985, %v5991
        %vm5994 = vc.u32 %v5992, %v5988
        %v5995 = vsel %vm5994, 1, 0
        %v5996 = vadd.s32 %v5992, %v5988
        %v5997 = vadd.s32 %v5993, %v5995
        %v5998 = vadd.s32 %v5997, %v5987
        %v5999 = vadd.s32 %v5998, %v5989
        %v6000 = vmul.u32 %v5955, %v5946
        %v6001 = vadd.s32 %v5977, %v5996
        %vm6002 = vc.u32 %v5977, %v5996
        %v6003 = vadd.s32 %v5999, 1
        %v6004 = vsel %vm6002, %v6003, %v5999
        %v6005 = vadd.s32 %v6000, %v6004
        %v6006 = vadd.s32 %v6005, 536870912
        %v6007 = vshrl.u32 %v6006, 30
        %v6008 = vshll.u32 %v6007, 30
        %v6009 = vsub.s32 %v6005, %v6008
        %vm6010 = vcmp.lt.s32.totalorder %v6009, 0
        %v6011 = vsub.s32 0, %v6009
        %v6012 = vsel %vm6010, %v6011, %v6009
        %v6013 = vclz %v6012
        %v6014 = vsub.s32 %v6013, 2
        %vm6015 = vcmp.gt.s32.totalorder 0, %v6014
        %v6016 = vsel %vm6015, 0, %v6014
        %v6017 = vsub.s32 32, %v6016
        %v6018 = vshll.u32 %v6009, %v6016
        %v6019 = vshrl.u32 %v6001, %v6017
        %v6020 = vor.u32 %v6018, %v6019
        %v6021 = vsub.s32 4294967266, %v6016
        %v6022 = vadd.s32 %v6021, 127
        %v6023 = vshll.u32 %v6022, 23
        %v6024 = vor.u32 4788187, %v6023
        %v6025 = vand.u32 2147483647, %v6024
        %v6027 = vcvt.s32.f32 %v6020
        %v6028 = vmul.f32 %v6027, %v6025
        %v6029 = vxor.u32 %v6028, 2147483648
        %v6030 = vsel %vm5909, %v6029, %v6028
        %v6031 = vsub.s32 4, %v6007
        %v6032 = vsel %vm5909, %v6031, %v6007
        %v6033 = vsel %vm5908, %v431, %v6030
        %v6034 = vsel %vm5908, 0, %v6032
        %v6035 = vmul.f32 %v6033, %v6033
        %v6036 = vmul.f32 %v6035, -0.001358992
        %v6037 = vadd.f32 %v6036, 0.041655596
        %v6038 = vmul.f32 %v6035, %v6037
        %v6039 = vadd.f32 %v6038, -0.4999988
        %v6040 = vmul.f32 %v6035, %v6039
        %v6041 = vadd.f32 1.0, %v6040
        %v6042 = vmul.f32 %v6033, %v6033
        %v6043 = vmul.f32 %v6042, -0.00019511016
        %v6044 = vadd.f32 %v6043, 0.008332121
        %v6045 = vmul.f32 %v6042, %v6044
        %v6046 = vadd.f32 %v6045, -0.16666654
        %v6047 = vmul.f32 %v6042, %v6046
        %v6048 = vadd.f32 %v6047, 1.0
        %v6049 = vmul.f32 %v6048, %v6033
        %vm6050 = vweird.f32 %v431
        %v6051 = vand.u32 %v6034, 3
        %vm6052 = vcmp.lt.s32.totalorder %v6051, 2
        %vm6053 = vcmp.eq.s32.totalorder %v6051, 0
        %v6054 = vxor.u32 %v6049, 2147483648
        %v6055 = vsel %vm6053, %v6041, %v6054
        %vm6056 = vcmp.eq.s32.totalorder %v6051, 2
        %v6057 = vxor.u32 %v6041, 2147483648
        %v6058 = vsel %vm6056, %v6057, %v6049
        %v6059 = vsel %vm6052, %v6055, %v6058
        %v6060 = vsel %vm6050, nan, %v6059
        %v6061 = vand.u32 2147483647, %v434
        %vm6062 = vcmp.le.f32.partialorder %v6061, 0.7853982
        %vm6063 = vcmp.lt.s32.totalorder %v434, 0
        %v6064 = vand.u32 %v434, 2139095040
        %v6065 = vshrl.u32 %v6064, 23
        %v6066 = vsub.s32 %v6065, 127
        %v6067 = vand.u32 2147483647, %v434
        %v6068 = vand.u32 %v6067, 8388607
        %v6069 = vor.u32 %v6068, 8388608
        %v6070 = vsub.s32 0, %v6069
        %v6071 = vadd.s32 %v6066, 1
        %vm6072 = vcmp.gt.s32.totalorder %v6071, 0
        %v6073 = vsel %vm6072, %v6071, 0
        %v6074 = vshrl.u32 %v6073, 5
        %v6075 = vand.u32 %v6073, 31
        %v6076 = vsub.s32 32, %v6075
        %v6077 = vshrl.u32 683565275, %v6076
        %v6078 = vshll.u32 683565275, %v6075
        %v6079 = vshrl.u32 2475754826, %v6076
        %v6080 = vor.u32 %v6078, %v6079
        %v6081 = vshll.u32 2475754826, %v6075
        %v6082 = vshrl.u32 2131351028, %v6076
        %v6083 = vor.u32 %v6081, %v6082
        %v6084 = vshll.u32 2131351028, %v6075
        %v6085 = vshrl.u32 2102212464, %v6076
        %v6086 = vor.u32 %v6084, %v6085
        %v6087 = vshll.u32 2102212464, %v6075
        %v6088 = vshrl.u32 920167782, %v6076
        %v6089 = vor.u32 %v6087, %v6088
        %v6090 = vshll.u32 920167782, %v6075
        %v6091 = vshrl.u32 1326507024, %v6076
        %v6092 = vor.u32 %v6090, %v6091
        %vm6093 = vcmp.lt.s32.totalorder %v6074, 1
        %vm6094 = vcmp.lt.s32.totalorder %v6074, 2
        %vm6095 = vcmp.lt.s32.totalorder %v6074, 3
        %vm6096 = vcmp.lt.s32.totalorder %v6074, 4
        %v6097 = vsel %vm6093, %v6077, %v6080
        %v6098 = vsel %vm6096, %v6086, 2102212464
        %v6099 = vsel %vm6095, %v6083, %v6098
        %v6100 = vsel %vm6094, %v6097, %v6099
        %v6101 = vsel %vm6093, %v6080, %v6083
        %v6102 = vsel %vm6096, %v6089, 920167782
        %v6103 = vsel %vm6095, %v6086, %v6102
        %v6104 = vsel %vm6094, %v6101, %v6103
        %v6105 = vsel %vm6093, %v6083, %v6086
        %v6106 = vsel %vm6096, %v6092, 1326507024
        %v6107 = vsel %vm6095, %v6089, %v6106
        %v6108 = vsel %vm6094, %v6105, %v6107
        %v6109 = vshll.u32 %v6069, 8
        %v6110 = vand.u32 %v6109, 65535
        %v6111 = vshrl.u32 %v6109, 16
        %v6112 = vand.u32 %v6108, 65535
        %v6113 = vshrl.u32 %v6108, 16
        %v6114 = vmul.u32 %v6110, %v6112
        %v6115 = vmul.u32 %v6110, %v6113
        %v6116 = vmul.u32 %v6111, %v6112
        %v6117 = vmul.u32 %v6111, %v6113
        %v6118 = vshll.u32 %v6115, 16
        %v6119 = vshrl.u32 %v6115, 16
        %v6120 = vshll.u32 %v6116, 16
        %v6121 = vshrl.u32 %v6116, 16
        %vm6122 = vc.u32 %v6114, %v6118
        %v6123 = vsel %vm6122, 1, 0
        %v6124 = vadd.s32 %v6114, %v6118
        %v6125 = vadd.s32 %v6117, %v6123
        %vm6126 = vc.u32 %v6124, %v6120
        %v6127 = vsel %vm6126, 1, 0
        %v6128 = vadd.s32 %v6124, %v6120
        %v6129 = vadd.s32 %v6125, %v6127
        %v6130 = vadd.s32 %v6129, %v6119
        %v6131 = vadd.s32 %v6130, %v6121
        %v6132 = vand.u32 %v6109, 65535
        %v6133 = vshrl.u32 %v6109, 16
        %v6134 = vand.u32 %v6104, 65535
        %v6135 = vshrl.u32 %v6104, 16
        %v6136 = vmul.u32 %v6132, %v6134
        %v6137 = vmul.u32 %v6132, %v6135
        %v6138 = vmul.u32 %v6133, %v6134
        %v6139 = vmul.u32 %v6133, %v6135
        %v6140 = vshll.u32 %v6137, 16
        %v6141 = vshrl.u32 %v6137, 16
        %v6142 = vshll.u32 %v6138, 16
        %v6143 = vshrl.u32 %v6138, 16
        %vm6144 = vc.u32 %v6136, %v6140
        %v6145 = vsel %vm6144, 1, 0
        %v6146 = vadd.s32 %v6136, %v6140
        %v6147 = vadd.s32 %v6139, %v6145
        %vm6148 = vc.u32 %v6146, %v6142
        %v6149 = vsel %vm6148, 1, 0
        %v6150 = vadd.s32 %v6146, %v6142
        %v6151 = vadd.s32 %v6147, %v6149
        %v6152 = vadd.s32 %v6151, %v6141
        %v6153 = vadd.s32 %v6152, %v6143
        %v6154 = vmul.u32 %v6109, %v6100
        %v6155 = vadd.s32 %v6131, %v6150
        %vm6156 = vc.u32 %v6131, %v6150
        %v6157 = vadd.s32 %v6153, 1
        %v6158 = vsel %vm6156, %v6157, %v6153
        %v6159 = vadd.s32 %v6154, %v6158
        %v6160 = vadd.s32 %v6159, 536870912
        %v6161 = vshrl.u32 %v6160, 30
        %v6162 = vshll.u32 %v6161, 30
        %v6163 = vsub.s32 %v6159, %v6162
        %vm6164 = vcmp.lt.s32.totalorder %v6163, 0
        %v6165 = vsub.s32 0, %v6163
        %v6166 = vsel %vm6164, %v6165, %v6163
        %v6167 = vclz %v6166
        %v6168 = vsub.s32 %v6167, 2
        %vm6169 = vcmp.gt.s32.totalorder 0, %v6168
        %v6170 = vsel %vm6169, 0, %v6168
        %v6171 = vsub.s32 32, %v6170
        %v6172 = vshll.u32 %v6163, %v6170
        %v6173 = vshrl.u32 %v6155, %v6171
        %v6174 = vor.u32 %v6172, %v6173
        %v6175 = vsub.s32 4294967266, %v6170
        %v6176 = vadd.s32 %v6175, 127
        %v6177 = vshll.u32 %v6176, 23
        %v6178 = vor.u32 4788187, %v6177
        %v6179 = vand.u32 2147483647, %v6178
        %v6181 = vcvt.s32.f32 %v6174
        %v6182 = vmul.f32 %v6181, %v6179
        %v6183 = vxor.u32 %v6182, 2147483648
        %v6184 = vsel %vm6063, %v6183, %v6182
        %v6185 = vsub.s32 4, %v6161
        %v6186 = vsel %vm6063, %v6185, %v6161
        %v6187 = vsel %vm6062, %v434, %v6184
        %v6188 = vsel %vm6062, 0, %v6186
        %v6189 = vmul.f32 %v6187, %v6187
        %v6190 = vmul.f32 %v6189, -0.001358992
        %v6191 = vadd.f32 %v6190, 0.041655596
        %v6192 = vmul.f32 %v6189, %v6191
        %v6193 = vadd.f32 %v6192, -0.4999988
        %v6194 = vmul.f32 %v6189, %v6193
        %v6195 = vadd.f32 1.0, %v6194
        %v6196 = vmul.f32 %v6187, %v6187
        %v6197 = vmul.f32 %v6196, -0.00019511016
        %v6198 = vadd.f32 %v6197, 0.008332121
        %v6199 = vmul.f32 %v6196, %v6198
        %v6200 = vadd.f32 %v6199, -0.16666654
        %v6201 = vmul.f32 %v6196, %v6200
        %v6202 = vadd.f32 %v6201, 1.0
        %v6203 = vmul.f32 %v6202, %v6187
        %vm6204 = vweird.f32 %v434
        %v6205 = vand.u32 %v6188, 3
        %vm6206 = vcmp.lt.s32.totalorder %v6205, 2
        %vm6207 = vcmp.eq.s32.totalorder %v6205, 0
        %v6208 = vxor.u32 %v6203, 2147483648
        %v6209 = vsel %vm6207, %v6195, %v6208
        %vm6210 = vcmp.eq.s32.totalorder %v6205, 2
        %v6211 = vxor.u32 %v6195, 2147483648
        %v6212 = vsel %vm6210, %v6211, %v6203
        %v6213 = vsel %vm6206, %v6209, %v6212
        %v6214 = vsel %vm6204, nan, %v6213
        %v6215 = vand.u32 2147483647, %v437
        %vm6216 = vcmp.le.f32.partialorder %v6215, 0.7853982
        %vm6217 = vcmp.lt.s32.totalorder %v437, 0
        %v6218 = vand.u32 %v437, 2139095040
        %v6219 = vshrl.u32 %v6218, 23
        %v6220 = vsub.s32 %v6219, 127
        %v6221 = vand.u32 2147483647, %v437
        %v6222 = vand.u32 %v6221, 8388607
        %v6223 = vor.u32 %v6222, 8388608
        %v6224 = vsub.s32 0, %v6223
        %v6225 = vadd.s32 %v6220, 1
        %vm6226 = vcmp.gt.s32.totalorder %v6225, 0
        %v6227 = vsel %vm6226, %v6225, 0
        %v6228 = vshrl.u32 %v6227, 5
        %v6229 = vand.u32 %v6227, 31
        %v6230 = vsub.s32 32, %v6229
        %v6231 = vshrl.u32 683565275, %v6230
        %v6232 = vshll.u32 683565275, %v6229
        %v6233 = vshrl.u32 2475754826, %v6230
        %v6234 = vor.u32 %v6232, %v6233
        %v6235 = vshll.u32 2475754826, %v6229
        %v6236 = vshrl.u32 2131351028, %v6230
        %v6237 = vor.u32 %v6235, %v6236
        %v6238 = vshll.u32 2131351028, %v6229
        %v6239 = vshrl.u32 2102212464, %v6230
        %v6240 = vor.u32 %v6238, %v6239
        %v6241 = vshll.u32 2102212464, %v6229
        %v6242 = vshrl.u32 920167782, %v6230
        %v6243 = vor.u32 %v6241, %v6242
        %v6244 = vshll.u32 920167782, %v6229
        %v6245 = vshrl.u32 1326507024, %v6230
        %v6246 = vor.u32 %v6244, %v6245
        %vm6247 = vcmp.lt.s32.totalorder %v6228, 1
        %vm6248 = vcmp.lt.s32.totalorder %v6228, 2
        %vm6249 = vcmp.lt.s32.totalorder %v6228, 3
        %vm6250 = vcmp.lt.s32.totalorder %v6228, 4
        %v6251 = vsel %vm6247, %v6231, %v6234
        %v6252 = vsel %vm6250, %v6240, 2102212464
        %v6253 = vsel %vm6249, %v6237, %v6252
        %v6254 = vsel %vm6248, %v6251, %v6253
        %v6255 = vsel %vm6247, %v6234, %v6237
        %v6256 = vsel %vm6250, %v6243, 920167782
        %v6257 = vsel %vm6249, %v6240, %v6256
        %v6258 = vsel %vm6248, %v6255, %v6257
        %v6259 = vsel %vm6247, %v6237, %v6240
        %v6260 = vsel %vm6250, %v6246, 1326507024
        %v6261 = vsel %vm6249, %v6243, %v6260
        %v6262 = vsel %vm6248, %v6259, %v6261
        %v6263 = vshll.u32 %v6223, 8
        %v6264 = vand.u32 %v6263, 65535
        %v6265 = vshrl.u32 %v6263, 16
        %v6266 = vand.u32 %v6262, 65535
        %v6267 = vshrl.u32 %v6262, 16
        %v6268 = vmul.u32 %v6264, %v6266
        %v6269 = vmul.u32 %v6264, %v6267
        %v6270 = vmul.u32 %v6265, %v6266
        %v6271 = vmul.u32 %v6265, %v6267
        %v6272 = vshll.u32 %v6269, 16
        %v6273 = vshrl.u32 %v6269, 16
        %v6274 = vshll.u32 %v6270, 16
        %v6275 = vshrl.u32 %v6270, 16
        %vm6276 = vc.u32 %v6268, %v6272
        %v6277 = vsel %vm6276, 1, 0
        %v6278 = vadd.s32 %v6268, %v6272
        %v6279 = vadd.s32 %v6271, %v6277
        %vm6280 = vc.u32 %v6278, %v6274
        %v6281 = vsel %vm6280, 1, 0
        %v6282 = vadd.s32 %v6278, %v6274
        %v6283 = vadd.s32 %v6279, %v6281
        %v6284 = vadd.s32 %v6283, %v6273
        %v6285 = vadd.s32 %v6284, %v6275
        %v6286 = vand.u32 %v6263, 65535
        %v6287 = vshrl.u32 %v6263, 16
        %v6288 = vand.u32 %v6258, 65535
        %v6289 = vshrl.u32 %v6258, 16
        %v6290 = vmul.u32 %v6286, %v6288
        %v6291 = vmul.u32 %v6286, %v6289
        %v6292 = vmul.u32 %v6287, %v6288
        %v6293 = vmul.u32 %v6287, %v6289
        %v6294 = vshll.u32 %v6291, 16
        %v6295 = vshrl.u32 %v6291, 16
        %v6296 = vshll.u32 %v6292, 16
        %v6297 = vshrl.u32 %v6292, 16
        %vm6298 = vc.u32 %v6290, %v6294
        %v6299 = vsel %vm6298, 1, 0
        %v6300 = vadd.s32 %v6290, %v6294
        %v6301 = vadd.s32 %v6293, %v6299
        %vm6302 = vc.u32 %v6300, %v6296
        %v6303 = vsel %vm6302, 1, 0
        %v6304 = vadd.s32 %v6300, %v6296
        %v6305 = vadd.s32 %v6301, %v6303
        %v6306 = vadd.s32 %v6305, %v6295
        %v6307 = vadd.s32 %v6306, %v6297
        %v6308 = vmul.u32 %v6263, %v6254
        %v6309 = vadd.s32 %v6285, %v6304
        %vm6310 = vc.u32 %v6285, %v6304
        %v6311 = vadd.s32 %v6307, 1
        %v6312 = vsel %vm6310, %v6311, %v6307
        %v6313 = vadd.s32 %v6308, %v6312
        %v6314 = vadd.s32 %v6313, 536870912
        %v6315 = vshrl.u32 %v6314, 30
        %v6316 = vshll.u32 %v6315, 30
        %v6317 = vsub.s32 %v6313, %v6316
        %vm6318 = vcmp.lt.s32.totalorder %v6317, 0
        %v6319 = vsub.s32 0, %v6317
        %v6320 = vsel %vm6318, %v6319, %v6317
        %v6321 = vclz %v6320
        %v6322 = vsub.s32 %v6321, 2
        %vm6323 = vcmp.gt.s32.totalorder 0, %v6322
        %v6324 = vsel %vm6323, 0, %v6322
        %v6325 = vsub.s32 32, %v6324
        %v6326 = vshll.u32 %v6317, %v6324
        %v6327 = vshrl.u32 %v6309, %v6325
        %v6328 = vor.u32 %v6326, %v6327
        %v6329 = vsub.s32 4294967266, %v6324
        %v6330 = vadd.s32 %v6329, 127
        %v6331 = vshll.u32 %v6330, 23
        %v6332 = vor.u32 4788187, %v6331
        %v6333 = vand.u32 2147483647, %v6332
        %v6335 = vcvt.s32.f32 %v6328
        %v6336 = vmul.f32 %v6335, %v6333
        %v6337 = vxor.u32 %v6336, 2147483648
        %v6338 = vsel %vm6217, %v6337, %v6336
        %v6339 = vsub.s32 4, %v6315
        %v6340 = vsel %vm6217, %v6339, %v6315
        %v6341 = vsel %vm6216, %v437, %v6338
        %v6342 = vsel %vm6216, 0, %v6340
        %v6343 = vmul.f32 %v6341, %v6341
        %v6344 = vmul.f32 %v6343, -0.001358992
        %v6345 = vadd.f32 %v6344, 0.041655596
        %v6346 = vmul.f32 %v6343, %v6345
        %v6347 = vadd.f32 %v6346, -0.4999988
        %v6348 = vmul.f32 %v6343, %v6347
        %v6349 = vadd.f32 1.0, %v6348
        %v6350 = vmul.f32 %v6341, %v6341
        %v6351 = vmul.f32 %v6350, -0.00019511016
        %v6352 = vadd.f32 %v6351, 0.008332121
        %v6353 = vmul.f32 %v6350, %v6352
        %v6354 = vadd.f32 %v6353, -0.16666654
        %v6355 = vmul.f32 %v6350, %v6354
        %v6356 = vadd.f32 %v6355, 1.0
        %v6357 = vmul.f32 %v6356, %v6341
        %vm6358 = vweird.f32 %v437
        %v6359 = vand.u32 %v6342, 3
        %vm6360 = vcmp.lt.s32.totalorder %v6359, 2
        %vm6361 = vcmp.eq.s32.totalorder %v6359, 0
        %v6362 = vxor.u32 %v6357, 2147483648
        %v6363 = vsel %vm6361, %v6349, %v6362
        %vm6364 = vcmp.eq.s32.totalorder %v6359, 2
        %v6365 = vxor.u32 %v6349, 2147483648
        %v6366 = vsel %vm6364, %v6365, %v6357
        %v6367 = vsel %vm6360, %v6363, %v6366
        %v6368 = vsel %vm6358, nan, %v6367
        %v6369 = vand.u32 2147483647, %v440
        %vm6370 = vcmp.le.f32.partialorder %v6369, 0.7853982
        %vm6371 = vcmp.lt.s32.totalorder %v440, 0
        %v6372 = vand.u32 %v440, 2139095040
        %v6373 = vshrl.u32 %v6372, 23
        %v6374 = vsub.s32 %v6373, 127
        %v6375 = vand.u32 2147483647, %v440
        %v6376 = vand.u32 %v6375, 8388607
        %v6377 = vor.u32 %v6376, 8388608
        %v6378 = vsub.s32 0, %v6377
        %v6379 = vadd.s32 %v6374, 1
        %vm6380 = vcmp.gt.s32.totalorder %v6379, 0
        %v6381 = vsel %vm6380, %v6379, 0
        %v6382 = vshrl.u32 %v6381, 5
        %v6383 = vand.u32 %v6381, 31
        %v6384 = vsub.s32 32, %v6383
        %v6385 = vshrl.u32 683565275, %v6384
        %v6386 = vshll.u32 683565275, %v6383
        %v6387 = vshrl.u32 2475754826, %v6384
        %v6388 = vor.u32 %v6386, %v6387
        %v6389 = vshll.u32 2475754826, %v6383
        %v6390 = vshrl.u32 2131351028, %v6384
        %v6391 = vor.u32 %v6389, %v6390
        %v6392 = vshll.u32 2131351028, %v6383
        %v6393 = vshrl.u32 2102212464, %v6384
        %v6394 = vor.u32 %v6392, %v6393
        %v6395 = vshll.u32 2102212464, %v6383
        %v6396 = vshrl.u32 920167782, %v6384
        %v6397 = vor.u32 %v6395, %v6396
        %v6398 = vshll.u32 920167782, %v6383
        %v6399 = vshrl.u32 1326507024, %v6384
        %v6400 = vor.u32 %v6398, %v6399
        %vm6401 = vcmp.lt.s32.totalorder %v6382, 1
        %vm6402 = vcmp.lt.s32.totalorder %v6382, 2
        %vm6403 = vcmp.lt.s32.totalorder %v6382, 3
        %vm6404 = vcmp.lt.s32.totalorder %v6382, 4
        %v6405 = vsel %vm6401, %v6385, %v6388
        %v6406 = vsel %vm6404, %v6394, 2102212464
        %v6407 = vsel %vm6403, %v6391, %v6406
        %v6408 = vsel %vm6402, %v6405, %v6407
        %v6409 = vsel %vm6401, %v6388, %v6391
        %v6410 = vsel %vm6404, %v6397, 920167782
        %v6411 = vsel %vm6403, %v6394, %v6410
        %v6412 = vsel %vm6402, %v6409, %v6411
        %v6413 = vsel %vm6401, %v6391, %v6394
        %v6414 = vsel %vm6404, %v6400, 1326507024
        %v6415 = vsel %vm6403, %v6397, %v6414
        %v6416 = vsel %vm6402, %v6413, %v6415
        %v6417 = vshll.u32 %v6377, 8
        %v6418 = vand.u32 %v6417, 65535
        %v6419 = vshrl.u32 %v6417, 16
        %v6420 = vand.u32 %v6416, 65535
        %v6421 = vshrl.u32 %v6416, 16
        %v6422 = vmul.u32 %v6418, %v6420
        %v6423 = vmul.u32 %v6418, %v6421
        %v6424 = vmul.u32 %v6419, %v6420
        %v6425 = vmul.u32 %v6419, %v6421
        %v6426 = vshll.u32 %v6423, 16
        %v6427 = vshrl.u32 %v6423, 16
        %v6428 = vshll.u32 %v6424, 16
        %v6429 = vshrl.u32 %v6424, 16
        %vm6430 = vc.u32 %v6422, %v6426
        %v6431 = vsel %vm6430, 1, 0
        %v6432 = vadd.s32 %v6422, %v6426
        %v6433 = vadd.s32 %v6425, %v6431
        %vm6434 = vc.u32 %v6432, %v6428
        %v6435 = vsel %vm6434, 1, 0
        %v6436 = vadd.s32 %v6432, %v6428
        %v6437 = vadd.s32 %v6433, %v6435
        %v6438 = vadd.s32 %v6437, %v6427
        %v6439 = vadd.s32 %v6438, %v6429
        %v6440 = vand.u32 %v6417, 65535
        %v6441 = vshrl.u32 %v6417, 16
        %v6442 = vand.u32 %v6412, 65535
        %v6443 = vshrl.u32 %v6412, 16
        %v6444 = vmul.u32 %v6440, %v6442
        %v6445 = vmul.u32 %v6440, %v6443
        %v6446 = vmul.u32 %v6441, %v6442
        %v6447 = vmul.u32 %v6441, %v6443
        %v6448 = vshll.u32 %v6445, 16
        %v6449 = vshrl.u32 %v6445, 16
        %v6450 = vshll.u32 %v6446, 16
        %v6451 = vshrl.u32 %v6446, 16
        %vm6452 = vc.u32 %v6444, %v6448
        %v6453 = vsel %vm6452, 1, 0
        %v6454 = vadd.s32 %v6444, %v6448
        %v6455 = vadd.s32 %v6447, %v6453
        %vm6456 = vc.u32 %v6454, %v6450
        %v6457 = vsel %vm6456, 1, 0
        %v6458 = vadd.s32 %v6454, %v6450
        %v6459 = vadd.s32 %v6455, %v6457
        %v6460 = vadd.s32 %v6459, %v6449
        %v6461 = vadd.s32 %v6460, %v6451
        %v6462 = vmul.u32 %v6417, %v6408
        %v6463 = vadd.s32 %v6439, %v6458
        %vm6464 = vc.u32 %v6439, %v6458
        %v6465 = vadd.s32 %v6461, 1
        %v6466 = vsel %vm6464, %v6465, %v6461
        %v6467 = vadd.s32 %v6462, %v6466
        %v6468 = vadd.s32 %v6467, 536870912
        %v6469 = vshrl.u32 %v6468, 30
        %v6470 = vshll.u32 %v6469, 30
        %v6471 = vsub.s32 %v6467, %v6470
        %vm6472 = vcmp.lt.s32.totalorder %v6471, 0
        %v6473 = vsub.s32 0, %v6471
        %v6474 = vsel %vm6472, %v6473, %v6471
        %v6475 = vclz %v6474
        %v6476 = vsub.s32 %v6475, 2
        %vm6477 = vcmp.gt.s32.totalorder 0, %v6476
        %v6478 = vsel %vm6477, 0, %v6476
        %v6479 = vsub.s32 32, %v6478
        %v6480 = vshll.u32 %v6471, %v6478
        %v6481 = vshrl.u32 %v6463, %v6479
        %v6482 = vor.u32 %v6480, %v6481
        %v6483 = vsub.s32 4294967266, %v6478
        %v6484 = vadd.s32 %v6483, 127
        %v6485 = vshll.u32 %v6484, 23
        %v6486 = vor.u32 4788187, %v6485
        %v6487 = vand.u32 2147483647, %v6486
        %v6489 = vcvt.s32.f32 %v6482
        %v6490 = vmul.f32 %v6489, %v6487
        %v6491 = vxor.u32 %v6490, 2147483648
        %v6492 = vsel %vm6371, %v6491, %v6490
        %v6493 = vsub.s32 4, %v6469
        %v6494 = vsel %vm6371, %v6493, %v6469
        %v6495 = vsel %vm6370, %v440, %v6492
        %v6496 = vsel %vm6370, 0, %v6494
        %v6497 = vmul.f32 %v6495, %v6495
        %v6498 = vmul.f32 %v6497, -0.001358992
        %v6499 = vadd.f32 %v6498, 0.041655596
        %v6500 = vmul.f32 %v6497, %v6499
        %v6501 = vadd.f32 %v6500, -0.4999988
        %v6502 = vmul.f32 %v6497, %v6501
        %v6503 = vadd.f32 1.0, %v6502
        %v6504 = vmul.f32 %v6495, %v6495
        %v6505 = vmul.f32 %v6504, -0.00019511016
        %v6506 = vadd.f32 %v6505, 0.008332121
        %v6507 = vmul.f32 %v6504, %v6506
        %v6508 = vadd.f32 %v6507, -0.16666654
        %v6509 = vmul.f32 %v6504, %v6508
        %v6510 = vadd.f32 %v6509, 1.0
        %v6511 = vmul.f32 %v6510, %v6495
        %vm6512 = vweird.f32 %v440
        %v6513 = vand.u32 %v6496, 3
        %vm6514 = vcmp.lt.s32.totalorder %v6513, 2
        %vm6515 = vcmp.eq.s32.totalorder %v6513, 0
        %v6516 = vxor.u32 %v6511, 2147483648
        %v6517 = vsel %vm6515, %v6503, %v6516
        %vm6518 = vcmp.eq.s32.totalorder %v6513, 2
        %v6519 = vxor.u32 %v6503, 2147483648
        %v6520 = vsel %vm6518, %v6519, %v6511
        %v6521 = vsel %vm6514, %v6517, %v6520
        %v6522 = vsel %vm6512, nan, %v6521
        %v6523 = vand.u32 2147483647, %v443
        %vm6524 = vcmp.le.f32.partialorder %v6523, 0.7853982
        %vm6525 = vcmp.lt.s32.totalorder %v443, 0
        %v6526 = vand.u32 %v443, 2139095040
        %v6527 = vshrl.u32 %v6526, 23
        %v6528 = vsub.s32 %v6527, 127
        %v6529 = vand.u32 2147483647, %v443
        %v6530 = vand.u32 %v6529, 8388607
        %v6531 = vor.u32 %v6530, 8388608
        %v6532 = vsub.s32 0, %v6531
        %v6533 = vadd.s32 %v6528, 1
        %vm6534 = vcmp.gt.s32.totalorder %v6533, 0
        %v6535 = vsel %vm6534, %v6533, 0
        %v6536 = vshrl.u32 %v6535, 5
        %v6537 = vand.u32 %v6535, 31
        %v6538 = vsub.s32 32, %v6537
        %v6539 = vshrl.u32 683565275, %v6538
        %v6540 = vshll.u32 683565275, %v6537
        %v6541 = vshrl.u32 2475754826, %v6538
        %v6542 = vor.u32 %v6540, %v6541
        %v6543 = vshll.u32 2475754826, %v6537
        %v6544 = vshrl.u32 2131351028, %v6538
        %v6545 = vor.u32 %v6543, %v6544
        %v6546 = vshll.u32 2131351028, %v6537
        %v6547 = vshrl.u32 2102212464, %v6538
        %v6548 = vor.u32 %v6546, %v6547
        %v6549 = vshll.u32 2102212464, %v6537
        %v6550 = vshrl.u32 920167782, %v6538
        %v6551 = vor.u32 %v6549, %v6550
        %v6552 = vshll.u32 920167782, %v6537
        %v6553 = vshrl.u32 1326507024, %v6538
        %v6554 = vor.u32 %v6552, %v6553
        %vm6555 = vcmp.lt.s32.totalorder %v6536, 1
        %vm6556 = vcmp.lt.s32.totalorder %v6536, 2
        %vm6557 = vcmp.lt.s32.totalorder %v6536, 3
        %vm6558 = vcmp.lt.s32.totalorder %v6536, 4
        %v6559 = vsel %vm6555, %v6539, %v6542
        %v6560 = vsel %vm6558, %v6548, 2102212464
        %v6561 = vsel %vm6557, %v6545, %v6560
        %v6562 = vsel %vm6556, %v6559, %v6561
        %v6563 = vsel %vm6555, %v6542, %v6545
        %v6564 = vsel %vm6558, %v6551, 920167782
        %v6565 = vsel %vm6557, %v6548, %v6564
        %v6566 = vsel %vm6556, %v6563, %v6565
        %v6567 = vsel %vm6555, %v6545, %v6548
        %v6568 = vsel %vm6558, %v6554, 1326507024
        %v6569 = vsel %vm6557, %v6551, %v6568
        %v6570 = vsel %vm6556, %v6567, %v6569
        %v6571 = vshll.u32 %v6531, 8
        %v6572 = vand.u32 %v6571, 65535
        %v6573 = vshrl.u32 %v6571, 16
        %v6574 = vand.u32 %v6570, 65535
        %v6575 = vshrl.u32 %v6570, 16
        %v6576 = vmul.u32 %v6572, %v6574
        %v6577 = vmul.u32 %v6572, %v6575
        %v6578 = vmul.u32 %v6573, %v6574
        %v6579 = vmul.u32 %v6573, %v6575
        %v6580 = vshll.u32 %v6577, 16
        %v6581 = vshrl.u32 %v6577, 16
        %v6582 = vshll.u32 %v6578, 16
        %v6583 = vshrl.u32 %v6578, 16
        %vm6584 = vc.u32 %v6576, %v6580
        %v6585 = vsel %vm6584, 1, 0
        %v6586 = vadd.s32 %v6576, %v6580
        %v6587 = vadd.s32 %v6579, %v6585
        %vm6588 = vc.u32 %v6586, %v6582
        %v6589 = vsel %vm6588, 1, 0
        %v6590 = vadd.s32 %v6586, %v6582
        %v6591 = vadd.s32 %v6587, %v6589
        %v6592 = vadd.s32 %v6591, %v6581
        %v6593 = vadd.s32 %v6592, %v6583
        %v6594 = vand.u32 %v6571, 65535
        %v6595 = vshrl.u32 %v6571, 16
        %v6596 = vand.u32 %v6566, 65535
        %v6597 = vshrl.u32 %v6566, 16
        %v6598 = vmul.u32 %v6594, %v6596
        %v6599 = vmul.u32 %v6594, %v6597
        %v6600 = vmul.u32 %v6595, %v6596
        %v6601 = vmul.u32 %v6595, %v6597
        %v6602 = vshll.u32 %v6599, 16
        %v6603 = vshrl.u32 %v6599, 16
        %v6604 = vshll.u32 %v6600, 16
        %v6605 = vshrl.u32 %v6600, 16
        %vm6606 = vc.u32 %v6598, %v6602
        %v6607 = vsel %vm6606, 1, 0
        %v6608 = vadd.s32 %v6598, %v6602
        %v6609 = vadd.s32 %v6601, %v6607
        %vm6610 = vc.u32 %v6608, %v6604
        %v6611 = vsel %vm6610, 1, 0
        %v6612 = vadd.s32 %v6608, %v6604
        %v6613 = vadd.s32 %v6609, %v6611
        %v6614 = vadd.s32 %v6613, %v6603
        %v6615 = vadd.s32 %v6614, %v6605
        %v6616 = vmul.u32 %v6571, %v6562
        %v6617 = vadd.s32 %v6593, %v6612
        %vm6618 = vc.u32 %v6593, %v6612
        %v6619 = vadd.s32 %v6615, 1
        %v6620 = vsel %vm6618, %v6619, %v6615
        %v6621 = vadd.s32 %v6616, %v6620
        %v6622 = vadd.s32 %v6621, 536870912
        %v6623 = vshrl.u32 %v6622, 30
        %v6624 = vshll.u32 %v6623, 30
        %v6625 = vsub.s32 %v6621, %v6624
        %vm6626 = vcmp.lt.s32.totalorder %v6625, 0
        %v6627 = vsub.s32 0, %v6625
        %v6628 = vsel %vm6626, %v6627, %v6625
        %v6629 = vclz %v6628
        %v6630 = vsub.s32 %v6629, 2
        %vm6631 = vcmp.gt.s32.totalorder 0, %v6630
        %v6632 = vsel %vm6631, 0, %v6630
        %v6633 = vsub.s32 32, %v6632
        %v6634 = vshll.u32 %v6625, %v6632
        %v6635 = vshrl.u32 %v6617, %v6633
        %v6636 = vor.u32 %v6634, %v6635
        %v6637 = vsub.s32 4294967266, %v6632
        %v6638 = vadd.s32 %v6637, 127
        %v6639 = vshll.u32 %v6638, 23
        %v6640 = vor.u32 4788187, %v6639
        %v6641 = vand.u32 2147483647, %v6640
        %v6643 = vcvt.s32.f32 %v6636
        %v6644 = vmul.f32 %v6643, %v6641
        %v6645 = vxor.u32 %v6644, 2147483648
        %v6646 = vsel %vm6525, %v6645, %v6644
        %v6647 = vsub.s32 4, %v6623
        %v6648 = vsel %vm6525, %v6647, %v6623
        %v6649 = vsel %vm6524, %v443, %v6646
        %v6650 = vsel %vm6524, 0, %v6648
        %v6651 = vmul.f32 %v6649, %v6649
        %v6652 = vmul.f32 %v6651, -0.001358992
        %v6653 = vadd.f32 %v6652, 0.041655596
        %v6654 = vmul.f32 %v6651, %v6653
        %v6655 = vadd.f32 %v6654, -0.4999988
        %v6656 = vmul.f32 %v6651, %v6655
        %v6657 = vadd.f32 1.0, %v6656
        %v6658 = vmul.f32 %v6649, %v6649
        %v6659 = vmul.f32 %v6658, -0.00019511016
        %v6660 = vadd.f32 %v6659, 0.008332121
        %v6661 = vmul.f32 %v6658, %v6660
        %v6662 = vadd.f32 %v6661, -0.16666654
        %v6663 = vmul.f32 %v6658, %v6662
        %v6664 = vadd.f32 %v6663, 1.0
        %v6665 = vmul.f32 %v6664, %v6649
        %vm6666 = vweird.f32 %v443
        %v6667 = vand.u32 %v6650, 3
        %vm6668 = vcmp.lt.s32.totalorder %v6667, 2
        %vm6669 = vcmp.eq.s32.totalorder %v6667, 0
        %v6670 = vxor.u32 %v6665, 2147483648
        %v6671 = vsel %vm6669, %v6657, %v6670
        %vm6672 = vcmp.eq.s32.totalorder %v6667, 2
        %v6673 = vxor.u32 %v6657, 2147483648
        %v6674 = vsel %vm6672, %v6673, %v6665
        %v6675 = vsel %vm6668, %v6671, %v6674
        %v6676 = vsel %vm6666, nan, %v6675
        %v6677 = vand.u32 2147483647, %v446
        %vm6678 = vcmp.le.f32.partialorder %v6677, 0.7853982
        %vm6679 = vcmp.lt.s32.totalorder %v446, 0
        %v6680 = vand.u32 %v446, 2139095040
        %v6681 = vshrl.u32 %v6680, 23
        %v6682 = vsub.s32 %v6681, 127
        %v6683 = vand.u32 2147483647, %v446
        %v6684 = vand.u32 %v6683, 8388607
        %v6685 = vor.u32 %v6684, 8388608
        %v6686 = vsub.s32 0, %v6685
        %v6687 = vadd.s32 %v6682, 1
        %vm6688 = vcmp.gt.s32.totalorder %v6687, 0
        %v6689 = vsel %vm6688, %v6687, 0
        %v6690 = vshrl.u32 %v6689, 5
        %v6691 = vand.u32 %v6689, 31
        %v6692 = vsub.s32 32, %v6691
        %v6693 = vshrl.u32 683565275, %v6692
        %v6694 = vshll.u32 683565275, %v6691
        %v6695 = vshrl.u32 2475754826, %v6692
        %v6696 = vor.u32 %v6694, %v6695
        %v6697 = vshll.u32 2475754826, %v6691
        %v6698 = vshrl.u32 2131351028, %v6692
        %v6699 = vor.u32 %v6697, %v6698
        %v6700 = vshll.u32 2131351028, %v6691
        %v6701 = vshrl.u32 2102212464, %v6692
        %v6702 = vor.u32 %v6700, %v6701
        %v6703 = vshll.u32 2102212464, %v6691
        %v6704 = vshrl.u32 920167782, %v6692
        %v6705 = vor.u32 %v6703, %v6704
        %v6706 = vshll.u32 920167782, %v6691
        %v6707 = vshrl.u32 1326507024, %v6692
        %v6708 = vor.u32 %v6706, %v6707
        %vm6709 = vcmp.lt.s32.totalorder %v6690, 1
        %vm6710 = vcmp.lt.s32.totalorder %v6690, 2
        %vm6711 = vcmp.lt.s32.totalorder %v6690, 3
        %vm6712 = vcmp.lt.s32.totalorder %v6690, 4
        %v6713 = vsel %vm6709, %v6693, %v6696
        %v6714 = vsel %vm6712, %v6702, 2102212464
        %v6715 = vsel %vm6711, %v6699, %v6714
        %v6716 = vsel %vm6710, %v6713, %v6715
        %v6717 = vsel %vm6709, %v6696, %v6699
        %v6718 = vsel %vm6712, %v6705, 920167782
        %v6719 = vsel %vm6711, %v6702, %v6718
        %v6720 = vsel %vm6710, %v6717, %v6719
        %v6721 = vsel %vm6709, %v6699, %v6702
        %v6722 = vsel %vm6712, %v6708, 1326507024
        %v6723 = vsel %vm6711, %v6705, %v6722
        %v6724 = vsel %vm6710, %v6721, %v6723
        %v6725 = vshll.u32 %v6685, 8
        %v6726 = vand.u32 %v6725, 65535
        %v6727 = vshrl.u32 %v6725, 16
        %v6728 = vand.u32 %v6724, 65535
        %v6729 = vshrl.u32 %v6724, 16
        %v6730 = vmul.u32 %v6726, %v6728
        %v6731 = vmul.u32 %v6726, %v6729
        %v6732 = vmul.u32 %v6727, %v6728
        %v6733 = vmul.u32 %v6727, %v6729
        %v6734 = vshll.u32 %v6731, 16
        %v6735 = vshrl.u32 %v6731, 16
        %v6736 = vshll.u32 %v6732, 16
        %v6737 = vshrl.u32 %v6732, 16
        %vm6738 = vc.u32 %v6730, %v6734
        %v6739 = vsel %vm6738, 1, 0
        %v6740 = vadd.s32 %v6730, %v6734
        %v6741 = vadd.s32 %v6733, %v6739
        %vm6742 = vc.u32 %v6740, %v6736
        %v6743 = vsel %vm6742, 1, 0
        %v6744 = vadd.s32 %v6740, %v6736
        %v6745 = vadd.s32 %v6741, %v6743
        %v6746 = vadd.s32 %v6745, %v6735
        %v6747 = vadd.s32 %v6746, %v6737
        %v6748 = vand.u32 %v6725, 65535
        %v6749 = vshrl.u32 %v6725, 16
        %v6750 = vand.u32 %v6720, 65535
        %v6751 = vshrl.u32 %v6720, 16
        %v6752 = vmul.u32 %v6748, %v6750
        %v6753 = vmul.u32 %v6748, %v6751
        %v6754 = vmul.u32 %v6749, %v6750
        %v6755 = vmul.u32 %v6749, %v6751
        %v6756 = vshll.u32 %v6753, 16
        %v6757 = vshrl.u32 %v6753, 16
        %v6758 = vshll.u32 %v6754, 16
        %v6759 = vshrl.u32 %v6754, 16
        %vm6760 = vc.u32 %v6752, %v6756
        %v6761 = vsel %vm6760, 1, 0
        %v6762 = vadd.s32 %v6752, %v6756
        %v6763 = vadd.s32 %v6755, %v6761
        %vm6764 = vc.u32 %v6762, %v6758
        %v6765 = vsel %vm6764, 1, 0
        %v6766 = vadd.s32 %v6762, %v6758
        %v6767 = vadd.s32 %v6763, %v6765
        %v6768 = vadd.s32 %v6767, %v6757
        %v6769 = vadd.s32 %v6768, %v6759
        %v6770 = vmul.u32 %v6725, %v6716
        %v6771 = vadd.s32 %v6747, %v6766
        %vm6772 = vc.u32 %v6747, %v6766
        %v6773 = vadd.s32 %v6769, 1
        %v6774 = vsel %vm6772, %v6773, %v6769
        %v6775 = vadd.s32 %v6770, %v6774
        %v6776 = vadd.s32 %v6775, 536870912
        %v6777 = vshrl.u32 %v6776, 30
        %v6778 = vshll.u32 %v6777, 30
        %v6779 = vsub.s32 %v6775, %v6778
        %vm6780 = vcmp.lt.s32.totalorder %v6779, 0
        %v6781 = vsub.s32 0, %v6779
        %v6782 = vsel %vm6780, %v6781, %v6779
        %v6783 = vclz %v6782
        %v6784 = vsub.s32 %v6783, 2
        %vm6785 = vcmp.gt.s32.totalorder 0, %v6784
        %v6786 = vsel %vm6785, 0, %v6784
        %v6787 = vsub.s32 32, %v6786
        %v6788 = vshll.u32 %v6779, %v6786
        %v6789 = vshrl.u32 %v6771, %v6787
        %v6790 = vor.u32 %v6788, %v6789
        %v6791 = vsub.s32 4294967266, %v6786
        %v6792 = vadd.s32 %v6791, 127
        %v6793 = vshll.u32 %v6792, 23
        %v6794 = vor.u32 4788187, %v6793
        %v6795 = vand.u32 2147483647, %v6794
        %v6797 = vcvt.s32.f32 %v6790
        %v6798 = vmul.f32 %v6797, %v6795
        %v6799 = vxor.u32 %v6798, 2147483648
        %v6800 = vsel %vm6679, %v6799, %v6798
        %v6801 = vsub.s32 4, %v6777
        %v6802 = vsel %vm6679, %v6801, %v6777
        %v6803 = vsel %vm6678, %v446, %v6800
        %v6804 = vsel %vm6678, 0, %v6802
        %v6805 = vmul.f32 %v6803, %v6803
        %v6806 = vmul.f32 %v6805, -0.001358992
        %v6807 = vadd.f32 %v6806, 0.041655596
        %v6808 = vmul.f32 %v6805, %v6807
        %v6809 = vadd.f32 %v6808, -0.4999988
        %v6810 = vmul.f32 %v6805, %v6809
        %v6811 = vadd.f32 1.0, %v6810
        %v6812 = vmul.f32 %v6803, %v6803
        %v6813 = vmul.f32 %v6812, -0.00019511016
        %v6814 = vadd.f32 %v6813, 0.008332121
        %v6815 = vmul.f32 %v6812, %v6814
        %v6816 = vadd.f32 %v6815, -0.16666654
        %v6817 = vmul.f32 %v6812, %v6816
        %v6818 = vadd.f32 %v6817, 1.0
        %v6819 = vmul.f32 %v6818, %v6803
        %vm6820 = vweird.f32 %v446
        %v6821 = vand.u32 %v6804, 3
        %vm6822 = vcmp.lt.s32.totalorder %v6821, 2
        %vm6823 = vcmp.eq.s32.totalorder %v6821, 0
        %v6824 = vxor.u32 %v6819, 2147483648
        %v6825 = vsel %vm6823, %v6811, %v6824
        %vm6826 = vcmp.eq.s32.totalorder %v6821, 2
        %v6827 = vxor.u32 %v6811, 2147483648
        %v6828 = vsel %vm6826, %v6827, %v6819
        %v6829 = vsel %vm6822, %v6825, %v6828
        %v6830 = vsel %vm6820, nan, %v6829
        %v6831 = vand.u32 2147483647, %v449
        %vm6832 = vcmp.le.f32.partialorder %v6831, 0.7853982
        %vm6833 = vcmp.lt.s32.totalorder %v449, 0
        %v6834 = vand.u32 %v449, 2139095040
        %v6835 = vshrl.u32 %v6834, 23
        %v6836 = vsub.s32 %v6835, 127
        %v6837 = vand.u32 2147483647, %v449
        %v6838 = vand.u32 %v6837, 8388607
        %v6839 = vor.u32 %v6838, 8388608
        %v6840 = vsub.s32 0, %v6839
        %v6841 = vadd.s32 %v6836, 1
        %vm6842 = vcmp.gt.s32.totalorder %v6841, 0
        %v6843 = vsel %vm6842, %v6841, 0
        %v6844 = vshrl.u32 %v6843, 5
        %v6845 = vand.u32 %v6843, 31
        %v6846 = vsub.s32 32, %v6845
        %v6847 = vshrl.u32 683565275, %v6846
        %v6848 = vshll.u32 683565275, %v6845
        %v6849 = vshrl.u32 2475754826, %v6846
        %v6850 = vor.u32 %v6848, %v6849
        %v6851 = vshll.u32 2475754826, %v6845
        %v6852 = vshrl.u32 2131351028, %v6846
        %v6853 = vor.u32 %v6851, %v6852
        %v6854 = vshll.u32 2131351028, %v6845
        %v6855 = vshrl.u32 2102212464, %v6846
        %v6856 = vor.u32 %v6854, %v6855
        %v6857 = vshll.u32 2102212464, %v6845
        %v6858 = vshrl.u32 920167782, %v6846
        %v6859 = vor.u32 %v6857, %v6858
        %v6860 = vshll.u32 920167782, %v6845
        %v6861 = vshrl.u32 1326507024, %v6846
        %v6862 = vor.u32 %v6860, %v6861
        %vm6863 = vcmp.lt.s32.totalorder %v6844, 1
        %vm6864 = vcmp.lt.s32.totalorder %v6844, 2
        %vm6865 = vcmp.lt.s32.totalorder %v6844, 3
        %vm6866 = vcmp.lt.s32.totalorder %v6844, 4
        %v6867 = vsel %vm6863, %v6847, %v6850
        %v6868 = vsel %vm6866, %v6856, 2102212464
        %v6869 = vsel %vm6865, %v6853, %v6868
        %v6870 = vsel %vm6864, %v6867, %v6869
        %v6871 = vsel %vm6863, %v6850, %v6853
        %v6872 = vsel %vm6866, %v6859, 920167782
        %v6873 = vsel %vm6865, %v6856, %v6872
        %v6874 = vsel %vm6864, %v6871, %v6873
        %v6875 = vsel %vm6863, %v6853, %v6856
        %v6876 = vsel %vm6866, %v6862, 1326507024
        %v6877 = vsel %vm6865, %v6859, %v6876
        %v6878 = vsel %vm6864, %v6875, %v6877
        %v6879 = vshll.u32 %v6839, 8
        %v6880 = vand.u32 %v6879, 65535
        %v6881 = vshrl.u32 %v6879, 16
        %v6882 = vand.u32 %v6878, 65535
        %v6883 = vshrl.u32 %v6878, 16
        %v6884 = vmul.u32 %v6880, %v6882
        %v6885 = vmul.u32 %v6880, %v6883
        %v6886 = vmul.u32 %v6881, %v6882
        %v6887 = vmul.u32 %v6881, %v6883
        %v6888 = vshll.u32 %v6885, 16
        %v6889 = vshrl.u32 %v6885, 16
        %v6890 = vshll.u32 %v6886, 16
        %v6891 = vshrl.u32 %v6886, 16
        %vm6892 = vc.u32 %v6884, %v6888
        %v6893 = vsel %vm6892, 1, 0
        %v6894 = vadd.s32 %v6884, %v6888
        %v6895 = vadd.s32 %v6887, %v6893
        %vm6896 = vc.u32 %v6894, %v6890
        %v6897 = vsel %vm6896, 1, 0
        %v6898 = vadd.s32 %v6894, %v6890
        %v6899 = vadd.s32 %v6895, %v6897
        %v6900 = vadd.s32 %v6899, %v6889
        %v6901 = vadd.s32 %v6900, %v6891
        %v6902 = vand.u32 %v6879, 65535
        %v6903 = vshrl.u32 %v6879, 16
        %v6904 = vand.u32 %v6874, 65535
        %v6905 = vshrl.u32 %v6874, 16
        %v6906 = vmul.u32 %v6902, %v6904
        %v6907 = vmul.u32 %v6902, %v6905
        %v6908 = vmul.u32 %v6903, %v6904
        %v6909 = vmul.u32 %v6903, %v6905
        %v6910 = vshll.u32 %v6907, 16
        %v6911 = vshrl.u32 %v6907, 16
        %v6912 = vshll.u32 %v6908, 16
        %v6913 = vshrl.u32 %v6908, 16
        %vm6914 = vc.u32 %v6906, %v6910
        %v6915 = vsel %vm6914, 1, 0
        %v6916 = vadd.s32 %v6906, %v6910
        %v6917 = vadd.s32 %v6909, %v6915
        %vm6918 = vc.u32 %v6916, %v6912
        %v6919 = vsel %vm6918, 1, 0
        %v6920 = vadd.s32 %v6916, %v6912
        %v6921 = vadd.s32 %v6917, %v6919
        %v6922 = vadd.s32 %v6921, %v6911
        %v6923 = vadd.s32 %v6922, %v6913
        %v6924 = vmul.u32 %v6879, %v6870
        %v6925 = vadd.s32 %v6901, %v6920
        %vm6926 = vc.u32 %v6901, %v6920
        %v6927 = vadd.s32 %v6923, 1
        %v6928 = vsel %vm6926, %v6927, %v6923
        %v6929 = vadd.s32 %v6924, %v6928
        %v6930 = vadd.s32 %v6929, 536870912
        %v6931 = vshrl.u32 %v6930, 30
        %v6932 = vshll.u32 %v6931, 30
        %v6933 = vsub.s32 %v6929, %v6932
        %vm6934 = vcmp.lt.s32.totalorder %v6933, 0
        %v6935 = vsub.s32 0, %v6933
        %v6936 = vsel %vm6934, %v6935, %v6933
        %v6937 = vclz %v6936
        %v6938 = vsub.s32 %v6937, 2
        %vm6939 = vcmp.gt.s32.totalorder 0, %v6938
        %v6940 = vsel %vm6939, 0, %v6938
        %v6941 = vsub.s32 32, %v6940
        %v6942 = vshll.u32 %v6933, %v6940
        %v6943 = vshrl.u32 %v6925, %v6941
        %v6944 = vor.u32 %v6942, %v6943
        %v6945 = vsub.s32 4294967266, %v6940
        %v6946 = vadd.s32 %v6945, 127
        %v6947 = vshll.u32 %v6946, 23
        %v6948 = vor.u32 4788187, %v6947
        %v6949 = vand.u32 2147483647, %v6948
        %v6951 = vcvt.s32.f32 %v6944
        %v6952 = vmul.f32 %v6951, %v6949
        %v6953 = vxor.u32 %v6952, 2147483648
        %v6954 = vsel %vm6833, %v6953, %v6952
        %v6955 = vsub.s32 4, %v6931
        %v6956 = vsel %vm6833, %v6955, %v6931
        %v6957 = vsel %vm6832, %v449, %v6954
        %v6958 = vsel %vm6832, 0, %v6956
        %v6959 = vmul.f32 %v6957, %v6957
        %v6960 = vmul.f32 %v6959, -0.001358992
        %v6961 = vadd.f32 %v6960, 0.041655596
        %v6962 = vmul.f32 %v6959, %v6961
        %v6963 = vadd.f32 %v6962, -0.4999988
        %v6964 = vmul.f32 %v6959, %v6963
        %v6965 = vadd.f32 1.0, %v6964
        %v6966 = vmul.f32 %v6957, %v6957
        %v6967 = vmul.f32 %v6966, -0.00019511016
        %v6968 = vadd.f32 %v6967, 0.008332121
        %v6969 = vmul.f32 %v6966, %v6968
        %v6970 = vadd.f32 %v6969, -0.16666654
        %v6971 = vmul.f32 %v6966, %v6970
        %v6972 = vadd.f32 %v6971, 1.0
        %v6973 = vmul.f32 %v6972, %v6957
        %vm6974 = vweird.f32 %v449
        %v6975 = vand.u32 %v6958, 3
        %vm6976 = vcmp.lt.s32.totalorder %v6975, 2
        %vm6977 = vcmp.eq.s32.totalorder %v6975, 0
        %v6978 = vxor.u32 %v6973, 2147483648
        %v6979 = vsel %vm6977, %v6965, %v6978
        %vm6980 = vcmp.eq.s32.totalorder %v6975, 2
        %v6981 = vxor.u32 %v6965, 2147483648
        %v6982 = vsel %vm6980, %v6981, %v6973
        %v6983 = vsel %vm6976, %v6979, %v6982
        %v6984 = vsel %vm6974, nan, %v6983
        %v6985 = vand.u32 2147483647, %v452
        %vm6986 = vcmp.le.f32.partialorder %v6985, 0.7853982
        %vm6987 = vcmp.lt.s32.totalorder %v452, 0
        %v6988 = vand.u32 %v452, 2139095040
        %v6989 = vshrl.u32 %v6988, 23
        %v6990 = vsub.s32 %v6989, 127
        %v6991 = vand.u32 2147483647, %v452
        %v6992 = vand.u32 %v6991, 8388607
        %v6993 = vor.u32 %v6992, 8388608
        %v6994 = vsub.s32 0, %v6993
        %v6995 = vadd.s32 %v6990, 1
        %vm6996 = vcmp.gt.s32.totalorder %v6995, 0
        %v6997 = vsel %vm6996, %v6995, 0
        %v6998 = vshrl.u32 %v6997, 5
        %v6999 = vand.u32 %v6997, 31
        %v7000 = vsub.s32 32, %v6999
        %v7001 = vshrl.u32 683565275, %v7000
        %v7002 = vshll.u32 683565275, %v6999
        %v7003 = vshrl.u32 2475754826, %v7000
        %v7004 = vor.u32 %v7002, %v7003
        %v7005 = vshll.u32 2475754826, %v6999
        %v7006 = vshrl.u32 2131351028, %v7000
        %v7007 = vor.u32 %v7005, %v7006
        %v7008 = vshll.u32 2131351028, %v6999
        %v7009 = vshrl.u32 2102212464, %v7000
        %v7010 = vor.u32 %v7008, %v7009
        %v7011 = vshll.u32 2102212464, %v6999
        %v7012 = vshrl.u32 920167782, %v7000
        %v7013 = vor.u32 %v7011, %v7012
        %v7014 = vshll.u32 920167782, %v6999
        %v7015 = vshrl.u32 1326507024, %v7000
        %v7016 = vor.u32 %v7014, %v7015
        %vm7017 = vcmp.lt.s32.totalorder %v6998, 1
        %vm7018 = vcmp.lt.s32.totalorder %v6998, 2
        %vm7019 = vcmp.lt.s32.totalorder %v6998, 3
        %vm7020 = vcmp.lt.s32.totalorder %v6998, 4
        %v7021 = vsel %vm7017, %v7001, %v7004
        %v7022 = vsel %vm7020, %v7010, 2102212464
        %v7023 = vsel %vm7019, %v7007, %v7022
        %v7024 = vsel %vm7018, %v7021, %v7023
        %v7025 = vsel %vm7017, %v7004, %v7007
        %v7026 = vsel %vm7020, %v7013, 920167782
        %v7027 = vsel %vm7019, %v7010, %v7026
        %v7028 = vsel %vm7018, %v7025, %v7027
        %v7029 = vsel %vm7017, %v7007, %v7010
        %v7030 = vsel %vm7020, %v7016, 1326507024
        %v7031 = vsel %vm7019, %v7013, %v7030
        %v7032 = vsel %vm7018, %v7029, %v7031
        %v7033 = vshll.u32 %v6993, 8
        %v7034 = vand.u32 %v7033, 65535
        %v7035 = vshrl.u32 %v7033, 16
        %v7036 = vand.u32 %v7032, 65535
        %v7037 = vshrl.u32 %v7032, 16
        %v7038 = vmul.u32 %v7034, %v7036
        %v7039 = vmul.u32 %v7034, %v7037
        %v7040 = vmul.u32 %v7035, %v7036
        %v7041 = vmul.u32 %v7035, %v7037
        %v7042 = vshll.u32 %v7039, 16
        %v7043 = vshrl.u32 %v7039, 16
        %v7044 = vshll.u32 %v7040, 16
        %v7045 = vshrl.u32 %v7040, 16
        %vm7046 = vc.u32 %v7038, %v7042
        %v7047 = vsel %vm7046, 1, 0
        %v7048 = vadd.s32 %v7038, %v7042
        %v7049 = vadd.s32 %v7041, %v7047
        %vm7050 = vc.u32 %v7048, %v7044
        %v7051 = vsel %vm7050, 1, 0
        %v7052 = vadd.s32 %v7048, %v7044
        %v7053 = vadd.s32 %v7049, %v7051
        %v7054 = vadd.s32 %v7053, %v7043
        %v7055 = vadd.s32 %v7054, %v7045
        %v7056 = vand.u32 %v7033, 65535
        %v7057 = vshrl.u32 %v7033, 16
        %v7058 = vand.u32 %v7028, 65535
        %v7059 = vshrl.u32 %v7028, 16
        %v7060 = vmul.u32 %v7056, %v7058
        %v7061 = vmul.u32 %v7056, %v7059
        %v7062 = vmul.u32 %v7057, %v7058
        %v7063 = vmul.u32 %v7057, %v7059
        %v7064 = vshll.u32 %v7061, 16
        %v7065 = vshrl.u32 %v7061, 16
        %v7066 = vshll.u32 %v7062, 16
        %v7067 = vshrl.u32 %v7062, 16
        %vm7068 = vc.u32 %v7060, %v7064
        %v7069 = vsel %vm7068, 1, 0
        %v7070 = vadd.s32 %v7060, %v7064
        %v7071 = vadd.s32 %v7063, %v7069
        %vm7072 = vc.u32 %v7070, %v7066
        %v7073 = vsel %vm7072, 1, 0
        %v7074 = vadd.s32 %v7070, %v7066
        %v7075 = vadd.s32 %v7071, %v7073
        %v7076 = vadd.s32 %v7075, %v7065
        %v7077 = vadd.s32 %v7076, %v7067
        %v7078 = vmul.u32 %v7033, %v7024
        %v7079 = vadd.s32 %v7055, %v7074
        %vm7080 = vc.u32 %v7055, %v7074
        %v7081 = vadd.s32 %v7077, 1
        %v7082 = vsel %vm7080, %v7081, %v7077
        %v7083 = vadd.s32 %v7078, %v7082
        %v7084 = vadd.s32 %v7083, 536870912
        %v7085 = vshrl.u32 %v7084, 30
        %v7086 = vshll.u32 %v7085, 30
        %v7087 = vsub.s32 %v7083, %v7086
        %vm7088 = vcmp.lt.s32.totalorder %v7087, 0
        %v7089 = vsub.s32 0, %v7087
        %v7090 = vsel %vm7088, %v7089, %v7087
        %v7091 = vclz %v7090
        %v7092 = vsub.s32 %v7091, 2
        %vm7093 = vcmp.gt.s32.totalorder 0, %v7092
        %v7094 = vsel %vm7093, 0, %v7092
        %v7095 = vsub.s32 32, %v7094
        %v7096 = vshll.u32 %v7087, %v7094
        %v7097 = vshrl.u32 %v7079, %v7095
        %v7098 = vor.u32 %v7096, %v7097
        %v7099 = vsub.s32 4294967266, %v7094
        %v7100 = vadd.s32 %v7099, 127
        %v7101 = vshll.u32 %v7100, 23
        %v7102 = vor.u32 4788187, %v7101
        %v7103 = vand.u32 2147483647, %v7102
        %v7105 = vcvt.s32.f32 %v7098
        %v7106 = vmul.f32 %v7105, %v7103
        %v7107 = vxor.u32 %v7106, 2147483648
        %v7108 = vsel %vm6987, %v7107, %v7106
        %v7109 = vsub.s32 4, %v7085
        %v7110 = vsel %vm6987, %v7109, %v7085
        %v7111 = vsel %vm6986, %v452, %v7108
        %v7112 = vsel %vm6986, 0, %v7110
        %v7113 = vmul.f32 %v7111, %v7111
        %v7114 = vmul.f32 %v7113, -0.001358992
        %v7115 = vadd.f32 %v7114, 0.041655596
        %v7116 = vmul.f32 %v7113, %v7115
        %v7117 = vadd.f32 %v7116, -0.4999988
        %v7118 = vmul.f32 %v7113, %v7117
        %v7119 = vadd.f32 1.0, %v7118
        %v7120 = vmul.f32 %v7111, %v7111
        %v7121 = vmul.f32 %v7120, -0.00019511016
        %v7122 = vadd.f32 %v7121, 0.008332121
        %v7123 = vmul.f32 %v7120, %v7122
        %v7124 = vadd.f32 %v7123, -0.16666654
        %v7125 = vmul.f32 %v7120, %v7124
        %v7126 = vadd.f32 %v7125, 1.0
        %v7127 = vmul.f32 %v7126, %v7111
        %vm7128 = vweird.f32 %v452
        %v7129 = vand.u32 %v7112, 3
        %vm7130 = vcmp.lt.s32.totalorder %v7129, 2
        %vm7131 = vcmp.eq.s32.totalorder %v7129, 0
        %v7132 = vxor.u32 %v7127, 2147483648
        %v7133 = vsel %vm7131, %v7119, %v7132
        %vm7134 = vcmp.eq.s32.totalorder %v7129, 2
        %v7135 = vxor.u32 %v7119, 2147483648
        %v7136 = vsel %vm7134, %v7135, %v7127
        %v7137 = vsel %vm7130, %v7133, %v7136
        %v7138 = vsel %vm7128, nan, %v7137
        %v7139 = vand.u32 2147483647, %v455
        %vm7140 = vcmp.le.f32.partialorder %v7139, 0.7853982
        %vm7141 = vcmp.lt.s32.totalorder %v455, 0
        %v7142 = vand.u32 %v455, 2139095040
        %v7143 = vshrl.u32 %v7142, 23
        %v7144 = vsub.s32 %v7143, 127
        %v7145 = vand.u32 2147483647, %v455
        %v7146 = vand.u32 %v7145, 8388607
        %v7147 = vor.u32 %v7146, 8388608
        %v7148 = vsub.s32 0, %v7147
        %v7149 = vadd.s32 %v7144, 1
        %vm7150 = vcmp.gt.s32.totalorder %v7149, 0
        %v7151 = vsel %vm7150, %v7149, 0
        %v7152 = vshrl.u32 %v7151, 5
        %v7153 = vand.u32 %v7151, 31
        %v7154 = vsub.s32 32, %v7153
        %v7155 = vshrl.u32 683565275, %v7154
        %v7156 = vshll.u32 683565275, %v7153
        %v7157 = vshrl.u32 2475754826, %v7154
        %v7158 = vor.u32 %v7156, %v7157
        %v7159 = vshll.u32 2475754826, %v7153
        %v7160 = vshrl.u32 2131351028, %v7154
        %v7161 = vor.u32 %v7159, %v7160
        %v7162 = vshll.u32 2131351028, %v7153
        %v7163 = vshrl.u32 2102212464, %v7154
        %v7164 = vor.u32 %v7162, %v7163
        %v7165 = vshll.u32 2102212464, %v7153
        %v7166 = vshrl.u32 920167782, %v7154
        %v7167 = vor.u32 %v7165, %v7166
        %v7168 = vshll.u32 920167782, %v7153
        %v7169 = vshrl.u32 1326507024, %v7154
        %v7170 = vor.u32 %v7168, %v7169
        %vm7171 = vcmp.lt.s32.totalorder %v7152, 1
        %vm7172 = vcmp.lt.s32.totalorder %v7152, 2
        %vm7173 = vcmp.lt.s32.totalorder %v7152, 3
        %vm7174 = vcmp.lt.s32.totalorder %v7152, 4
        %v7175 = vsel %vm7171, %v7155, %v7158
        %v7176 = vsel %vm7174, %v7164, 2102212464
        %v7177 = vsel %vm7173, %v7161, %v7176
        %v7178 = vsel %vm7172, %v7175, %v7177
        %v7179 = vsel %vm7171, %v7158, %v7161
        %v7180 = vsel %vm7174, %v7167, 920167782
        %v7181 = vsel %vm7173, %v7164, %v7180
        %v7182 = vsel %vm7172, %v7179, %v7181
        %v7183 = vsel %vm7171, %v7161, %v7164
        %v7184 = vsel %vm7174, %v7170, 1326507024
        %v7185 = vsel %vm7173, %v7167, %v7184
        %v7186 = vsel %vm7172, %v7183, %v7185
        %v7187 = vshll.u32 %v7147, 8
        %v7188 = vand.u32 %v7187, 65535
        %v7189 = vshrl.u32 %v7187, 16
        %v7190 = vand.u32 %v7186, 65535
        %v7191 = vshrl.u32 %v7186, 16
        %v7192 = vmul.u32 %v7188, %v7190
        %v7193 = vmul.u32 %v7188, %v7191
        %v7194 = vmul.u32 %v7189, %v7190
        %v7195 = vmul.u32 %v7189, %v7191
        %v7196 = vshll.u32 %v7193, 16
        %v7197 = vshrl.u32 %v7193, 16
        %v7198 = vshll.u32 %v7194, 16
        %v7199 = vshrl.u32 %v7194, 16
        %vm7200 = vc.u32 %v7192, %v7196
        %v7201 = vsel %vm7200, 1, 0
        %v7202 = vadd.s32 %v7192, %v7196
        %v7203 = vadd.s32 %v7195, %v7201
        %vm7204 = vc.u32 %v7202, %v7198
        %v7205 = vsel %vm7204, 1, 0
        %v7206 = vadd.s32 %v7202, %v7198
        %v7207 = vadd.s32 %v7203, %v7205
        %v7208 = vadd.s32 %v7207, %v7197
        %v7209 = vadd.s32 %v7208, %v7199
        %v7210 = vand.u32 %v7187, 65535
        %v7211 = vshrl.u32 %v7187, 16
        %v7212 = vand.u32 %v7182, 65535
        %v7213 = vshrl.u32 %v7182, 16
        %v7214 = vmul.u32 %v7210, %v7212
        %v7215 = vmul.u32 %v7210, %v7213
        %v7216 = vmul.u32 %v7211, %v7212
        %v7217 = vmul.u32 %v7211, %v7213
        %v7218 = vshll.u32 %v7215, 16
        %v7219 = vshrl.u32 %v7215, 16
        %v7220 = vshll.u32 %v7216, 16
        %v7221 = vshrl.u32 %v7216, 16
        %vm7222 = vc.u32 %v7214, %v7218
        %v7223 = vsel %vm7222, 1, 0
        %v7224 = vadd.s32 %v7214, %v7218
        %v7225 = vadd.s32 %v7217, %v7223
        %vm7226 = vc.u32 %v7224, %v7220
        %v7227 = vsel %vm7226, 1, 0
        %v7228 = vadd.s32 %v7224, %v7220
        %v7229 = vadd.s32 %v7225, %v7227
        %v7230 = vadd.s32 %v7229, %v7219
        %v7231 = vadd.s32 %v7230, %v7221
        %v7232 = vmul.u32 %v7187, %v7178
        %v7233 = vadd.s32 %v7209, %v7228
        %vm7234 = vc.u32 %v7209, %v7228
        %v7235 = vadd.s32 %v7231, 1
        %v7236 = vsel %vm7234, %v7235, %v7231
        %v7237 = vadd.s32 %v7232, %v7236
        %v7238 = vadd.s32 %v7237, 536870912
        %v7239 = vshrl.u32 %v7238, 30
        %v7240 = vshll.u32 %v7239, 30
        %v7241 = vsub.s32 %v7237, %v7240
        %vm7242 = vcmp.lt.s32.totalorder %v7241, 0
        %v7243 = vsub.s32 0, %v7241
        %v7244 = vsel %vm7242, %v7243, %v7241
        %v7245 = vclz %v7244
        %v7246 = vsub.s32 %v7245, 2
        %vm7247 = vcmp.gt.s32.totalorder 0, %v7246
        %v7248 = vsel %vm7247, 0, %v7246
        %v7249 = vsub.s32 32, %v7248
        %v7250 = vshll.u32 %v7241, %v7248
        %v7251 = vshrl.u32 %v7233, %v7249
        %v7252 = vor.u32 %v7250, %v7251
        %v7253 = vsub.s32 4294967266, %v7248
        %v7254 = vadd.s32 %v7253, 127
        %v7255 = vshll.u32 %v7254, 23
        %v7256 = vor.u32 4788187, %v7255
        %v7257 = vand.u32 2147483647, %v7256
        %v7259 = vcvt.s32.f32 %v7252
        %v7260 = vmul.f32 %v7259, %v7257
        %v7261 = vxor.u32 %v7260, 2147483648
        %v7262 = vsel %vm7141, %v7261, %v7260
        %v7263 = vsub.s32 4, %v7239
        %v7264 = vsel %vm7141, %v7263, %v7239
        %v7265 = vsel %vm7140, %v455, %v7262
        %v7266 = vsel %vm7140, 0, %v7264
        %v7267 = vmul.f32 %v7265, %v7265
        %v7268 = vmul.f32 %v7267, -0.001358992
        %v7269 = vadd.f32 %v7268, 0.041655596
        %v7270 = vmul.f32 %v7267, %v7269
        %v7271 = vadd.f32 %v7270, -0.4999988
        %v7272 = vmul.f32 %v7267, %v7271
        %v7273 = vadd.f32 1.0, %v7272
        %v7274 = vmul.f32 %v7265, %v7265
        %v7275 = vmul.f32 %v7274, -0.00019511016
        %v7276 = vadd.f32 %v7275, 0.008332121
        %v7277 = vmul.f32 %v7274, %v7276
        %v7278 = vadd.f32 %v7277, -0.16666654
        %v7279 = vmul.f32 %v7274, %v7278
        %v7280 = vadd.f32 %v7279, 1.0
        %v7281 = vmul.f32 %v7280, %v7265
        %vm7282 = vweird.f32 %v455
        %v7283 = vand.u32 %v7266, 3
        %vm7284 = vcmp.lt.s32.totalorder %v7283, 2
        %vm7285 = vcmp.eq.s32.totalorder %v7283, 0
        %v7286 = vxor.u32 %v7281, 2147483648
        %v7287 = vsel %vm7285, %v7273, %v7286
        %vm7288 = vcmp.eq.s32.totalorder %v7283, 2
        %v7289 = vxor.u32 %v7273, 2147483648
        %v7290 = vsel %vm7288, %v7289, %v7281
        %v7291 = vsel %vm7284, %v7287, %v7290
        %v7292 = vsel %vm7282, nan, %v7291
        %v7293 = vand.u32 2147483647, %v458
        %vm7294 = vcmp.le.f32.partialorder %v7293, 0.7853982
        %vm7295 = vcmp.lt.s32.totalorder %v458, 0
        %v7296 = vand.u32 %v458, 2139095040
        %v7297 = vshrl.u32 %v7296, 23
        %v7298 = vsub.s32 %v7297, 127
        %v7299 = vand.u32 2147483647, %v458
        %v7300 = vand.u32 %v7299, 8388607
        %v7301 = vor.u32 %v7300, 8388608
        %v7302 = vsub.s32 0, %v7301
        %v7303 = vadd.s32 %v7298, 1
        %vm7304 = vcmp.gt.s32.totalorder %v7303, 0
        %v7305 = vsel %vm7304, %v7303, 0
        %v7306 = vshrl.u32 %v7305, 5
        %v7307 = vand.u32 %v7305, 31
        %v7308 = vsub.s32 32, %v7307
        %v7309 = vshrl.u32 683565275, %v7308
        %v7310 = vshll.u32 683565275, %v7307
        %v7311 = vshrl.u32 2475754826, %v7308
        %v7312 = vor.u32 %v7310, %v7311
        %v7313 = vshll.u32 2475754826, %v7307
        %v7314 = vshrl.u32 2131351028, %v7308
        %v7315 = vor.u32 %v7313, %v7314
        %v7316 = vshll.u32 2131351028, %v7307
        %v7317 = vshrl.u32 2102212464, %v7308
        %v7318 = vor.u32 %v7316, %v7317
        %v7319 = vshll.u32 2102212464, %v7307
        %v7320 = vshrl.u32 920167782, %v7308
        %v7321 = vor.u32 %v7319, %v7320
        %v7322 = vshll.u32 920167782, %v7307
        %v7323 = vshrl.u32 1326507024, %v7308
        %v7324 = vor.u32 %v7322, %v7323
        %vm7325 = vcmp.lt.s32.totalorder %v7306, 1
        %vm7326 = vcmp.lt.s32.totalorder %v7306, 2
        %vm7327 = vcmp.lt.s32.totalorder %v7306, 3
        %vm7328 = vcmp.lt.s32.totalorder %v7306, 4
        %v7329 = vsel %vm7325, %v7309, %v7312
        %v7330 = vsel %vm7328, %v7318, 2102212464
        %v7331 = vsel %vm7327, %v7315, %v7330
        %v7332 = vsel %vm7326, %v7329, %v7331
        %v7333 = vsel %vm7325, %v7312, %v7315
        %v7334 = vsel %vm7328, %v7321, 920167782
        %v7335 = vsel %vm7327, %v7318, %v7334
        %v7336 = vsel %vm7326, %v7333, %v7335
        %v7337 = vsel %vm7325, %v7315, %v7318
        %v7338 = vsel %vm7328, %v7324, 1326507024
        %v7339 = vsel %vm7327, %v7321, %v7338
        %v7340 = vsel %vm7326, %v7337, %v7339
        %v7341 = vshll.u32 %v7301, 8
        %v7342 = vand.u32 %v7341, 65535
        %v7343 = vshrl.u32 %v7341, 16
        %v7344 = vand.u32 %v7340, 65535
        %v7345 = vshrl.u32 %v7340, 16
        %v7346 = vmul.u32 %v7342, %v7344
        %v7347 = vmul.u32 %v7342, %v7345
        %v7348 = vmul.u32 %v7343, %v7344
        %v7349 = vmul.u32 %v7343, %v7345
        %v7350 = vshll.u32 %v7347, 16
        %v7351 = vshrl.u32 %v7347, 16
        %v7352 = vshll.u32 %v7348, 16
        %v7353 = vshrl.u32 %v7348, 16
        %vm7354 = vc.u32 %v7346, %v7350
        %v7355 = vsel %vm7354, 1, 0
        %v7356 = vadd.s32 %v7346, %v7350
        %v7357 = vadd.s32 %v7349, %v7355
        %vm7358 = vc.u32 %v7356, %v7352
        %v7359 = vsel %vm7358, 1, 0
        %v7360 = vadd.s32 %v7356, %v7352
        %v7361 = vadd.s32 %v7357, %v7359
        %v7362 = vadd.s32 %v7361, %v7351
        %v7363 = vadd.s32 %v7362, %v7353
        %v7364 = vand.u32 %v7341, 65535
        %v7365 = vshrl.u32 %v7341, 16
        %v7366 = vand.u32 %v7336, 65535
        %v7367 = vshrl.u32 %v7336, 16
        %v7368 = vmul.u32 %v7364, %v7366
        %v7369 = vmul.u32 %v7364, %v7367
        %v7370 = vmul.u32 %v7365, %v7366
        %v7371 = vmul.u32 %v7365, %v7367
        %v7372 = vshll.u32 %v7369, 16
        %v7373 = vshrl.u32 %v7369, 16
        %v7374 = vshll.u32 %v7370, 16
        %v7375 = vshrl.u32 %v7370, 16
        %vm7376 = vc.u32 %v7368, %v7372
        %v7377 = vsel %vm7376, 1, 0
        %v7378 = vadd.s32 %v7368, %v7372
        %v7379 = vadd.s32 %v7371, %v7377
        %vm7380 = vc.u32 %v7378, %v7374
        %v7381 = vsel %vm7380, 1, 0
        %v7382 = vadd.s32 %v7378, %v7374
        %v7383 = vadd.s32 %v7379, %v7381
        %v7384 = vadd.s32 %v7383, %v7373
        %v7385 = vadd.s32 %v7384, %v7375
        %v7386 = vmul.u32 %v7341, %v7332
        %v7387 = vadd.s32 %v7363, %v7382
        %vm7388 = vc.u32 %v7363, %v7382
        %v7389 = vadd.s32 %v7385, 1
        %v7390 = vsel %vm7388, %v7389, %v7385
        %v7391 = vadd.s32 %v7386, %v7390
        %v7392 = vadd.s32 %v7391, 536870912
        %v7393 = vshrl.u32 %v7392, 30
        %v7394 = vshll.u32 %v7393, 30
        %v7395 = vsub.s32 %v7391, %v7394
        %vm7396 = vcmp.lt.s32.totalorder %v7395, 0
        %v7397 = vsub.s32 0, %v7395
        %v7398 = vsel %vm7396, %v7397, %v7395
        %v7399 = vclz %v7398
        %v7400 = vsub.s32 %v7399, 2
        %vm7401 = vcmp.gt.s32.totalorder 0, %v7400
        %v7402 = vsel %vm7401, 0, %v7400
        %v7403 = vsub.s32 32, %v7402
        %v7404 = vshll.u32 %v7395, %v7402
        %v7405 = vshrl.u32 %v7387, %v7403
        %v7406 = vor.u32 %v7404, %v7405
        %v7407 = vsub.s32 4294967266, %v7402
        %v7408 = vadd.s32 %v7407, 127
        %v7409 = vshll.u32 %v7408, 23
        %v7410 = vor.u32 4788187, %v7409
        %v7411 = vand.u32 2147483647, %v7410
        %v7413 = vcvt.s32.f32 %v7406
        %v7414 = vmul.f32 %v7413, %v7411
        %v7415 = vxor.u32 %v7414, 2147483648
        %v7416 = vsel %vm7295, %v7415, %v7414
        %v7417 = vsub.s32 4, %v7393
        %v7418 = vsel %vm7295, %v7417, %v7393
        %v7419 = vsel %vm7294, %v458, %v7416
        %v7420 = vsel %vm7294, 0, %v7418
        %v7421 = vmul.f32 %v7419, %v7419
        %v7422 = vmul.f32 %v7421, -0.001358992
        %v7423 = vadd.f32 %v7422, 0.041655596
        %v7424 = vmul.f32 %v7421, %v7423
        %v7425 = vadd.f32 %v7424, -0.4999988
        %v7426 = vmul.f32 %v7421, %v7425
        %v7427 = vadd.f32 1.0, %v7426
        %v7428 = vmul.f32 %v7419, %v7419
        %v7429 = vmul.f32 %v7428, -0.00019511016
        %v7430 = vadd.f32 %v7429, 0.008332121
        %v7431 = vmul.f32 %v7428, %v7430
        %v7432 = vadd.f32 %v7431, -0.16666654
        %v7433 = vmul.f32 %v7428, %v7432
        %v7434 = vadd.f32 %v7433, 1.0
        %v7435 = vmul.f32 %v7434, %v7419
        %vm7436 = vweird.f32 %v458
        %v7437 = vand.u32 %v7420, 3
        %vm7438 = vcmp.lt.s32.totalorder %v7437, 2
        %vm7439 = vcmp.eq.s32.totalorder %v7437, 0
        %v7440 = vxor.u32 %v7435, 2147483648
        %v7441 = vsel %vm7439, %v7427, %v7440
        %vm7442 = vcmp.eq.s32.totalorder %v7437, 2
        %v7443 = vxor.u32 %v7427, 2147483648
        %v7444 = vsel %vm7442, %v7443, %v7435
        %v7445 = vsel %vm7438, %v7441, %v7444
        %v7446 = vsel %vm7436, nan, %v7445
        %v7447 = vand.u32 2147483647, %v461
        %vm7448 = vcmp.le.f32.partialorder %v7447, 0.7853982
        %vm7449 = vcmp.lt.s32.totalorder %v461, 0
        %v7450 = vand.u32 %v461, 2139095040
        %v7451 = vshrl.u32 %v7450, 23
        %v7452 = vsub.s32 %v7451, 127
        %v7453 = vand.u32 2147483647, %v461
        %v7454 = vand.u32 %v7453, 8388607
        %v7455 = vor.u32 %v7454, 8388608
        %v7456 = vsub.s32 0, %v7455
        %v7457 = vadd.s32 %v7452, 1
        %vm7458 = vcmp.gt.s32.totalorder %v7457, 0
        %v7459 = vsel %vm7458, %v7457, 0
        %v7460 = vshrl.u32 %v7459, 5
        %v7461 = vand.u32 %v7459, 31
        %v7462 = vsub.s32 32, %v7461
        %v7463 = vshrl.u32 683565275, %v7462
        %v7464 = vshll.u32 683565275, %v7461
        %v7465 = vshrl.u32 2475754826, %v7462
        %v7466 = vor.u32 %v7464, %v7465
        %v7467 = vshll.u32 2475754826, %v7461
        %v7468 = vshrl.u32 2131351028, %v7462
        %v7469 = vor.u32 %v7467, %v7468
        %v7470 = vshll.u32 2131351028, %v7461
        %v7471 = vshrl.u32 2102212464, %v7462
        %v7472 = vor.u32 %v7470, %v7471
        %v7473 = vshll.u32 2102212464, %v7461
        %v7474 = vshrl.u32 920167782, %v7462
        %v7475 = vor.u32 %v7473, %v7474
        %v7476 = vshll.u32 920167782, %v7461
        %v7477 = vshrl.u32 1326507024, %v7462
        %v7478 = vor.u32 %v7476, %v7477
        %vm7479 = vcmp.lt.s32.totalorder %v7460, 1
        %vm7480 = vcmp.lt.s32.totalorder %v7460, 2
        %vm7481 = vcmp.lt.s32.totalorder %v7460, 3
        %vm7482 = vcmp.lt.s32.totalorder %v7460, 4
        %v7483 = vsel %vm7479, %v7463, %v7466
        %v7484 = vsel %vm7482, %v7472, 2102212464
        %v7485 = vsel %vm7481, %v7469, %v7484
        %v7486 = vsel %vm7480, %v7483, %v7485
        %v7487 = vsel %vm7479, %v7466, %v7469
        %v7488 = vsel %vm7482, %v7475, 920167782
        %v7489 = vsel %vm7481, %v7472, %v7488
        %v7490 = vsel %vm7480, %v7487, %v7489
        %v7491 = vsel %vm7479, %v7469, %v7472
        %v7492 = vsel %vm7482, %v7478, 1326507024
        %v7493 = vsel %vm7481, %v7475, %v7492
        %v7494 = vsel %vm7480, %v7491, %v7493
        %v7495 = vshll.u32 %v7455, 8
        %v7496 = vand.u32 %v7495, 65535
        %v7497 = vshrl.u32 %v7495, 16
        %v7498 = vand.u32 %v7494, 65535
        %v7499 = vshrl.u32 %v7494, 16
        %v7500 = vmul.u32 %v7496, %v7498
        %v7501 = vmul.u32 %v7496, %v7499
        %v7502 = vmul.u32 %v7497, %v7498
        %v7503 = vmul.u32 %v7497, %v7499
        %v7504 = vshll.u32 %v7501, 16
        %v7505 = vshrl.u32 %v7501, 16
        %v7506 = vshll.u32 %v7502, 16
        %v7507 = vshrl.u32 %v7502, 16
        %vm7508 = vc.u32 %v7500, %v7504
        %v7509 = vsel %vm7508, 1, 0
        %v7510 = vadd.s32 %v7500, %v7504
        %v7511 = vadd.s32 %v7503, %v7509
        %vm7512 = vc.u32 %v7510, %v7506
        %v7513 = vsel %vm7512, 1, 0
        %v7514 = vadd.s32 %v7510, %v7506
        %v7515 = vadd.s32 %v7511, %v7513
        %v7516 = vadd.s32 %v7515, %v7505
        %v7517 = vadd.s32 %v7516, %v7507
        %v7518 = vand.u32 %v7495, 65535
        %v7519 = vshrl.u32 %v7495, 16
        %v7520 = vand.u32 %v7490, 65535
        %v7521 = vshrl.u32 %v7490, 16
        %v7522 = vmul.u32 %v7518, %v7520
        %v7523 = vmul.u32 %v7518, %v7521
        %v7524 = vmul.u32 %v7519, %v7520
        %v7525 = vmul.u32 %v7519, %v7521
        %v7526 = vshll.u32 %v7523, 16
        %v7527 = vshrl.u32 %v7523, 16
        %v7528 = vshll.u32 %v7524, 16
        %v7529 = vshrl.u32 %v7524, 16
        %vm7530 = vc.u32 %v7522, %v7526
        %v7531 = vsel %vm7530, 1, 0
        %v7532 = vadd.s32 %v7522, %v7526
        %v7533 = vadd.s32 %v7525, %v7531
        %vm7534 = vc.u32 %v7532, %v7528
        %v7535 = vsel %vm7534, 1, 0
        %v7536 = vadd.s32 %v7532, %v7528
        %v7537 = vadd.s32 %v7533, %v7535
        %v7538 = vadd.s32 %v7537, %v7527
        %v7539 = vadd.s32 %v7538, %v7529
        %v7540 = vmul.u32 %v7495, %v7486
        %v7541 = vadd.s32 %v7517, %v7536
        %vm7542 = vc.u32 %v7517, %v7536
        %v7543 = vadd.s32 %v7539, 1
        %v7544 = vsel %vm7542, %v7543, %v7539
        %v7545 = vadd.s32 %v7540, %v7544
        %v7546 = vadd.s32 %v7545, 536870912
        %v7547 = vshrl.u32 %v7546, 30
        %v7548 = vshll.u32 %v7547, 30
        %v7549 = vsub.s32 %v7545, %v7548
        %vm7550 = vcmp.lt.s32.totalorder %v7549, 0
        %v7551 = vsub.s32 0, %v7549
        %v7552 = vsel %vm7550, %v7551, %v7549
        %v7553 = vclz %v7552
        %v7554 = vsub.s32 %v7553, 2
        %vm7555 = vcmp.gt.s32.totalorder 0, %v7554
        %v7556 = vsel %vm7555, 0, %v7554
        %v7557 = vsub.s32 32, %v7556
        %v7558 = vshll.u32 %v7549, %v7556
        %v7559 = vshrl.u32 %v7541, %v7557
        %v7560 = vor.u32 %v7558, %v7559
        %v7561 = vsub.s32 4294967266, %v7556
        %v7562 = vadd.s32 %v7561, 127
        %v7563 = vshll.u32 %v7562, 23
        %v7564 = vor.u32 4788187, %v7563
        %v7565 = vand.u32 2147483647, %v7564
        %v7567 = vcvt.s32.f32 %v7560
        %v7568 = vmul.f32 %v7567, %v7565
        %v7569 = vxor.u32 %v7568, 2147483648
        %v7570 = vsel %vm7449, %v7569, %v7568
        %v7571 = vsub.s32 4, %v7547
        %v7572 = vsel %vm7449, %v7571, %v7547
        %v7573 = vsel %vm7448, %v461, %v7570
        %v7574 = vsel %vm7448, 0, %v7572
        %v7575 = vmul.f32 %v7573, %v7573
        %v7576 = vmul.f32 %v7575, -0.001358992
        %v7577 = vadd.f32 %v7576, 0.041655596
        %v7578 = vmul.f32 %v7575, %v7577
        %v7579 = vadd.f32 %v7578, -0.4999988
        %v7580 = vmul.f32 %v7575, %v7579
        %v7581 = vadd.f32 1.0, %v7580
        %v7582 = vmul.f32 %v7573, %v7573
        %v7583 = vmul.f32 %v7582, -0.00019511016
        %v7584 = vadd.f32 %v7583, 0.008332121
        %v7585 = vmul.f32 %v7582, %v7584
        %v7586 = vadd.f32 %v7585, -0.16666654
        %v7587 = vmul.f32 %v7582, %v7586
        %v7588 = vadd.f32 %v7587, 1.0
        %v7589 = vmul.f32 %v7588, %v7573
        %vm7590 = vweird.f32 %v461
        %v7591 = vand.u32 %v7574, 3
        %vm7592 = vcmp.lt.s32.totalorder %v7591, 2
        %vm7593 = vcmp.eq.s32.totalorder %v7591, 0
        %v7594 = vxor.u32 %v7589, 2147483648
        %v7595 = vsel %vm7593, %v7581, %v7594
        %vm7596 = vcmp.eq.s32.totalorder %v7591, 2
        %v7597 = vxor.u32 %v7581, 2147483648
        %v7598 = vsel %vm7596, %v7597, %v7589
        %v7599 = vsel %vm7592, %v7595, %v7598
        %v7600 = vsel %vm7590, nan, %v7599
        %v7601 = vand.u32 2147483647, %v464
        %vm7602 = vcmp.le.f32.partialorder %v7601, 0.7853982
        %vm7603 = vcmp.lt.s32.totalorder %v464, 0
        %v7604 = vand.u32 %v464, 2139095040
        %v7605 = vshrl.u32 %v7604, 23
        %v7606 = vsub.s32 %v7605, 127
        %v7607 = vand.u32 2147483647, %v464
        %v7608 = vand.u32 %v7607, 8388607
        %v7609 = vor.u32 %v7608, 8388608
        %v7610 = vsub.s32 0, %v7609
        %v7611 = vadd.s32 %v7606, 1
        %vm7612 = vcmp.gt.s32.totalorder %v7611, 0
        %v7613 = vsel %vm7612, %v7611, 0
        %v7614 = vshrl.u32 %v7613, 5
        %v7615 = vand.u32 %v7613, 31
        %v7616 = vsub.s32 32, %v7615
        %v7617 = vshrl.u32 683565275, %v7616
        %v7618 = vshll.u32 683565275, %v7615
        %v7619 = vshrl.u32 2475754826, %v7616
        %v7620 = vor.u32 %v7618, %v7619
        %v7621 = vshll.u32 2475754826, %v7615
        %v7622 = vshrl.u32 2131351028, %v7616
        %v7623 = vor.u32 %v7621, %v7622
        %v7624 = vshll.u32 2131351028, %v7615
        %v7625 = vshrl.u32 2102212464, %v7616
        %v7626 = vor.u32 %v7624, %v7625
        %v7627 = vshll.u32 2102212464, %v7615
        %v7628 = vshrl.u32 920167782, %v7616
        %v7629 = vor.u32 %v7627, %v7628
        %v7630 = vshll.u32 920167782, %v7615
        %v7631 = vshrl.u32 1326507024, %v7616
        %v7632 = vor.u32 %v7630, %v7631
        %vm7633 = vcmp.lt.s32.totalorder %v7614, 1
        %vm7634 = vcmp.lt.s32.totalorder %v7614, 2
        %vm7635 = vcmp.lt.s32.totalorder %v7614, 3
        %vm7636 = vcmp.lt.s32.totalorder %v7614, 4
        %v7637 = vsel %vm7633, %v7617, %v7620
        %v7638 = vsel %vm7636, %v7626, 2102212464
        %v7639 = vsel %vm7635, %v7623, %v7638
        %v7640 = vsel %vm7634, %v7637, %v7639
        %v7641 = vsel %vm7633, %v7620, %v7623
        %v7642 = vsel %vm7636, %v7629, 920167782
        %v7643 = vsel %vm7635, %v7626, %v7642
        %v7644 = vsel %vm7634, %v7641, %v7643
        %v7645 = vsel %vm7633, %v7623, %v7626
        %v7646 = vsel %vm7636, %v7632, 1326507024
        %v7647 = vsel %vm7635, %v7629, %v7646
        %v7648 = vsel %vm7634, %v7645, %v7647
        %v7649 = vshll.u32 %v7609, 8
        %v7650 = vand.u32 %v7649, 65535
        %v7651 = vshrl.u32 %v7649, 16
        %v7652 = vand.u32 %v7648, 65535
        %v7653 = vshrl.u32 %v7648, 16
        %v7654 = vmul.u32 %v7650, %v7652
        %v7655 = vmul.u32 %v7650, %v7653
        %v7656 = vmul.u32 %v7651, %v7652
        %v7657 = vmul.u32 %v7651, %v7653
        %v7658 = vshll.u32 %v7655, 16
        %v7659 = vshrl.u32 %v7655, 16
        %v7660 = vshll.u32 %v7656, 16
        %v7661 = vshrl.u32 %v7656, 16
        %vm7662 = vc.u32 %v7654, %v7658
        %v7663 = vsel %vm7662, 1, 0
        %v7664 = vadd.s32 %v7654, %v7658
        %v7665 = vadd.s32 %v7657, %v7663
        %vm7666 = vc.u32 %v7664, %v7660
        %v7667 = vsel %vm7666, 1, 0
        %v7668 = vadd.s32 %v7664, %v7660
        %v7669 = vadd.s32 %v7665, %v7667
        %v7670 = vadd.s32 %v7669, %v7659
        %v7671 = vadd.s32 %v7670, %v7661
        %v7672 = vand.u32 %v7649, 65535
        %v7673 = vshrl.u32 %v7649, 16
        %v7674 = vand.u32 %v7644, 65535
        %v7675 = vshrl.u32 %v7644, 16
        %v7676 = vmul.u32 %v7672, %v7674
        %v7677 = vmul.u32 %v7672, %v7675
        %v7678 = vmul.u32 %v7673, %v7674
        %v7679 = vmul.u32 %v7673, %v7675
        %v7680 = vshll.u32 %v7677, 16
        %v7681 = vshrl.u32 %v7677, 16
        %v7682 = vshll.u32 %v7678, 16
        %v7683 = vshrl.u32 %v7678, 16
        %vm7684 = vc.u32 %v7676, %v7680
        %v7685 = vsel %vm7684, 1, 0
        %v7686 = vadd.s32 %v7676, %v7680
        %v7687 = vadd.s32 %v7679, %v7685
        %vm7688 = vc.u32 %v7686, %v7682
        %v7689 = vsel %vm7688, 1, 0
        %v7690 = vadd.s32 %v7686, %v7682
        %v7691 = vadd.s32 %v7687, %v7689
        %v7692 = vadd.s32 %v7691, %v7681
        %v7693 = vadd.s32 %v7692, %v7683
        %v7694 = vmul.u32 %v7649, %v7640
        %v7695 = vadd.s32 %v7671, %v7690
        %vm7696 = vc.u32 %v7671, %v7690
        %v7697 = vadd.s32 %v7693, 1
        %v7698 = vsel %vm7696, %v7697, %v7693
        %v7699 = vadd.s32 %v7694, %v7698
        %v7700 = vadd.s32 %v7699, 536870912
        %v7701 = vshrl.u32 %v7700, 30
        %v7702 = vshll.u32 %v7701, 30
        %v7703 = vsub.s32 %v7699, %v7702
        %vm7704 = vcmp.lt.s32.totalorder %v7703, 0
        %v7705 = vsub.s32 0, %v7703
        %v7706 = vsel %vm7704, %v7705, %v7703
        %v7707 = vclz %v7706
        %v7708 = vsub.s32 %v7707, 2
        %vm7709 = vcmp.gt.s32.totalorder 0, %v7708
        %v7710 = vsel %vm7709, 0, %v7708
        %v7711 = vsub.s32 32, %v7710
        %v7712 = vshll.u32 %v7703, %v7710
        %v7713 = vshrl.u32 %v7695, %v7711
        %v7714 = vor.u32 %v7712, %v7713
        %v7715 = vsub.s32 4294967266, %v7710
        %v7716 = vadd.s32 %v7715, 127
        %v7717 = vshll.u32 %v7716, 23
        %v7718 = vor.u32 4788187, %v7717
        %v7719 = vand.u32 2147483647, %v7718
        %v7721 = vcvt.s32.f32 %v7714
        %v7722 = vmul.f32 %v7721, %v7719
        %v7723 = vxor.u32 %v7722, 2147483648
        %v7724 = vsel %vm7603, %v7723, %v7722
        %v7725 = vsub.s32 4, %v7701
        %v7726 = vsel %vm7603, %v7725, %v7701
        %v7727 = vsel %vm7602, %v464, %v7724
        %v7728 = vsel %vm7602, 0, %v7726
        %v7729 = vmul.f32 %v7727, %v7727
        %v7730 = vmul.f32 %v7729, -0.001358992
        %v7731 = vadd.f32 %v7730, 0.041655596
        %v7732 = vmul.f32 %v7729, %v7731
        %v7733 = vadd.f32 %v7732, -0.4999988
        %v7734 = vmul.f32 %v7729, %v7733
        %v7735 = vadd.f32 1.0, %v7734
        %v7736 = vmul.f32 %v7727, %v7727
        %v7737 = vmul.f32 %v7736, -0.00019511016
        %v7738 = vadd.f32 %v7737, 0.008332121
        %v7739 = vmul.f32 %v7736, %v7738
        %v7740 = vadd.f32 %v7739, -0.16666654
        %v7741 = vmul.f32 %v7736, %v7740
        %v7742 = vadd.f32 %v7741, 1.0
        %v7743 = vmul.f32 %v7742, %v7727
        %vm7744 = vweird.f32 %v464
        %v7745 = vand.u32 %v7728, 3
        %vm7746 = vcmp.lt.s32.totalorder %v7745, 2
        %vm7747 = vcmp.eq.s32.totalorder %v7745, 0
        %v7748 = vxor.u32 %v7743, 2147483648
        %v7749 = vsel %vm7747, %v7735, %v7748
        %vm7750 = vcmp.eq.s32.totalorder %v7745, 2
        %v7751 = vxor.u32 %v7735, 2147483648
        %v7752 = vsel %vm7750, %v7751, %v7743
        %v7753 = vsel %vm7746, %v7749, %v7752
        %v7754 = vsel %vm7744, nan, %v7753
        %v7755 = vand.u32 2147483647, %v467
        %vm7756 = vcmp.le.f32.partialorder %v7755, 0.7853982
        %vm7757 = vcmp.lt.s32.totalorder %v467, 0
        %v7758 = vand.u32 %v467, 2139095040
        %v7759 = vshrl.u32 %v7758, 23
        %v7760 = vsub.s32 %v7759, 127
        %v7761 = vand.u32 2147483647, %v467
        %v7762 = vand.u32 %v7761, 8388607
        %v7763 = vor.u32 %v7762, 8388608
        %v7764 = vsub.s32 0, %v7763
        %v7765 = vadd.s32 %v7760, 1
        %vm7766 = vcmp.gt.s32.totalorder %v7765, 0
        %v7767 = vsel %vm7766, %v7765, 0
        %v7768 = vshrl.u32 %v7767, 5
        %v7769 = vand.u32 %v7767, 31
        %v7770 = vsub.s32 32, %v7769
        %v7771 = vshrl.u32 683565275, %v7770
        %v7772 = vshll.u32 683565275, %v7769
        %v7773 = vshrl.u32 2475754826, %v7770
        %v7774 = vor.u32 %v7772, %v7773
        %v7775 = vshll.u32 2475754826, %v7769
        %v7776 = vshrl.u32 2131351028, %v7770
        %v7777 = vor.u32 %v7775, %v7776
        %v7778 = vshll.u32 2131351028, %v7769
        %v7779 = vshrl.u32 2102212464, %v7770
        %v7780 = vor.u32 %v7778, %v7779
        %v7781 = vshll.u32 2102212464, %v7769
        %v7782 = vshrl.u32 920167782, %v7770
        %v7783 = vor.u32 %v7781, %v7782
        %v7784 = vshll.u32 920167782, %v7769
        %v7785 = vshrl.u32 1326507024, %v7770
        %v7786 = vor.u32 %v7784, %v7785
        %vm7787 = vcmp.lt.s32.totalorder %v7768, 1
        %vm7788 = vcmp.lt.s32.totalorder %v7768, 2
        %vm7789 = vcmp.lt.s32.totalorder %v7768, 3
        %vm7790 = vcmp.lt.s32.totalorder %v7768, 4
        %v7791 = vsel %vm7787, %v7771, %v7774
        %v7792 = vsel %vm7790, %v7780, 2102212464
        %v7793 = vsel %vm7789, %v7777, %v7792
        %v7794 = vsel %vm7788, %v7791, %v7793
        %v7795 = vsel %vm7787, %v7774, %v7777
        %v7796 = vsel %vm7790, %v7783, 920167782
        %v7797 = vsel %vm7789, %v7780, %v7796
        %v7798 = vsel %vm7788, %v7795, %v7797
        %v7799 = vsel %vm7787, %v7777, %v7780
        %v7800 = vsel %vm7790, %v7786, 1326507024
        %v7801 = vsel %vm7789, %v7783, %v7800
        %v7802 = vsel %vm7788, %v7799, %v7801
        %v7803 = vshll.u32 %v7763, 8
        %v7804 = vand.u32 %v7803, 65535
        %v7805 = vshrl.u32 %v7803, 16
        %v7806 = vand.u32 %v7802, 65535
        %v7807 = vshrl.u32 %v7802, 16
        %v7808 = vmul.u32 %v7804, %v7806
        %v7809 = vmul.u32 %v7804, %v7807
        %v7810 = vmul.u32 %v7805, %v7806
        %v7811 = vmul.u32 %v7805, %v7807
        %v7812 = vshll.u32 %v7809, 16
        %v7813 = vshrl.u32 %v7809, 16
        %v7814 = vshll.u32 %v7810, 16
        %v7815 = vshrl.u32 %v7810, 16
        %vm7816 = vc.u32 %v7808, %v7812
        %v7817 = vsel %vm7816, 1, 0
        %v7818 = vadd.s32 %v7808, %v7812
        %v7819 = vadd.s32 %v7811, %v7817
        %vm7820 = vc.u32 %v7818, %v7814
        %v7821 = vsel %vm7820, 1, 0
        %v7822 = vadd.s32 %v7818, %v7814
        %v7823 = vadd.s32 %v7819, %v7821
        %v7824 = vadd.s32 %v7823, %v7813
        %v7825 = vadd.s32 %v7824, %v7815
        %v7826 = vand.u32 %v7803, 65535
        %v7827 = vshrl.u32 %v7803, 16
        %v7828 = vand.u32 %v7798, 65535
        %v7829 = vshrl.u32 %v7798, 16
        %v7830 = vmul.u32 %v7826, %v7828
        %v7831 = vmul.u32 %v7826, %v7829
        %v7832 = vmul.u32 %v7827, %v7828
        %v7833 = vmul.u32 %v7827, %v7829
        %v7834 = vshll.u32 %v7831, 16
        %v7835 = vshrl.u32 %v7831, 16
        %v7836 = vshll.u32 %v7832, 16
        %v7837 = vshrl.u32 %v7832, 16
        %vm7838 = vc.u32 %v7830, %v7834
        %v7839 = vsel %vm7838, 1, 0
        %v7840 = vadd.s32 %v7830, %v7834
        %v7841 = vadd.s32 %v7833, %v7839
        %vm7842 = vc.u32 %v7840, %v7836
        %v7843 = vsel %vm7842, 1, 0
        %v7844 = vadd.s32 %v7840, %v7836
        %v7845 = vadd.s32 %v7841, %v7843
        %v7846 = vadd.s32 %v7845, %v7835
        %v7847 = vadd.s32 %v7846, %v7837
        %v7848 = vmul.u32 %v7803, %v7794
        %v7849 = vadd.s32 %v7825, %v7844
        %vm7850 = vc.u32 %v7825, %v7844
        %v7851 = vadd.s32 %v7847, 1
        %v7852 = vsel %vm7850, %v7851, %v7847
        %v7853 = vadd.s32 %v7848, %v7852
        %v7854 = vadd.s32 %v7853, 536870912
        %v7855 = vshrl.u32 %v7854, 30
        %v7856 = vshll.u32 %v7855, 30
        %v7857 = vsub.s32 %v7853, %v7856
        %vm7858 = vcmp.lt.s32.totalorder %v7857, 0
        %v7859 = vsub.s32 0, %v7857
        %v7860 = vsel %vm7858, %v7859, %v7857
        %v7861 = vclz %v7860
        %v7862 = vsub.s32 %v7861, 2
        %vm7863 = vcmp.gt.s32.totalorder 0, %v7862
        %v7864 = vsel %vm7863, 0, %v7862
        %v7865 = vsub.s32 32, %v7864
        %v7866 = vshll.u32 %v7857, %v7864
        %v7867 = vshrl.u32 %v7849, %v7865
        %v7868 = vor.u32 %v7866, %v7867
        %v7869 = vsub.s32 4294967266, %v7864
        %v7870 = vadd.s32 %v7869, 127
        %v7871 = vshll.u32 %v7870, 23
        %v7872 = vor.u32 4788187, %v7871
        %v7873 = vand.u32 2147483647, %v7872
        %v7875 = vcvt.s32.f32 %v7868
        %v7876 = vmul.f32 %v7875, %v7873
        %v7877 = vxor.u32 %v7876, 2147483648
        %v7878 = vsel %vm7757, %v7877, %v7876
        %v7879 = vsub.s32 4, %v7855
        %v7880 = vsel %vm7757, %v7879, %v7855
        %v7881 = vsel %vm7756, %v467, %v7878
        %v7882 = vsel %vm7756, 0, %v7880
        %v7883 = vmul.f32 %v7881, %v7881
        %v7884 = vmul.f32 %v7883, -0.001358992
        %v7885 = vadd.f32 %v7884, 0.041655596
        %v7886 = vmul.f32 %v7883, %v7885
        %v7887 = vadd.f32 %v7886, -0.4999988
        %v7888 = vmul.f32 %v7883, %v7887
        %v7889 = vadd.f32 1.0, %v7888
        %v7890 = vmul.f32 %v7881, %v7881
        %v7891 = vmul.f32 %v7890, -0.00019511016
        %v7892 = vadd.f32 %v7891, 0.008332121
        %v7893 = vmul.f32 %v7890, %v7892
        %v7894 = vadd.f32 %v7893, -0.16666654
        %v7895 = vmul.f32 %v7890, %v7894
        %v7896 = vadd.f32 %v7895, 1.0
        %v7897 = vmul.f32 %v7896, %v7881
        %vm7898 = vweird.f32 %v467
        %v7899 = vand.u32 %v7882, 3
        %vm7900 = vcmp.lt.s32.totalorder %v7899, 2
        %vm7901 = vcmp.eq.s32.totalorder %v7899, 0
        %v7902 = vxor.u32 %v7897, 2147483648
        %v7903 = vsel %vm7901, %v7889, %v7902
        %vm7904 = vcmp.eq.s32.totalorder %v7899, 2
        %v7905 = vxor.u32 %v7889, 2147483648
        %v7906 = vsel %vm7904, %v7905, %v7897
        %v7907 = vsel %vm7900, %v7903, %v7906
        %v7908 = vsel %vm7898, nan, %v7907
        %7909 = vst [vmem:[#allocation5] sm:$0xff] %v5598
        %7910 = vst [vmem:[#allocation5 + $0x8] sm:$0xff] %v5752
        %7911 = vst [vmem:[#allocation5 + $0x10] sm:$0xff] %v5906
        %7912 = vst [vmem:[#allocation5 + $0x18] sm:$0xff] %v6060
        %7913 = vst [vmem:[#allocation5 + $0x20] sm:$0xff] %v6214
        %7914 = vst [vmem:[#allocation5 + $0x28] sm:$0xff] %v6368
        %7915 = vst [vmem:[#allocation5 + $0x30] sm:$0xff] %v6522
        %7916 = vst [vmem:[#allocation5 + $0x38] sm:$0xff] %v6676
        %7917 = vst [vmem:[#allocation5 + $0x40] sm:$0xff] %v6830
        %7918 = vst [vmem:[#allocation5 + $0x48] sm:$0xff] %v6984
        %7919 = vst [vmem:[#allocation5 + $0x50] sm:$0xff] %v7138
        %7920 = vst [vmem:[#allocation5 + $0x58] sm:$0xff] %v7292
        %7921 = vst [vmem:[#allocation5 + $0x60] sm:$0xff] %v7446
        %7922 = vst [vmem:[#allocation5 + $0x68] sm:$0xff] %v7600
        %7923 = vst [vmem:[#allocation5 + $0x70] sm:$0xff] %v7754
        %7924 = vst [vmem:[#allocation5 + $0x78] sm:$0xff] %v7908
        %v7925 = vand.u32 2147483647, %v422
        %vm7926 = vcmp.le.f32.partialorder %v7925, 0.7853982
        %vm7927 = vcmp.lt.s32.totalorder %v422, 0
        %v7928 = vand.u32 %v422, 2139095040
        %v7929 = vshrl.u32 %v7928, 23
        %v7930 = vsub.s32 %v7929, 127
        %v7931 = vand.u32 2147483647, %v422
        %v7932 = vand.u32 %v7931, 8388607
        %v7933 = vor.u32 %v7932, 8388608
        %v7934 = vsub.s32 0, %v7933
        %v7935 = vadd.s32 %v7930, 1
        %vm7936 = vcmp.gt.s32.totalorder %v7935, 0
        %v7937 = vsel %vm7936, %v7935, 0
        %v7938 = vshrl.u32 %v7937, 5
        %v7939 = vand.u32 %v7937, 31
        %v7940 = vsub.s32 32, %v7939
        %v7941 = vshrl.u32 683565275, %v7940
        %v7942 = vshll.u32 683565275, %v7939
        %v7943 = vshrl.u32 2475754826, %v7940
        %v7944 = vor.u32 %v7942, %v7943
        %v7945 = vshll.u32 2475754826, %v7939
        %v7946 = vshrl.u32 2131351028, %v7940
        %v7947 = vor.u32 %v7945, %v7946
        %v7948 = vshll.u32 2131351028, %v7939
        %v7949 = vshrl.u32 2102212464, %v7940
        %v7950 = vor.u32 %v7948, %v7949
        %v7951 = vshll.u32 2102212464, %v7939
        %v7952 = vshrl.u32 920167782, %v7940
        %v7953 = vor.u32 %v7951, %v7952
        %v7954 = vshll.u32 920167782, %v7939
        %v7955 = vshrl.u32 1326507024, %v7940
        %v7956 = vor.u32 %v7954, %v7955
        %vm7957 = vcmp.lt.s32.totalorder %v7938, 1
        %vm7958 = vcmp.lt.s32.totalorder %v7938, 2
        %vm7959 = vcmp.lt.s32.totalorder %v7938, 3
        %vm7960 = vcmp.lt.s32.totalorder %v7938, 4
        %v7961 = vsel %vm7957, %v7941, %v7944
        %v7962 = vsel %vm7960, %v7950, 2102212464
        %v7963 = vsel %vm7959, %v7947, %v7962
        %v7964 = vsel %vm7958, %v7961, %v7963
        %v7965 = vsel %vm7957, %v7944, %v7947
        %v7966 = vsel %vm7960, %v7953, 920167782
        %v7967 = vsel %vm7959, %v7950, %v7966
        %v7968 = vsel %vm7958, %v7965, %v7967
        %v7969 = vsel %vm7957, %v7947, %v7950
        %v7970 = vsel %vm7960, %v7956, 1326507024
        %v7971 = vsel %vm7959, %v7953, %v7970
        %v7972 = vsel %vm7958, %v7969, %v7971
        %v7973 = vshll.u32 %v7933, 8
        %v7974 = vand.u32 %v7973, 65535
        %v7975 = vshrl.u32 %v7973, 16
        %v7976 = vand.u32 %v7972, 65535
        %v7977 = vshrl.u32 %v7972, 16
        %v7978 = vmul.u32 %v7974, %v7976
        %v7979 = vmul.u32 %v7974, %v7977
        %v7980 = vmul.u32 %v7975, %v7976
        %v7981 = vmul.u32 %v7975, %v7977
        %v7982 = vshll.u32 %v7979, 16
        %v7983 = vshrl.u32 %v7979, 16
        %v7984 = vshll.u32 %v7980, 16
        %v7985 = vshrl.u32 %v7980, 16
        %vm7986 = vc.u32 %v7978, %v7982
        %v7987 = vsel %vm7986, 1, 0
        %v7988 = vadd.s32 %v7978, %v7982
        %v7989 = vadd.s32 %v7981, %v7987
        %vm7990 = vc.u32 %v7988, %v7984
        %v7991 = vsel %vm7990, 1, 0
        %v7992 = vadd.s32 %v7988, %v7984
        %v7993 = vadd.s32 %v7989, %v7991
        %v7994 = vadd.s32 %v7993, %v7983
        %v7995 = vadd.s32 %v7994, %v7985
        %v7996 = vand.u32 %v7973, 65535
        %v7997 = vshrl.u32 %v7973, 16
        %v7998 = vand.u32 %v7968, 65535
        %v7999 = vshrl.u32 %v7968, 16
        %v8000 = vmul.u32 %v7996, %v7998
        %v8001 = vmul.u32 %v7996, %v7999
        %v8002 = vmul.u32 %v7997, %v7998
        %v8003 = vmul.u32 %v7997, %v7999
        %v8004 = vshll.u32 %v8001, 16
        %v8005 = vshrl.u32 %v8001, 16
        %v8006 = vshll.u32 %v8002, 16
        %v8007 = vshrl.u32 %v8002, 16
        %vm8008 = vc.u32 %v8000, %v8004
        %v8009 = vsel %vm8008, 1, 0
        %v8010 = vadd.s32 %v8000, %v8004
        %v8011 = vadd.s32 %v8003, %v8009
        %vm8012 = vc.u32 %v8010, %v8006
        %v8013 = vsel %vm8012, 1, 0
        %v8014 = vadd.s32 %v8010, %v8006
        %v8015 = vadd.s32 %v8011, %v8013
        %v8016 = vadd.s32 %v8015, %v8005
        %v8017 = vadd.s32 %v8016, %v8007
        %v8018 = vmul.u32 %v7973, %v7964
        %v8019 = vadd.s32 %v7995, %v8014
        %vm8020 = vc.u32 %v7995, %v8014
        %v8021 = vadd.s32 %v8017, 1
        %v8022 = vsel %vm8020, %v8021, %v8017
        %v8023 = vadd.s32 %v8018, %v8022
        %v8024 = vadd.s32 %v8023, 536870912
        %v8025 = vshrl.u32 %v8024, 30
        %v8026 = vshll.u32 %v8025, 30
        %v8027 = vsub.s32 %v8023, %v8026
        %vm8028 = vcmp.lt.s32.totalorder %v8027, 0
        %v8029 = vsub.s32 0, %v8027
        %v8030 = vsel %vm8028, %v8029, %v8027
        %v8031 = vclz %v8030
        %v8032 = vsub.s32 %v8031, 2
        %vm8033 = vcmp.gt.s32.totalorder 0, %v8032
        %v8034 = vsel %vm8033, 0, %v8032
        %v8035 = vsub.s32 32, %v8034
        %v8036 = vshll.u32 %v8027, %v8034
        %v8037 = vshrl.u32 %v8019, %v8035
        %v8038 = vor.u32 %v8036, %v8037
        %v8039 = vsub.s32 4294967266, %v8034
        %v8040 = vadd.s32 %v8039, 127
        %v8041 = vshll.u32 %v8040, 23
        %v8042 = vor.u32 4788187, %v8041
        %v8043 = vand.u32 2147483647, %v8042
        %v8045 = vcvt.s32.f32 %v8038
        %v8046 = vmul.f32 %v8045, %v8043
        %v8047 = vxor.u32 %v8046, 2147483648
        %v8048 = vsel %vm7927, %v8047, %v8046
        %v8049 = vsub.s32 4, %v8025
        %v8050 = vsel %vm7927, %v8049, %v8025
        %v8051 = vsel %vm7926, %v422, %v8048
        %v8052 = vsel %vm7926, 0, %v8050
        %v8053 = vmul.f32 %v8051, %v8051
        %v8054 = vmul.f32 %v8053, -0.001358992
        %v8055 = vadd.f32 %v8054, 0.041655596
        %v8056 = vmul.f32 %v8053, %v8055
        %v8057 = vadd.f32 %v8056, -0.4999988
        %v8058 = vmul.f32 %v8053, %v8057
        %v8059 = vadd.f32 1.0, %v8058
        %v8060 = vmul.f32 %v8051, %v8051
        %v8061 = vmul.f32 %v8060, -0.00019511016
        %v8062 = vadd.f32 %v8061, 0.008332121
        %v8063 = vmul.f32 %v8060, %v8062
        %v8064 = vadd.f32 %v8063, -0.16666654
        %v8065 = vmul.f32 %v8060, %v8064
        %v8066 = vadd.f32 %v8065, 1.0
        %v8067 = vmul.f32 %v8066, %v8051
        %vm8068 = vweird.f32 %v422
        %v8069 = vadd.s32 %v8052, 3
        %v8070 = vand.u32 %v8069, 3
        %vm8071 = vcmp.lt.s32.totalorder %v8070, 2
        %vm8072 = vcmp.eq.s32.totalorder %v8070, 0
        %v8073 = vxor.u32 %v8067, 2147483648
        %v8074 = vsel %vm8072, %v8059, %v8073
        %vm8075 = vcmp.eq.s32.totalorder %v8070, 2
        %v8076 = vxor.u32 %v8059, 2147483648
        %v8077 = vsel %vm8075, %v8076, %v8067
        %v8078 = vsel %vm8071, %v8074, %v8077
        %v8079 = vsel %vm8068, nan, %v8078
        %v8080 = vand.u32 2147483647, %v425
        %vm8081 = vcmp.le.f32.partialorder %v8080, 0.7853982
        %vm8082 = vcmp.lt.s32.totalorder %v425, 0
        %v8083 = vand.u32 %v425, 2139095040
        %v8084 = vshrl.u32 %v8083, 23
        %v8085 = vsub.s32 %v8084, 127
        %v8086 = vand.u32 2147483647, %v425
        %v8087 = vand.u32 %v8086, 8388607
        %v8088 = vor.u32 %v8087, 8388608
        %v8089 = vsub.s32 0, %v8088
        %v8090 = vadd.s32 %v8085, 1
        %vm8091 = vcmp.gt.s32.totalorder %v8090, 0
        %v8092 = vsel %vm8091, %v8090, 0
        %v8093 = vshrl.u32 %v8092, 5
        %v8094 = vand.u32 %v8092, 31
        %v8095 = vsub.s32 32, %v8094
        %v8096 = vshrl.u32 683565275, %v8095
        %v8097 = vshll.u32 683565275, %v8094
        %v8098 = vshrl.u32 2475754826, %v8095
        %v8099 = vor.u32 %v8097, %v8098
        %v8100 = vshll.u32 2475754826, %v8094
        %v8101 = vshrl.u32 2131351028, %v8095
        %v8102 = vor.u32 %v8100, %v8101
        %v8103 = vshll.u32 2131351028, %v8094
        %v8104 = vshrl.u32 2102212464, %v8095
        %v8105 = vor.u32 %v8103, %v8104
        %v8106 = vshll.u32 2102212464, %v8094
        %v8107 = vshrl.u32 920167782, %v8095
        %v8108 = vor.u32 %v8106, %v8107
        %v8109 = vshll.u32 920167782, %v8094
        %v8110 = vshrl.u32 1326507024, %v8095
        %v8111 = vor.u32 %v8109, %v8110
        %vm8112 = vcmp.lt.s32.totalorder %v8093, 1
        %vm8113 = vcmp.lt.s32.totalorder %v8093, 2
        %vm8114 = vcmp.lt.s32.totalorder %v8093, 3
        %vm8115 = vcmp.lt.s32.totalorder %v8093, 4
        %v8116 = vsel %vm8112, %v8096, %v8099
        %v8117 = vsel %vm8115, %v8105, 2102212464
        %v8118 = vsel %vm8114, %v8102, %v8117
        %v8119 = vsel %vm8113, %v8116, %v8118
        %v8120 = vsel %vm8112, %v8099, %v8102
        %v8121 = vsel %vm8115, %v8108, 920167782
        %v8122 = vsel %vm8114, %v8105, %v8121
        %v8123 = vsel %vm8113, %v8120, %v8122
        %v8124 = vsel %vm8112, %v8102, %v8105
        %v8125 = vsel %vm8115, %v8111, 1326507024
        %v8126 = vsel %vm8114, %v8108, %v8125
        %v8127 = vsel %vm8113, %v8124, %v8126
        %v8128 = vshll.u32 %v8088, 8
        %v8129 = vand.u32 %v8128, 65535
        %v8130 = vshrl.u32 %v8128, 16
        %v8131 = vand.u32 %v8127, 65535
        %v8132 = vshrl.u32 %v8127, 16
        %v8133 = vmul.u32 %v8129, %v8131
        %v8134 = vmul.u32 %v8129, %v8132
        %v8135 = vmul.u32 %v8130, %v8131
        %v8136 = vmul.u32 %v8130, %v8132
        %v8137 = vshll.u32 %v8134, 16
        %v8138 = vshrl.u32 %v8134, 16
        %v8139 = vshll.u32 %v8135, 16
        %v8140 = vshrl.u32 %v8135, 16
        %vm8141 = vc.u32 %v8133, %v8137
        %v8142 = vsel %vm8141, 1, 0
        %v8143 = vadd.s32 %v8133, %v8137
        %v8144 = vadd.s32 %v8136, %v8142
        %vm8145 = vc.u32 %v8143, %v8139
        %v8146 = vsel %vm8145, 1, 0
        %v8147 = vadd.s32 %v8143, %v8139
        %v8148 = vadd.s32 %v8144, %v8146
        %v8149 = vadd.s32 %v8148, %v8138
        %v8150 = vadd.s32 %v8149, %v8140
        %v8151 = vand.u32 %v8128, 65535
        %v8152 = vshrl.u32 %v8128, 16
        %v8153 = vand.u32 %v8123, 65535
        %v8154 = vshrl.u32 %v8123, 16
        %v8155 = vmul.u32 %v8151, %v8153
        %v8156 = vmul.u32 %v8151, %v8154
        %v8157 = vmul.u32 %v8152, %v8153
        %v8158 = vmul.u32 %v8152, %v8154
        %v8159 = vshll.u32 %v8156, 16
        %v8160 = vshrl.u32 %v8156, 16
        %v8161 = vshll.u32 %v8157, 16
        %v8162 = vshrl.u32 %v8157, 16
        %vm8163 = vc.u32 %v8155, %v8159
        %v8164 = vsel %vm8163, 1, 0
        %v8165 = vadd.s32 %v8155, %v8159
        %v8166 = vadd.s32 %v8158, %v8164
        %vm8167 = vc.u32 %v8165, %v8161
        %v8168 = vsel %vm8167, 1, 0
        %v8169 = vadd.s32 %v8165, %v8161
        %v8170 = vadd.s32 %v8166, %v8168
        %v8171 = vadd.s32 %v8170, %v8160
        %v8172 = vadd.s32 %v8171, %v8162
        %v8173 = vmul.u32 %v8128, %v8119
        %v8174 = vadd.s32 %v8150, %v8169
        %vm8175 = vc.u32 %v8150, %v8169
        %v8176 = vadd.s32 %v8172, 1
        %v8177 = vsel %vm8175, %v8176, %v8172
        %v8178 = vadd.s32 %v8173, %v8177
        %v8179 = vadd.s32 %v8178, 536870912
        %v8180 = vshrl.u32 %v8179, 30
        %v8181 = vshll.u32 %v8180, 30
        %v8182 = vsub.s32 %v8178, %v8181
        %vm8183 = vcmp.lt.s32.totalorder %v8182, 0
        %v8184 = vsub.s32 0, %v8182
        %v8185 = vsel %vm8183, %v8184, %v8182
        %v8186 = vclz %v8185
        %v8187 = vsub.s32 %v8186, 2
        %vm8188 = vcmp.gt.s32.totalorder 0, %v8187
        %v8189 = vsel %vm8188, 0, %v8187
        %v8190 = vsub.s32 32, %v8189
        %v8191 = vshll.u32 %v8182, %v8189
        %v8192 = vshrl.u32 %v8174, %v8190
        %v8193 = vor.u32 %v8191, %v8192
        %v8194 = vsub.s32 4294967266, %v8189
        %v8195 = vadd.s32 %v8194, 127
        %v8196 = vshll.u32 %v8195, 23
        %v8197 = vor.u32 4788187, %v8196
        %v8198 = vand.u32 2147483647, %v8197
        %v8200 = vcvt.s32.f32 %v8193
        %v8201 = vmul.f32 %v8200, %v8198
        %v8202 = vxor.u32 %v8201, 2147483648
        %v8203 = vsel %vm8082, %v8202, %v8201
        %v8204 = vsub.s32 4, %v8180
        %v8205 = vsel %vm8082, %v8204, %v8180
        %v8206 = vsel %vm8081, %v425, %v8203
        %v8207 = vsel %vm8081, 0, %v8205
        %v8208 = vmul.f32 %v8206, %v8206
        %v8209 = vmul.f32 %v8208, -0.001358992
        %v8210 = vadd.f32 %v8209, 0.041655596
        %v8211 = vmul.f32 %v8208, %v8210
        %v8212 = vadd.f32 %v8211, -0.4999988
        %v8213 = vmul.f32 %v8208, %v8212
        %v8214 = vadd.f32 1.0, %v8213
        %v8215 = vmul.f32 %v8206, %v8206
        %v8216 = vmul.f32 %v8215, -0.00019511016
        %v8217 = vadd.f32 %v8216, 0.008332121
        %v8218 = vmul.f32 %v8215, %v8217
        %v8219 = vadd.f32 %v8218, -0.16666654
        %v8220 = vmul.f32 %v8215, %v8219
        %v8221 = vadd.f32 %v8220, 1.0
        %v8222 = vmul.f32 %v8221, %v8206
        %vm8223 = vweird.f32 %v425
        %v8224 = vadd.s32 %v8207, 3
        %v8225 = vand.u32 %v8224, 3
        %vm8226 = vcmp.lt.s32.totalorder %v8225, 2
        %vm8227 = vcmp.eq.s32.totalorder %v8225, 0
        %v8228 = vxor.u32 %v8222, 2147483648
        %v8229 = vsel %vm8227, %v8214, %v8228
        %vm8230 = vcmp.eq.s32.totalorder %v8225, 2
        %v8231 = vxor.u32 %v8214, 2147483648
        %v8232 = vsel %vm8230, %v8231, %v8222
        %v8233 = vsel %vm8226, %v8229, %v8232
        %v8234 = vsel %vm8223, nan, %v8233
        %v8235 = vand.u32 2147483647, %v428
        %vm8236 = vcmp.le.f32.partialorder %v8235, 0.7853982
        %vm8237 = vcmp.lt.s32.totalorder %v428, 0
        %v8238 = vand.u32 %v428, 2139095040
        %v8239 = vshrl.u32 %v8238, 23
        %v8240 = vsub.s32 %v8239, 127
        %v8241 = vand.u32 2147483647, %v428
        %v8242 = vand.u32 %v8241, 8388607
        %v8243 = vor.u32 %v8242, 8388608
        %v8244 = vsub.s32 0, %v8243
        %v8245 = vadd.s32 %v8240, 1
        %vm8246 = vcmp.gt.s32.totalorder %v8245, 0
        %v8247 = vsel %vm8246, %v8245, 0
        %v8248 = vshrl.u32 %v8247, 5
        %v8249 = vand.u32 %v8247, 31
        %v8250 = vsub.s32 32, %v8249
        %v8251 = vshrl.u32 683565275, %v8250
        %v8252 = vshll.u32 683565275, %v8249
        %v8253 = vshrl.u32 2475754826, %v8250
        %v8254 = vor.u32 %v8252, %v8253
        %v8255 = vshll.u32 2475754826, %v8249
        %v8256 = vshrl.u32 2131351028, %v8250
        %v8257 = vor.u32 %v8255, %v8256
        %v8258 = vshll.u32 2131351028, %v8249
        %v8259 = vshrl.u32 2102212464, %v8250
        %v8260 = vor.u32 %v8258, %v8259
        %v8261 = vshll.u32 2102212464, %v8249
        %v8262 = vshrl.u32 920167782, %v8250
        %v8263 = vor.u32 %v8261, %v8262
        %v8264 = vshll.u32 920167782, %v8249
        %v8265 = vshrl.u32 1326507024, %v8250
        %v8266 = vor.u32 %v8264, %v8265
        %vm8267 = vcmp.lt.s32.totalorder %v8248, 1
        %vm8268 = vcmp.lt.s32.totalorder %v8248, 2
        %vm8269 = vcmp.lt.s32.totalorder %v8248, 3
        %vm8270 = vcmp.lt.s32.totalorder %v8248, 4
        %v8271 = vsel %vm8267, %v8251, %v8254
        %v8272 = vsel %vm8270, %v8260, 2102212464
        %v8273 = vsel %vm8269, %v8257, %v8272
        %v8274 = vsel %vm8268, %v8271, %v8273
        %v8275 = vsel %vm8267, %v8254, %v8257
        %v8276 = vsel %vm8270, %v8263, 920167782
        %v8277 = vsel %vm8269, %v8260, %v8276
        %v8278 = vsel %vm8268, %v8275, %v8277
        %v8279 = vsel %vm8267, %v8257, %v8260
        %v8280 = vsel %vm8270, %v8266, 1326507024
        %v8281 = vsel %vm8269, %v8263, %v8280
        %v8282 = vsel %vm8268, %v8279, %v8281
        %v8283 = vshll.u32 %v8243, 8
        %v8284 = vand.u32 %v8283, 65535
        %v8285 = vshrl.u32 %v8283, 16
        %v8286 = vand.u32 %v8282, 65535
        %v8287 = vshrl.u32 %v8282, 16
        %v8288 = vmul.u32 %v8284, %v8286
        %v8289 = vmul.u32 %v8284, %v8287
        %v8290 = vmul.u32 %v8285, %v8286
        %v8291 = vmul.u32 %v8285, %v8287
        %v8292 = vshll.u32 %v8289, 16
        %v8293 = vshrl.u32 %v8289, 16
        %v8294 = vshll.u32 %v8290, 16
        %v8295 = vshrl.u32 %v8290, 16
        %vm8296 = vc.u32 %v8288, %v8292
        %v8297 = vsel %vm8296, 1, 0
        %v8298 = vadd.s32 %v8288, %v8292
        %v8299 = vadd.s32 %v8291, %v8297
        %vm8300 = vc.u32 %v8298, %v8294
        %v8301 = vsel %vm8300, 1, 0
        %v8302 = vadd.s32 %v8298, %v8294
        %v8303 = vadd.s32 %v8299, %v8301
        %v8304 = vadd.s32 %v8303, %v8293
        %v8305 = vadd.s32 %v8304, %v8295
        %v8306 = vand.u32 %v8283, 65535
        %v8307 = vshrl.u32 %v8283, 16
        %v8308 = vand.u32 %v8278, 65535
        %v8309 = vshrl.u32 %v8278, 16
        %v8310 = vmul.u32 %v8306, %v8308
        %v8311 = vmul.u32 %v8306, %v8309
        %v8312 = vmul.u32 %v8307, %v8308
        %v8313 = vmul.u32 %v8307, %v8309
        %v8314 = vshll.u32 %v8311, 16
        %v8315 = vshrl.u32 %v8311, 16
        %v8316 = vshll.u32 %v8312, 16
        %v8317 = vshrl.u32 %v8312, 16
        %vm8318 = vc.u32 %v8310, %v8314
        %v8319 = vsel %vm8318, 1, 0
        %v8320 = vadd.s32 %v8310, %v8314
        %v8321 = vadd.s32 %v8313, %v8319
        %vm8322 = vc.u32 %v8320, %v8316
        %v8323 = vsel %vm8322, 1, 0
        %v8324 = vadd.s32 %v8320, %v8316
        %v8325 = vadd.s32 %v8321, %v8323
        %v8326 = vadd.s32 %v8325, %v8315
        %v8327 = vadd.s32 %v8326, %v8317
        %v8328 = vmul.u32 %v8283, %v8274
        %v8329 = vadd.s32 %v8305, %v8324
        %vm8330 = vc.u32 %v8305, %v8324
        %v8331 = vadd.s32 %v8327, 1
        %v8332 = vsel %vm8330, %v8331, %v8327
        %v8333 = vadd.s32 %v8328, %v8332
        %v8334 = vadd.s32 %v8333, 536870912
        %v8335 = vshrl.u32 %v8334, 30
        %v8336 = vshll.u32 %v8335, 30
        %v8337 = vsub.s32 %v8333, %v8336
        %vm8338 = vcmp.lt.s32.totalorder %v8337, 0
        %v8339 = vsub.s32 0, %v8337
        %v8340 = vsel %vm8338, %v8339, %v8337
        %v8341 = vclz %v8340
        %v8342 = vsub.s32 %v8341, 2
        %vm8343 = vcmp.gt.s32.totalorder 0, %v8342
        %v8344 = vsel %vm8343, 0, %v8342
        %v8345 = vsub.s32 32, %v8344
        %v8346 = vshll.u32 %v8337, %v8344
        %v8347 = vshrl.u32 %v8329, %v8345
        %v8348 = vor.u32 %v8346, %v8347
        %v8349 = vsub.s32 4294967266, %v8344
        %v8350 = vadd.s32 %v8349, 127
        %v8351 = vshll.u32 %v8350, 23
        %v8352 = vor.u32 4788187, %v8351
        %v8353 = vand.u32 2147483647, %v8352
        %v8355 = vcvt.s32.f32 %v8348
        %v8356 = vmul.f32 %v8355, %v8353
        %v8357 = vxor.u32 %v8356, 2147483648
        %v8358 = vsel %vm8237, %v8357, %v8356
        %v8359 = vsub.s32 4, %v8335
        %v8360 = vsel %vm8237, %v8359, %v8335
        %v8361 = vsel %vm8236, %v428, %v8358
        %v8362 = vsel %vm8236, 0, %v8360
        %v8363 = vmul.f32 %v8361, %v8361
        %v8364 = vmul.f32 %v8363, -0.001358992
        %v8365 = vadd.f32 %v8364, 0.041655596
        %v8366 = vmul.f32 %v8363, %v8365
        %v8367 = vadd.f32 %v8366, -0.4999988
        %v8368 = vmul.f32 %v8363, %v8367
        %v8369 = vadd.f32 1.0, %v8368
        %v8370 = vmul.f32 %v8361, %v8361
        %v8371 = vmul.f32 %v8370, -0.00019511016
        %v8372 = vadd.f32 %v8371, 0.008332121
        %v8373 = vmul.f32 %v8370, %v8372
        %v8374 = vadd.f32 %v8373, -0.16666654
        %v8375 = vmul.f32 %v8370, %v8374
        %v8376 = vadd.f32 %v8375, 1.0
        %v8377 = vmul.f32 %v8376, %v8361
        %vm8378 = vweird.f32 %v428
        %v8379 = vadd.s32 %v8362, 3
        %v8380 = vand.u32 %v8379, 3
        %vm8381 = vcmp.lt.s32.totalorder %v8380, 2
        %vm8382 = vcmp.eq.s32.totalorder %v8380, 0
        %v8383 = vxor.u32 %v8377, 2147483648
        %v8384 = vsel %vm8382, %v8369, %v8383
        %vm8385 = vcmp.eq.s32.totalorder %v8380, 2
        %v8386 = vxor.u32 %v8369, 2147483648
        %v8387 = vsel %vm8385, %v8386, %v8377
        %v8388 = vsel %vm8381, %v8384, %v8387
        %v8389 = vsel %vm8378, nan, %v8388
        %v8390 = vand.u32 2147483647, %v431
        %vm8391 = vcmp.le.f32.partialorder %v8390, 0.7853982
        %vm8392 = vcmp.lt.s32.totalorder %v431, 0
        %v8393 = vand.u32 %v431, 2139095040
        %v8394 = vshrl.u32 %v8393, 23
        %v8395 = vsub.s32 %v8394, 127
        %v8396 = vand.u32 2147483647, %v431
        %v8397 = vand.u32 %v8396, 8388607
        %v8398 = vor.u32 %v8397, 8388608
        %v8399 = vsub.s32 0, %v8398
        %v8400 = vadd.s32 %v8395, 1
        %vm8401 = vcmp.gt.s32.totalorder %v8400, 0
        %v8402 = vsel %vm8401, %v8400, 0
        %v8403 = vshrl.u32 %v8402, 5
        %v8404 = vand.u32 %v8402, 31
        %v8405 = vsub.s32 32, %v8404
        %v8406 = vshrl.u32 683565275, %v8405
        %v8407 = vshll.u32 683565275, %v8404
        %v8408 = vshrl.u32 2475754826, %v8405
        %v8409 = vor.u32 %v8407, %v8408
        %v8410 = vshll.u32 2475754826, %v8404
        %v8411 = vshrl.u32 2131351028, %v8405
        %v8412 = vor.u32 %v8410, %v8411
        %v8413 = vshll.u32 2131351028, %v8404
        %v8414 = vshrl.u32 2102212464, %v8405
        %v8415 = vor.u32 %v8413, %v8414
        %v8416 = vshll.u32 2102212464, %v8404
        %v8417 = vshrl.u32 920167782, %v8405
        %v8418 = vor.u32 %v8416, %v8417
        %v8419 = vshll.u32 920167782, %v8404
        %v8420 = vshrl.u32 1326507024, %v8405
        %v8421 = vor.u32 %v8419, %v8420
        %vm8422 = vcmp.lt.s32.totalorder %v8403, 1
        %vm8423 = vcmp.lt.s32.totalorder %v8403, 2
        %vm8424 = vcmp.lt.s32.totalorder %v8403, 3
        %vm8425 = vcmp.lt.s32.totalorder %v8403, 4
        %v8426 = vsel %vm8422, %v8406, %v8409
        %v8427 = vsel %vm8425, %v8415, 2102212464
        %v8428 = vsel %vm8424, %v8412, %v8427
        %v8429 = vsel %vm8423, %v8426, %v8428
        %v8430 = vsel %vm8422, %v8409, %v8412
        %v8431 = vsel %vm8425, %v8418, 920167782
        %v8432 = vsel %vm8424, %v8415, %v8431
        %v8433 = vsel %vm8423, %v8430, %v8432
        %v8434 = vsel %vm8422, %v8412, %v8415
        %v8435 = vsel %vm8425, %v8421, 1326507024
        %v8436 = vsel %vm8424, %v8418, %v8435
        %v8437 = vsel %vm8423, %v8434, %v8436
        %v8438 = vshll.u32 %v8398, 8
        %v8439 = vand.u32 %v8438, 65535
        %v8440 = vshrl.u32 %v8438, 16
        %v8441 = vand.u32 %v8437, 65535
        %v8442 = vshrl.u32 %v8437, 16
        %v8443 = vmul.u32 %v8439, %v8441
        %v8444 = vmul.u32 %v8439, %v8442
        %v8445 = vmul.u32 %v8440, %v8441
        %v8446 = vmul.u32 %v8440, %v8442
        %v8447 = vshll.u32 %v8444, 16
        %v8448 = vshrl.u32 %v8444, 16
        %v8449 = vshll.u32 %v8445, 16
        %v8450 = vshrl.u32 %v8445, 16
        %vm8451 = vc.u32 %v8443, %v8447
        %v8452 = vsel %vm8451, 1, 0
        %v8453 = vadd.s32 %v8443, %v8447
        %v8454 = vadd.s32 %v8446, %v8452
        %vm8455 = vc.u32 %v8453, %v8449
        %v8456 = vsel %vm8455, 1, 0
        %v8457 = vadd.s32 %v8453, %v8449
        %v8458 = vadd.s32 %v8454, %v8456
        %v8459 = vadd.s32 %v8458, %v8448
        %v8460 = vadd.s32 %v8459, %v8450
        %v8461 = vand.u32 %v8438, 65535
        %v8462 = vshrl.u32 %v8438, 16
        %v8463 = vand.u32 %v8433, 65535
        %v8464 = vshrl.u32 %v8433, 16
        %v8465 = vmul.u32 %v8461, %v8463
        %v8466 = vmul.u32 %v8461, %v8464
        %v8467 = vmul.u32 %v8462, %v8463
        %v8468 = vmul.u32 %v8462, %v8464
        %v8469 = vshll.u32 %v8466, 16
        %v8470 = vshrl.u32 %v8466, 16
        %v8471 = vshll.u32 %v8467, 16
        %v8472 = vshrl.u32 %v8467, 16
        %vm8473 = vc.u32 %v8465, %v8469
        %v8474 = vsel %vm8473, 1, 0
        %v8475 = vadd.s32 %v8465, %v8469
        %v8476 = vadd.s32 %v8468, %v8474
        %vm8477 = vc.u32 %v8475, %v8471
        %v8478 = vsel %vm8477, 1, 0
        %v8479 = vadd.s32 %v8475, %v8471
        %v8480 = vadd.s32 %v8476, %v8478
        %v8481 = vadd.s32 %v8480, %v8470
        %v8482 = vadd.s32 %v8481, %v8472
        %v8483 = vmul.u32 %v8438, %v8429
        %v8484 = vadd.s32 %v8460, %v8479
        %vm8485 = vc.u32 %v8460, %v8479
        %v8486 = vadd.s32 %v8482, 1
        %v8487 = vsel %vm8485, %v8486, %v8482
        %v8488 = vadd.s32 %v8483, %v8487
        %v8489 = vadd.s32 %v8488, 536870912
        %v8490 = vshrl.u32 %v8489, 30
        %v8491 = vshll.u32 %v8490, 30
        %v8492 = vsub.s32 %v8488, %v8491
        %vm8493 = vcmp.lt.s32.totalorder %v8492, 0
        %v8494 = vsub.s32 0, %v8492
        %v8495 = vsel %vm8493, %v8494, %v8492
        %v8496 = vclz %v8495
        %v8497 = vsub.s32 %v8496, 2
        %vm8498 = vcmp.gt.s32.totalorder 0, %v8497
        %v8499 = vsel %vm8498, 0, %v8497
        %v8500 = vsub.s32 32, %v8499
        %v8501 = vshll.u32 %v8492, %v8499
        %v8502 = vshrl.u32 %v8484, %v8500
        %v8503 = vor.u32 %v8501, %v8502
        %v8504 = vsub.s32 4294967266, %v8499
        %v8505 = vadd.s32 %v8504, 127
        %v8506 = vshll.u32 %v8505, 23
        %v8507 = vor.u32 4788187, %v8506
        %v8508 = vand.u32 2147483647, %v8507
        %v8510 = vcvt.s32.f32 %v8503
        %v8511 = vmul.f32 %v8510, %v8508
        %v8512 = vxor.u32 %v8511, 2147483648
        %v8513 = vsel %vm8392, %v8512, %v8511
        %v8514 = vsub.s32 4, %v8490
        %v8515 = vsel %vm8392, %v8514, %v8490
        %v8516 = vsel %vm8391, %v431, %v8513
        %v8517 = vsel %vm8391, 0, %v8515
        %v8518 = vmul.f32 %v8516, %v8516
        %v8519 = vmul.f32 %v8518, -0.001358992
        %v8520 = vadd.f32 %v8519, 0.041655596
        %v8521 = vmul.f32 %v8518, %v8520
        %v8522 = vadd.f32 %v8521, -0.4999988
        %v8523 = vmul.f32 %v8518, %v8522
        %v8524 = vadd.f32 1.0, %v8523
        %v8525 = vmul.f32 %v8516, %v8516
        %v8526 = vmul.f32 %v8525, -0.00019511016
        %v8527 = vadd.f32 %v8526, 0.008332121
        %v8528 = vmul.f32 %v8525, %v8527
        %v8529 = vadd.f32 %v8528, -0.16666654
        %v8530 = vmul.f32 %v8525, %v8529
        %v8531 = vadd.f32 %v8530, 1.0
        %v8532 = vmul.f32 %v8531, %v8516
        %vm8533 = vweird.f32 %v431
        %v8534 = vadd.s32 %v8517, 3
        %v8535 = vand.u32 %v8534, 3
        %vm8536 = vcmp.lt.s32.totalorder %v8535, 2
        %vm8537 = vcmp.eq.s32.totalorder %v8535, 0
        %v8538 = vxor.u32 %v8532, 2147483648
        %v8539 = vsel %vm8537, %v8524, %v8538
        %vm8540 = vcmp.eq.s32.totalorder %v8535, 2
        %v8541 = vxor.u32 %v8524, 2147483648
        %v8542 = vsel %vm8540, %v8541, %v8532
        %v8543 = vsel %vm8536, %v8539, %v8542
        %v8544 = vsel %vm8533, nan, %v8543
        %v8545 = vand.u32 2147483647, %v434
        %vm8546 = vcmp.le.f32.partialorder %v8545, 0.7853982
        %vm8547 = vcmp.lt.s32.totalorder %v434, 0
        %v8548 = vand.u32 %v434, 2139095040
        %v8549 = vshrl.u32 %v8548, 23
        %v8550 = vsub.s32 %v8549, 127
        %v8551 = vand.u32 2147483647, %v434
        %v8552 = vand.u32 %v8551, 8388607
        %v8553 = vor.u32 %v8552, 8388608
        %v8554 = vsub.s32 0, %v8553
        %v8555 = vadd.s32 %v8550, 1
        %vm8556 = vcmp.gt.s32.totalorder %v8555, 0
        %v8557 = vsel %vm8556, %v8555, 0
        %v8558 = vshrl.u32 %v8557, 5
        %v8559 = vand.u32 %v8557, 31
        %v8560 = vsub.s32 32, %v8559
        %v8561 = vshrl.u32 683565275, %v8560
        %v8562 = vshll.u32 683565275, %v8559
        %v8563 = vshrl.u32 2475754826, %v8560
        %v8564 = vor.u32 %v8562, %v8563
        %v8565 = vshll.u32 2475754826, %v8559
        %v8566 = vshrl.u32 2131351028, %v8560
        %v8567 = vor.u32 %v8565, %v8566
        %v8568 = vshll.u32 2131351028, %v8559
        %v8569 = vshrl.u32 2102212464, %v8560
        %v8570 = vor.u32 %v8568, %v8569
        %v8571 = vshll.u32 2102212464, %v8559
        %v8572 = vshrl.u32 920167782, %v8560
        %v8573 = vor.u32 %v8571, %v8572
        %v8574 = vshll.u32 920167782, %v8559
        %v8575 = vshrl.u32 1326507024, %v8560
        %v8576 = vor.u32 %v8574, %v8575
        %vm8577 = vcmp.lt.s32.totalorder %v8558, 1
        %vm8578 = vcmp.lt.s32.totalorder %v8558, 2
        %vm8579 = vcmp.lt.s32.totalorder %v8558, 3
        %vm8580 = vcmp.lt.s32.totalorder %v8558, 4
        %v8581 = vsel %vm8577, %v8561, %v8564
        %v8582 = vsel %vm8580, %v8570, 2102212464
        %v8583 = vsel %vm8579, %v8567, %v8582
        %v8584 = vsel %vm8578, %v8581, %v8583
        %v8585 = vsel %vm8577, %v8564, %v8567
        %v8586 = vsel %vm8580, %v8573, 920167782
        %v8587 = vsel %vm8579, %v8570, %v8586
        %v8588 = vsel %vm8578, %v8585, %v8587
        %v8589 = vsel %vm8577, %v8567, %v8570
        %v8590 = vsel %vm8580, %v8576, 1326507024
        %v8591 = vsel %vm8579, %v8573, %v8590
        %v8592 = vsel %vm8578, %v8589, %v8591
        %v8593 = vshll.u32 %v8553, 8
        %v8594 = vand.u32 %v8593, 65535
        %v8595 = vshrl.u32 %v8593, 16
        %v8596 = vand.u32 %v8592, 65535
        %v8597 = vshrl.u32 %v8592, 16
        %v8598 = vmul.u32 %v8594, %v8596
        %v8599 = vmul.u32 %v8594, %v8597
        %v8600 = vmul.u32 %v8595, %v8596
        %v8601 = vmul.u32 %v8595, %v8597
        %v8602 = vshll.u32 %v8599, 16
        %v8603 = vshrl.u32 %v8599, 16
        %v8604 = vshll.u32 %v8600, 16
        %v8605 = vshrl.u32 %v8600, 16
        %vm8606 = vc.u32 %v8598, %v8602
        %v8607 = vsel %vm8606, 1, 0
        %v8608 = vadd.s32 %v8598, %v8602
        %v8609 = vadd.s32 %v8601, %v8607
        %vm8610 = vc.u32 %v8608, %v8604
        %v8611 = vsel %vm8610, 1, 0
        %v8612 = vadd.s32 %v8608, %v8604
        %v8613 = vadd.s32 %v8609, %v8611
        %v8614 = vadd.s32 %v8613, %v8603
        %v8615 = vadd.s32 %v8614, %v8605
        %v8616 = vand.u32 %v8593, 65535
        %v8617 = vshrl.u32 %v8593, 16
        %v8618 = vand.u32 %v8588, 65535
        %v8619 = vshrl.u32 %v8588, 16
        %v8620 = vmul.u32 %v8616, %v8618
        %v8621 = vmul.u32 %v8616, %v8619
        %v8622 = vmul.u32 %v8617, %v8618
        %v8623 = vmul.u32 %v8617, %v8619
        %v8624 = vshll.u32 %v8621, 16
        %v8625 = vshrl.u32 %v8621, 16
        %v8626 = vshll.u32 %v8622, 16
        %v8627 = vshrl.u32 %v8622, 16
        %vm8628 = vc.u32 %v8620, %v8624
        %v8629 = vsel %vm8628, 1, 0
        %v8630 = vadd.s32 %v8620, %v8624
        %v8631 = vadd.s32 %v8623, %v8629
        %vm8632 = vc.u32 %v8630, %v8626
        %v8633 = vsel %vm8632, 1, 0
        %v8634 = vadd.s32 %v8630, %v8626
        %v8635 = vadd.s32 %v8631, %v8633
        %v8636 = vadd.s32 %v8635, %v8625
        %v8637 = vadd.s32 %v8636, %v8627
        %v8638 = vmul.u32 %v8593, %v8584
        %v8639 = vadd.s32 %v8615, %v8634
        %vm8640 = vc.u32 %v8615, %v8634
        %v8641 = vadd.s32 %v8637, 1
        %v8642 = vsel %vm8640, %v8641, %v8637
        %v8643 = vadd.s32 %v8638, %v8642
        %v8644 = vadd.s32 %v8643, 536870912
        %v8645 = vshrl.u32 %v8644, 30
        %v8646 = vshll.u32 %v8645, 30
        %v8647 = vsub.s32 %v8643, %v8646
        %vm8648 = vcmp.lt.s32.totalorder %v8647, 0
        %v8649 = vsub.s32 0, %v8647
        %v8650 = vsel %vm8648, %v8649, %v8647
        %v8651 = vclz %v8650
        %v8652 = vsub.s32 %v8651, 2
        %vm8653 = vcmp.gt.s32.totalorder 0, %v8652
        %v8654 = vsel %vm8653, 0, %v8652
        %v8655 = vsub.s32 32, %v8654
        %v8656 = vshll.u32 %v8647, %v8654
        %v8657 = vshrl.u32 %v8639, %v8655
        %v8658 = vor.u32 %v8656, %v8657
        %v8659 = vsub.s32 4294967266, %v8654
        %v8660 = vadd.s32 %v8659, 127
        %v8661 = vshll.u32 %v8660, 23
        %v8662 = vor.u32 4788187, %v8661
        %v8663 = vand.u32 2147483647, %v8662
        %v8665 = vcvt.s32.f32 %v8658
        %v8666 = vmul.f32 %v8665, %v8663
        %v8667 = vxor.u32 %v8666, 2147483648
        %v8668 = vsel %vm8547, %v8667, %v8666
        %v8669 = vsub.s32 4, %v8645
        %v8670 = vsel %vm8547, %v8669, %v8645
        %v8671 = vsel %vm8546, %v434, %v8668
        %v8672 = vsel %vm8546, 0, %v8670
        %v8673 = vmul.f32 %v8671, %v8671
        %v8674 = vmul.f32 %v8673, -0.001358992
        %v8675 = vadd.f32 %v8674, 0.041655596
        %v8676 = vmul.f32 %v8673, %v8675
        %v8677 = vadd.f32 %v8676, -0.4999988
        %v8678 = vmul.f32 %v8673, %v8677
        %v8679 = vadd.f32 1.0, %v8678
        %v8680 = vmul.f32 %v8671, %v8671
        %v8681 = vmul.f32 %v8680, -0.00019511016
        %v8682 = vadd.f32 %v8681, 0.008332121
        %v8683 = vmul.f32 %v8680, %v8682
        %v8684 = vadd.f32 %v8683, -0.16666654
        %v8685 = vmul.f32 %v8680, %v8684
        %v8686 = vadd.f32 %v8685, 1.0
        %v8687 = vmul.f32 %v8686, %v8671
        %vm8688 = vweird.f32 %v434
        %v8689 = vadd.s32 %v8672, 3
        %v8690 = vand.u32 %v8689, 3
        %vm8691 = vcmp.lt.s32.totalorder %v8690, 2
        %vm8692 = vcmp.eq.s32.totalorder %v8690, 0
        %v8693 = vxor.u32 %v8687, 2147483648
        %v8694 = vsel %vm8692, %v8679, %v8693
        %vm8695 = vcmp.eq.s32.totalorder %v8690, 2
        %v8696 = vxor.u32 %v8679, 2147483648
        %v8697 = vsel %vm8695, %v8696, %v8687
        %v8698 = vsel %vm8691, %v8694, %v8697
        %v8699 = vsel %vm8688, nan, %v8698
        %v8700 = vand.u32 2147483647, %v437
        %vm8701 = vcmp.le.f32.partialorder %v8700, 0.7853982
        %vm8702 = vcmp.lt.s32.totalorder %v437, 0
        %v8703 = vand.u32 %v437, 2139095040
        %v8704 = vshrl.u32 %v8703, 23
        %v8705 = vsub.s32 %v8704, 127
        %v8706 = vand.u32 2147483647, %v437
        %v8707 = vand.u32 %v8706, 8388607
        %v8708 = vor.u32 %v8707, 8388608
        %v8709 = vsub.s32 0, %v8708
        %v8710 = vadd.s32 %v8705, 1
        %vm8711 = vcmp.gt.s32.totalorder %v8710, 0
        %v8712 = vsel %vm8711, %v8710, 0
        %v8713 = vshrl.u32 %v8712, 5
        %v8714 = vand.u32 %v8712, 31
        %v8715 = vsub.s32 32, %v8714
        %v8716 = vshrl.u32 683565275, %v8715
        %v8717 = vshll.u32 683565275, %v8714
        %v8718 = vshrl.u32 2475754826, %v8715
        %v8719 = vor.u32 %v8717, %v8718
        %v8720 = vshll.u32 2475754826, %v8714
        %v8721 = vshrl.u32 2131351028, %v8715
        %v8722 = vor.u32 %v8720, %v8721
        %v8723 = vshll.u32 2131351028, %v8714
        %v8724 = vshrl.u32 2102212464, %v8715
        %v8725 = vor.u32 %v8723, %v8724
        %v8726 = vshll.u32 2102212464, %v8714
        %v8727 = vshrl.u32 920167782, %v8715
        %v8728 = vor.u32 %v8726, %v8727
        %v8729 = vshll.u32 920167782, %v8714
        %v8730 = vshrl.u32 1326507024, %v8715
        %v8731 = vor.u32 %v8729, %v8730
        %vm8732 = vcmp.lt.s32.totalorder %v8713, 1
        %vm8733 = vcmp.lt.s32.totalorder %v8713, 2
        %vm8734 = vcmp.lt.s32.totalorder %v8713, 3
        %vm8735 = vcmp.lt.s32.totalorder %v8713, 4
        %v8736 = vsel %vm8732, %v8716, %v8719
        %v8737 = vsel %vm8735, %v8725, 2102212464
        %v8738 = vsel %vm8734, %v8722, %v8737
        %v8739 = vsel %vm8733, %v8736, %v8738
        %v8740 = vsel %vm8732, %v8719, %v8722
        %v8741 = vsel %vm8735, %v8728, 920167782
        %v8742 = vsel %vm8734, %v8725, %v8741
        %v8743 = vsel %vm8733, %v8740, %v8742
        %v8744 = vsel %vm8732, %v8722, %v8725
        %v8745 = vsel %vm8735, %v8731, 1326507024
        %v8746 = vsel %vm8734, %v8728, %v8745
        %v8747 = vsel %vm8733, %v8744, %v8746
        %v8748 = vshll.u32 %v8708, 8
        %v8749 = vand.u32 %v8748, 65535
        %v8750 = vshrl.u32 %v8748, 16
        %v8751 = vand.u32 %v8747, 65535
        %v8752 = vshrl.u32 %v8747, 16
        %v8753 = vmul.u32 %v8749, %v8751
        %v8754 = vmul.u32 %v8749, %v8752
        %v8755 = vmul.u32 %v8750, %v8751
        %v8756 = vmul.u32 %v8750, %v8752
        %v8757 = vshll.u32 %v8754, 16
        %v8758 = vshrl.u32 %v8754, 16
        %v8759 = vshll.u32 %v8755, 16
        %v8760 = vshrl.u32 %v8755, 16
        %vm8761 = vc.u32 %v8753, %v8757
        %v8762 = vsel %vm8761, 1, 0
        %v8763 = vadd.s32 %v8753, %v8757
        %v8764 = vadd.s32 %v8756, %v8762
        %vm8765 = vc.u32 %v8763, %v8759
        %v8766 = vsel %vm8765, 1, 0
        %v8767 = vadd.s32 %v8763, %v8759
        %v8768 = vadd.s32 %v8764, %v8766
        %v8769 = vadd.s32 %v8768, %v8758
        %v8770 = vadd.s32 %v8769, %v8760
        %v8771 = vand.u32 %v8748, 65535
        %v8772 = vshrl.u32 %v8748, 16
        %v8773 = vand.u32 %v8743, 65535
        %v8774 = vshrl.u32 %v8743, 16
        %v8775 = vmul.u32 %v8771, %v8773
        %v8776 = vmul.u32 %v8771, %v8774
        %v8777 = vmul.u32 %v8772, %v8773
        %v8778 = vmul.u32 %v8772, %v8774
        %v8779 = vshll.u32 %v8776, 16
        %v8780 = vshrl.u32 %v8776, 16
        %v8781 = vshll.u32 %v8777, 16
        %v8782 = vshrl.u32 %v8777, 16
        %vm8783 = vc.u32 %v8775, %v8779
        %v8784 = vsel %vm8783, 1, 0
        %v8785 = vadd.s32 %v8775, %v8779
        %v8786 = vadd.s32 %v8778, %v8784
        %vm8787 = vc.u32 %v8785, %v8781
        %v8788 = vsel %vm8787, 1, 0
        %v8789 = vadd.s32 %v8785, %v8781
        %v8790 = vadd.s32 %v8786, %v8788
        %v8791 = vadd.s32 %v8790, %v8780
        %v8792 = vadd.s32 %v8791, %v8782
        %v8793 = vmul.u32 %v8748, %v8739
        %v8794 = vadd.s32 %v8770, %v8789
        %vm8795 = vc.u32 %v8770, %v8789
        %v8796 = vadd.s32 %v8792, 1
        %v8797 = vsel %vm8795, %v8796, %v8792
        %v8798 = vadd.s32 %v8793, %v8797
        %v8799 = vadd.s32 %v8798, 536870912
        %v8800 = vshrl.u32 %v8799, 30
        %v8801 = vshll.u32 %v8800, 30
        %v8802 = vsub.s32 %v8798, %v8801
        %vm8803 = vcmp.lt.s32.totalorder %v8802, 0
        %v8804 = vsub.s32 0, %v8802
        %v8805 = vsel %vm8803, %v8804, %v8802
        %v8806 = vclz %v8805
        %v8807 = vsub.s32 %v8806, 2
        %vm8808 = vcmp.gt.s32.totalorder 0, %v8807
        %v8809 = vsel %vm8808, 0, %v8807
        %v8810 = vsub.s32 32, %v8809
        %v8811 = vshll.u32 %v8802, %v8809
        %v8812 = vshrl.u32 %v8794, %v8810
        %v8813 = vor.u32 %v8811, %v8812
        %v8814 = vsub.s32 4294967266, %v8809
        %v8815 = vadd.s32 %v8814, 127
        %v8816 = vshll.u32 %v8815, 23
        %v8817 = vor.u32 4788187, %v8816
        %v8818 = vand.u32 2147483647, %v8817
        %v8820 = vcvt.s32.f32 %v8813
        %v8821 = vmul.f32 %v8820, %v8818
        %v8822 = vxor.u32 %v8821, 2147483648
        %v8823 = vsel %vm8702, %v8822, %v8821
        %v8824 = vsub.s32 4, %v8800
        %v8825 = vsel %vm8702, %v8824, %v8800
        %v8826 = vsel %vm8701, %v437, %v8823
        %v8827 = vsel %vm8701, 0, %v8825
        %v8828 = vmul.f32 %v8826, %v8826
        %v8829 = vmul.f32 %v8828, -0.001358992
        %v8830 = vadd.f32 %v8829, 0.041655596
        %v8831 = vmul.f32 %v8828, %v8830
        %v8832 = vadd.f32 %v8831, -0.4999988
        %v8833 = vmul.f32 %v8828, %v8832
        %v8834 = vadd.f32 1.0, %v8833
        %v8835 = vmul.f32 %v8826, %v8826
        %v8836 = vmul.f32 %v8835, -0.00019511016
        %v8837 = vadd.f32 %v8836, 0.008332121
        %v8838 = vmul.f32 %v8835, %v8837
        %v8839 = vadd.f32 %v8838, -0.16666654
        %v8840 = vmul.f32 %v8835, %v8839
        %v8841 = vadd.f32 %v8840, 1.0
        %v8842 = vmul.f32 %v8841, %v8826
        %vm8843 = vweird.f32 %v437
        %v8844 = vadd.s32 %v8827, 3
        %v8845 = vand.u32 %v8844, 3
        %vm8846 = vcmp.lt.s32.totalorder %v8845, 2
        %vm8847 = vcmp.eq.s32.totalorder %v8845, 0
        %v8848 = vxor.u32 %v8842, 2147483648
        %v8849 = vsel %vm8847, %v8834, %v8848
        %vm8850 = vcmp.eq.s32.totalorder %v8845, 2
        %v8851 = vxor.u32 %v8834, 2147483648
        %v8852 = vsel %vm8850, %v8851, %v8842
        %v8853 = vsel %vm8846, %v8849, %v8852
        %v8854 = vsel %vm8843, nan, %v8853
        %v8855 = vand.u32 2147483647, %v440
        %vm8856 = vcmp.le.f32.partialorder %v8855, 0.7853982
        %vm8857 = vcmp.lt.s32.totalorder %v440, 0
        %v8858 = vand.u32 %v440, 2139095040
        %v8859 = vshrl.u32 %v8858, 23
        %v8860 = vsub.s32 %v8859, 127
        %v8861 = vand.u32 2147483647, %v440
        %v8862 = vand.u32 %v8861, 8388607
        %v8863 = vor.u32 %v8862, 8388608
        %v8864 = vsub.s32 0, %v8863
        %v8865 = vadd.s32 %v8860, 1
        %vm8866 = vcmp.gt.s32.totalorder %v8865, 0
        %v8867 = vsel %vm8866, %v8865, 0
        %v8868 = vshrl.u32 %v8867, 5
        %v8869 = vand.u32 %v8867, 31
        %v8870 = vsub.s32 32, %v8869
        %v8871 = vshrl.u32 683565275, %v8870
        %v8872 = vshll.u32 683565275, %v8869
        %v8873 = vshrl.u32 2475754826, %v8870
        %v8874 = vor.u32 %v8872, %v8873
        %v8875 = vshll.u32 2475754826, %v8869
        %v8876 = vshrl.u32 2131351028, %v8870
        %v8877 = vor.u32 %v8875, %v8876
        %v8878 = vshll.u32 2131351028, %v8869
        %v8879 = vshrl.u32 2102212464, %v8870
        %v8880 = vor.u32 %v8878, %v8879
        %v8881 = vshll.u32 2102212464, %v8869
        %v8882 = vshrl.u32 920167782, %v8870
        %v8883 = vor.u32 %v8881, %v8882
        %v8884 = vshll.u32 920167782, %v8869
        %v8885 = vshrl.u32 1326507024, %v8870
        %v8886 = vor.u32 %v8884, %v8885
        %vm8887 = vcmp.lt.s32.totalorder %v8868, 1
        %vm8888 = vcmp.lt.s32.totalorder %v8868, 2
        %vm8889 = vcmp.lt.s32.totalorder %v8868, 3
        %vm8890 = vcmp.lt.s32.totalorder %v8868, 4
        %v8891 = vsel %vm8887, %v8871, %v8874
        %v8892 = vsel %vm8890, %v8880, 2102212464
        %v8893 = vsel %vm8889, %v8877, %v8892
        %v8894 = vsel %vm8888, %v8891, %v8893
        %v8895 = vsel %vm8887, %v8874, %v8877
        %v8896 = vsel %vm8890, %v8883, 920167782
        %v8897 = vsel %vm8889, %v8880, %v8896
        %v8898 = vsel %vm8888, %v8895, %v8897
        %v8899 = vsel %vm8887, %v8877, %v8880
        %v8900 = vsel %vm8890, %v8886, 1326507024
        %v8901 = vsel %vm8889, %v8883, %v8900
        %v8902 = vsel %vm8888, %v8899, %v8901
        %v8903 = vshll.u32 %v8863, 8
        %v8904 = vand.u32 %v8903, 65535
        %v8905 = vshrl.u32 %v8903, 16
        %v8906 = vand.u32 %v8902, 65535
        %v8907 = vshrl.u32 %v8902, 16
        %v8908 = vmul.u32 %v8904, %v8906
        %v8909 = vmul.u32 %v8904, %v8907
        %v8910 = vmul.u32 %v8905, %v8906
        %v8911 = vmul.u32 %v8905, %v8907
        %v8912 = vshll.u32 %v8909, 16
        %v8913 = vshrl.u32 %v8909, 16
        %v8914 = vshll.u32 %v8910, 16
        %v8915 = vshrl.u32 %v8910, 16
        %vm8916 = vc.u32 %v8908, %v8912
        %v8917 = vsel %vm8916, 1, 0
        %v8918 = vadd.s32 %v8908, %v8912
        %v8919 = vadd.s32 %v8911, %v8917
        %vm8920 = vc.u32 %v8918, %v8914
        %v8921 = vsel %vm8920, 1, 0
        %v8922 = vadd.s32 %v8918, %v8914
        %v8923 = vadd.s32 %v8919, %v8921
        %v8924 = vadd.s32 %v8923, %v8913
        %v8925 = vadd.s32 %v8924, %v8915
        %v8926 = vand.u32 %v8903, 65535
        %v8927 = vshrl.u32 %v8903, 16
        %v8928 = vand.u32 %v8898, 65535
        %v8929 = vshrl.u32 %v8898, 16
        %v8930 = vmul.u32 %v8926, %v8928
        %v8931 = vmul.u32 %v8926, %v8929
        %v8932 = vmul.u32 %v8927, %v8928
        %v8933 = vmul.u32 %v8927, %v8929
        %v8934 = vshll.u32 %v8931, 16
        %v8935 = vshrl.u32 %v8931, 16
        %v8936 = vshll.u32 %v8932, 16
        %v8937 = vshrl.u32 %v8932, 16
        %vm8938 = vc.u32 %v8930, %v8934
        %v8939 = vsel %vm8938, 1, 0
        %v8940 = vadd.s32 %v8930, %v8934
        %v8941 = vadd.s32 %v8933, %v8939
        %vm8942 = vc.u32 %v8940, %v8936
        %v8943 = vsel %vm8942, 1, 0
        %v8944 = vadd.s32 %v8940, %v8936
        %v8945 = vadd.s32 %v8941, %v8943
        %v8946 = vadd.s32 %v8945, %v8935
        %v8947 = vadd.s32 %v8946, %v8937
        %v8948 = vmul.u32 %v8903, %v8894
        %v8949 = vadd.s32 %v8925, %v8944
        %vm8950 = vc.u32 %v8925, %v8944
        %v8951 = vadd.s32 %v8947, 1
        %v8952 = vsel %vm8950, %v8951, %v8947
        %v8953 = vadd.s32 %v8948, %v8952
        %v8954 = vadd.s32 %v8953, 536870912
        %v8955 = vshrl.u32 %v8954, 30
        %v8956 = vshll.u32 %v8955, 30
        %v8957 = vsub.s32 %v8953, %v8956
        %vm8958 = vcmp.lt.s32.totalorder %v8957, 0
        %v8959 = vsub.s32 0, %v8957
        %v8960 = vsel %vm8958, %v8959, %v8957
        %v8961 = vclz %v8960
        %v8962 = vsub.s32 %v8961, 2
        %vm8963 = vcmp.gt.s32.totalorder 0, %v8962
        %v8964 = vsel %vm8963, 0, %v8962
        %v8965 = vsub.s32 32, %v8964
        %v8966 = vshll.u32 %v8957, %v8964
        %v8967 = vshrl.u32 %v8949, %v8965
        %v8968 = vor.u32 %v8966, %v8967
        %v8969 = vsub.s32 4294967266, %v8964
        %v8970 = vadd.s32 %v8969, 127
        %v8971 = vshll.u32 %v8970, 23
        %v8972 = vor.u32 4788187, %v8971
        %v8973 = vand.u32 2147483647, %v8972
        %v8975 = vcvt.s32.f32 %v8968
        %v8976 = vmul.f32 %v8975, %v8973
        %v8977 = vxor.u32 %v8976, 2147483648
        %v8978 = vsel %vm8857, %v8977, %v8976
        %v8979 = vsub.s32 4, %v8955
        %v8980 = vsel %vm8857, %v8979, %v8955
        %v8981 = vsel %vm8856, %v440, %v8978
        %v8982 = vsel %vm8856, 0, %v8980
        %v8983 = vmul.f32 %v8981, %v8981
        %v8984 = vmul.f32 %v8983, -0.001358992
        %v8985 = vadd.f32 %v8984, 0.041655596
        %v8986 = vmul.f32 %v8983, %v8985
        %v8987 = vadd.f32 %v8986, -0.4999988
        %v8988 = vmul.f32 %v8983, %v8987
        %v8989 = vadd.f32 1.0, %v8988
        %v8990 = vmul.f32 %v8981, %v8981
        %v8991 = vmul.f32 %v8990, -0.00019511016
        %v8992 = vadd.f32 %v8991, 0.008332121
        %v8993 = vmul.f32 %v8990, %v8992
        %v8994 = vadd.f32 %v8993, -0.16666654
        %v8995 = vmul.f32 %v8990, %v8994
        %v8996 = vadd.f32 %v8995, 1.0
        %v8997 = vmul.f32 %v8996, %v8981
        %vm8998 = vweird.f32 %v440
        %v8999 = vadd.s32 %v8982, 3
        %v9000 = vand.u32 %v8999, 3
        %vm9001 = vcmp.lt.s32.totalorder %v9000, 2
        %vm9002 = vcmp.eq.s32.totalorder %v9000, 0
        %v9003 = vxor.u32 %v8997, 2147483648
        %v9004 = vsel %vm9002, %v8989, %v9003
        %vm9005 = vcmp.eq.s32.totalorder %v9000, 2
        %v9006 = vxor.u32 %v8989, 2147483648
        %v9007 = vsel %vm9005, %v9006, %v8997
        %v9008 = vsel %vm9001, %v9004, %v9007
        %v9009 = vsel %vm8998, nan, %v9008
        %v9010 = vand.u32 2147483647, %v443
        %vm9011 = vcmp.le.f32.partialorder %v9010, 0.7853982
        %vm9012 = vcmp.lt.s32.totalorder %v443, 0
        %v9013 = vand.u32 %v443, 2139095040
        %v9014 = vshrl.u32 %v9013, 23
        %v9015 = vsub.s32 %v9014, 127
        %v9016 = vand.u32 2147483647, %v443
        %v9017 = vand.u32 %v9016, 8388607
        %v9018 = vor.u32 %v9017, 8388608
        %v9019 = vsub.s32 0, %v9018
        %v9020 = vadd.s32 %v9015, 1
        %vm9021 = vcmp.gt.s32.totalorder %v9020, 0
        %v9022 = vsel %vm9021, %v9020, 0
        %v9023 = vshrl.u32 %v9022, 5
        %v9024 = vand.u32 %v9022, 31
        %v9025 = vsub.s32 32, %v9024
        %v9026 = vshrl.u32 683565275, %v9025
        %v9027 = vshll.u32 683565275, %v9024
        %v9028 = vshrl.u32 2475754826, %v9025
        %v9029 = vor.u32 %v9027, %v9028
        %v9030 = vshll.u32 2475754826, %v9024
        %v9031 = vshrl.u32 2131351028, %v9025
        %v9032 = vor.u32 %v9030, %v9031
        %v9033 = vshll.u32 2131351028, %v9024
        %v9034 = vshrl.u32 2102212464, %v9025
        %v9035 = vor.u32 %v9033, %v9034
        %v9036 = vshll.u32 2102212464, %v9024
        %v9037 = vshrl.u32 920167782, %v9025
        %v9038 = vor.u32 %v9036, %v9037
        %v9039 = vshll.u32 920167782, %v9024
        %v9040 = vshrl.u32 1326507024, %v9025
        %v9041 = vor.u32 %v9039, %v9040
        %vm9042 = vcmp.lt.s32.totalorder %v9023, 1
        %vm9043 = vcmp.lt.s32.totalorder %v9023, 2
        %vm9044 = vcmp.lt.s32.totalorder %v9023, 3
        %vm9045 = vcmp.lt.s32.totalorder %v9023, 4
        %v9046 = vsel %vm9042, %v9026, %v9029
        %v9047 = vsel %vm9045, %v9035, 2102212464
        %v9048 = vsel %vm9044, %v9032, %v9047
        %v9049 = vsel %vm9043, %v9046, %v9048
        %v9050 = vsel %vm9042, %v9029, %v9032
        %v9051 = vsel %vm9045, %v9038, 920167782
        %v9052 = vsel %vm9044, %v9035, %v9051
        %v9053 = vsel %vm9043, %v9050, %v9052
        %v9054 = vsel %vm9042, %v9032, %v9035
        %v9055 = vsel %vm9045, %v9041, 1326507024
        %v9056 = vsel %vm9044, %v9038, %v9055
        %v9057 = vsel %vm9043, %v9054, %v9056
        %v9058 = vshll.u32 %v9018, 8
        %v9059 = vand.u32 %v9058, 65535
        %v9060 = vshrl.u32 %v9058, 16
        %v9061 = vand.u32 %v9057, 65535
        %v9062 = vshrl.u32 %v9057, 16
        %v9063 = vmul.u32 %v9059, %v9061
        %v9064 = vmul.u32 %v9059, %v9062
        %v9065 = vmul.u32 %v9060, %v9061
        %v9066 = vmul.u32 %v9060, %v9062
        %v9067 = vshll.u32 %v9064, 16
        %v9068 = vshrl.u32 %v9064, 16
        %v9069 = vshll.u32 %v9065, 16
        %v9070 = vshrl.u32 %v9065, 16
        %vm9071 = vc.u32 %v9063, %v9067
        %v9072 = vsel %vm9071, 1, 0
        %v9073 = vadd.s32 %v9063, %v9067
        %v9074 = vadd.s32 %v9066, %v9072
        %vm9075 = vc.u32 %v9073, %v9069
        %v9076 = vsel %vm9075, 1, 0
        %v9077 = vadd.s32 %v9073, %v9069
        %v9078 = vadd.s32 %v9074, %v9076
        %v9079 = vadd.s32 %v9078, %v9068
        %v9080 = vadd.s32 %v9079, %v9070
        %v9081 = vand.u32 %v9058, 65535
        %v9082 = vshrl.u32 %v9058, 16
        %v9083 = vand.u32 %v9053, 65535
        %v9084 = vshrl.u32 %v9053, 16
        %v9085 = vmul.u32 %v9081, %v9083
        %v9086 = vmul.u32 %v9081, %v9084
        %v9087 = vmul.u32 %v9082, %v9083
        %v9088 = vmul.u32 %v9082, %v9084
        %v9089 = vshll.u32 %v9086, 16
        %v9090 = vshrl.u32 %v9086, 16
        %v9091 = vshll.u32 %v9087, 16
        %v9092 = vshrl.u32 %v9087, 16
        %vm9093 = vc.u32 %v9085, %v9089
        %v9094 = vsel %vm9093, 1, 0
        %v9095 = vadd.s32 %v9085, %v9089
        %v9096 = vadd.s32 %v9088, %v9094
        %vm9097 = vc.u32 %v9095, %v9091
        %v9098 = vsel %vm9097, 1, 0
        %v9099 = vadd.s32 %v9095, %v9091
        %v9100 = vadd.s32 %v9096, %v9098
        %v9101 = vadd.s32 %v9100, %v9090
        %v9102 = vadd.s32 %v9101, %v9092
        %v9103 = vmul.u32 %v9058, %v9049
        %v9104 = vadd.s32 %v9080, %v9099
        %vm9105 = vc.u32 %v9080, %v9099
        %v9106 = vadd.s32 %v9102, 1
        %v9107 = vsel %vm9105, %v9106, %v9102
        %v9108 = vadd.s32 %v9103, %v9107
        %v9109 = vadd.s32 %v9108, 536870912
        %v9110 = vshrl.u32 %v9109, 30
        %v9111 = vshll.u32 %v9110, 30
        %v9112 = vsub.s32 %v9108, %v9111
        %vm9113 = vcmp.lt.s32.totalorder %v9112, 0
        %v9114 = vsub.s32 0, %v9112
        %v9115 = vsel %vm9113, %v9114, %v9112
        %v9116 = vclz %v9115
        %v9117 = vsub.s32 %v9116, 2
        %vm9118 = vcmp.gt.s32.totalorder 0, %v9117
        %v9119 = vsel %vm9118, 0, %v9117
        %v9120 = vsub.s32 32, %v9119
        %v9121 = vshll.u32 %v9112, %v9119
        %v9122 = vshrl.u32 %v9104, %v9120
        %v9123 = vor.u32 %v9121, %v9122
        %v9124 = vsub.s32 4294967266, %v9119
        %v9125 = vadd.s32 %v9124, 127
        %v9126 = vshll.u32 %v9125, 23
        %v9127 = vor.u32 4788187, %v9126
        %v9128 = vand.u32 2147483647, %v9127
        %v9130 = vcvt.s32.f32 %v9123
        %v9131 = vmul.f32 %v9130, %v9128
        %v9132 = vxor.u32 %v9131, 2147483648
        %v9133 = vsel %vm9012, %v9132, %v9131
        %v9134 = vsub.s32 4, %v9110
        %v9135 = vsel %vm9012, %v9134, %v9110
        %v9136 = vsel %vm9011, %v443, %v9133
        %v9137 = vsel %vm9011, 0, %v9135
        %v9138 = vmul.f32 %v9136, %v9136
        %v9139 = vmul.f32 %v9138, -0.001358992
        %v9140 = vadd.f32 %v9139, 0.041655596
        %v9141 = vmul.f32 %v9138, %v9140
        %v9142 = vadd.f32 %v9141, -0.4999988
        %v9143 = vmul.f32 %v9138, %v9142
        %v9144 = vadd.f32 1.0, %v9143
        %v9145 = vmul.f32 %v9136, %v9136
        %v9146 = vmul.f32 %v9145, -0.00019511016
        %v9147 = vadd.f32 %v9146, 0.008332121
        %v9148 = vmul.f32 %v9145, %v9147
        %v9149 = vadd.f32 %v9148, -0.16666654
        %v9150 = vmul.f32 %v9145, %v9149
        %v9151 = vadd.f32 %v9150, 1.0
        %v9152 = vmul.f32 %v9151, %v9136
        %vm9153 = vweird.f32 %v443
        %v9154 = vadd.s32 %v9137, 3
        %v9155 = vand.u32 %v9154, 3
        %vm9156 = vcmp.lt.s32.totalorder %v9155, 2
        %vm9157 = vcmp.eq.s32.totalorder %v9155, 0
        %v9158 = vxor.u32 %v9152, 2147483648
        %v9159 = vsel %vm9157, %v9144, %v9158
        %vm9160 = vcmp.eq.s32.totalorder %v9155, 2
        %v9161 = vxor.u32 %v9144, 2147483648
        %v9162 = vsel %vm9160, %v9161, %v9152
        %v9163 = vsel %vm9156, %v9159, %v9162
        %v9164 = vsel %vm9153, nan, %v9163
        %v9165 = vand.u32 2147483647, %v446
        %vm9166 = vcmp.le.f32.partialorder %v9165, 0.7853982
        %vm9167 = vcmp.lt.s32.totalorder %v446, 0
        %v9168 = vand.u32 %v446, 2139095040
        %v9169 = vshrl.u32 %v9168, 23
        %v9170 = vsub.s32 %v9169, 127
        %v9171 = vand.u32 2147483647, %v446
        %v9172 = vand.u32 %v9171, 8388607
        %v9173 = vor.u32 %v9172, 8388608
        %v9174 = vsub.s32 0, %v9173
        %v9175 = vadd.s32 %v9170, 1
        %vm9176 = vcmp.gt.s32.totalorder %v9175, 0
        %v9177 = vsel %vm9176, %v9175, 0
        %v9178 = vshrl.u32 %v9177, 5
        %v9179 = vand.u32 %v9177, 31
        %v9180 = vsub.s32 32, %v9179
        %v9181 = vshrl.u32 683565275, %v9180
        %v9182 = vshll.u32 683565275, %v9179
        %v9183 = vshrl.u32 2475754826, %v9180
        %v9184 = vor.u32 %v9182, %v9183
        %v9185 = vshll.u32 2475754826, %v9179
        %v9186 = vshrl.u32 2131351028, %v9180
        %v9187 = vor.u32 %v9185, %v9186
        %v9188 = vshll.u32 2131351028, %v9179
        %v9189 = vshrl.u32 2102212464, %v9180
        %v9190 = vor.u32 %v9188, %v9189
        %v9191 = vshll.u32 2102212464, %v9179
        %v9192 = vshrl.u32 920167782, %v9180
        %v9193 = vor.u32 %v9191, %v9192
        %v9194 = vshll.u32 920167782, %v9179
        %v9195 = vshrl.u32 1326507024, %v9180
        %v9196 = vor.u32 %v9194, %v9195
        %vm9197 = vcmp.lt.s32.totalorder %v9178, 1
        %vm9198 = vcmp.lt.s32.totalorder %v9178, 2
        %vm9199 = vcmp.lt.s32.totalorder %v9178, 3
        %vm9200 = vcmp.lt.s32.totalorder %v9178, 4
        %v9201 = vsel %vm9197, %v9181, %v9184
        %v9202 = vsel %vm9200, %v9190, 2102212464
        %v9203 = vsel %vm9199, %v9187, %v9202
        %v9204 = vsel %vm9198, %v9201, %v9203
        %v9205 = vsel %vm9197, %v9184, %v9187
        %v9206 = vsel %vm9200, %v9193, 920167782
        %v9207 = vsel %vm9199, %v9190, %v9206
        %v9208 = vsel %vm9198, %v9205, %v9207
        %v9209 = vsel %vm9197, %v9187, %v9190
        %v9210 = vsel %vm9200, %v9196, 1326507024
        %v9211 = vsel %vm9199, %v9193, %v9210
        %v9212 = vsel %vm9198, %v9209, %v9211
        %v9213 = vshll.u32 %v9173, 8
        %v9214 = vand.u32 %v9213, 65535
        %v9215 = vshrl.u32 %v9213, 16
        %v9216 = vand.u32 %v9212, 65535
        %v9217 = vshrl.u32 %v9212, 16
        %v9218 = vmul.u32 %v9214, %v9216
        %v9219 = vmul.u32 %v9214, %v9217
        %v9220 = vmul.u32 %v9215, %v9216
        %v9221 = vmul.u32 %v9215, %v9217
        %v9222 = vshll.u32 %v9219, 16
        %v9223 = vshrl.u32 %v9219, 16
        %v9224 = vshll.u32 %v9220, 16
        %v9225 = vshrl.u32 %v9220, 16
        %vm9226 = vc.u32 %v9218, %v9222
        %v9227 = vsel %vm9226, 1, 0
        %v9228 = vadd.s32 %v9218, %v9222
        %v9229 = vadd.s32 %v9221, %v9227
        %vm9230 = vc.u32 %v9228, %v9224
        %v9231 = vsel %vm9230, 1, 0
        %v9232 = vadd.s32 %v9228, %v9224
        %v9233 = vadd.s32 %v9229, %v9231
        %v9234 = vadd.s32 %v9233, %v9223
        %v9235 = vadd.s32 %v9234, %v9225
        %v9236 = vand.u32 %v9213, 65535
        %v9237 = vshrl.u32 %v9213, 16
        %v9238 = vand.u32 %v9208, 65535
        %v9239 = vshrl.u32 %v9208, 16
        %v9240 = vmul.u32 %v9236, %v9238
        %v9241 = vmul.u32 %v9236, %v9239
        %v9242 = vmul.u32 %v9237, %v9238
        %v9243 = vmul.u32 %v9237, %v9239
        %v9244 = vshll.u32 %v9241, 16
        %v9245 = vshrl.u32 %v9241, 16
        %v9246 = vshll.u32 %v9242, 16
        %v9247 = vshrl.u32 %v9242, 16
        %vm9248 = vc.u32 %v9240, %v9244
        %v9249 = vsel %vm9248, 1, 0
        %v9250 = vadd.s32 %v9240, %v9244
        %v9251 = vadd.s32 %v9243, %v9249
        %vm9252 = vc.u32 %v9250, %v9246
        %v9253 = vsel %vm9252, 1, 0
        %v9254 = vadd.s32 %v9250, %v9246
        %v9255 = vadd.s32 %v9251, %v9253
        %v9256 = vadd.s32 %v9255, %v9245
        %v9257 = vadd.s32 %v9256, %v9247
        %v9258 = vmul.u32 %v9213, %v9204
        %v9259 = vadd.s32 %v9235, %v9254
        %vm9260 = vc.u32 %v9235, %v9254
        %v9261 = vadd.s32 %v9257, 1
        %v9262 = vsel %vm9260, %v9261, %v9257
        %v9263 = vadd.s32 %v9258, %v9262
        %v9264 = vadd.s32 %v9263, 536870912
        %v9265 = vshrl.u32 %v9264, 30
        %v9266 = vshll.u32 %v9265, 30
        %v9267 = vsub.s32 %v9263, %v9266
        %vm9268 = vcmp.lt.s32.totalorder %v9267, 0
        %v9269 = vsub.s32 0, %v9267
        %v9270 = vsel %vm9268, %v9269, %v9267
        %v9271 = vclz %v9270
        %v9272 = vsub.s32 %v9271, 2
        %vm9273 = vcmp.gt.s32.totalorder 0, %v9272
        %v9274 = vsel %vm9273, 0, %v9272
        %v9275 = vsub.s32 32, %v9274
        %v9276 = vshll.u32 %v9267, %v9274
        %v9277 = vshrl.u32 %v9259, %v9275
        %v9278 = vor.u32 %v9276, %v9277
        %v9279 = vsub.s32 4294967266, %v9274
        %v9280 = vadd.s32 %v9279, 127
        %v9281 = vshll.u32 %v9280, 23
        %v9282 = vor.u32 4788187, %v9281
        %v9283 = vand.u32 2147483647, %v9282
        %v9285 = vcvt.s32.f32 %v9278
        %v9286 = vmul.f32 %v9285, %v9283
        %v9287 = vxor.u32 %v9286, 2147483648
        %v9288 = vsel %vm9167, %v9287, %v9286
        %v9289 = vsub.s32 4, %v9265
        %v9290 = vsel %vm9167, %v9289, %v9265
        %v9291 = vsel %vm9166, %v446, %v9288
        %v9292 = vsel %vm9166, 0, %v9290
        %v9293 = vmul.f32 %v9291, %v9291
        %v9294 = vmul.f32 %v9293, -0.001358992
        %v9295 = vadd.f32 %v9294, 0.041655596
        %v9296 = vmul.f32 %v9293, %v9295
        %v9297 = vadd.f32 %v9296, -0.4999988
        %v9298 = vmul.f32 %v9293, %v9297
        %v9299 = vadd.f32 1.0, %v9298
        %v9300 = vmul.f32 %v9291, %v9291
        %v9301 = vmul.f32 %v9300, -0.00019511016
        %v9302 = vadd.f32 %v9301, 0.008332121
        %v9303 = vmul.f32 %v9300, %v9302
        %v9304 = vadd.f32 %v9303, -0.16666654
        %v9305 = vmul.f32 %v9300, %v9304
        %v9306 = vadd.f32 %v9305, 1.0
        %v9307 = vmul.f32 %v9306, %v9291
        %vm9308 = vweird.f32 %v446
        %v9309 = vadd.s32 %v9292, 3
        %v9310 = vand.u32 %v9309, 3
        %vm9311 = vcmp.lt.s32.totalorder %v9310, 2
        %vm9312 = vcmp.eq.s32.totalorder %v9310, 0
        %v9313 = vxor.u32 %v9307, 2147483648
        %v9314 = vsel %vm9312, %v9299, %v9313
        %vm9315 = vcmp.eq.s32.totalorder %v9310, 2
        %v9316 = vxor.u32 %v9299, 2147483648
        %v9317 = vsel %vm9315, %v9316, %v9307
        %v9318 = vsel %vm9311, %v9314, %v9317
        %v9319 = vsel %vm9308, nan, %v9318
        %v9320 = vand.u32 2147483647, %v449
        %vm9321 = vcmp.le.f32.partialorder %v9320, 0.7853982
        %vm9322 = vcmp.lt.s32.totalorder %v449, 0
        %v9323 = vand.u32 %v449, 2139095040
        %v9324 = vshrl.u32 %v9323, 23
        %v9325 = vsub.s32 %v9324, 127
        %v9326 = vand.u32 2147483647, %v449
        %v9327 = vand.u32 %v9326, 8388607
        %v9328 = vor.u32 %v9327, 8388608
        %v9329 = vsub.s32 0, %v9328
        %v9330 = vadd.s32 %v9325, 1
        %vm9331 = vcmp.gt.s32.totalorder %v9330, 0
        %v9332 = vsel %vm9331, %v9330, 0
        %v9333 = vshrl.u32 %v9332, 5
        %v9334 = vand.u32 %v9332, 31
        %v9335 = vsub.s32 32, %v9334
        %v9336 = vshrl.u32 683565275, %v9335
        %v9337 = vshll.u32 683565275, %v9334
        %v9338 = vshrl.u32 2475754826, %v9335
        %v9339 = vor.u32 %v9337, %v9338
        %v9340 = vshll.u32 2475754826, %v9334
        %v9341 = vshrl.u32 2131351028, %v9335
        %v9342 = vor.u32 %v9340, %v9341
        %v9343 = vshll.u32 2131351028, %v9334
        %v9344 = vshrl.u32 2102212464, %v9335
        %v9345 = vor.u32 %v9343, %v9344
        %v9346 = vshll.u32 2102212464, %v9334
        %v9347 = vshrl.u32 920167782, %v9335
        %v9348 = vor.u32 %v9346, %v9347
        %v9349 = vshll.u32 920167782, %v9334
        %v9350 = vshrl.u32 1326507024, %v9335
        %v9351 = vor.u32 %v9349, %v9350
        %vm9352 = vcmp.lt.s32.totalorder %v9333, 1
        %vm9353 = vcmp.lt.s32.totalorder %v9333, 2
        %vm9354 = vcmp.lt.s32.totalorder %v9333, 3
        %vm9355 = vcmp.lt.s32.totalorder %v9333, 4
        %v9356 = vsel %vm9352, %v9336, %v9339
        %v9357 = vsel %vm9355, %v9345, 2102212464
        %v9358 = vsel %vm9354, %v9342, %v9357
        %v9359 = vsel %vm9353, %v9356, %v9358
        %v9360 = vsel %vm9352, %v9339, %v9342
        %v9361 = vsel %vm9355, %v9348, 920167782
        %v9362 = vsel %vm9354, %v9345, %v9361
        %v9363 = vsel %vm9353, %v9360, %v9362
        %v9364 = vsel %vm9352, %v9342, %v9345
        %v9365 = vsel %vm9355, %v9351, 1326507024
        %v9366 = vsel %vm9354, %v9348, %v9365
        %v9367 = vsel %vm9353, %v9364, %v9366
        %v9368 = vshll.u32 %v9328, 8
        %v9369 = vand.u32 %v9368, 65535
        %v9370 = vshrl.u32 %v9368, 16
        %v9371 = vand.u32 %v9367, 65535
        %v9372 = vshrl.u32 %v9367, 16
        %v9373 = vmul.u32 %v9369, %v9371
        %v9374 = vmul.u32 %v9369, %v9372
        %v9375 = vmul.u32 %v9370, %v9371
        %v9376 = vmul.u32 %v9370, %v9372
        %v9377 = vshll.u32 %v9374, 16
        %v9378 = vshrl.u32 %v9374, 16
        %v9379 = vshll.u32 %v9375, 16
        %v9380 = vshrl.u32 %v9375, 16
        %vm9381 = vc.u32 %v9373, %v9377
        %v9382 = vsel %vm9381, 1, 0
        %v9383 = vadd.s32 %v9373, %v9377
        %v9384 = vadd.s32 %v9376, %v9382
        %vm9385 = vc.u32 %v9383, %v9379
        %v9386 = vsel %vm9385, 1, 0
        %v9387 = vadd.s32 %v9383, %v9379
        %v9388 = vadd.s32 %v9384, %v9386
        %v9389 = vadd.s32 %v9388, %v9378
        %v9390 = vadd.s32 %v9389, %v9380
        %v9391 = vand.u32 %v9368, 65535
        %v9392 = vshrl.u32 %v9368, 16
        %v9393 = vand.u32 %v9363, 65535
        %v9394 = vshrl.u32 %v9363, 16
        %v9395 = vmul.u32 %v9391, %v9393
        %v9396 = vmul.u32 %v9391, %v9394
        %v9397 = vmul.u32 %v9392, %v9393
        %v9398 = vmul.u32 %v9392, %v9394
        %v9399 = vshll.u32 %v9396, 16
        %v9400 = vshrl.u32 %v9396, 16
        %v9401 = vshll.u32 %v9397, 16
        %v9402 = vshrl.u32 %v9397, 16
        %vm9403 = vc.u32 %v9395, %v9399
        %v9404 = vsel %vm9403, 1, 0
        %v9405 = vadd.s32 %v9395, %v9399
        %v9406 = vadd.s32 %v9398, %v9404
        %vm9407 = vc.u32 %v9405, %v9401
        %v9408 = vsel %vm9407, 1, 0
        %v9409 = vadd.s32 %v9405, %v9401
        %v9410 = vadd.s32 %v9406, %v9408
        %v9411 = vadd.s32 %v9410, %v9400
        %v9412 = vadd.s32 %v9411, %v9402
        %v9413 = vmul.u32 %v9368, %v9359
        %v9414 = vadd.s32 %v9390, %v9409
        %vm9415 = vc.u32 %v9390, %v9409
        %v9416 = vadd.s32 %v9412, 1
        %v9417 = vsel %vm9415, %v9416, %v9412
        %v9418 = vadd.s32 %v9413, %v9417
        %v9419 = vadd.s32 %v9418, 536870912
        %v9420 = vshrl.u32 %v9419, 30
        %v9421 = vshll.u32 %v9420, 30
        %v9422 = vsub.s32 %v9418, %v9421
        %vm9423 = vcmp.lt.s32.totalorder %v9422, 0
        %v9424 = vsub.s32 0, %v9422
        %v9425 = vsel %vm9423, %v9424, %v9422
        %v9426 = vclz %v9425
        %v9427 = vsub.s32 %v9426, 2
        %vm9428 = vcmp.gt.s32.totalorder 0, %v9427
        %v9429 = vsel %vm9428, 0, %v9427
        %v9430 = vsub.s32 32, %v9429
        %v9431 = vshll.u32 %v9422, %v9429
        %v9432 = vshrl.u32 %v9414, %v9430
        %v9433 = vor.u32 %v9431, %v9432
        %v9434 = vsub.s32 4294967266, %v9429
        %v9435 = vadd.s32 %v9434, 127
        %v9436 = vshll.u32 %v9435, 23
        %v9437 = vor.u32 4788187, %v9436
        %v9438 = vand.u32 2147483647, %v9437
        %v9440 = vcvt.s32.f32 %v9433
        %v9441 = vmul.f32 %v9440, %v9438
        %v9442 = vxor.u32 %v9441, 2147483648
        %v9443 = vsel %vm9322, %v9442, %v9441
        %v9444 = vsub.s32 4, %v9420
        %v9445 = vsel %vm9322, %v9444, %v9420
        %v9446 = vsel %vm9321, %v449, %v9443
        %v9447 = vsel %vm9321, 0, %v9445
        %v9448 = vmul.f32 %v9446, %v9446
        %v9449 = vmul.f32 %v9448, -0.001358992
        %v9450 = vadd.f32 %v9449, 0.041655596
        %v9451 = vmul.f32 %v9448, %v9450
        %v9452 = vadd.f32 %v9451, -0.4999988
        %v9453 = vmul.f32 %v9448, %v9452
        %v9454 = vadd.f32 1.0, %v9453
        %v9455 = vmul.f32 %v9446, %v9446
        %v9456 = vmul.f32 %v9455, -0.00019511016
        %v9457 = vadd.f32 %v9456, 0.008332121
        %v9458 = vmul.f32 %v9455, %v9457
        %v9459 = vadd.f32 %v9458, -0.16666654
        %v9460 = vmul.f32 %v9455, %v9459
        %v9461 = vadd.f32 %v9460, 1.0
        %v9462 = vmul.f32 %v9461, %v9446
        %vm9463 = vweird.f32 %v449
        %v9464 = vadd.s32 %v9447, 3
        %v9465 = vand.u32 %v9464, 3
        %vm9466 = vcmp.lt.s32.totalorder %v9465, 2
        %vm9467 = vcmp.eq.s32.totalorder %v9465, 0
        %v9468 = vxor.u32 %v9462, 2147483648
        %v9469 = vsel %vm9467, %v9454, %v9468
        %vm9470 = vcmp.eq.s32.totalorder %v9465, 2
        %v9471 = vxor.u32 %v9454, 2147483648
        %v9472 = vsel %vm9470, %v9471, %v9462
        %v9473 = vsel %vm9466, %v9469, %v9472
        %v9474 = vsel %vm9463, nan, %v9473
        %v9475 = vand.u32 2147483647, %v452
        %vm9476 = vcmp.le.f32.partialorder %v9475, 0.7853982
        %vm9477 = vcmp.lt.s32.totalorder %v452, 0
        %v9478 = vand.u32 %v452, 2139095040
        %v9479 = vshrl.u32 %v9478, 23
        %v9480 = vsub.s32 %v9479, 127
        %v9481 = vand.u32 2147483647, %v452
        %v9482 = vand.u32 %v9481, 8388607
        %v9483 = vor.u32 %v9482, 8388608
        %v9484 = vsub.s32 0, %v9483
        %v9485 = vadd.s32 %v9480, 1
        %vm9486 = vcmp.gt.s32.totalorder %v9485, 0
        %v9487 = vsel %vm9486, %v9485, 0
        %v9488 = vshrl.u32 %v9487, 5
        %v9489 = vand.u32 %v9487, 31
        %v9490 = vsub.s32 32, %v9489
        %v9491 = vshrl.u32 683565275, %v9490
        %v9492 = vshll.u32 683565275, %v9489
        %v9493 = vshrl.u32 2475754826, %v9490
        %v9494 = vor.u32 %v9492, %v9493
        %v9495 = vshll.u32 2475754826, %v9489
        %v9496 = vshrl.u32 2131351028, %v9490
        %v9497 = vor.u32 %v9495, %v9496
        %v9498 = vshll.u32 2131351028, %v9489
        %v9499 = vshrl.u32 2102212464, %v9490
        %v9500 = vor.u32 %v9498, %v9499
        %v9501 = vshll.u32 2102212464, %v9489
        %v9502 = vshrl.u32 920167782, %v9490
        %v9503 = vor.u32 %v9501, %v9502
        %v9504 = vshll.u32 920167782, %v9489
        %v9505 = vshrl.u32 1326507024, %v9490
        %v9506 = vor.u32 %v9504, %v9505
        %vm9507 = vcmp.lt.s32.totalorder %v9488, 1
        %vm9508 = vcmp.lt.s32.totalorder %v9488, 2
        %vm9509 = vcmp.lt.s32.totalorder %v9488, 3
        %vm9510 = vcmp.lt.s32.totalorder %v9488, 4
        %v9511 = vsel %vm9507, %v9491, %v9494
        %v9512 = vsel %vm9510, %v9500, 2102212464
        %v9513 = vsel %vm9509, %v9497, %v9512
        %v9514 = vsel %vm9508, %v9511, %v9513
        %v9515 = vsel %vm9507, %v9494, %v9497
        %v9516 = vsel %vm9510, %v9503, 920167782
        %v9517 = vsel %vm9509, %v9500, %v9516
        %v9518 = vsel %vm9508, %v9515, %v9517
        %v9519 = vsel %vm9507, %v9497, %v9500
        %v9520 = vsel %vm9510, %v9506, 1326507024
        %v9521 = vsel %vm9509, %v9503, %v9520
        %v9522 = vsel %vm9508, %v9519, %v9521
        %v9523 = vshll.u32 %v9483, 8
        %v9524 = vand.u32 %v9523, 65535
        %v9525 = vshrl.u32 %v9523, 16
        %v9526 = vand.u32 %v9522, 65535
        %v9527 = vshrl.u32 %v9522, 16
        %v9528 = vmul.u32 %v9524, %v9526
        %v9529 = vmul.u32 %v9524, %v9527
        %v9530 = vmul.u32 %v9525, %v9526
        %v9531 = vmul.u32 %v9525, %v9527
        %v9532 = vshll.u32 %v9529, 16
        %v9533 = vshrl.u32 %v9529, 16
        %v9534 = vshll.u32 %v9530, 16
        %v9535 = vshrl.u32 %v9530, 16
        %vm9536 = vc.u32 %v9528, %v9532
        %v9537 = vsel %vm9536, 1, 0
        %v9538 = vadd.s32 %v9528, %v9532
        %v9539 = vadd.s32 %v9531, %v9537
        %vm9540 = vc.u32 %v9538, %v9534
        %v9541 = vsel %vm9540, 1, 0
        %v9542 = vadd.s32 %v9538, %v9534
        %v9543 = vadd.s32 %v9539, %v9541
        %v9544 = vadd.s32 %v9543, %v9533
        %v9545 = vadd.s32 %v9544, %v9535
        %v9546 = vand.u32 %v9523, 65535
        %v9547 = vshrl.u32 %v9523, 16
        %v9548 = vand.u32 %v9518, 65535
        %v9549 = vshrl.u32 %v9518, 16
        %v9550 = vmul.u32 %v9546, %v9548
        %v9551 = vmul.u32 %v9546, %v9549
        %v9552 = vmul.u32 %v9547, %v9548
        %v9553 = vmul.u32 %v9547, %v9549
        %v9554 = vshll.u32 %v9551, 16
        %v9555 = vshrl.u32 %v9551, 16
        %v9556 = vshll.u32 %v9552, 16
        %v9557 = vshrl.u32 %v9552, 16
        %vm9558 = vc.u32 %v9550, %v9554
        %v9559 = vsel %vm9558, 1, 0
        %v9560 = vadd.s32 %v9550, %v9554
        %v9561 = vadd.s32 %v9553, %v9559
        %vm9562 = vc.u32 %v9560, %v9556
        %v9563 = vsel %vm9562, 1, 0
        %v9564 = vadd.s32 %v9560, %v9556
        %v9565 = vadd.s32 %v9561, %v9563
        %v9566 = vadd.s32 %v9565, %v9555
        %v9567 = vadd.s32 %v9566, %v9557
        %v9568 = vmul.u32 %v9523, %v9514
        %v9569 = vadd.s32 %v9545, %v9564
        %vm9570 = vc.u32 %v9545, %v9564
        %v9571 = vadd.s32 %v9567, 1
        %v9572 = vsel %vm9570, %v9571, %v9567
        %v9573 = vadd.s32 %v9568, %v9572
        %v9574 = vadd.s32 %v9573, 536870912
        %v9575 = vshrl.u32 %v9574, 30
        %v9576 = vshll.u32 %v9575, 30
        %v9577 = vsub.s32 %v9573, %v9576
        %vm9578 = vcmp.lt.s32.totalorder %v9577, 0
        %v9579 = vsub.s32 0, %v9577
        %v9580 = vsel %vm9578, %v9579, %v9577
        %v9581 = vclz %v9580
        %v9582 = vsub.s32 %v9581, 2
        %vm9583 = vcmp.gt.s32.totalorder 0, %v9582
        %v9584 = vsel %vm9583, 0, %v9582
        %v9585 = vsub.s32 32, %v9584
        %v9586 = vshll.u32 %v9577, %v9584
        %v9587 = vshrl.u32 %v9569, %v9585
        %v9588 = vor.u32 %v9586, %v9587
        %v9589 = vsub.s32 4294967266, %v9584
        %v9590 = vadd.s32 %v9589, 127
        %v9591 = vshll.u32 %v9590, 23
        %v9592 = vor.u32 4788187, %v9591
        %v9593 = vand.u32 2147483647, %v9592
        %v9595 = vcvt.s32.f32 %v9588
        %v9596 = vmul.f32 %v9595, %v9593
        %v9597 = vxor.u32 %v9596, 2147483648
        %v9598 = vsel %vm9477, %v9597, %v9596
        %v9599 = vsub.s32 4, %v9575
        %v9600 = vsel %vm9477, %v9599, %v9575
        %v9601 = vsel %vm9476, %v452, %v9598
        %v9602 = vsel %vm9476, 0, %v9600
        %v9603 = vmul.f32 %v9601, %v9601
        %v9604 = vmul.f32 %v9603, -0.001358992
        %v9605 = vadd.f32 %v9604, 0.041655596
        %v9606 = vmul.f32 %v9603, %v9605
        %v9607 = vadd.f32 %v9606, -0.4999988
        %v9608 = vmul.f32 %v9603, %v9607
        %v9609 = vadd.f32 1.0, %v9608
        %v9610 = vmul.f32 %v9601, %v9601
        %v9611 = vmul.f32 %v9610, -0.00019511016
        %v9612 = vadd.f32 %v9611, 0.008332121
        %v9613 = vmul.f32 %v9610, %v9612
        %v9614 = vadd.f32 %v9613, -0.16666654
        %v9615 = vmul.f32 %v9610, %v9614
        %v9616 = vadd.f32 %v9615, 1.0
        %v9617 = vmul.f32 %v9616, %v9601
        %vm9618 = vweird.f32 %v452
        %v9619 = vadd.s32 %v9602, 3
        %v9620 = vand.u32 %v9619, 3
        %vm9621 = vcmp.lt.s32.totalorder %v9620, 2
        %vm9622 = vcmp.eq.s32.totalorder %v9620, 0
        %v9623 = vxor.u32 %v9617, 2147483648
        %v9624 = vsel %vm9622, %v9609, %v9623
        %vm9625 = vcmp.eq.s32.totalorder %v9620, 2
        %v9626 = vxor.u32 %v9609, 2147483648
        %v9627 = vsel %vm9625, %v9626, %v9617
        %v9628 = vsel %vm9621, %v9624, %v9627
        %v9629 = vsel %vm9618, nan, %v9628
        %v9630 = vand.u32 2147483647, %v455
        %vm9631 = vcmp.le.f32.partialorder %v9630, 0.7853982
        %vm9632 = vcmp.lt.s32.totalorder %v455, 0
        %v9633 = vand.u32 %v455, 2139095040
        %v9634 = vshrl.u32 %v9633, 23
        %v9635 = vsub.s32 %v9634, 127
        %v9636 = vand.u32 2147483647, %v455
        %v9637 = vand.u32 %v9636, 8388607
        %v9638 = vor.u32 %v9637, 8388608
        %v9639 = vsub.s32 0, %v9638
        %v9640 = vadd.s32 %v9635, 1
        %vm9641 = vcmp.gt.s32.totalorder %v9640, 0
        %v9642 = vsel %vm9641, %v9640, 0
        %v9643 = vshrl.u32 %v9642, 5
        %v9644 = vand.u32 %v9642, 31
        %v9645 = vsub.s32 32, %v9644
        %v9646 = vshrl.u32 683565275, %v9645
        %v9647 = vshll.u32 683565275, %v9644
        %v9648 = vshrl.u32 2475754826, %v9645
        %v9649 = vor.u32 %v9647, %v9648
        %v9650 = vshll.u32 2475754826, %v9644
        %v9651 = vshrl.u32 2131351028, %v9645
        %v9652 = vor.u32 %v9650, %v9651
        %v9653 = vshll.u32 2131351028, %v9644
        %v9654 = vshrl.u32 2102212464, %v9645
        %v9655 = vor.u32 %v9653, %v9654
        %v9656 = vshll.u32 2102212464, %v9644
        %v9657 = vshrl.u32 920167782, %v9645
        %v9658 = vor.u32 %v9656, %v9657
        %v9659 = vshll.u32 920167782, %v9644
        %v9660 = vshrl.u32 1326507024, %v9645
        %v9661 = vor.u32 %v9659, %v9660
        %vm9662 = vcmp.lt.s32.totalorder %v9643, 1
        %vm9663 = vcmp.lt.s32.totalorder %v9643, 2
        %vm9664 = vcmp.lt.s32.totalorder %v9643, 3
        %vm9665 = vcmp.lt.s32.totalorder %v9643, 4
        %v9666 = vsel %vm9662, %v9646, %v9649
        %v9667 = vsel %vm9665, %v9655, 2102212464
        %v9668 = vsel %vm9664, %v9652, %v9667
        %v9669 = vsel %vm9663, %v9666, %v9668
        %v9670 = vsel %vm9662, %v9649, %v9652
        %v9671 = vsel %vm9665, %v9658, 920167782
        %v9672 = vsel %vm9664, %v9655, %v9671
        %v9673 = vsel %vm9663, %v9670, %v9672
        %v9674 = vsel %vm9662, %v9652, %v9655
        %v9675 = vsel %vm9665, %v9661, 1326507024
        %v9676 = vsel %vm9664, %v9658, %v9675
        %v9677 = vsel %vm9663, %v9674, %v9676
        %v9678 = vshll.u32 %v9638, 8
        %v9679 = vand.u32 %v9678, 65535
        %v9680 = vshrl.u32 %v9678, 16
        %v9681 = vand.u32 %v9677, 65535
        %v9682 = vshrl.u32 %v9677, 16
        %v9683 = vmul.u32 %v9679, %v9681
        %v9684 = vmul.u32 %v9679, %v9682
        %v9685 = vmul.u32 %v9680, %v9681
        %v9686 = vmul.u32 %v9680, %v9682
        %v9687 = vshll.u32 %v9684, 16
        %v9688 = vshrl.u32 %v9684, 16
        %v9689 = vshll.u32 %v9685, 16
        %v9690 = vshrl.u32 %v9685, 16
        %vm9691 = vc.u32 %v9683, %v9687
        %v9692 = vsel %vm9691, 1, 0
        %v9693 = vadd.s32 %v9683, %v9687
        %v9694 = vadd.s32 %v9686, %v9692
        %vm9695 = vc.u32 %v9693, %v9689
        %v9696 = vsel %vm9695, 1, 0
        %v9697 = vadd.s32 %v9693, %v9689
        %v9698 = vadd.s32 %v9694, %v9696
        %v9699 = vadd.s32 %v9698, %v9688
        %v9700 = vadd.s32 %v9699, %v9690
        %v9701 = vand.u32 %v9678, 65535
        %v9702 = vshrl.u32 %v9678, 16
        %v9703 = vand.u32 %v9673, 65535
        %v9704 = vshrl.u32 %v9673, 16
        %v9705 = vmul.u32 %v9701, %v9703
        %v9706 = vmul.u32 %v9701, %v9704
        %v9707 = vmul.u32 %v9702, %v9703
        %v9708 = vmul.u32 %v9702, %v9704
        %v9709 = vshll.u32 %v9706, 16
        %v9710 = vshrl.u32 %v9706, 16
        %v9711 = vshll.u32 %v9707, 16
        %v9712 = vshrl.u32 %v9707, 16
        %vm9713 = vc.u32 %v9705, %v9709
        %v9714 = vsel %vm9713, 1, 0
        %v9715 = vadd.s32 %v9705, %v9709
        %v9716 = vadd.s32 %v9708, %v9714
        %vm9717 = vc.u32 %v9715, %v9711
        %v9718 = vsel %vm9717, 1, 0
        %v9719 = vadd.s32 %v9715, %v9711
        %v9720 = vadd.s32 %v9716, %v9718
        %v9721 = vadd.s32 %v9720, %v9710
        %v9722 = vadd.s32 %v9721, %v9712
        %v9723 = vmul.u32 %v9678, %v9669
        %v9724 = vadd.s32 %v9700, %v9719
        %vm9725 = vc.u32 %v9700, %v9719
        %v9726 = vadd.s32 %v9722, 1
        %v9727 = vsel %vm9725, %v9726, %v9722
        %v9728 = vadd.s32 %v9723, %v9727
        %v9729 = vadd.s32 %v9728, 536870912
        %v9730 = vshrl.u32 %v9729, 30
        %v9731 = vshll.u32 %v9730, 30
        %v9732 = vsub.s32 %v9728, %v9731
        %vm9733 = vcmp.lt.s32.totalorder %v9732, 0
        %v9734 = vsub.s32 0, %v9732
        %v9735 = vsel %vm9733, %v9734, %v9732
        %v9736 = vclz %v9735
        %v9737 = vsub.s32 %v9736, 2
        %vm9738 = vcmp.gt.s32.totalorder 0, %v9737
        %v9739 = vsel %vm9738, 0, %v9737
        %v9740 = vsub.s32 32, %v9739
        %v9741 = vshll.u32 %v9732, %v9739
        %v9742 = vshrl.u32 %v9724, %v9740
        %v9743 = vor.u32 %v9741, %v9742
        %v9744 = vsub.s32 4294967266, %v9739
        %v9745 = vadd.s32 %v9744, 127
        %v9746 = vshll.u32 %v9745, 23
        %v9747 = vor.u32 4788187, %v9746
        %v9748 = vand.u32 2147483647, %v9747
        %v9750 = vcvt.s32.f32 %v9743
        %v9751 = vmul.f32 %v9750, %v9748
        %v9752 = vxor.u32 %v9751, 2147483648
        %v9753 = vsel %vm9632, %v9752, %v9751
        %v9754 = vsub.s32 4, %v9730
        %v9755 = vsel %vm9632, %v9754, %v9730
        %v9756 = vsel %vm9631, %v455, %v9753
        %v9757 = vsel %vm9631, 0, %v9755
        %v9758 = vmul.f32 %v9756, %v9756
        %v9759 = vmul.f32 %v9758, -0.001358992
        %v9760 = vadd.f32 %v9759, 0.041655596
        %v9761 = vmul.f32 %v9758, %v9760
        %v9762 = vadd.f32 %v9761, -0.4999988
        %v9763 = vmul.f32 %v9758, %v9762
        %v9764 = vadd.f32 1.0, %v9763
        %v9765 = vmul.f32 %v9756, %v9756
        %v9766 = vmul.f32 %v9765, -0.00019511016
        %v9767 = vadd.f32 %v9766, 0.008332121
        %v9768 = vmul.f32 %v9765, %v9767
        %v9769 = vadd.f32 %v9768, -0.16666654
        %v9770 = vmul.f32 %v9765, %v9769
        %v9771 = vadd.f32 %v9770, 1.0
        %v9772 = vmul.f32 %v9771, %v9756
        %vm9773 = vweird.f32 %v455
        %v9774 = vadd.s32 %v9757, 3
        %v9775 = vand.u32 %v9774, 3
        %vm9776 = vcmp.lt.s32.totalorder %v9775, 2
        %vm9777 = vcmp.eq.s32.totalorder %v9775, 0
        %v9778 = vxor.u32 %v9772, 2147483648
        %v9779 = vsel %vm9777, %v9764, %v9778
        %vm9780 = vcmp.eq.s32.totalorder %v9775, 2
        %v9781 = vxor.u32 %v9764, 2147483648
        %v9782 = vsel %vm9780, %v9781, %v9772
        %v9783 = vsel %vm9776, %v9779, %v9782
        %v9784 = vsel %vm9773, nan, %v9783
        %v9785 = vand.u32 2147483647, %v458
        %vm9786 = vcmp.le.f32.partialorder %v9785, 0.7853982
        %vm9787 = vcmp.lt.s32.totalorder %v458, 0
        %v9788 = vand.u32 %v458, 2139095040
        %v9789 = vshrl.u32 %v9788, 23
        %v9790 = vsub.s32 %v9789, 127
        %v9791 = vand.u32 2147483647, %v458
        %v9792 = vand.u32 %v9791, 8388607
        %v9793 = vor.u32 %v9792, 8388608
        %v9794 = vsub.s32 0, %v9793
        %v9795 = vadd.s32 %v9790, 1
        %vm9796 = vcmp.gt.s32.totalorder %v9795, 0
        %v9797 = vsel %vm9796, %v9795, 0
        %v9798 = vshrl.u32 %v9797, 5
        %v9799 = vand.u32 %v9797, 31
        %v9800 = vsub.s32 32, %v9799
        %v9801 = vshrl.u32 683565275, %v9800
        %v9802 = vshll.u32 683565275, %v9799
        %v9803 = vshrl.u32 2475754826, %v9800
        %v9804 = vor.u32 %v9802, %v9803
        %v9805 = vshll.u32 2475754826, %v9799
        %v9806 = vshrl.u32 2131351028, %v9800
        %v9807 = vor.u32 %v9805, %v9806
        %v9808 = vshll.u32 2131351028, %v9799
        %v9809 = vshrl.u32 2102212464, %v9800
        %v9810 = vor.u32 %v9808, %v9809
        %v9811 = vshll.u32 2102212464, %v9799
        %v9812 = vshrl.u32 920167782, %v9800
        %v9813 = vor.u32 %v9811, %v9812
        %v9814 = vshll.u32 920167782, %v9799
        %v9815 = vshrl.u32 1326507024, %v9800
        %v9816 = vor.u32 %v9814, %v9815
        %vm9817 = vcmp.lt.s32.totalorder %v9798, 1
        %vm9818 = vcmp.lt.s32.totalorder %v9798, 2
        %vm9819 = vcmp.lt.s32.totalorder %v9798, 3
        %vm9820 = vcmp.lt.s32.totalorder %v9798, 4
        %v9821 = vsel %vm9817, %v9801, %v9804
        %v9822 = vsel %vm9820, %v9810, 2102212464
        %v9823 = vsel %vm9819, %v9807, %v9822
        %v9824 = vsel %vm9818, %v9821, %v9823
        %v9825 = vsel %vm9817, %v9804, %v9807
        %v9826 = vsel %vm9820, %v9813, 920167782
        %v9827 = vsel %vm9819, %v9810, %v9826
        %v9828 = vsel %vm9818, %v9825, %v9827
        %v9829 = vsel %vm9817, %v9807, %v9810
        %v9830 = vsel %vm9820, %v9816, 1326507024
        %v9831 = vsel %vm9819, %v9813, %v9830
        %v9832 = vsel %vm9818, %v9829, %v9831
        %v9833 = vshll.u32 %v9793, 8
        %v9834 = vand.u32 %v9833, 65535
        %v9835 = vshrl.u32 %v9833, 16
        %v9836 = vand.u32 %v9832, 65535
        %v9837 = vshrl.u32 %v9832, 16
        %v9838 = vmul.u32 %v9834, %v9836
        %v9839 = vmul.u32 %v9834, %v9837
        %v9840 = vmul.u32 %v9835, %v9836
        %v9841 = vmul.u32 %v9835, %v9837
        %v9842 = vshll.u32 %v9839, 16
        %v9843 = vshrl.u32 %v9839, 16
        %v9844 = vshll.u32 %v9840, 16
        %v9845 = vshrl.u32 %v9840, 16
        %vm9846 = vc.u32 %v9838, %v9842
        %v9847 = vsel %vm9846, 1, 0
        %v9848 = vadd.s32 %v9838, %v9842
        %v9849 = vadd.s32 %v9841, %v9847
        %vm9850 = vc.u32 %v9848, %v9844
        %v9851 = vsel %vm9850, 1, 0
        %v9852 = vadd.s32 %v9848, %v9844
        %v9853 = vadd.s32 %v9849, %v9851
        %v9854 = vadd.s32 %v9853, %v9843
        %v9855 = vadd.s32 %v9854, %v9845
        %v9856 = vand.u32 %v9833, 65535
        %v9857 = vshrl.u32 %v9833, 16
        %v9858 = vand.u32 %v9828, 65535
        %v9859 = vshrl.u32 %v9828, 16
        %v9860 = vmul.u32 %v9856, %v9858
        %v9861 = vmul.u32 %v9856, %v9859
        %v9862 = vmul.u32 %v9857, %v9858
        %v9863 = vmul.u32 %v9857, %v9859
        %v9864 = vshll.u32 %v9861, 16
        %v9865 = vshrl.u32 %v9861, 16
        %v9866 = vshll.u32 %v9862, 16
        %v9867 = vshrl.u32 %v9862, 16
        %vm9868 = vc.u32 %v9860, %v9864
        %v9869 = vsel %vm9868, 1, 0
        %v9870 = vadd.s32 %v9860, %v9864
        %v9871 = vadd.s32 %v9863, %v9869
        %vm9872 = vc.u32 %v9870, %v9866
        %v9873 = vsel %vm9872, 1, 0
        %v9874 = vadd.s32 %v9870, %v9866
        %v9875 = vadd.s32 %v9871, %v9873
        %v9876 = vadd.s32 %v9875, %v9865
        %v9877 = vadd.s32 %v9876, %v9867
        %v9878 = vmul.u32 %v9833, %v9824
        %v9879 = vadd.s32 %v9855, %v9874
        %vm9880 = vc.u32 %v9855, %v9874
        %v9881 = vadd.s32 %v9877, 1
        %v9882 = vsel %vm9880, %v9881, %v9877
        %v9883 = vadd.s32 %v9878, %v9882
        %v9884 = vadd.s32 %v9883, 536870912
        %v9885 = vshrl.u32 %v9884, 30
        %v9886 = vshll.u32 %v9885, 30
        %v9887 = vsub.s32 %v9883, %v9886
        %vm9888 = vcmp.lt.s32.totalorder %v9887, 0
        %v9889 = vsub.s32 0, %v9887
        %v9890 = vsel %vm9888, %v9889, %v9887
        %v9891 = vclz %v9890
        %v9892 = vsub.s32 %v9891, 2
        %vm9893 = vcmp.gt.s32.totalorder 0, %v9892
        %v9894 = vsel %vm9893, 0, %v9892
        %v9895 = vsub.s32 32, %v9894
        %v9896 = vshll.u32 %v9887, %v9894
        %v9897 = vshrl.u32 %v9879, %v9895
        %v9898 = vor.u32 %v9896, %v9897
        %v9899 = vsub.s32 4294967266, %v9894
        %v9900 = vadd.s32 %v9899, 127
        %v9901 = vshll.u32 %v9900, 23
        %v9902 = vor.u32 4788187, %v9901
        %v9903 = vand.u32 2147483647, %v9902
        %v9905 = vcvt.s32.f32 %v9898
        %v9906 = vmul.f32 %v9905, %v9903
        %v9907 = vxor.u32 %v9906, 2147483648
        %v9908 = vsel %vm9787, %v9907, %v9906
        %v9909 = vsub.s32 4, %v9885
        %v9910 = vsel %vm9787, %v9909, %v9885
        %v9911 = vsel %vm9786, %v458, %v9908
        %v9912 = vsel %vm9786, 0, %v9910
        %v9913 = vmul.f32 %v9911, %v9911
        %v9914 = vmul.f32 %v9913, -0.001358992
        %v9915 = vadd.f32 %v9914, 0.041655596
        %v9916 = vmul.f32 %v9913, %v9915
        %v9917 = vadd.f32 %v9916, -0.4999988
        %v9918 = vmul.f32 %v9913, %v9917
        %v9919 = vadd.f32 1.0, %v9918
        %v9920 = vmul.f32 %v9911, %v9911
        %v9921 = vmul.f32 %v9920, -0.00019511016
        %v9922 = vadd.f32 %v9921, 0.008332121
        %v9923 = vmul.f32 %v9920, %v9922
        %v9924 = vadd.f32 %v9923, -0.16666654
        %v9925 = vmul.f32 %v9920, %v9924
        %v9926 = vadd.f32 %v9925, 1.0
        %v9927 = vmul.f32 %v9926, %v9911
        %vm9928 = vweird.f32 %v458
        %v9929 = vadd.s32 %v9912, 3
        %v9930 = vand.u32 %v9929, 3
        %vm9931 = vcmp.lt.s32.totalorder %v9930, 2
        %vm9932 = vcmp.eq.s32.totalorder %v9930, 0
        %v9933 = vxor.u32 %v9927, 2147483648
        %v9934 = vsel %vm9932, %v9919, %v9933
        %vm9935 = vcmp.eq.s32.totalorder %v9930, 2
        %v9936 = vxor.u32 %v9919, 2147483648
        %v9937 = vsel %vm9935, %v9936, %v9927
        %v9938 = vsel %vm9931, %v9934, %v9937
        %v9939 = vsel %vm9928, nan, %v9938
        %v9940 = vand.u32 2147483647, %v461
        %vm9941 = vcmp.le.f32.partialorder %v9940, 0.7853982
        %vm9942 = vcmp.lt.s32.totalorder %v461, 0
        %v9943 = vand.u32 %v461, 2139095040
        %v9944 = vshrl.u32 %v9943, 23
        %v9945 = vsub.s32 %v9944, 127
        %v9946 = vand.u32 2147483647, %v461
        %v9947 = vand.u32 %v9946, 8388607
        %v9948 = vor.u32 %v9947, 8388608
        %v9949 = vsub.s32 0, %v9948
        %v9950 = vadd.s32 %v9945, 1
        %vm9951 = vcmp.gt.s32.totalorder %v9950, 0
        %v9952 = vsel %vm9951, %v9950, 0
        %v9953 = vshrl.u32 %v9952, 5
        %v9954 = vand.u32 %v9952, 31
        %v9955 = vsub.s32 32, %v9954
        %v9956 = vshrl.u32 683565275, %v9955
        %v9957 = vshll.u32 683565275, %v9954
        %v9958 = vshrl.u32 2475754826, %v9955
        %v9959 = vor.u32 %v9957, %v9958
        %v9960 = vshll.u32 2475754826, %v9954
        %v9961 = vshrl.u32 2131351028, %v9955
        %v9962 = vor.u32 %v9960, %v9961
        %v9963 = vshll.u32 2131351028, %v9954
        %v9964 = vshrl.u32 2102212464, %v9955
        %v9965 = vor.u32 %v9963, %v9964
        %v9966 = vshll.u32 2102212464, %v9954
        %v9967 = vshrl.u32 920167782, %v9955
        %v9968 = vor.u32 %v9966, %v9967
        %v9969 = vshll.u32 920167782, %v9954
        %v9970 = vshrl.u32 1326507024, %v9955
        %v9971 = vor.u32 %v9969, %v9970
        %vm9972 = vcmp.lt.s32.totalorder %v9953, 1
        %vm9973 = vcmp.lt.s32.totalorder %v9953, 2
        %vm9974 = vcmp.lt.s32.totalorder %v9953, 3
        %vm9975 = vcmp.lt.s32.totalorder %v9953, 4
        %v9976 = vsel %vm9972, %v9956, %v9959
        %v9977 = vsel %vm9975, %v9965, 2102212464
        %v9978 = vsel %vm9974, %v9962, %v9977
        %v9979 = vsel %vm9973, %v9976, %v9978
        %v9980 = vsel %vm9972, %v9959, %v9962
        %v9981 = vsel %vm9975, %v9968, 920167782
        %v9982 = vsel %vm9974, %v9965, %v9981
        %v9983 = vsel %vm9973, %v9980, %v9982
        %v9984 = vsel %vm9972, %v9962, %v9965
        %v9985 = vsel %vm9975, %v9971, 1326507024
        %v9986 = vsel %vm9974, %v9968, %v9985
        %v9987 = vsel %vm9973, %v9984, %v9986
        %v9988 = vshll.u32 %v9948, 8
        %v9989 = vand.u32 %v9988, 65535
        %v9990 = vshrl.u32 %v9988, 16
        %v9991 = vand.u32 %v9987, 65535
        %v9992 = vshrl.u32 %v9987, 16
        %v9993 = vmul.u32 %v9989, %v9991
        %v9994 = vmul.u32 %v9989, %v9992
        %v9995 = vmul.u32 %v9990, %v9991
        %v9996 = vmul.u32 %v9990, %v9992
        %v9997 = vshll.u32 %v9994, 16
        %v9998 = vshrl.u32 %v9994, 16
        %v9999 = vshll.u32 %v9995, 16
        %v10000 = vshrl.u32 %v9995, 16
        %vm10001 = vc.u32 %v9993, %v9997
        %v10002 = vsel %vm10001, 1, 0
        %v10003 = vadd.s32 %v9993, %v9997
        %v10004 = vadd.s32 %v9996, %v10002
        %vm10005 = vc.u32 %v10003, %v9999
        %v10006 = vsel %vm10005, 1, 0
        %v10007 = vadd.s32 %v10003, %v9999
        %v10008 = vadd.s32 %v10004, %v10006
        %v10009 = vadd.s32 %v10008, %v9998
        %v10010 = vadd.s32 %v10009, %v10000
        %v10011 = vand.u32 %v9988, 65535
        %v10012 = vshrl.u32 %v9988, 16
        %v10013 = vand.u32 %v9983, 65535
        %v10014 = vshrl.u32 %v9983, 16
        %v10015 = vmul.u32 %v10011, %v10013
        %v10016 = vmul.u32 %v10011, %v10014
        %v10017 = vmul.u32 %v10012, %v10013
        %v10018 = vmul.u32 %v10012, %v10014
        %v10019 = vshll.u32 %v10016, 16
        %v10020 = vshrl.u32 %v10016, 16
        %v10021 = vshll.u32 %v10017, 16
        %v10022 = vshrl.u32 %v10017, 16
        %vm10023 = vc.u32 %v10015, %v10019
        %v10024 = vsel %vm10023, 1, 0
        %v10025 = vadd.s32 %v10015, %v10019
        %v10026 = vadd.s32 %v10018, %v10024
        %vm10027 = vc.u32 %v10025, %v10021
        %v10028 = vsel %vm10027, 1, 0
        %v10029 = vadd.s32 %v10025, %v10021
        %v10030 = vadd.s32 %v10026, %v10028
        %v10031 = vadd.s32 %v10030, %v10020
        %v10032 = vadd.s32 %v10031, %v10022
        %v10033 = vmul.u32 %v9988, %v9979
        %v10034 = vadd.s32 %v10010, %v10029
        %vm10035 = vc.u32 %v10010, %v10029
        %v10036 = vadd.s32 %v10032, 1
        %v10037 = vsel %vm10035, %v10036, %v10032
        %v10038 = vadd.s32 %v10033, %v10037
        %v10039 = vadd.s32 %v10038, 536870912
        %v10040 = vshrl.u32 %v10039, 30
        %v10041 = vshll.u32 %v10040, 30
        %v10042 = vsub.s32 %v10038, %v10041
        %vm10043 = vcmp.lt.s32.totalorder %v10042, 0
        %v10044 = vsub.s32 0, %v10042
        %v10045 = vsel %vm10043, %v10044, %v10042
        %v10046 = vclz %v10045
        %v10047 = vsub.s32 %v10046, 2
        %vm10048 = vcmp.gt.s32.totalorder 0, %v10047
        %v10049 = vsel %vm10048, 0, %v10047
        %v10050 = vsub.s32 32, %v10049
        %v10051 = vshll.u32 %v10042, %v10049
        %v10052 = vshrl.u32 %v10034, %v10050
        %v10053 = vor.u32 %v10051, %v10052
        %v10054 = vsub.s32 4294967266, %v10049
        %v10055 = vadd.s32 %v10054, 127
        %v10056 = vshll.u32 %v10055, 23
        %v10057 = vor.u32 4788187, %v10056
        %v10058 = vand.u32 2147483647, %v10057
        %v10060 = vcvt.s32.f32 %v10053
        %v10061 = vmul.f32 %v10060, %v10058
        %v10062 = vxor.u32 %v10061, 2147483648
        %v10063 = vsel %vm9942, %v10062, %v10061
        %v10064 = vsub.s32 4, %v10040
        %v10065 = vsel %vm9942, %v10064, %v10040
        %v10066 = vsel %vm9941, %v461, %v10063
        %v10067 = vsel %vm9941, 0, %v10065
        %v10068 = vmul.f32 %v10066, %v10066
        %v10069 = vmul.f32 %v10068, -0.001358992
        %v10070 = vadd.f32 %v10069, 0.041655596
        %v10071 = vmul.f32 %v10068, %v10070
        %v10072 = vadd.f32 %v10071, -0.4999988
        %v10073 = vmul.f32 %v10068, %v10072
        %v10074 = vadd.f32 1.0, %v10073
        %v10075 = vmul.f32 %v10066, %v10066
        %v10076 = vmul.f32 %v10075, -0.00019511016
        %v10077 = vadd.f32 %v10076, 0.008332121
        %v10078 = vmul.f32 %v10075, %v10077
        %v10079 = vadd.f32 %v10078, -0.16666654
        %v10080 = vmul.f32 %v10075, %v10079
        %v10081 = vadd.f32 %v10080, 1.0
        %v10082 = vmul.f32 %v10081, %v10066
        %vm10083 = vweird.f32 %v461
        %v10084 = vadd.s32 %v10067, 3
        %v10085 = vand.u32 %v10084, 3
        %vm10086 = vcmp.lt.s32.totalorder %v10085, 2
        %vm10087 = vcmp.eq.s32.totalorder %v10085, 0
        %v10088 = vxor.u32 %v10082, 2147483648
        %v10089 = vsel %vm10087, %v10074, %v10088
        %vm10090 = vcmp.eq.s32.totalorder %v10085, 2
        %v10091 = vxor.u32 %v10074, 2147483648
        %v10092 = vsel %vm10090, %v10091, %v10082
        %v10093 = vsel %vm10086, %v10089, %v10092
        %v10094 = vsel %vm10083, nan, %v10093
        %v10095 = vand.u32 2147483647, %v464
        %vm10096 = vcmp.le.f32.partialorder %v10095, 0.7853982
        %vm10097 = vcmp.lt.s32.totalorder %v464, 0
        %v10098 = vand.u32 %v464, 2139095040
        %v10099 = vshrl.u32 %v10098, 23
        %v10100 = vsub.s32 %v10099, 127
        %v10101 = vand.u32 2147483647, %v464
        %v10102 = vand.u32 %v10101, 8388607
        %v10103 = vor.u32 %v10102, 8388608
        %v10104 = vsub.s32 0, %v10103
        %v10105 = vadd.s32 %v10100, 1
        %vm10106 = vcmp.gt.s32.totalorder %v10105, 0
        %v10107 = vsel %vm10106, %v10105, 0
        %v10108 = vshrl.u32 %v10107, 5
        %v10109 = vand.u32 %v10107, 31
        %v10110 = vsub.s32 32, %v10109
        %v10111 = vshrl.u32 683565275, %v10110
        %v10112 = vshll.u32 683565275, %v10109
        %v10113 = vshrl.u32 2475754826, %v10110
        %v10114 = vor.u32 %v10112, %v10113
        %v10115 = vshll.u32 2475754826, %v10109
        %v10116 = vshrl.u32 2131351028, %v10110
        %v10117 = vor.u32 %v10115, %v10116
        %v10118 = vshll.u32 2131351028, %v10109
        %v10119 = vshrl.u32 2102212464, %v10110
        %v10120 = vor.u32 %v10118, %v10119
        %v10121 = vshll.u32 2102212464, %v10109
        %v10122 = vshrl.u32 920167782, %v10110
        %v10123 = vor.u32 %v10121, %v10122
        %v10124 = vshll.u32 920167782, %v10109
        %v10125 = vshrl.u32 1326507024, %v10110
        %v10126 = vor.u32 %v10124, %v10125
        %vm10127 = vcmp.lt.s32.totalorder %v10108, 1
        %vm10128 = vcmp.lt.s32.totalorder %v10108, 2
        %vm10129 = vcmp.lt.s32.totalorder %v10108, 3
        %vm10130 = vcmp.lt.s32.totalorder %v10108, 4
        %v10131 = vsel %vm10127, %v10111, %v10114
        %v10132 = vsel %vm10130, %v10120, 2102212464
        %v10133 = vsel %vm10129, %v10117, %v10132
        %v10134 = vsel %vm10128, %v10131, %v10133
        %v10135 = vsel %vm10127, %v10114, %v10117
        %v10136 = vsel %vm10130, %v10123, 920167782
        %v10137 = vsel %vm10129, %v10120, %v10136
        %v10138 = vsel %vm10128, %v10135, %v10137
        %v10139 = vsel %vm10127, %v10117, %v10120
        %v10140 = vsel %vm10130, %v10126, 1326507024
        %v10141 = vsel %vm10129, %v10123, %v10140
        %v10142 = vsel %vm10128, %v10139, %v10141
        %v10143 = vshll.u32 %v10103, 8
        %v10144 = vand.u32 %v10143, 65535
        %v10145 = vshrl.u32 %v10143, 16
        %v10146 = vand.u32 %v10142, 65535
        %v10147 = vshrl.u32 %v10142, 16
        %v10148 = vmul.u32 %v10144, %v10146
        %v10149 = vmul.u32 %v10144, %v10147
        %v10150 = vmul.u32 %v10145, %v10146
        %v10151 = vmul.u32 %v10145, %v10147
        %v10152 = vshll.u32 %v10149, 16
        %v10153 = vshrl.u32 %v10149, 16
        %v10154 = vshll.u32 %v10150, 16
        %v10155 = vshrl.u32 %v10150, 16
        %vm10156 = vc.u32 %v10148, %v10152
        %v10157 = vsel %vm10156, 1, 0
        %v10158 = vadd.s32 %v10148, %v10152
        %v10159 = vadd.s32 %v10151, %v10157
        %vm10160 = vc.u32 %v10158, %v10154
        %v10161 = vsel %vm10160, 1, 0
        %v10162 = vadd.s32 %v10158, %v10154
        %v10163 = vadd.s32 %v10159, %v10161
        %v10164 = vadd.s32 %v10163, %v10153
        %v10165 = vadd.s32 %v10164, %v10155
        %v10166 = vand.u32 %v10143, 65535
        %v10167 = vshrl.u32 %v10143, 16
        %v10168 = vand.u32 %v10138, 65535
        %v10169 = vshrl.u32 %v10138, 16
        %v10170 = vmul.u32 %v10166, %v10168
        %v10171 = vmul.u32 %v10166, %v10169
        %v10172 = vmul.u32 %v10167, %v10168
        %v10173 = vmul.u32 %v10167, %v10169
        %v10174 = vshll.u32 %v10171, 16
        %v10175 = vshrl.u32 %v10171, 16
        %v10176 = vshll.u32 %v10172, 16
        %v10177 = vshrl.u32 %v10172, 16
        %vm10178 = vc.u32 %v10170, %v10174
        %v10179 = vsel %vm10178, 1, 0
        %v10180 = vadd.s32 %v10170, %v10174
        %v10181 = vadd.s32 %v10173, %v10179
        %vm10182 = vc.u32 %v10180, %v10176
        %v10183 = vsel %vm10182, 1, 0
        %v10184 = vadd.s32 %v10180, %v10176
        %v10185 = vadd.s32 %v10181, %v10183
        %v10186 = vadd.s32 %v10185, %v10175
        %v10187 = vadd.s32 %v10186, %v10177
        %v10188 = vmul.u32 %v10143, %v10134
        %v10189 = vadd.s32 %v10165, %v10184
        %vm10190 = vc.u32 %v10165, %v10184
        %v10191 = vadd.s32 %v10187, 1
        %v10192 = vsel %vm10190, %v10191, %v10187
        %v10193 = vadd.s32 %v10188, %v10192
        %v10194 = vadd.s32 %v10193, 536870912
        %v10195 = vshrl.u32 %v10194, 30
        %v10196 = vshll.u32 %v10195, 30
        %v10197 = vsub.s32 %v10193, %v10196
        %vm10198 = vcmp.lt.s32.totalorder %v10197, 0
        %v10199 = vsub.s32 0, %v10197
        %v10200 = vsel %vm10198, %v10199, %v10197
        %v10201 = vclz %v10200
        %v10202 = vsub.s32 %v10201, 2
        %vm10203 = vcmp.gt.s32.totalorder 0, %v10202
        %v10204 = vsel %vm10203, 0, %v10202
        %v10205 = vsub.s32 32, %v10204
        %v10206 = vshll.u32 %v10197, %v10204
        %v10207 = vshrl.u32 %v10189, %v10205
        %v10208 = vor.u32 %v10206, %v10207
        %v10209 = vsub.s32 4294967266, %v10204
        %v10210 = vadd.s32 %v10209, 127
        %v10211 = vshll.u32 %v10210, 23
        %v10212 = vor.u32 4788187, %v10211
        %v10213 = vand.u32 2147483647, %v10212
        %v10215 = vcvt.s32.f32 %v10208
        %v10216 = vmul.f32 %v10215, %v10213
        %v10217 = vxor.u32 %v10216, 2147483648
        %v10218 = vsel %vm10097, %v10217, %v10216
        %v10219 = vsub.s32 4, %v10195
        %v10220 = vsel %vm10097, %v10219, %v10195
        %v10221 = vsel %vm10096, %v464, %v10218
        %v10222 = vsel %vm10096, 0, %v10220
        %v10223 = vmul.f32 %v10221, %v10221
        %v10224 = vmul.f32 %v10223, -0.001358992
        %v10225 = vadd.f32 %v10224, 0.041655596
        %v10226 = vmul.f32 %v10223, %v10225
        %v10227 = vadd.f32 %v10226, -0.4999988
        %v10228 = vmul.f32 %v10223, %v10227
        %v10229 = vadd.f32 1.0, %v10228
        %v10230 = vmul.f32 %v10221, %v10221
        %v10231 = vmul.f32 %v10230, -0.00019511016
        %v10232 = vadd.f32 %v10231, 0.008332121
        %v10233 = vmul.f32 %v10230, %v10232
        %v10234 = vadd.f32 %v10233, -0.16666654
        %v10235 = vmul.f32 %v10230, %v10234
        %v10236 = vadd.f32 %v10235, 1.0
        %v10237 = vmul.f32 %v10236, %v10221
        %vm10238 = vweird.f32 %v464
        %v10239 = vadd.s32 %v10222, 3
        %v10240 = vand.u32 %v10239, 3
        %vm10241 = vcmp.lt.s32.totalorder %v10240, 2
        %vm10242 = vcmp.eq.s32.totalorder %v10240, 0
        %v10243 = vxor.u32 %v10237, 2147483648
        %v10244 = vsel %vm10242, %v10229, %v10243
        %vm10245 = vcmp.eq.s32.totalorder %v10240, 2
        %v10246 = vxor.u32 %v10229, 2147483648
        %v10247 = vsel %vm10245, %v10246, %v10237
        %v10248 = vsel %vm10241, %v10244, %v10247
        %v10249 = vsel %vm10238, nan, %v10248
        %v10250 = vand.u32 2147483647, %v467
        %vm10251 = vcmp.le.f32.partialorder %v10250, 0.7853982
        %vm10252 = vcmp.lt.s32.totalorder %v467, 0
        %v10253 = vand.u32 %v467, 2139095040
        %v10254 = vshrl.u32 %v10253, 23
        %v10255 = vsub.s32 %v10254, 127
        %v10256 = vand.u32 2147483647, %v467
        %v10257 = vand.u32 %v10256, 8388607
        %v10258 = vor.u32 %v10257, 8388608
        %v10259 = vsub.s32 0, %v10258
        %v10260 = vadd.s32 %v10255, 1
        %vm10261 = vcmp.gt.s32.totalorder %v10260, 0
        %v10262 = vsel %vm10261, %v10260, 0
        %v10263 = vshrl.u32 %v10262, 5
        %v10264 = vand.u32 %v10262, 31
        %v10265 = vsub.s32 32, %v10264
        %v10266 = vshrl.u32 683565275, %v10265
        %v10267 = vshll.u32 683565275, %v10264
        %v10268 = vshrl.u32 2475754826, %v10265
        %v10269 = vor.u32 %v10267, %v10268
        %v10270 = vshll.u32 2475754826, %v10264
        %v10271 = vshrl.u32 2131351028, %v10265
        %v10272 = vor.u32 %v10270, %v10271
        %v10273 = vshll.u32 2131351028, %v10264
        %v10274 = vshrl.u32 2102212464, %v10265
        %v10275 = vor.u32 %v10273, %v10274
        %v10276 = vshll.u32 2102212464, %v10264
        %v10277 = vshrl.u32 920167782, %v10265
        %v10278 = vor.u32 %v10276, %v10277
        %v10279 = vshll.u32 920167782, %v10264
        %v10280 = vshrl.u32 1326507024, %v10265
        %v10281 = vor.u32 %v10279, %v10280
        %vm10282 = vcmp.lt.s32.totalorder %v10263, 1
        %vm10283 = vcmp.lt.s32.totalorder %v10263, 2
        %vm10284 = vcmp.lt.s32.totalorder %v10263, 3
        %vm10285 = vcmp.lt.s32.totalorder %v10263, 4
        %v10286 = vsel %vm10282, %v10266, %v10269
        %v10287 = vsel %vm10285, %v10275, 2102212464
        %v10288 = vsel %vm10284, %v10272, %v10287
        %v10289 = vsel %vm10283, %v10286, %v10288
        %v10290 = vsel %vm10282, %v10269, %v10272
        %v10291 = vsel %vm10285, %v10278, 920167782
        %v10292 = vsel %vm10284, %v10275, %v10291
        %v10293 = vsel %vm10283, %v10290, %v10292
        %v10294 = vsel %vm10282, %v10272, %v10275
        %v10295 = vsel %vm10285, %v10281, 1326507024
        %v10296 = vsel %vm10284, %v10278, %v10295
        %v10297 = vsel %vm10283, %v10294, %v10296
        %v10298 = vshll.u32 %v10258, 8
        %v10299 = vand.u32 %v10298, 65535
        %v10300 = vshrl.u32 %v10298, 16
        %v10301 = vand.u32 %v10297, 65535
        %v10302 = vshrl.u32 %v10297, 16
        %v10303 = vmul.u32 %v10299, %v10301
        %v10304 = vmul.u32 %v10299, %v10302
        %v10305 = vmul.u32 %v10300, %v10301
        %v10306 = vmul.u32 %v10300, %v10302
        %v10307 = vshll.u32 %v10304, 16
        %v10308 = vshrl.u32 %v10304, 16
        %v10309 = vshll.u32 %v10305, 16
        %v10310 = vshrl.u32 %v10305, 16
        %vm10311 = vc.u32 %v10303, %v10307
        %v10312 = vsel %vm10311, 1, 0
        %v10313 = vadd.s32 %v10303, %v10307
        %v10314 = vadd.s32 %v10306, %v10312
        %vm10315 = vc.u32 %v10313, %v10309
        %v10316 = vsel %vm10315, 1, 0
        %v10317 = vadd.s32 %v10313, %v10309
        %v10318 = vadd.s32 %v10314, %v10316
        %v10319 = vadd.s32 %v10318, %v10308
        %v10320 = vadd.s32 %v10319, %v10310
        %v10321 = vand.u32 %v10298, 65535
        %v10322 = vshrl.u32 %v10298, 16
        %v10323 = vand.u32 %v10293, 65535
        %v10324 = vshrl.u32 %v10293, 16
        %v10325 = vmul.u32 %v10321, %v10323
        %v10326 = vmul.u32 %v10321, %v10324
        %v10327 = vmul.u32 %v10322, %v10323
        %v10328 = vmul.u32 %v10322, %v10324
        %v10329 = vshll.u32 %v10326, 16
        %v10330 = vshrl.u32 %v10326, 16
        %v10331 = vshll.u32 %v10327, 16
        %v10332 = vshrl.u32 %v10327, 16
        %vm10333 = vc.u32 %v10325, %v10329
        %v10334 = vsel %vm10333, 1, 0
        %v10335 = vadd.s32 %v10325, %v10329
        %v10336 = vadd.s32 %v10328, %v10334
        %vm10337 = vc.u32 %v10335, %v10331
        %v10338 = vsel %vm10337, 1, 0
        %v10339 = vadd.s32 %v10335, %v10331
        %v10340 = vadd.s32 %v10336, %v10338
        %v10341 = vadd.s32 %v10340, %v10330
        %v10342 = vadd.s32 %v10341, %v10332
        %v10343 = vmul.u32 %v10298, %v10289
        %v10344 = vadd.s32 %v10320, %v10339
        %vm10345 = vc.u32 %v10320, %v10339
        %v10346 = vadd.s32 %v10342, 1
        %v10347 = vsel %vm10345, %v10346, %v10342
        %v10348 = vadd.s32 %v10343, %v10347
        %v10349 = vadd.s32 %v10348, 536870912
        %v10350 = vshrl.u32 %v10349, 30
        %v10351 = vshll.u32 %v10350, 30
        %v10352 = vsub.s32 %v10348, %v10351
        %vm10353 = vcmp.lt.s32.totalorder %v10352, 0
        %v10354 = vsub.s32 0, %v10352
        %v10355 = vsel %vm10353, %v10354, %v10352
        %v10356 = vclz %v10355
        %v10357 = vsub.s32 %v10356, 2
        %vm10358 = vcmp.gt.s32.totalorder 0, %v10357
        %v10359 = vsel %vm10358, 0, %v10357
        %v10360 = vsub.s32 32, %v10359
        %v10361 = vshll.u32 %v10352, %v10359
        %v10362 = vshrl.u32 %v10344, %v10360
        %v10363 = vor.u32 %v10361, %v10362
        %v10364 = vsub.s32 4294967266, %v10359
        %v10365 = vadd.s32 %v10364, 127
        %v10366 = vshll.u32 %v10365, 23
        %v10367 = vor.u32 4788187, %v10366
        %v10368 = vand.u32 2147483647, %v10367
        %v10370 = vcvt.s32.f32 %v10363
        %v10371 = vmul.f32 %v10370, %v10368
        %v10372 = vxor.u32 %v10371, 2147483648
        %v10373 = vsel %vm10252, %v10372, %v10371
        %v10374 = vsub.s32 4, %v10350
        %v10375 = vsel %vm10252, %v10374, %v10350
        %v10376 = vsel %vm10251, %v467, %v10373
        %v10377 = vsel %vm10251, 0, %v10375
        %v10378 = vmul.f32 %v10376, %v10376
        %v10379 = vmul.f32 %v10378, -0.001358992
        %v10380 = vadd.f32 %v10379, 0.041655596
        %v10381 = vmul.f32 %v10378, %v10380
        %v10382 = vadd.f32 %v10381, -0.4999988
        %v10383 = vmul.f32 %v10378, %v10382
        %v10384 = vadd.f32 1.0, %v10383
        %v10385 = vmul.f32 %v10376, %v10376
        %v10386 = vmul.f32 %v10385, -0.00019511016
        %v10387 = vadd.f32 %v10386, 0.008332121
        %v10388 = vmul.f32 %v10385, %v10387
        %v10389 = vadd.f32 %v10388, -0.16666654
        %v10390 = vmul.f32 %v10385, %v10389
        %v10391 = vadd.f32 %v10390, 1.0
        %v10392 = vmul.f32 %v10391, %v10376
        %vm10393 = vweird.f32 %v467
        %v10394 = vadd.s32 %v10377, 3
        %v10395 = vand.u32 %v10394, 3
        %vm10396 = vcmp.lt.s32.totalorder %v10395, 2
        %vm10397 = vcmp.eq.s32.totalorder %v10395, 0
        %v10398 = vxor.u32 %v10392, 2147483648
        %v10399 = vsel %vm10397, %v10384, %v10398
        %vm10400 = vcmp.eq.s32.totalorder %v10395, 2
        %v10401 = vxor.u32 %v10384, 2147483648
        %v10402 = vsel %vm10400, %v10401, %v10392
        %v10403 = vsel %vm10396, %v10399, %v10402
        %v10404 = vsel %vm10393, nan, %v10403
        %10405 = vst [vmem:[#allocation6] sm:$0xff] %v8079
        %10406 = vst [vmem:[#allocation6 + $0x8] sm:$0xff] %v8234
        %10407 = vst [vmem:[#allocation6 + $0x10] sm:$0xff] %v8389
        %10408 = vst [vmem:[#allocation6 + $0x18] sm:$0xff] %v8544
        %10409 = vst [vmem:[#allocation6 + $0x20] sm:$0xff] %v8699
        %10410 = vst [vmem:[#allocation6 + $0x28] sm:$0xff] %v8854
        %10411 = vst [vmem:[#allocation6 + $0x30] sm:$0xff] %v9009
        %10412 = vst [vmem:[#allocation6 + $0x38] sm:$0xff] %v9164
        %10413 = vst [vmem:[#allocation6 + $0x40] sm:$0xff] %v9319
        %10414 = vst [vmem:[#allocation6 + $0x48] sm:$0xff] %v9474
        %10415 = vst [vmem:[#allocation6 + $0x50] sm:$0xff] %v9629
        %10416 = vst [vmem:[#allocation6 + $0x58] sm:$0xff] %v9784
        %10417 = vst [vmem:[#allocation6 + $0x60] sm:$0xff] %v9939
        %10418 = vst [vmem:[#allocation6 + $0x68] sm:$0xff] %v10094
        %10419 = vst [vmem:[#allocation6 + $0x70] sm:$0xff] %v10249
        %10420 = vst [vmem:[#allocation6 + $0x78] sm:$0xff] %v10404
        %10421 = vst [vmem:[#allocation2] sm:$0xff] 0.0
        %10422 = vst [vmem:[#allocation2 + $0x8] sm:$0xff] 0.0
        %10423 = vst [vmem:[#allocation2 + $0x10] sm:$0xff] 0.0
        %10424 = vst [vmem:[#allocation2 + $0x18] sm:$0xff] 0.0
        %10425 = vst [vmem:[#allocation2 + $0x20] sm:$0xff] 0.0
        %10426 = vst [vmem:[#allocation2 + $0x28] sm:$0xff] 0.0
        %10427 = vst [vmem:[#allocation2 + $0x30] sm:$0xff] 0.0
        %10428 = vst [vmem:[#allocation2 + $0x38] sm:$0xff] 0.0
        %10429 = vst [vmem:[#allocation2 + $0x40] sm:$0xff] 0.0
        %10430 = vst [vmem:[#allocation2 + $0x48] sm:$0xff] 0.0
        %10431 = vst [vmem:[#allocation2 + $0x50] sm:$0xff] 0.0
        %10432 = vst [vmem:[#allocation2 + $0x58] sm:$0xff] 0.0
        %10433 = vst [vmem:[#allocation2 + $0x60] sm:$0xff] 0.0
        %10434 = vst [vmem:[#allocation2 + $0x68] sm:$0xff] 0.0
        %10435 = vst [vmem:[#allocation2 + $0x70] sm:$0xff] 0.0
        %10436 = vst [vmem:[#allocation2 + $0x78] sm:$0xff] 0.0
        loop: start=0, step=1, limit=3
        $region49: #{tpu_custom_call.1} parent=43 // loop_pre_header
          _
        $region50: #{tpu_custom_call.1} parent=43 // loop_header
          %s10438 = sphi 0, %s10442
          %p10439 = scmp.ge.s32.totalorder %s10438, 3
        $region51: #{tpu_custom_call.1} parent=43 // loop_header_branch
          %10441 = sbr.rel (%p10439) target = $region55
        $region52: #{tpu_custom_call.1} parent=43 // loop_body
          %s10443 = smul.u32 %s10438, 128
          %v10444 = vld [vmem:[#allocation3] sm:$0xff]
          %v10445 = vld [vmem:[#allocation3 + $0x8] sm:$0xff]
          %v10446 = vld [vmem:[#allocation3 + $0x10] sm:$0xff]
          %v10447 = vld [vmem:[#allocation3 + $0x18] sm:$0xff]
          %v10448 = vld [vmem:[#allocation3 + $0x20] sm:$0xff]
          %v10449 = vld [vmem:[#allocation3 + $0x28] sm:$0xff]
          %v10450 = vld [vmem:[#allocation3 + $0x30] sm:$0xff]
          %v10451 = vld [vmem:[#allocation3 + $0x38] sm:$0xff]
          %v10452 = vld [vmem:[#allocation3 + $0x40] sm:$0xff]
          %v10453 = vld [vmem:[#allocation3 + $0x48] sm:$0xff]
          %v10454 = vld [vmem:[#allocation3 + $0x50] sm:$0xff]
          %v10455 = vld [vmem:[#allocation3 + $0x58] sm:$0xff]
          %v10456 = vld [vmem:[#allocation3 + $0x60] sm:$0xff]
          %v10457 = vld [vmem:[#allocation3 + $0x68] sm:$0xff]
          %v10458 = vld [vmem:[#allocation3 + $0x70] sm:$0xff]
          %v10459 = vld [vmem:[#allocation3 + $0x78] sm:$0xff]
          %v10460 = vld [vmem:[#allocation4] sm:$0xff]
          %v10461 = vld [vmem:[#allocation4 + $0x8] sm:$0xff]
          %v10462 = vld [vmem:[#allocation4 + $0x10] sm:$0xff]
          %v10463 = vld [vmem:[#allocation4 + $0x18] sm:$0xff]
          %v10464 = vld [vmem:[#allocation4 + $0x20] sm:$0xff]
          %v10465 = vld [vmem:[#allocation4 + $0x28] sm:$0xff]
          %v10466 = vld [vmem:[#allocation4 + $0x30] sm:$0xff]
          %v10467 = vld [vmem:[#allocation4 + $0x38] sm:$0xff]
          %v10468 = vld [vmem:[#allocation4 + $0x40] sm:$0xff]
          %v10469 = vld [vmem:[#allocation4 + $0x48] sm:$0xff]
          %v10470 = vld [vmem:[#allocation4 + $0x50] sm:$0xff]
          %v10471 = vld [vmem:[#allocation4 + $0x58] sm:$0xff]
          %v10472 = vld [vmem:[#allocation4 + $0x60] sm:$0xff]
          %v10473 = vld [vmem:[#allocation4 + $0x68] sm:$0xff]
          %v10474 = vld [vmem:[#allocation4 + $0x70] sm:$0xff]
          %v10475 = vld [vmem:[#allocation4 + $0x78] sm:$0xff]
          %v10476 = vld [vmem:[#allocation2] sm:$0xff]
          %v10477 = vld [vmem:[#allocation2 + $0x8] sm:$0xff]
          %v10478 = vld [vmem:[#allocation2 + $0x10] sm:$0xff]
          %v10479 = vld [vmem:[#allocation2 + $0x18] sm:$0xff]
          %v10480 = vld [vmem:[#allocation2 + $0x20] sm:$0xff]
          %v10481 = vld [vmem:[#allocation2 + $0x28] sm:$0xff]
          %v10482 = vld [vmem:[#allocation2 + $0x30] sm:$0xff]
          %v10483 = vld [vmem:[#allocation2 + $0x38] sm:$0xff]
          %v10484 = vld [vmem:[#allocation2 + $0x40] sm:$0xff]
          %v10485 = vld [vmem:[#allocation2 + $0x48] sm:$0xff]
          %v10486 = vld [vmem:[#allocation2 + $0x50] sm:$0xff]
          %v10487 = vld [vmem:[#allocation2 + $0x58] sm:$0xff]
          %v10488 = vld [vmem:[#allocation2 + $0x60] sm:$0xff]
          %v10489 = vld [vmem:[#allocation2 + $0x68] sm:$0xff]
          %v10490 = vld [vmem:[#allocation2 + $0x70] sm:$0xff]
          %v10491 = vld [vmem:[#allocation2 + $0x78] sm:$0xff]
          %s10492 = scalar_lea.vmem %s3, %s10443
          %v10493 = vld [vmem:[%s10492] sm:$0xff]
          %v10494 = vld [vmem:[%s10492 + $0x8] sm:$0xff]
          %v10495 = vld [vmem:[%s10492 + $0x10] sm:$0xff]
          %v10496 = vld [vmem:[%s10492 + $0x18] sm:$0xff]
          %v10497 = vld [vmem:[%s10492 + $0x20] sm:$0xff]
          %v10498 = vld [vmem:[%s10492 + $0x28] sm:$0xff]
          %v10499 = vld [vmem:[%s10492 + $0x30] sm:$0xff]
          %v10500 = vld [vmem:[%s10492 + $0x38] sm:$0xff]
          %v10501 = vld [vmem:[%s10492 + $0x40] sm:$0xff]
          %v10502 = vld [vmem:[%s10492 + $0x48] sm:$0xff]
          %v10503 = vld [vmem:[%s10492 + $0x50] sm:$0xff]
          %v10504 = vld [vmem:[%s10492 + $0x58] sm:$0xff]
          %v10505 = vld [vmem:[%s10492 + $0x60] sm:$0xff]
          %v10506 = vld [vmem:[%s10492 + $0x68] sm:$0xff]
          %v10507 = vld [vmem:[%s10492 + $0x70] sm:$0xff]
          %v10508 = vld [vmem:[%s10492 + $0x78] sm:$0xff]
          %s10509 = scalar_lea.vmem [#allocation7], %s10443
          %v10510 = vld [vmem:[%s10509] sm:$0xff]
          %v10511 = vld [vmem:[%s10509 + $0x8] sm:$0xff]
          %v10512 = vld [vmem:[%s10509 + $0x10] sm:$0xff]
          %v10513 = vld [vmem:[%s10509 + $0x18] sm:$0xff]
          %v10514 = vld [vmem:[%s10509 + $0x20] sm:$0xff]
          %v10515 = vld [vmem:[%s10509 + $0x28] sm:$0xff]
          %v10516 = vld [vmem:[%s10509 + $0x30] sm:$0xff]
          %v10517 = vld [vmem:[%s10509 + $0x38] sm:$0xff]
          %v10518 = vld [vmem:[%s10509 + $0x40] sm:$0xff]
          %v10519 = vld [vmem:[%s10509 + $0x48] sm:$0xff]
          %v10520 = vld [vmem:[%s10509 + $0x50] sm:$0xff]
          %v10521 = vld [vmem:[%s10509 + $0x58] sm:$0xff]
          %v10522 = vld [vmem:[%s10509 + $0x60] sm:$0xff]
          %v10523 = vld [vmem:[%s10509 + $0x68] sm:$0xff]
          %v10524 = vld [vmem:[%s10509 + $0x70] sm:$0xff]
          %v10525 = vld [vmem:[%s10509 + $0x78] sm:$0xff]
          %10526 = vmatpush.msra.mxu0 %v10525
          %10527 = vmatpush.msra.mxu0 %v10524
          %10528 = vmatpush.msra.mxu0 %v10523
          %10529 = vmatpush.msra.mxu0 %v10522
          %10530 = vmatpush.msra.mxu0 %v10521
          %10531 = vmatpush.msra.mxu0 %v10520
          %10532 = vmatpush.msra.mxu0 %v10519
          %10533 = vmatpush.msra.mxu0 %v10518
          %10534 = vmatpush.msra.mxu0 %v10517
          %10535 = vmatpush.msra.mxu0 %v10516
          %10536 = vmatpush.msra.mxu0 %v10515
          %10537 = vmatpush.msra.mxu0 %v10514
          %10538 = vmatpush.msra.mxu0 %v10513
          %10539 = vmatpush.msra.mxu0 %v10512
          %10540 = vmatpush.msra.mxu0 %v10511
          %10541 = vmatpush.msra.mxu0 %v10510
          %10542 = vmatmul.f32.gmra.mxu0 %v10460
          %v10543 = vpop.f32.mrf.mxu0
          %v10544 = vadd.f32 0.0, %v10543
          %10545 = vmatmul.f32.gmra.mxu0 %v10461
          %v10546 = vpop.f32.mrf.mxu0
          %v10547 = vadd.f32 0.0, %v10546
          %10548 = vmatmul.f32.gmra.mxu0 %v10462
          %v10549 = vpop.f32.mrf.mxu0
          %v10550 = vadd.f32 0.0, %v10549
          %10551 = vmatmul.f32.gmra.mxu0 %v10463
          %v10552 = vpop.f32.mrf.mxu0
          %v10553 = vadd.f32 0.0, %v10552
          %10554 = vmatmul.f32.gmra.mxu0 %v10464
          %v10555 = vpop.f32.mrf.mxu0
          %v10556 = vadd.f32 0.0, %v10555
          %10557 = vmatmul.f32.gmra.mxu0 %v10465
          %v10558 = vpop.f32.mrf.mxu0
          %v10559 = vadd.f32 0.0, %v10558
          %10560 = vmatmul.f32.gmra.mxu0 %v10466
          %v10561 = vpop.f32.mrf.mxu0
          %v10562 = vadd.f32 0.0, %v10561
          %10563 = vmatmul.f32.gmra.mxu0 %v10467
          %v10564 = vpop.f32.mrf.mxu0
          %v10565 = vadd.f32 0.0, %v10564
          %10566 = vmatmul.f32.gmra.mxu0 %v10468
          %v10567 = vpop.f32.mrf.mxu0
          %v10568 = vadd.f32 0.0, %v10567
          %10569 = vmatmul.f32.gmra.mxu0 %v10469
          %v10570 = vpop.f32.mrf.mxu0
          %v10571 = vadd.f32 0.0, %v10570
          %10572 = vmatmul.f32.gmra.mxu0 %v10470
          %v10573 = vpop.f32.mrf.mxu0
          %v10574 = vadd.f32 0.0, %v10573
          %10575 = vmatmul.f32.gmra.mxu0 %v10471
          %v10576 = vpop.f32.mrf.mxu0
          %v10577 = vadd.f32 0.0, %v10576
          %10578 = vmatmul.f32.gmra.mxu0 %v10472
          %v10579 = vpop.f32.mrf.mxu0
          %v10580 = vadd.f32 0.0, %v10579
          %10581 = vmatmul.f32.gmra.mxu0 %v10473
          %v10582 = vpop.f32.mrf.mxu0
          %v10583 = vadd.f32 0.0, %v10582
          %10584 = vmatmul.f32.gmra.mxu0 %v10474
          %v10585 = vpop.f32.mrf.mxu0
          %v10586 = vadd.f32 0.0, %v10585
          %10587 = vmatmul.f32.gmra.mxu0 %v10475
          %v10588 = vpop.f32.mrf.mxu0
          %v10589 = vadd.f32 0.0, %v10588
          %10590 = vdwg.mxu0
          %10591 = vmatpush.msra.mxu0 %v10508
          %10592 = vmatpush.msra.mxu0 %v10507
          %10593 = vmatpush.msra.mxu0 %v10506
          %10594 = vmatpush.msra.mxu0 %v10505
          %10595 = vmatpush.msra.mxu0 %v10504
          %10596 = vmatpush.msra.mxu0 %v10503
          %10597 = vmatpush.msra.mxu0 %v10502
          %10598 = vmatpush.msra.mxu0 %v10501
          %10599 = vmatpush.msra.mxu0 %v10500
          %10600 = vmatpush.msra.mxu0 %v10499
          %10601 = vmatpush.msra.mxu0 %v10498
          %10602 = vmatpush.msra.mxu0 %v10497
          %10603 = vmatpush.msra.mxu0 %v10496
          %10604 = vmatpush.msra.mxu0 %v10495
          %10605 = vmatpush.msra.mxu0 %v10494
          %10606 = vmatpush.msra.mxu0 %v10493
          %10607 = vmatmul.f32.gmra.mxu0 %v10444
          %v10608 = vpop.f32.mrf.mxu0
          %v10609 = vadd.f32 %v10544, %v10608
          %10610 = vmatmul.f32.gmra.mxu0 %v10445
          %v10611 = vpop.f32.mrf.mxu0
          %v10612 = vadd.f32 %v10547, %v10611
          %10613 = vmatmul.f32.gmra.mxu0 %v10446
          %v10614 = vpop.f32.mrf.mxu0
          %v10615 = vadd.f32 %v10550, %v10614
          %10616 = vmatmul.f32.gmra.mxu0 %v10447
          %v10617 = vpop.f32.mrf.mxu0
          %v10618 = vadd.f32 %v10553, %v10617
          %10619 = vmatmul.f32.gmra.mxu0 %v10448
          %v10620 = vpop.f32.mrf.mxu0
          %v10621 = vadd.f32 %v10556, %v10620
          %10622 = vmatmul.f32.gmra.mxu0 %v10449
          %v10623 = vpop.f32.mrf.mxu0
          %v10624 = vadd.f32 %v10559, %v10623
          %10625 = vmatmul.f32.gmra.mxu0 %v10450
          %v10626 = vpop.f32.mrf.mxu0
          %v10627 = vadd.f32 %v10562, %v10626
          %10628 = vmatmul.f32.gmra.mxu0 %v10451
          %v10629 = vpop.f32.mrf.mxu0
          %v10630 = vadd.f32 %v10565, %v10629
          %10631 = vmatmul.f32.gmra.mxu0 %v10452
          %v10632 = vpop.f32.mrf.mxu0
          %v10633 = vadd.f32 %v10568, %v10632
          %10634 = vmatmul.f32.gmra.mxu0 %v10453
          %v10635 = vpop.f32.mrf.mxu0
          %v10636 = vadd.f32 %v10571, %v10635
          %10637 = vmatmul.f32.gmra.mxu0 %v10454
          %v10638 = vpop.f32.mrf.mxu0
          %v10639 = vadd.f32 %v10574, %v10638
          %10640 = vmatmul.f32.gmra.mxu0 %v10455
          %v10641 = vpop.f32.mrf.mxu0
          %v10642 = vadd.f32 %v10577, %v10641
          %10643 = vmatmul.f32.gmra.mxu0 %v10456
          %v10644 = vpop.f32.mrf.mxu0
          %v10645 = vadd.f32 %v10580, %v10644
          %10646 = vmatmul.f32.gmra.mxu0 %v10457
          %v10647 = vpop.f32.mrf.mxu0
          %v10648 = vadd.f32 %v10583, %v10647
          %10649 = vmatmul.f32.gmra.mxu0 %v10458
          %v10650 = vpop.f32.mrf.mxu0
          %v10651 = vadd.f32 %v10586, %v10650
          %10652 = vmatmul.f32.gmra.mxu0 %v10459
          %v10653 = vpop.f32.mrf.mxu0
          %v10654 = vadd.f32 %v10589, %v10653
          %10655 = vdwg.mxu0
          %v10656 = vadd.f32 %v10476, %v10609
          %v10657 = vadd.f32 %v10477, %v10612
          %v10658 = vadd.f32 %v10478, %v10615
          %v10659 = vadd.f32 %v10479, %v10618
          %v10660 = vadd.f32 %v10480, %v10621
          %v10661 = vadd.f32 %v10481, %v10624
          %v10662 = vadd.f32 %v10482, %v10627
          %v10663 = vadd.f32 %v10483, %v10630
          %v10664 = vadd.f32 %v10484, %v10633
          %v10665 = vadd.f32 %v10485, %v10636
          %v10666 = vadd.f32 %v10486, %v10639
          %v10667 = vadd.f32 %v10487, %v10642
          %v10668 = vadd.f32 %v10488, %v10645
          %v10669 = vadd.f32 %v10489, %v10648
          %v10670 = vadd.f32 %v10490, %v10651
          %v10671 = vadd.f32 %v10491, %v10654
          %10672 = vst [vmem:[#allocation2] sm:$0xff] %v10656
          %10673 = vst [vmem:[#allocation2 + $0x8] sm:$0xff] %v10657
          %10674 = vst [vmem:[#allocation2 + $0x10] sm:$0xff] %v10658
          %10675 = vst [vmem:[#allocation2 + $0x18] sm:$0xff] %v10659
          %10676 = vst [vmem:[#allocation2 + $0x20] sm:$0xff] %v10660
          %10677 = vst [vmem:[#allocation2 + $0x28] sm:$0xff] %v10661
          %10678 = vst [vmem:[#allocation2 + $0x30] sm:$0xff] %v10662
          %10679 = vst [vmem:[#allocation2 + $0x38] sm:$0xff] %v10663
          %10680 = vst [vmem:[#allocation2 + $0x40] sm:$0xff] %v10664
          %10681 = vst [vmem:[#allocation2 + $0x48] sm:$0xff] %v10665
          %10682 = vst [vmem:[#allocation2 + $0x50] sm:$0xff] %v10666
          %10683 = vst [vmem:[#allocation2 + $0x58] sm:$0xff] %v10667
          %10684 = vst [vmem:[#allocation2 + $0x60] sm:$0xff] %v10668
          %10685 = vst [vmem:[#allocation2 + $0x68] sm:$0xff] %v10669
          %10686 = vst [vmem:[#allocation2 + $0x70] sm:$0xff] %v10670
          %10687 = vst [vmem:[#allocation2 + $0x78] sm:$0xff] %v10671
          %s10688 = sadd.s32 %s10438, 1
          %p10689 = scmp.lt.s32.totalorder %s10688, 3
          // Predicated region
          $region56: #{tpu_custom_call.1} parent=52 // pred_check
            %p10690 = pneg %p10689
          $region57: #{tpu_custom_call.1} parent=52 // pred_check_branch
            %10692 = sbr.rel (%p10690) target = $region59
          $region58: #{tpu_custom_call.1} parent=52 // pred_region
            %v10693 = vld [vmem:[#allocation5] sm:$0xff]
            %v10694 = vld [vmem:[#allocation5 + $0x8] sm:$0xff]
            %v10695 = vld [vmem:[#allocation5 + $0x10] sm:$0xff]
            %v10696 = vld [vmem:[#allocation5 + $0x18] sm:$0xff]
            %v10697 = vld [vmem:[#allocation5 + $0x20] sm:$0xff]
            %v10698 = vld [vmem:[#allocation5 + $0x28] sm:$0xff]
            %v10699 = vld [vmem:[#allocation5 + $0x30] sm:$0xff]
            %v10700 = vld [vmem:[#allocation5 + $0x38] sm:$0xff]
            %v10701 = vld [vmem:[#allocation5 + $0x40] sm:$0xff]
            %v10702 = vld [vmem:[#allocation5 + $0x48] sm:$0xff]
            %v10703 = vld [vmem:[#allocation5 + $0x50] sm:$0xff]
            %v10704 = vld [vmem:[#allocation5 + $0x58] sm:$0xff]
            %v10705 = vld [vmem:[#allocation5 + $0x60] sm:$0xff]
            %v10706 = vld [vmem:[#allocation5 + $0x68] sm:$0xff]
            %v10707 = vld [vmem:[#allocation5 + $0x70] sm:$0xff]
            %v10708 = vld [vmem:[#allocation5 + $0x78] sm:$0xff]
            %v10709 = vld [vmem:[#allocation6] sm:$0xff]
            %v10710 = vld [vmem:[#allocation6 + $0x8] sm:$0xff]
            %v10711 = vld [vmem:[#allocation6 + $0x10] sm:$0xff]
            %v10712 = vld [vmem:[#allocation6 + $0x18] sm:$0xff]
            %v10713 = vld [vmem:[#allocation6 + $0x20] sm:$0xff]
            %v10714 = vld [vmem:[#allocation6 + $0x28] sm:$0xff]
            %v10715 = vld [vmem:[#allocation6 + $0x30] sm:$0xff]
            %v10716 = vld [vmem:[#allocation6 + $0x38] sm:$0xff]
            %v10717 = vld [vmem:[#allocation6 + $0x40] sm:$0xff]
            %v10718 = vld [vmem:[#allocation6 + $0x48] sm:$0xff]
            %v10719 = vld [vmem:[#allocation6 + $0x50] sm:$0xff]
            %v10720 = vld [vmem:[#allocation6 + $0x58] sm:$0xff]
            %v10721 = vld [vmem:[#allocation6 + $0x60] sm:$0xff]
            %v10722 = vld [vmem:[#allocation6 + $0x68] sm:$0xff]
            %v10723 = vld [vmem:[#allocation6 + $0x70] sm:$0xff]
            %v10724 = vld [vmem:[#allocation6 + $0x78] sm:$0xff]
            %v10725 = vmul.f32 %v10444, %v10693
            %v10726 = vmul.f32 %v10445, %v10694
            %v10727 = vmul.f32 %v10446, %v10695
            %v10728 = vmul.f32 %v10447, %v10696
            %v10729 = vmul.f32 %v10448, %v10697
            %v10730 = vmul.f32 %v10449, %v10698
            %v10731 = vmul.f32 %v10450, %v10699
            %v10732 = vmul.f32 %v10451, %v10700
            %v10733 = vmul.f32 %v10452, %v10701
            %v10734 = vmul.f32 %v10453, %v10702
            %v10735 = vmul.f32 %v10454, %v10703
            %v10736 = vmul.f32 %v10455, %v10704
            %v10737 = vmul.f32 %v10456, %v10705
            %v10738 = vmul.f32 %v10457, %v10706
            %v10739 = vmul.f32 %v10458, %v10707
            %v10740 = vmul.f32 %v10459, %v10708
            %v10741 = vmul.f32 %v10460, %v10709
            %v10742 = vmul.f32 %v10461, %v10710
            %v10743 = vmul.f32 %v10462, %v10711
            %v10744 = vmul.f32 %v10463, %v10712
            %v10745 = vmul.f32 %v10464, %v10713
            %v10746 = vmul.f32 %v10465, %v10714
            %v10747 = vmul.f32 %v10466, %v10715
            %v10748 = vmul.f32 %v10467, %v10716
            %v10749 = vmul.f32 %v10468, %v10717
            %v10750 = vmul.f32 %v10469, %v10718
            %v10751 = vmul.f32 %v10470, %v10719
            %v10752 = vmul.f32 %v10471, %v10720
            %v10753 = vmul.f32 %v10472, %v10721
            %v10754 = vmul.f32 %v10473, %v10722
            %v10755 = vmul.f32 %v10474, %v10723
            %v10756 = vmul.f32 %v10475, %v10724
            %v10757 = vsub.f32 %v10725, %v10741
            %v10758 = vsub.f32 %v10726, %v10742
            %v10759 = vsub.f32 %v10727, %v10743
            %v10760 = vsub.f32 %v10728, %v10744
            %v10761 = vsub.f32 %v10729, %v10745
            %v10762 = vsub.f32 %v10730, %v10746
            %v10763 = vsub.f32 %v10731, %v10747
            %v10764 = vsub.f32 %v10732, %v10748
            %v10765 = vsub.f32 %v10733, %v10749
            %v10766 = vsub.f32 %v10734, %v10750
            %v10767 = vsub.f32 %v10735, %v10751
            %v10768 = vsub.f32 %v10736, %v10752
            %v10769 = vsub.f32 %v10737, %v10753
            %v10770 = vsub.f32 %v10738, %v10754
            %v10771 = vsub.f32 %v10739, %v10755
            %v10772 = vsub.f32 %v10740, %v10756
            %10773 = vst [vmem:[#allocation3] sm:$0xff] %v10757
            %10774 = vst [vmem:[#allocation3 + $0x8] sm:$0xff] %v10758
            %10775 = vst [vmem:[#allocation3 + $0x10] sm:$0xff] %v10759
            %10776 = vst [vmem:[#allocation3 + $0x18] sm:$0xff] %v10760
            %10777 = vst [vmem:[#allocation3 + $0x20] sm:$0xff] %v10761
            %10778 = vst [vmem:[#allocation3 + $0x28] sm:$0xff] %v10762
            %10779 = vst [vmem:[#allocation3 + $0x30] sm:$0xff] %v10763
            %10780 = vst [vmem:[#allocation3 + $0x38] sm:$0xff] %v10764
            %10781 = vst [vmem:[#allocation3 + $0x40] sm:$0xff] %v10765
            %10782 = vst [vmem:[#allocation3 + $0x48] sm:$0xff] %v10766
            %10783 = vst [vmem:[#allocation3 + $0x50] sm:$0xff] %v10767
            %10784 = vst [vmem:[#allocation3 + $0x58] sm:$0xff] %v10768
            %10785 = vst [vmem:[#allocation3 + $0x60] sm:$0xff] %v10769
            %10786 = vst [vmem:[#allocation3 + $0x68] sm:$0xff] %v10770
            %10787 = vst [vmem:[#allocation3 + $0x70] sm:$0xff] %v10771
            %10788 = vst [vmem:[#allocation3 + $0x78] sm:$0xff] %v10772
            %v10789 = vmul.f32 %v10460, %v10693
            %v10790 = vmul.f32 %v10461, %v10694
            %v10791 = vmul.f32 %v10462, %v10695
            %v10792 = vmul.f32 %v10463, %v10696
            %v10793 = vmul.f32 %v10464, %v10697
            %v10794 = vmul.f32 %v10465, %v10698
            %v10795 = vmul.f32 %v10466, %v10699
            %v10796 = vmul.f32 %v10467, %v10700
            %v10797 = vmul.f32 %v10468, %v10701
            %v10798 = vmul.f32 %v10469, %v10702
            %v10799 = vmul.f32 %v10470, %v10703
            %v10800 = vmul.f32 %v10471, %v10704
            %v10801 = vmul.f32 %v10472, %v10705
            %v10802 = vmul.f32 %v10473, %v10706
            %v10803 = vmul.f32 %v10474, %v10707
            %v10804 = vmul.f32 %v10475, %v10708
            %v10805 = vmul.f32 %v10444, %v10709
            %v10806 = vmul.f32 %v10445, %v10710
            %v10807 = vmul.f32 %v10446, %v10711
            %v10808 = vmul.f32 %v10447, %v10712
            %v10809 = vmul.f32 %v10448, %v10713
            %v10810 = vmul.f32 %v10449, %v10714
            %v10811 = vmul.f32 %v10450, %v10715
            %v10812 = vmul.f32 %v10451, %v10716
            %v10813 = vmul.f32 %v10452, %v10717
            %v10814 = vmul.f32 %v10453, %v10718
            %v10815 = vmul.f32 %v10454, %v10719
            %v10816 = vmul.f32 %v10455, %v10720
            %v10817 = vmul.f32 %v10456, %v10721
            %v10818 = vmul.f32 %v10457, %v10722
            %v10819 = vmul.f32 %v10458, %v10723
            %v10820 = vmul.f32 %v10459, %v10724
            %v10821 = vadd.f32 %v10789, %v10805
            %v10822 = vadd.f32 %v10790, %v10806
            %v10823 = vadd.f32 %v10791, %v10807
            %v10824 = vadd.f32 %v10792, %v10808
            %v10825 = vadd.f32 %v10793, %v10809
            %v10826 = vadd.f32 %v10794, %v10810
            %v10827 = vadd.f32 %v10795, %v10811
            %v10828 = vadd.f32 %v10796, %v10812
            %v10829 = vadd.f32 %v10797, %v10813
            %v10830 = vadd.f32 %v10798, %v10814
            %v10831 = vadd.f32 %v10799, %v10815
            %v10832 = vadd.f32 %v10800, %v10816
            %v10833 = vadd.f32 %v10801, %v10817
            %v10834 = vadd.f32 %v10802, %v10818
            %v10835 = vadd.f32 %v10803, %v10819
            %v10836 = vadd.f32 %v10804, %v10820
            %10837 = vst [vmem:[#allocation4] sm:$0xff] %v10821
            %10838 = vst [vmem:[#allocation4 + $0x8] sm:$0xff] %v10822
            %10839 = vst [vmem:[#allocation4 + $0x10] sm:$0xff] %v10823
            %10840 = vst [vmem:[#allocation4 + $0x18] sm:$0xff] %v10824
            %10841 = vst [vmem:[#allocation4 + $0x20] sm:$0xff] %v10825
            %10842 = vst [vmem:[#allocation4 + $0x28] sm:$0xff] %v10826
            %10843 = vst [vmem:[#allocation4 + $0x30] sm:$0xff] %v10827
            %10844 = vst [vmem:[#allocation4 + $0x38] sm:$0xff] %v10828
            %10845 = vst [vmem:[#allocation4 + $0x40] sm:$0xff] %v10829
            %10846 = vst [vmem:[#allocation4 + $0x48] sm:$0xff] %v10830
            %10847 = vst [vmem:[#allocation4 + $0x50] sm:$0xff] %v10831
            %10848 = vst [vmem:[#allocation4 + $0x58] sm:$0xff] %v10832
            %10849 = vst [vmem:[#allocation4 + $0x60] sm:$0xff] %v10833
            %10850 = vst [vmem:[#allocation4 + $0x68] sm:$0xff] %v10834
            %10851 = vst [vmem:[#allocation4 + $0x70] sm:$0xff] %v10835
            %10852 = vst [vmem:[#allocation4 + $0x78] sm:$0xff] %v10836
          $region59: #{tpu_custom_call.1} parent=52 // pred_fallthru
            _
        $region53: #{tpu_custom_call.1} parent=43 // loop_footer
          %s10442 = sadd.s32 1, %s10438
        $region54: #{tpu_custom_call.1} parent=43 // loop_footer_branch
          %10437 = sbr.rel target = $region50
        $region55: #{tpu_custom_call.1} parent=43 // loop_exit
          _
        %v10853 = vld [vmem:[#allocation2] sm:$0xff]
        %v10854 = vld [vmem:[#allocation2 + $0x8] sm:$0xff]
        %v10855 = vld [vmem:[#allocation2 + $0x10] sm:$0xff]
        %v10856 = vld [vmem:[#allocation2 + $0x18] sm:$0xff]
        %v10857 = vld [vmem:[#allocation2 + $0x20] sm:$0xff]
        %v10858 = vld [vmem:[#allocation2 + $0x28] sm:$0xff]
        %v10859 = vld [vmem:[#allocation2 + $0x30] sm:$0xff]
        %v10860 = vld [vmem:[#allocation2 + $0x38] sm:$0xff]
        %v10861 = vld [vmem:[#allocation2 + $0x40] sm:$0xff]
        %v10862 = vld [vmem:[#allocation2 + $0x48] sm:$0xff]
        %v10863 = vld [vmem:[#allocation2 + $0x50] sm:$0xff]
        %v10864 = vld [vmem:[#allocation2 + $0x58] sm:$0xff]
        %v10865 = vld [vmem:[#allocation2 + $0x60] sm:$0xff]
        %v10866 = vld [vmem:[#allocation2 + $0x68] sm:$0xff]
        %v10867 = vld [vmem:[#allocation2 + $0x70] sm:$0xff]
        %v10868 = vld [vmem:[#allocation2 + $0x78] sm:$0xff]
        %v10869 = vld [vmem:[%s5] sm:$0x1]
        %v10871 = vperm.slane %v10869, 0
        %v10873 = vadd.f32 %v10853, %v10871
        %v10874 = vadd.f32 %v10854, %v10871
        %v10875 = vadd.f32 %v10855, %v10871
        %v10876 = vadd.f32 %v10856, %v10871
        %v10877 = vadd.f32 %v10857, %v10871
        %v10878 = vadd.f32 %v10858, %v10871
        %v10879 = vadd.f32 %v10859, %v10871
        %v10880 = vadd.f32 %v10860, %v10871
        %v10881 = vadd.f32 %v10861, %v10871
        %v10882 = vadd.f32 %v10862, %v10871
        %v10883 = vadd.f32 %v10863, %v10871
        %v10884 = vadd.f32 %v10864, %v10871
        %v10885 = vadd.f32 %v10865, %v10871
        %v10886 = vadd.f32 %v10866, %v10871
        %v10887 = vadd.f32 %v10867, %v10871
        %v10888 = vadd.f32 %v10868, %v10871
        %vm10889 = vcmask 130048
        %10890 = vst.msk [vmem:[%s270] sm:$0xff] %vm10889, %v10873
        %10891 = vst.msk [vmem:[%s270 + $0x8] sm:$0xff] %vm10889, %v10874
        %10892 = vst.msk [vmem:[%s270 + $0x10] sm:$0xff] %vm10889, %v10875
        %10893 = vst.msk [vmem:[%s270 + $0x18] sm:$0xff] %vm10889, %v10876
        %10894 = vst.msk [vmem:[%s270 + $0x20] sm:$0xff] %vm10889, %v10877
        %10895 = vst.msk [vmem:[%s270 + $0x28] sm:$0xff] %vm10889, %v10878
        %10896 = vst.msk [vmem:[%s270 + $0x30] sm:$0xff] %vm10889, %v10879
        %10897 = vst.msk [vmem:[%s270 + $0x38] sm:$0xff] %vm10889, %v10880
        %10898 = vst.msk [vmem:[%s270 + $0x40] sm:$0xff] %vm10889, %v10881
        %10899 = vst.msk [vmem:[%s270 + $0x48] sm:$0xff] %vm10889, %v10882
        %10900 = vst.msk [vmem:[%s270 + $0x50] sm:$0xff] %vm10889, %v10883
        %10901 = vst.msk [vmem:[%s270 + $0x58] sm:$0xff] %vm10889, %v10884
        %10902 = vst.msk [vmem:[%s270 + $0x60] sm:$0xff] %vm10889, %v10885
        %10903 = vst.msk [vmem:[%s270 + $0x68] sm:$0xff] %vm10889, %v10886
        %10904 = vst.msk [vmem:[%s270 + $0x70] sm:$0xff] %vm10889, %v10887
        %10905 = vst.msk [vmem:[%s270 + $0x78] sm:$0xff] %vm10889, %v10888
        %s10906 = smul.u32 16, %s18
        %p10907 = scmp.lt.s32.totalorder %s10906, 63
        %s10908 = scalar_select %p10907, %s10906, 63
        %s10909 = smul.addr %s10908, 8
        %s10910 = scalar_lea.vmem %s6, %s10909
        // Predicated region
        $region60: #{tpu_custom_call.1} parent=43 // pred_check
          %p10911 = pneg %p167
        $region61: #{tpu_custom_call.1} parent=43 // pred_check_branch
          %10913 = sbr.rel (%p10911) target = $region63
        $region62: #{tpu_custom_call.1} parent=43 // pred_region
          %s10914 = smul.u32 16, %s18
        $region63: #{tpu_custom_call.1} parent=43 // pred_fallthru
          _
      $region44: #{tpu_custom_call.1} parent=5 // pred_fallthru
        _
      %p10915 = scmp.le.s32.totalorder 2, %s13
      // Predicated region
      $region64: #{tpu_custom_call.1} parent=5 // pred_check
        %p10916 = pneg %p10915
      $region65: #{tpu_custom_call.1} parent=5 // pred_check_branch
        %10918 = sbr.rel (%p10916) target = $region67
      $region66: #{tpu_custom_call.1} parent=5 // pred_region
        %s10919 = ssub.s32 %s13, 2
        // Predicated region
        $region68: #{tpu_custom_call.1} parent=66 // pred_check
          %p10920 = pneg %p173
        $region69: #{tpu_custom_call.1} parent=66 // pred_check_branch
          %10922 = sbr.rel (%p10920) target = $region71
        $region70: #{tpu_custom_call.1} parent=66 // pred_region
          %s10923 = smul.u32 16, %s19
          %p10924 = scmp.lt.s32.totalorder %s10923, 63
          %s10925 = scalar_select %p10924, %s10923, 63
          %s10926 = smul.addr %s10925, 8
          %s10927 = scalar_lea.vmem %s6, %s10926
        $region71: #{tpu_custom_call.1} parent=66 // pred_fallthru
          _
      $region67: #{tpu_custom_call.1} parent=5 // pred_fallthru
        _
    $region6: #{tpu_custom_call.1} parent=1 // loop_footer
      %s17 = sadd.s32 1, %s13
    $region7: #{tpu_custom_call.1} parent=1 // loop_footer_branch
      %12 = sbr.rel target = $region3
    $region8: #{tpu_custom_call.1} parent=1 // loop_exit
      _
    %10928 = vsyncpa [#allocation8], 1
    %s10929 = scalar_lea.sflag [#allocation8], 1
    %10930 = vsyncpa %s10929, 1

</llo_original>
